<compile_context>
chip_gen: v6e
topology: v6e:2x2x1
jax: 0.10.0
libtpu: 0.0.40
codegen_flags: <defaults>
</compile_context>

<pallas_src>
import functools
import math

import jax
import jax.numpy as jnp
from jax.experimental import pallas as pl
from jax.experimental.pallas import tpu as pltpu

# ---------------------------------------------------------------------------
# hyperparameters (small, consistent with the module's forward)
FEW = 4            # K, number of support examples
MAX_NB = 16        # max neighbours per entity
EMBED_DIM = 32     # d
NUM_SYMBOLS = 20   # pad index == NUM_SYMBOLS
NUM_HEADS = 4      # hidden size 2*d = 64 divisible by 4
PROCESS_STEP = 2
NUM_QUERY = 4      # q


def _round_up(x, m):
    return ((x + m - 1) // m) * m


EMB_ROWS = _round_up(NUM_SYMBOLS + 1, 8)   # padded vocab rows for one-hot gathers

_VMEM = pl.BlockSpec(memory_space=pltpu.MemorySpace.VMEM)


def _sigmoid(x):
    return 1.0 / (1.0 + jnp.exp(-x))


# ---------------------------------------------------------------------------
# Single fused kernel: whole Matcher forward pass.
def _matcher_kernel(task_id_ref, rel_ids_ref, ent_ids_ref, t_nb_ref, t_self_ref,
                    head_ids_ref, deg_ref,
                    emb_ref, bil_emb_t_ref, w_nb_t_ref, w_head_t_ref,
                    freq_ref, freq2_ref,
                    wq_t_ref, bq_ref, wk_t_ref, bk_ref, wv_t_ref, bv_ref,
                    w_ih_t_ref, w_hh_h_t_ref, w_hh_r_t_ref, b_lstm_ref,
                    score_ref,
                    *, few, num_query, num_heads, process_step, pad_idx):
    f32 = jnp.float32
    V, d = emb_ref.shape              # padded vocab rows, embed dim
    D = 2 * d                         # hidden size of support/query sets
    hidden = 2 * D                    # LSTM cell hidden size
    R, N = rel_ids_ref.shape          # R = 2*few + 2*num_query rows

    emb = emb_ref[...]                                             # [V, d]
    rel_ids = rel_ids_ref[...]                                     # [R, N]
    t_self = t_self_ref[...]                                       # [R, 1]

    # ---- in-kernel embedding gathers: one-hot compare + MXU matmul ----
    lane_v = jax.lax.broadcasted_iota(jnp.int32, (1, V), 1)        # [1, V]
    rel_oh = (rel_ids[:, :, None] == lane_v[None, :, :]).astype(f32)       # [R,N,V]
    ent_oh = (ent_ids_ref[...][:, :, None] == lane_v[None, :, :]).astype(f32)
    head_oh = (head_ids_ref[...] == lane_v).astype(f32)            # [R, V]
    task_oh = (task_id_ref[...] == lane_v).astype(f32)             # [1, V]

    task_emb = jnp.dot(task_oh, emb, preferred_element_type=f32)   # [1, d]
    # folded bilinear: u[w] = emb[w,:] . (W_bil @ task_emb)
    u = jnp.dot(task_emb, bil_emb_t_ref[...],
                preferred_element_type=f32)                        # [1, V]
    rel_score = jnp.sum(rel_oh * u[None, :, :], axis=-1)           # [R, N]

    # time score via cosine-difference identity, scale = 1/d
    dt = t_nb_ref[...] - t_self                                    # [R, N]
    time_score = jnp.sum(jnp.cos(dt[:, :, None] * freq_ref[...][None, :, :]),
                         axis=-1) * (1.0 / d)                      # [R, N]

    # masked softmax over neighbours (finite large-negative avoids NaN on
    # fully padded rows while matching the reference elsewhere exactly)
    mask = rel_ids == pad_idx
    score = jnp.where(mask, f32(-1e30), time_score * rel_score)
    score = score - jnp.max(score, axis=1, keepdims=True)
    att = jnp.exp(score)
    att = att / jnp.sum(att, axis=1, keepdims=True)                # [R, N]

    # attention-weighted entity aggregation: agg = (sum_n att * onehot) @ emb
    w_ae = jnp.sum(att[:, :, None] * ent_oh, axis=1)               # [R, V]
    agg = jnp.dot(w_ae, emb, preferred_element_type=f32)           # [R, d]
    head_emb = jnp.dot(head_oh, emb, preferred_element_type=f32)   # [R, d]
    enc = jnp.maximum(
        jnp.dot(agg, w_nb_t_ref[...], preferred_element_type=f32) * deg_ref[...]
        + jnp.dot(head_emb, w_head_t_ref[...], preferred_element_type=f32),
        0.0)                                                       # [R, d]

    # ---- regroup rows into support / query sets (lane-dense concat) ----
    support = jnp.concatenate([enc[0:few, :], enc[few:2 * few, :]], axis=1)
    q0 = 2 * few
    query = jnp.concatenate([enc[q0:q0 + num_query, :],
                             enc[q0 + num_query:q0 + 2 * num_query, :]], axis=1)

    # ---- top-level interleaved cos/sin time embedding (cos even / sin odd) --
    col = jax.lax.broadcasted_iota(jnp.int32, (1, D), 1)
    phase_off = jnp.where(col % 2 == 0, f32(0.0), f32(math.pi / 2.0))   # [1, D]
    tscale = f32(1.0 / math.sqrt(d))
    freq2 = freq2_ref[...]                                         # [1, D]
    support = support + jnp.cos(t_self[0:few, :] * freq2 - phase_off) * tscale
    query = query + jnp.cos(t_self[q0:q0 + num_query, :] * freq2 - phase_off) * tscale

    # ---- support aggregator: multi-head self-attention over the K supports --
    qm = jnp.dot(support, wq_t_ref[...], preferred_element_type=f32) + bq_ref[...]
    km = jnp.dot(support, wk_t_ref[...], preferred_element_type=f32) + bk_ref[...]
    vm = jnp.dot(support, wv_t_ref[...], preferred_element_type=f32) + bv_ref[...]
    dh = D // num_heads
    inv_sqrt_dh = 1.0 / math.sqrt(dh)
    ctxs = []
    for h_i in range(num_heads):
        sl = slice(h_i * dh, (h_i + 1) * dh)
        s_h = jnp.dot(qm[:, sl], km[:, sl].T,
                      preferred_element_type=f32) * inv_sqrt_dh    # [few, few]
        s_h = s_h - jnp.max(s_h, axis=-1, keepdims=True)
        p_h = jnp.exp(s_h)
        p_h = p_h / jnp.sum(p_h, axis=-1, keepdims=True)
        ctxs.append(jnp.dot(p_h, vm[:, sl], preferred_element_type=f32))
    support_agg = jnp.concatenate(ctxs, axis=1)                    # [few, D]

    # ---- query encoder: LSTMCell + attention over support -------------------
    x = query                                                      # [nq, D]
    # hoisted loop-invariant input projection (+ combined biases)
    x_gates = jnp.dot(x, w_ih_t_ref[...], preferred_element_type=f32) + b_lstm_ref[...]
    w_hh_h_t = w_hh_h_t_ref[...]                                   # [D, 4*hidden]
    w_hh_r_t = w_hh_r_t_ref[...]                                   # [D, 4*hidden]
    h_part = jnp.zeros((num_query, D), f32)
    r_part = jnp.zeros((num_query, D), f32)
    c = jnp.zeros((num_query, hidden), f32)
    h = x
    for _ in range(process_step):
        gates = (x_gates
                 + jnp.dot(h_part, w_hh_h_t, preferred_element_type=f32)
                 + jnp.dot(r_part, w_hh_r_t, preferred_element_type=f32))
        i_g = _sigmoid(gates[:, 0 * hidden:1 * hidden])
        f_g = _sigmoid(gates[:, 1 * hidden:2 * hidden])
        g_g = jnp.tanh(gates[:, 2 * hidden:3 * hidden])
        o_g = _sigmoid(gates[:, 3 * hidden:4 * hidden])
        c = f_g * c + i_g * g_g
        h_cell = o_g * jnp.tanh(c)
        h = x + h_cell[:, :D]
        logits = jnp.dot(h, support_agg.T, preferred_element_type=f32)   # [nq, few]
        logits = logits - jnp.max(logits, axis=1, keepdims=True)
        attn = jnp.exp(logits)
        attn = attn / jnp.sum(attn, axis=1, keepdims=True)
        r_part = jnp.dot(attn, support_agg, preferred_element_type=f32)  # [nq, D]
        h_part = h

    # ---- final score: query_f . mean(support)  (VPU lane reduce) ------------
    s_mean = jnp.mean(support_agg, axis=0, keepdims=True)          # [1, D]
    score_ref[...] = jnp.sum(h * s_mean, axis=-1, keepdims=True)   # [nq, 1]


# ---------------------------------------------------------------------------
# parameter preparation: pre-transpose / pre-fold / pad once (free layout work)
def prepare_params(p):
    d = EMBED_DIM
    D = 2 * d
    emb = p["symbol_emb"].astype(jnp.float32)
    emb_pad = jnp.zeros((EMB_ROWS, d), jnp.float32).at[:NUM_SYMBOLS + 1].set(emb)
    freq = p["basis_freq"].astype(jnp.float32)
    return dict(
        emb=emb_pad,
        bil_emb_t=jnp.transpose(emb_pad @ p["w_bil"]),        # [d, EMB_ROWS]
        w_nb_t=p["w_nb"].T,
        w_head_t=p["w_head"].T,
        freq=freq.reshape(1, d),
        freq2=jnp.repeat(freq, 2).reshape(1, D),
        wq_t=p["wq"].T, bq=p["bq"].reshape(1, D),
        wk_t=p["wk"].T, bk=p["bk"].reshape(1, D),
        wv_t=p["wv"].T, bv=p["bv"].reshape(1, D),
        w_ih_t=p["w_ih"].T,                                   # [D, 4*hidden]
        w_hh_h_t=p["w_hh"][:, :D].T,                          # [D, 4*hidden]
        w_hh_r_t=p["w_hh"][:, D:].T,                          # [D, 4*hidden]
        b_lstm=(p["b_ih"] + p["b_hh"]).reshape(1, -1),
    )


# ---------------------------------------------------------------------------
# wrapper: pack the four neighbor sides into one [R, ...] problem and launch
# a single fused pallas_call.
def matcher_forward(kparams, task_rel, support_time, query_time,
                    support_meta, query_meta):
    (s_left, s_conn_l, s_deg_l, s_right, s_conn_r, s_deg_r) = support_meta
    (q_left, q_conn_l, q_deg_l, q_right, q_conn_r, q_deg_r) = query_meta
    few = support_time.shape[0]
    nq = query_time.shape[0]

    # row layout: [support-left | support-right | query-left | query-right]
    conn = jnp.concatenate([s_conn_l, s_conn_r, q_conn_l, q_conn_r], axis=0)
    rel_ids = conn[:, :, 0].astype(jnp.int32)
    ent_ids = conn[:, :, 1].astype(jnp.int32)
    t_nb = conn[:, :, 2].astype(jnp.float32)
    t_self = jnp.concatenate([support_time, support_time,
                              query_time, query_time]).reshape(-1, 1).astype(jnp.float32)
    head_ids = jnp.concatenate([s_left, s_right, q_left, q_right]
                               ).reshape(-1, 1).astype(jnp.int32)
    degs = jnp.concatenate([s_deg_l, s_deg_r, q_deg_l, q_deg_r]
                           ).reshape(-1, 1).astype(jnp.float32)
    task_id = jnp.asarray(task_rel, jnp.int32).reshape(1, 1)

    kernel = functools.partial(_matcher_kernel, few=few, num_query=nq,
                               num_heads=NUM_HEADS, process_step=PROCESS_STEP,
                               pad_idx=NUM_SYMBOLS)

    score = pl.pallas_call(
        kernel,
        out_shape=jax.ShapeDtypeStruct((nq, 1), jnp.float32),
        in_specs=[_VMEM] * 23,
        out_specs=_VMEM,
        cost_estimate=pl.CostEstimate(flops=3_000_000, transcendentals=20_000,
                                      bytes_accessed=600_000),
    )(task_id, rel_ids, ent_ids, t_nb, t_self, head_ids, degs,
      kparams["emb"], kparams["bil_emb_t"], kparams["w_nb_t"], kparams["w_head_t"],
      kparams["freq"], kparams["freq2"],
      kparams["wq_t"], kparams["bq"], kparams["wk_t"], kparams["bk"],
      kparams["wv_t"], kparams["bv"],
      kparams["w_ih_t"], kparams["w_hh_h_t"], kparams["w_hh_r_t"],
      kparams["b_lstm"])

    return score.reshape(-1)          # [q]  (torch's .squeeze())


# ---------------------------------------------------------------------------
# pure-JAX reference (literal port of the PyTorch module, eval mode)
def _time_encode_ref(ts, freq):
    d = freq.shape[0]
    m = ts[:, :, None].astype(jnp.float32) * freq[None, None, :]
    h = jnp.stack([jnp.cos(m), jnp.sin(m)], axis=-1).reshape(
        ts.shape[0], ts.shape[1], 2 * d)
    return h * jnp.float32(1.0 / math.sqrt(d))


def _neighbor_side_ref(params, conn, times_self, head_ids, degrees, task_emb):
    emb = params["symbol_emb"]
    freq = params["basis_freq"]
    rel = conn[:, :, 0]
    ent = conn[:, :, 1]
    t_nb = conn[:, :, 2].astype(jnp.float32)
    B, _ = rel.shape
    self_emb = _time_encode_ref(times_self.reshape(B, 1), freq)     # [B,1,2d]
    nb_emb = _time_encode_ref(t_nb, freq)                           # [B,N,2d]
    time_score = jnp.sum(nb_emb * self_emb, axis=-1)                # [B,N]
    rel_emb = emb[rel]
    ent_emb = emb[ent]
    v = params["w_bil"] @ task_emb.reshape(-1)                      # [d]
    rel_score = jnp.sum(rel_emb * v[None, None, :], axis=-1)        # [B,N]
    score = jnp.where(rel == NUM_SYMBOLS, -jnp.inf, time_score * rel_score)
    att = jax.nn.softmax(score, axis=1)
    agg = jnp.einsum("bn,bnd->bd", att, ent_emb)
    head_emb = emb[head_ids]
    return jax.nn.relu(agg @ params["w_nb"].T * degrees.reshape(B, 1)
                       + head_emb @ params["w_head"].T)


def _self_attention_ref(params, x):
    K, D = x.shape
    H = NUM_HEADS
    dh = D // H
    q = x @ params["wq"].T + params["bq"]
    k = x @ params["wk"].T + params["bk"]
    v = x @ params["wv"].T + params["bv"]
    qh = q.reshape(K, H, dh).transpose(1, 0, 2)
    kh = k.reshape(K, H, dh).transpose(1, 0, 2)
    vh = v.reshape(K, H, dh).transpose(1, 0, 2)
    s = jnp.einsum("hqe,hke->hqk", qh, kh) / math.sqrt(dh)
    p = jax.nn.softmax(s, axis=-1)
    ctx = jnp.einsum("hqk,hke->hqe", p, vh)
    return ctx.transpose(1, 0, 2).reshape(K, D)


def _query_encoder_ref(params, support, query, process_step):
    D = query.shape[1]
    hidden = 2 * D
    w_ih = params["w_ih"]
    w_hh = params["w_hh"]
    b = params["b_ih"] + params["b_hh"]
    h_r = jnp.zeros((query.shape[0], hidden), jnp.float32)
    c = jnp.zeros((query.shape[0], hidden), jnp.float32)
    h = query
    for _ in range(process_step):
        gates = query @ w_ih.T + h_r @ w_hh.T + b
        i = jax.nn.sigmoid(gates[:, :hidden])
        f = jax.nn.sigmoid(gates[:, hidden:2 * hidden])
        g = jnp.tanh(gates[:, 2 * hidden:3 * hidden])
        o = jax.nn.sigmoid(gates[:, 3 * hidden:])
        c = f * c + i * g
        h_cell = o * jnp.tanh(c)
        h = query + h_cell[:, :D]
        attn = jax.nn.softmax(h @ support.T, axis=1)
        r = attn @ support
        h_r = jnp.concatenate([h, r], axis=1)
    return h


def matcher_reference(params, task_rel, support_time, query_time,
                      support_meta, query_meta):
    d = EMBED_DIM
    (s_left, s_conn_l, s_deg_l, s_right, s_conn_r, s_deg_r) = support_meta
    (q_left, q_conn_l, q_deg_l, q_right, q_conn_r, q_deg_r) = query_meta
    emb = params["symbol_emb"]
    task_emb = emb[task_rel].reshape(1, d)

    ls = _neighbor_side_ref(params, s_conn_l, support_time, s_left, s_deg_l, task_emb)
    rs = _neighbor_side_ref(params, s_conn_r, support_time, s_right, s_deg_r, task_emb)
    support_set = jnp.concatenate([ls, rs], axis=1)
    lq = _neighbor_side_ref(params, q_conn_l, query_time, q_left, q_deg_l, task_emb)
    rq = _neighbor_side_ref(params, q_conn_r, query_time, q_right, q_deg_r, task_emb)
    query_set = jnp.concatenate([lq, rq], axis=1)

    freq = params["basis_freq"]
    support_set = support_set + _time_encode_ref(
        support_time.reshape(-1, 1), freq).reshape(-1, 2 * d)
    support_agg = _self_attention_ref(params, support_set)
    query_set = query_set + _time_encode_ref(
        query_time.reshape(-1, 1), freq).reshape(-1, 2 * d)
    qf = _query_encoder_ref(params, support_agg, query_set, PROCESS_STEP)
    s_mean = jnp.mean(support_agg, axis=0, keepdims=True)
    return (qf @ s_mean.T).reshape(-1)


# ---------------------------------------------------------------------------
def init_params(key):
    d = EMBED_DIM
    D = 2 * d
    hidden = 2 * D
    ks = jax.random.split(key, 16)

    def nrm(k, shape, scale):
        return (scale * jax.random.normal(k, shape)).astype(jnp.float32)

    emb = nrm(ks[0], (NUM_SYMBOLS + 1, d), 1.0)
    emb = emb.at[NUM_SYMBOLS].set(0.0)                      # padding_idx row

    xav = math.sqrt(2.0 / (2 * d))
    lin = 1.0 / math.sqrt(D)
    lstm = 1.0 / math.sqrt(hidden)
    return dict(
        symbol_emb=emb,
        basis_freq=(1.0 / 10.0 ** jnp.linspace(0.0, 9.0, d)).astype(jnp.float32),
        w_bil=nrm(ks[1], (d, d), xav),
        w_head=nrm(ks[2], (d, d), xav),
        w_nb=nrm(ks[3], (d, d), xav),
        wq=nrm(ks[4], (D, D), lin), bq=nrm(ks[5], (D,), lin),
        wk=nrm(ks[6], (D, D), lin), bk=nrm(ks[7], (D,), lin),
        wv=nrm(ks[8], (D, D), lin), bv=nrm(ks[9], (D,), lin),
        w_ih=nrm(ks[10], (4 * hidden, D), lstm),
        w_hh=nrm(ks[11], (4 * hidden, hidden), lstm),
        b_ih=nrm(ks[12], (4 * hidden,), lstm),
        b_hh=nrm(ks[13], (4 * hidden,), lstm),
    )


if __name__ == "__main__":
    key = jax.random.PRNGKey(0)
    kp, kd = jax.random.split(key)
    params = init_params(kp)
    kparams = prepare_params(params)
    ks = jax.random.split(kd, 14)

    def make_connections(k, B):
        k1, k2, k3 = jax.random.split(k, 3)
        rel = jax.random.randint(k1, (B, MAX_NB), 0, NUM_SYMBOLS)
        ent = jax.random.randint(k2, (B, MAX_NB), 0, NUM_SYMBOLS)
        t = jax.random.randint(k3, (B, MAX_NB), 0, 50)
        # pad the last 3 neighbour slots (exercises the masking path)
        rel = rel.at[:, MAX_NB - 3:].set(NUM_SYMBOLS)
        ent = ent.at[:, MAX_NB - 3:].set(NUM_SYMBOLS)
        return jnp.stack([rel, ent, t], axis=-1).astype(jnp.int32)

    task_rel = jnp.array([3], dtype=jnp.int32)
    support_time = jax.random.uniform(ks[0], (FEW,), minval=0.0, maxval=50.0)
    query_time = jax.random.uniform(ks[1], (NUM_QUERY,), minval=0.0, maxval=50.0)

    support_meta = (
        jax.random.randint(ks[2], (FEW,), 0, NUM_SYMBOLS),
        make_connections(ks[3], FEW),
        jax.random.uniform(ks[4], (FEW,), minval=0.1, maxval=1.0),
        jax.random.randint(ks[5], (FEW,), 0, NUM_SYMBOLS),
        make_connections(ks[6], FEW),
        jax.random.uniform(ks[7], (FEW,), minval=0.1, maxval=1.0),
    )
    query_meta = (
        jax.random.randint(ks[8], (NUM_QUERY,), 0, NUM_SYMBOLS),
        make_connections(ks[9], NUM_QUERY),
        jax.random.uniform(ks[10], (NUM_QUERY,), minval=0.1, maxval=1.0),
        jax.random.randint(ks[11], (NUM_QUERY,), 0, NUM_SYMBOLS),
        make_connections(ks[12], NUM_QUERY),
        jax.random.uniform(ks[13], (NUM_QUERY,), minval=0.1, maxval=1.0),
    )

    fwd = jax.jit(matcher_forward)
    score = jax.block_until_ready(
        fwd(kparams, task_rel, support_time, query_time, support_meta, query_meta))

    ref = jax.block_until_ready(
        jax.jit(matcher_reference)(params, task_rel, support_time, query_time,
                                   support_meta, query_meta))

    assert score.shape == (NUM_QUERY,)
    assert bool(jnp.all(jnp.isfinite(score)))
    assert bool(jnp.allclose(score, ref, rtol=5e-3, atol=5e-3)), (score, ref)
    print("KERNEL_OK")
</pallas_src>

<mosaic_0001>
module attributes {stable_mosaic.version = 11 : i64} {
  func.func @_matcher_kernel(%arg0: memref<1x1xi32, #tpu.memory_space<vmem>>, %arg1: memref<16x16xi32, #tpu.memory_space<vmem>>, %arg2: memref<16x16xi32, #tpu.memory_space<vmem>>, %arg3: memref<16x16xf32, #tpu.memory_space<vmem>>, %arg4: memref<16x1xf32, #tpu.memory_space<vmem>>, %arg5: memref<16x1xi32, #tpu.memory_space<vmem>>, %arg6: memref<16x1xf32, #tpu.memory_space<vmem>>, %arg7: memref<24x32xf32, #tpu.memory_space<vmem>>, %arg8: memref<32x24xf32, #tpu.memory_space<vmem>>, %arg9: memref<32x32xf32, #tpu.memory_space<vmem>>, %arg10: memref<32x32xf32, #tpu.memory_space<vmem>>, %arg11: memref<1x32xf32, #tpu.memory_space<vmem>>, %arg12: memref<1x64xf32, #tpu.memory_space<vmem>>, %arg13: memref<64x64xf32, #tpu.memory_space<vmem>>, %arg14: memref<1x64xf32, #tpu.memory_space<vmem>>, %arg15: memref<64x64xf32, #tpu.memory_space<vmem>>, %arg16: memref<1x64xf32, #tpu.memory_space<vmem>>, %arg17: memref<64x64xf32, #tpu.memory_space<vmem>>, %arg18: memref<1x64xf32, #tpu.memory_space<vmem>>, %arg19: memref<64x512xf32, #tpu.memory_space<vmem>>, %arg20: memref<64x512xf32, #tpu.memory_space<vmem>>, %arg21: memref<64x512xf32, #tpu.memory_space<vmem>>, %arg22: memref<1x512xf32, #tpu.memory_space<vmem>>, %arg23: memref<4x1xf32, #tpu.memory_space<vmem>>) attributes {dimension_semantics = [], scalar_prefetch = 0 : i64, scratch_operands = 0 : i64, tpu.core_type = #tpu.core_type<tc>} {
    %c0 = arith.constant 0 : index
    %c0_0 = arith.constant 0 : index
    %0 = vector.load %arg7[%c0, %c0_0] : memref<24x32xf32, #tpu.memory_space<vmem>>, vector<24x32xf32>
    %c0_1 = arith.constant 0 : index
    %c0_2 = arith.constant 0 : index
    %1 = vector.load %arg1[%c0_1, %c0_2] : memref<16x16xi32, #tpu.memory_space<vmem>>, vector<16x16xi32>
    %c0_3 = arith.constant 0 : index
    %c0_4 = arith.constant 0 : index
    %2 = vector.load %arg4[%c0_3, %c0_4] : memref<16x1xf32, #tpu.memory_space<vmem>>, vector<16x1xf32>
    %3 = tpu.iota {dimensions = array<i32: 1>} : vector<1x24xi32>
    %4 = vector.shape_cast %1 : vector<16x16xi32> to vector<16x16x1xi32>
    %5 = vector.shape_cast %3 : vector<1x24xi32> to vector<1x1x24xi32>
    %6 = vector.broadcast %4 : vector<16x16x1xi32> to vector<16x16x24xi32>
    %7 = vector.broadcast %5 : vector<1x1x24xi32> to vector<16x16x24xi32>
    %8 = arith.cmpi eq, %6, %7 : vector<16x16x24xi32>
    %9 = arith.extui %8 : vector<16x16x24xi1> to vector<16x16x24xi32>
    %10 = arith.sitofp %9 : vector<16x16x24xi32> to vector<16x16x24xf32>
    %c0_5 = arith.constant 0 : index
    %c0_6 = arith.constant 0 : index
    %11 = vector.load %arg2[%c0_5, %c0_6] : memref<16x16xi32, #tpu.memory_space<vmem>>, vector<16x16xi32>
    %12 = vector.shape_cast %11 : vector<16x16xi32> to vector<16x16x1xi32>
    %13 = vector.shape_cast %3 : vector<1x24xi32> to vector<1x1x24xi32>
    %14 = vector.broadcast %12 : vector<16x16x1xi32> to vector<16x16x24xi32>
    %15 = vector.broadcast %13 : vector<1x1x24xi32> to vector<16x16x24xi32>
    %16 = arith.cmpi eq, %14, %15 : vector<16x16x24xi32>
    %17 = arith.extui %16 : vector<16x16x24xi1> to vector<16x16x24xi32>
    %18 = arith.sitofp %17 : vector<16x16x24xi32> to vector<16x16x24xf32>
    %c0_7 = arith.constant 0 : index
    %c0_8 = arith.constant 0 : index
    %19 = vector.load %arg5[%c0_7, %c0_8] : memref<16x1xi32, #tpu.memory_space<vmem>>, vector<16x1xi32>
    %20 = vector.broadcast %19 : vector<16x1xi32> to vector<16x24xi32>
    %21 = vector.broadcast %3 : vector<1x24xi32> to vector<16x24xi32>
    %22 = arith.cmpi eq, %20, %21 : vector<16x24xi32>
    %23 = arith.extui %22 : vector<16x24xi1> to vector<16x24xi32>
    %24 = arith.sitofp %23 : vector<16x24xi32> to vector<16x24xf32>
    %c0_9 = arith.constant 0 : index
    %c0_10 = arith.constant 0 : index
    %25 = vector.load %arg0[%c0_9, %c0_10] : memref<1x1xi32, #tpu.memory_space<vmem>>, vector<1x1xi32>
    %26 = vector.broadcast %25 : vector<1x1xi32> to vector<1x24xi32>
    %27 = arith.cmpi eq, %26, %3 : vector<1x24xi32>
    %28 = arith.extui %27 : vector<1x24xi1> to vector<1x24xi32>
    %29 = arith.sitofp %28 : vector<1x24xi32> to vector<1x24xf32>
    %cst = arith.constant dense<0.000000e+00> : vector<1x32xf32>
    %30 = tpu.matmul %29, %0, %cst {dimension_numbers = #tpu.dot_dimension_numbers<[1], [0], [0], [1], [0, 0, 1, 1], [], []>} : vector<1x24xf32>, vector<24x32xf32>, vector<1x32xf32> -> vector<1x32xf32>
    %c0_11 = arith.constant 0 : index
    %c0_12 = arith.constant 0 : index
    %31 = vector.load %arg8[%c0_11, %c0_12] : memref<32x24xf32, #tpu.memory_space<vmem>>, vector<32x24xf32>
    %cst_13 = arith.constant dense<0.000000e+00> : vector<1x24xf32>
    %32 = tpu.matmul %30, %31, %cst_13 {dimension_numbers = #tpu.dot_dimension_numbers<[1], [0], [0], [1], [0, 0, 1, 1], [], []>} : vector<1x32xf32>, vector<32x24xf32>, vector<1x24xf32> -> vector<1x24xf32>
    %33 = vector.shape_cast %32 : vector<1x24xf32> to vector<1x1x24xf32>
    %34 = vector.broadcast %33 : vector<1x1x24xf32> to vector<16x16x24xf32>
    %35 = arith.mulf %10, %34 : vector<16x16x24xf32>
    %cst_14 = arith.constant dense<0.000000e+00> : vector<16x16xf32>
    %36 = vector.multi_reduction <add>, %35, %cst_14 [2] : vector<16x16x24xf32> to vector<16x16xf32>
    %c0_15 = arith.constant 0 : index
    %c0_16 = arith.constant 0 : index
    %37 = vector.load %arg3[%c0_15, %c0_16] : memref<16x16xf32, #tpu.memory_space<vmem>>, vector<16x16xf32>
    %38 = vector.broadcast %2 : vector<16x1xf32> to vector<16x16xf32>
    %39 = arith.subf %37, %38 : vector<16x16xf32>
    %40 = vector.shape_cast %39 : vector<16x16xf32> to vector<16x16x1xf32>
    %c0_17 = arith.constant 0 : index
    %c0_18 = arith.constant 0 : index
    %41 = vector.load %arg11[%c0_17, %c0_18] : memref<1x32xf32, #tpu.memory_space<vmem>>, vector<1x32xf32>
    %42 = vector.shape_cast %41 : vector<1x32xf32> to vector<1x1x32xf32>
    %43 = vector.broadcast %40 : vector<16x16x1xf32> to vector<16x16x32xf32>
    %44 = vector.broadcast %42 : vector<1x1x32xf32> to vector<16x16x32xf32>
    %45 = arith.mulf %43, %44 : vector<16x16x32xf32>
    %46 = math.cos %45 : vector<16x16x32xf32>
    %cst_19 = arith.constant dense<0.000000e+00> : vector<16x16xf32>
    %47 = vector.multi_reduction <add>, %46, %cst_19 [2] : vector<16x16x32xf32> to vector<16x16xf32>
    %cst_20 = arith.constant 3.125000e-02 : f32
    %48 = vector.broadcast %cst_20 : f32 to vector<16x16xf32>
    %49 = arith.mulf %47, %48 : vector<16x16xf32>
    %c20_i32 = arith.constant 20 : i32
    %50 = vector.broadcast %c20_i32 : i32 to vector<16x16xi32>
    %51 = arith.cmpi eq, %1, %50 : vector<16x16xi32>
    %52 = arith.mulf %49, %36 : vector<16x16xf32>
    %cst_21 = arith.constant -1.000000e+30 : f32
    %53 = vector.broadcast %cst_21 : f32 to vector<16x16xf32>
    %54 = arith.select %51, %53, %52 : vector<16x16xi1>, vector<16x16xf32>
    %cst_22 = arith.constant dense<0xFF800000> : vector<16xf32>
    %55 = vector.multi_reduction <maximumf>, %54, %cst_22 [1] : vector<16x16xf32> to vector<16xf32>
    %56 = vector.shape_cast %55 : vector<16xf32> to vector<16x1xf32>
    %57 = vector.broadcast %56 : vector<16x1xf32> to vector<16x16xf32>
    %58 = arith.subf %54, %57 : vector<16x16xf32>
    %59 = math.exp %58 : vector<16x16xf32>
    %cst_23 = arith.constant dense<0.000000e+00> : vector<16xf32>
    %60 = vector.multi_reduction <add>, %59, %cst_23 [1] : vector<16x16xf32> to vector<16xf32>
    %61 = vector.shape_cast %60 : vector<16xf32> to vector<16x1xf32>
    %62 = vector.broadcast %61 : vector<16x1xf32> to vector<16x16xf32>
    %63 = arith.divf %59, %62 : vector<16x16xf32>
    %64 = vector.shape_cast %63 : vector<16x16xf32> to vector<16x16x1xf32>
    %65 = vector.broadcast %64 : vector<16x16x1xf32> to vector<16x16x24xf32>
    %66 = arith.mulf %65, %18 : vector<16x16x24xf32>
    %cst_24 = arith.constant dense<0.000000e+00> : vector<16x24xf32>
    %67 = vector.multi_reduction <add>, %66, %cst_24 [1] : vector<16x16x24xf32> to vector<16x24xf32>
    %cst_25 = arith.constant dense<0.000000e+00> : vector<16x32xf32>
    %68 = tpu.matmul %67, %0, %cst_25 {dimension_numbers = #tpu.dot_dimension_numbers<[1], [0], [0], [1], [0, 0, 1, 1], [], []>} : vector<16x24xf32>, vector<24x32xf32>, vector<16x32xf32> -> vector<16x32xf32>
    %cst_26 = arith.constant dense<0.000000e+00> : vector<16x32xf32>
    %69 = tpu.matmul %24, %0, %cst_26 {dimension_numbers = #tpu.dot_dimension_numbers<[1], [0], [0], [1], [0, 0, 1, 1], [], []>} : vector<16x24xf32>, vector<24x32xf32>, vector<16x32xf32> -> vector<16x32xf32>
    %c0_27 = arith.constant 0 : index
    %c0_28 = arith.constant 0 : index
    %70 = vector.load %arg9[%c0_27, %c0_28] : memref<32x32xf32, #tpu.memory_space<vmem>>, vector<32x32xf32>
    %cst_29 = arith.constant dense<0.000000e+00> : vector<16x32xf32>
    %71 = tpu.matmul %68, %70, %cst_29 {dimension_numbers = #tpu.dot_dimension_numbers<[1], [0], [0], [1], [0, 0, 1, 1], [], []>} : vector<16x32xf32>, vector<32x32xf32>, vector<16x32xf32> -> vector<16x32xf32>
    %c0_30 = arith.constant 0 : index
    %c0_31 = arith.constant 0 : index
    %72 = vector.load %arg6[%c0_30, %c0_31] : memref<16x1xf32, #tpu.memory_space<vmem>>, vector<16x1xf32>
    %73 = vector.broadcast %72 : vector<16x1xf32> to vector<16x32xf32>
    %74 = arith.mulf %71, %73 : vector<16x32xf32>
    %c0_32 = arith.constant 0 : index
    %c0_33 = arith.constant 0 : index
    %75 = vector.load %arg10[%c0_32, %c0_33] : memref<32x32xf32, #tpu.memory_space<vmem>>, vector<32x32xf32>
    %cst_34 = arith.constant dense<0.000000e+00> : vector<16x32xf32>
    %76 = tpu.matmul %69, %75, %cst_34 {dimension_numbers = #tpu.dot_dimension_numbers<[1], [0], [0], [1], [0, 0, 1, 1], [], []>} : vector<16x32xf32>, vector<32x32xf32>, vector<16x32xf32> -> vector<16x32xf32>
    %77 = arith.addf %74, %76 : vector<16x32xf32>
    %cst_35 = arith.constant 0.000000e+00 : f32
    %78 = vector.broadcast %cst_35 : f32 to vector<16x32xf32>
    %79 = arith.maximumf %77, %78 : vector<16x32xf32>
    %80 = vector.extract_strided_slice %79 {offsets = [0, 0], sizes = [4, 32], strides = [1, 1]} : vector<16x32xf32> to vector<4x32xf32>
    %81 = vector.extract_strided_slice %79 {offsets = [4, 0], sizes = [4, 32], strides = [1, 1]} : vector<16x32xf32> to vector<4x32xf32>
    %82 = tpu.concatenate %80, %81 in 1 : vector<4x32xf32>, vector<4x32xf32> -> vector<4x64xf32>
    %83 = vector.extract_strided_slice %79 {offsets = [8, 0], sizes = [4, 32], strides = [1, 1]} : vector<16x32xf32> to vector<4x32xf32>
    %84 = vector.extract_strided_slice %79 {offsets = [12, 0], sizes = [4, 32], strides = [1, 1]} : vector<16x32xf32> to vector<4x32xf32>
    %85 = tpu.concatenate %83, %84 in 1 : vector<4x32xf32>, vector<4x32xf32> -> vector<4x64xf32>
    %86 = tpu.iota {dimensions = array<i32: 1>} : vector<1x64xi32>
    %c2_i32 = arith.constant 2 : i32
    %c0_i32 = arith.constant 0 : i32
    %87 = arith.cmpi eq, %c2_i32, %c0_i32 : i32
    %c1_i32 = arith.constant 1 : i32
    %88 = arith.select %87, %c1_i32, %c2_i32 : i32
    %89 = vector.broadcast %88 : i32 to vector<1x64xi32>
    %90 = arith.remsi %86, %89 : vector<1x64xi32>
    %c0_i32_36 = arith.constant 0 : i32
    %91 = vector.broadcast %c0_i32_36 : i32 to vector<1x64xi32>
    %92 = arith.cmpi ne, %90, %91 : vector<1x64xi32>
    %c0_i32_37 = arith.constant 0 : i32
    %93 = vector.broadcast %c0_i32_37 : i32 to vector<1x64xi32>
    %94 = arith.cmpi slt, %90, %93 : vector<1x64xi32>
    %c0_i32_38 = arith.constant 0 : i32
    %95 = arith.cmpi slt, %88, %c0_i32_38 : i32
    %96 = vector.broadcast %95 : i1 to vector<1x64xi1>
    %97 = vector.broadcast %96 : vector<1x64xi1> to vector<1x64xi1>
    %98 = arith.xori %94, %97 : vector<1x64xi1>
    %99 = arith.andi %98, %92 : vector<1x64xi1>
    %100 = vector.broadcast %88 : i32 to vector<1x64xi32>
    %101 = arith.addi %90, %100 : vector<1x64xi32>
    %102 = arith.select %99, %101, %90 : vector<1x64xi1>, vector<1x64xi32>
    %c0_i32_39 = arith.constant 0 : i32
    %103 = vector.broadcast %c0_i32_39 : i32 to vector<1x64xi32>
    %104 = arith.cmpi eq, %102, %103 : vector<1x64xi32>
    %cst_40 = arith.constant 0.000000e+00 : f32
    %cst_41 = arith.constant 1.57079637 : f32
    %105 = vector.broadcast %cst_40 : f32 to vector<1x64xf32>
    %106 = vector.broadcast %cst_41 : f32 to vector<1x64xf32>
    %107 = arith.select %104, %105, %106 : vector<1x64xi1>, vector<1x64xf32>
    %c0_42 = arith.constant 0 : index
    %c0_43 = arith.constant 0 : index
    %108 = vector.load %arg12[%c0_42, %c0_43] : memref<1x64xf32, #tpu.memory_space<vmem>>, vector<1x64xf32>
    %109 = vector.extract_strided_slice %2 {offsets = [0, 0], sizes = [4, 1], strides = [1, 1]} : vector<16x1xf32> to vector<4x1xf32>
    %110 = vector.broadcast %109 : vector<4x1xf32> to vector<4x64xf32>
    %111 = vector.broadcast %108 : vector<1x64xf32> to vector<4x64xf32>
    %112 = arith.mulf %110, %111 : vector<4x64xf32>
    %113 = vector.broadcast %107 : vector<1x64xf32> to vector<4x64xf32>
    %114 = arith.subf %112, %113 : vector<4x64xf32>
    %115 = math.cos %114 : vector<4x64xf32>
    %cst_44 = arith.constant 0.176776692 : f32
    %116 = vector.broadcast %cst_44 : f32 to vector<4x64xf32>
    %117 = arith.mulf %115, %116 : vector<4x64xf32>
    %118 = arith.addf %82, %117 : vector<4x64xf32>
    %119 = vector.extract_strided_slice %2 {offsets = [8, 0], sizes = [4, 1], strides = [1, 1]} : vector<16x1xf32> to vector<4x1xf32>
    %120 = vector.broadcast %119 : vector<4x1xf32> to vector<4x64xf32>
    %121 = vector.broadcast %108 : vector<1x64xf32> to vector<4x64xf32>
    %122 = arith.mulf %120, %121 : vector<4x64xf32>
    %123 = vector.broadcast %107 : vector<1x64xf32> to vector<4x64xf32>
    %124 = arith.subf %122, %123 : vector<4x64xf32>
    %125 = math.cos %124 : vector<4x64xf32>
    %cst_45 = arith.constant 0.176776692 : f32
    %126 = vector.broadcast %cst_45 : f32 to vector<4x64xf32>
    %127 = arith.mulf %125, %126 : vector<4x64xf32>
    %128 = arith.addf %85, %127 : vector<4x64xf32>
    %c0_46 = arith.constant 0 : index
    %c0_47 = arith.constant 0 : index
    %129 = vector.load %arg13[%c0_46, %c0_47] : memref<64x64xf32, #tpu.memory_space<vmem>>, vector<64x64xf32>
    %cst_48 = arith.constant dense<0.000000e+00> : vector<4x64xf32>
    %130 = tpu.matmul %118, %129, %cst_48 {dimension_numbers = #tpu.dot_dimension_numbers<[1], [0], [0], [1], [0, 0, 1, 1], [], []>} : vector<4x64xf32>, vector<64x64xf32>, vector<4x64xf32> -> vector<4x64xf32>
    %c0_49 = arith.constant 0 : index
    %c0_50 = arith.constant 0 : index
    %131 = vector.load %arg14[%c0_49, %c0_50] : memref<1x64xf32, #tpu.memory_space<vmem>>, vector<1x64xf32>
    %132 = vector.broadcast %131 : vector<1x64xf32> to vector<4x64xf32>
    %133 = arith.addf %130, %132 : vector<4x64xf32>
    %c0_51 = arith.constant 0 : index
    %c0_52 = arith.constant 0 : index
    %134 = vector.load %arg15[%c0_51, %c0_52] : memref<64x64xf32, #tpu.memory_space<vmem>>, vector<64x64xf32>
    %cst_53 = arith.constant dense<0.000000e+00> : vector<4x64xf32>
    %135 = tpu.matmul %118, %134, %cst_53 {dimension_numbers = #tpu.dot_dimension_numbers<[1], [0], [0], [1], [0, 0, 1, 1], [], []>} : vector<4x64xf32>, vector<64x64xf32>, vector<4x64xf32> -> vector<4x64xf32>
    %c0_54 = arith.constant 0 : index
    %c0_55 = arith.constant 0 : index
    %136 = vector.load %arg16[%c0_54, %c0_55] : memref<1x64xf32, #tpu.memory_space<vmem>>, vector<1x64xf32>
    %137 = vector.broadcast %136 : vector<1x64xf32> to vector<4x64xf32>
    %138 = arith.addf %135, %137 : vector<4x64xf32>
    %c0_56 = arith.constant 0 : index
    %c0_57 = arith.constant 0 : index
    %139 = vector.load %arg17[%c0_56, %c0_57] : memref<64x64xf32, #tpu.memory_space<vmem>>, vector<64x64xf32>
    %cst_58 = arith.constant dense<0.000000e+00> : vector<4x64xf32>
    %140 = tpu.matmul %118, %139, %cst_58 {dimension_numbers = #tpu.dot_dimension_numbers<[1], [0], [0], [1], [0, 0, 1, 1], [], []>} : vector<4x64xf32>, vector<64x64xf32>, vector<4x64xf32> -> vector<4x64xf32>
    %c0_59 = arith.constant 0 : index
    %c0_60 = arith.constant 0 : index
    %141 = vector.load %arg18[%c0_59, %c0_60] : memref<1x64xf32, #tpu.memory_space<vmem>>, vector<1x64xf32>
    %142 = vector.broadcast %141 : vector<1x64xf32> to vector<4x64xf32>
    %143 = arith.addf %140, %142 : vector<4x64xf32>
    %144 = vector.extract_strided_slice %133 {offsets = [0, 0], sizes = [4, 16], strides = [1, 1]} : vector<4x64xf32> to vector<4x16xf32>
    %145 = vector.extract_strided_slice %138 {offsets = [0, 0], sizes = [4, 16], strides = [1, 1]} : vector<4x64xf32> to vector<4x16xf32>
    %146 = tpu.transpose %145, [1, 0] : vector<4x16xf32> -> vector<16x4xf32>
    %cst_61 = arith.constant dense<0.000000e+00> : vector<4x4xf32>
    %147 = tpu.matmul %144, %146, %cst_61 {dimension_numbers = #tpu.dot_dimension_numbers<[1], [0], [0], [1], [0, 0, 1, 1], [], []>} : vector<4x16xf32>, vector<16x4xf32>, vector<4x4xf32> -> vector<4x4xf32>
    %cst_62 = arith.constant 2.500000e-01 : f32
    %148 = vector.broadcast %cst_62 : f32 to vector<4x4xf32>
    %149 = arith.mulf %147, %148 : vector<4x4xf32>
    %cst_63 = arith.constant dense<0xFF800000> : vector<4xf32>
    %150 = vector.multi_reduction <maximumf>, %149, %cst_63 [1] : vector<4x4xf32> to vector<4xf32>
    %151 = vector.shape_cast %150 : vector<4xf32> to vector<4x1xf32>
    %152 = vector.broadcast %151 : vector<4x1xf32> to vector<4x4xf32>
    %153 = arith.subf %149, %152 : vector<4x4xf32>
    %154 = math.exp %153 : vector<4x4xf32>
    %cst_64 = arith.constant dense<0.000000e+00> : vector<4xf32>
    %155 = vector.multi_reduction <add>, %154, %cst_64 [1] : vector<4x4xf32> to vector<4xf32>
    %156 = vector.shape_cast %155 : vector<4xf32> to vector<4x1xf32>
    %157 = vector.broadcast %156 : vector<4x1xf32> to vector<4x4xf32>
    %158 = arith.divf %154, %157 : vector<4x4xf32>
    %159 = vector.extract_strided_slice %143 {offsets = [0, 0], sizes = [4, 16], strides = [1, 1]} : vector<4x64xf32> to vector<4x16xf32>
    %cst_65 = arith.constant dense<0.000000e+00> : vector<4x16xf32>
    %160 = tpu.matmul %158, %159, %cst_65 {dimension_numbers = #tpu.dot_dimension_numbers<[1], [0], [0], [1], [0, 0, 1, 1], [], []>} : vector<4x4xf32>, vector<4x16xf32>, vector<4x16xf32> -> vector<4x16xf32>
    %161 = vector.extract_strided_slice %133 {offsets = [0, 16], sizes = [4, 16], strides = [1, 1]} : vector<4x64xf32> to vector<4x16xf32>
    %162 = vector.extract_strided_slice %138 {offsets = [0, 16], sizes = [4, 16], strides = [1, 1]} : vector<4x64xf32> to vector<4x16xf32>
    %163 = tpu.transpose %162, [1, 0] : vector<4x16xf32> -> vector<16x4xf32>
    %cst_66 = arith.constant dense<0.000000e+00> : vector<4x4xf32>
    %164 = tpu.matmul %161, %163, %cst_66 {dimension_numbers = #tpu.dot_dimension_numbers<[1], [0], [0], [1], [0, 0, 1, 1], [], []>} : vector<4x16xf32>, vector<16x4xf32>, vector<4x4xf32> -> vector<4x4xf32>
    %cst_67 = arith.constant 2.500000e-01 : f32
    %165 = vector.broadcast %cst_67 : f32 to vector<4x4xf32>
    %166 = arith.mulf %164, %165 : vector<4x4xf32>
    %cst_68 = arith.constant dense<0xFF800000> : vector<4xf32>
    %167 = vector.multi_reduction <maximumf>, %166, %cst_68 [1] : vector<4x4xf32> to vector<4xf32>
    %168 = vector.shape_cast %167 : vector<4xf32> to vector<4x1xf32>
    %169 = vector.broadcast %168 : vector<4x1xf32> to vector<4x4xf32>
    %170 = arith.subf %166, %169 : vector<4x4xf32>
    %171 = math.exp %170 : vector<4x4xf32>
    %cst_69 = arith.constant dense<0.000000e+00> : vector<4xf32>
    %172 = vector.multi_reduction <add>, %171, %cst_69 [1] : vector<4x4xf32> to vector<4xf32>
    %173 = vector.shape_cast %172 : vector<4xf32> to vector<4x1xf32>
    %174 = vector.broadcast %173 : vector<4x1xf32> to vector<4x4xf32>
    %175 = arith.divf %171, %174 : vector<4x4xf32>
    %176 = vector.extract_strided_slice %143 {offsets = [0, 16], sizes = [4, 16], strides = [1, 1]} : vector<4x64xf32> to vector<4x16xf32>
    %cst_70 = arith.constant dense<0.000000e+00> : vector<4x16xf32>
    %177 = tpu.matmul %175, %176, %cst_70 {dimension_numbers = #tpu.dot_dimension_numbers<[1], [0], [0], [1], [0, 0, 1, 1], [], []>} : vector<4x4xf32>, vector<4x16xf32>, vector<4x16xf32> -> vector<4x16xf32>
    %178 = vector.extract_strided_slice %133 {offsets = [0, 32], sizes = [4, 16], strides = [1, 1]} : vector<4x64xf32> to vector<4x16xf32>
    %179 = vector.extract_strided_slice %138 {offsets = [0, 32], sizes = [4, 16], strides = [1, 1]} : vector<4x64xf32> to vector<4x16xf32>
    %180 = tpu.transpose %179, [1, 0] : vector<4x16xf32> -> vector<16x4xf32>
    %cst_71 = arith.constant dense<0.000000e+00> : vector<4x4xf32>
    %181 = tpu.matmul %178, %180, %cst_71 {dimension_numbers = #tpu.dot_dimension_numbers<[1], [0], [0], [1], [0, 0, 1, 1], [], []>} : vector<4x16xf32>, vector<16x4xf32>, vector<4x4xf32> -> vector<4x4xf32>
    %cst_72 = arith.constant 2.500000e-01 : f32
    %182 = vector.broadcast %cst_72 : f32 to vector<4x4xf32>
    %183 = arith.mulf %181, %182 : vector<4x4xf32>
    %cst_73 = arith.constant dense<0xFF800000> : vector<4xf32>
    %184 = vector.multi_reduction <maximumf>, %183, %cst_73 [1] : vector<4x4xf32> to vector<4xf32>
    %185 = vector.shape_cast %184 : vector<4xf32> to vector<4x1xf32>
    %186 = vector.broadcast %185 : vector<4x1xf32> to vector<4x4xf32>
    %187 = arith.subf %183, %186 : vector<4x4xf32>
    %188 = math.exp %187 : vector<4x4xf32>
    %cst_74 = arith.constant dense<0.000000e+00> : vector<4xf32>
    %189 = vector.multi_reduction <add>, %188, %cst_74 [1] : vector<4x4xf32> to vector<4xf32>
    %190 = vector.shape_cast %189 : vector<4xf32> to vector<4x1xf32>
    %191 = vector.broadcast %190 : vector<4x1xf32> to vector<4x4xf32>
    %192 = arith.divf %188, %191 : vector<4x4xf32>
    %193 = vector.extract_strided_slice %143 {offsets = [0, 32], sizes = [4, 16], strides = [1, 1]} : vector<4x64xf32> to vector<4x16xf32>
    %cst_75 = arith.constant dense<0.000000e+00> : vector<4x16xf32>
    %194 = tpu.matmul %192, %193, %cst_75 {dimension_numbers = #tpu.dot_dimension_numbers<[1], [0], [0], [1], [0, 0, 1, 1], [], []>} : vector<4x4xf32>, vector<4x16xf32>, vector<4x16xf32> -> vector<4x16xf32>
    %195 = vector.extract_strided_slice %133 {offsets = [0, 48], sizes = [4, 16], strides = [1, 1]} : vector<4x64xf32> to vector<4x16xf32>
    %196 = vector.extract_strided_slice %138 {offsets = [0, 48], sizes = [4, 16], strides = [1, 1]} : vector<4x64xf32> to vector<4x16xf32>
    %197 = tpu.transpose %196, [1, 0] : vector<4x16xf32> -> vector<16x4xf32>
    %cst_76 = arith.constant dense<0.000000e+00> : vector<4x4xf32>
    %198 = tpu.matmul %195, %197, %cst_76 {dimension_numbers = #tpu.dot_dimension_numbers<[1], [0], [0], [1], [0, 0, 1, 1], [], []>} : vector<4x16xf32>, vector<16x4xf32>, vector<4x4xf32> -> vector<4x4xf32>
    %cst_77 = arith.constant 2.500000e-01 : f32
    %199 = vector.broadcast %cst_77 : f32 to vector<4x4xf32>
    %200 = arith.mulf %198, %199 : vector<4x4xf32>
    %cst_78 = arith.constant dense<0xFF800000> : vector<4xf32>
    %201 = vector.multi_reduction <maximumf>, %200, %cst_78 [1] : vector<4x4xf32> to vector<4xf32>
    %202 = vector.shape_cast %201 : vector<4xf32> to vector<4x1xf32>
    %203 = vector.broadcast %202 : vector<4x1xf32> to vector<4x4xf32>
    %204 = arith.subf %200, %203 : vector<4x4xf32>
    %205 = math.exp %204 : vector<4x4xf32>
    %cst_79 = arith.constant dense<0.000000e+00> : vector<4xf32>
    %206 = vector.multi_reduction <add>, %205, %cst_79 [1] : vector<4x4xf32> to vector<4xf32>
    %207 = vector.shape_cast %206 : vector<4xf32> to vector<4x1xf32>
    %208 = vector.broadcast %207 : vector<4x1xf32> to vector<4x4xf32>
    %209 = arith.divf %205, %208 : vector<4x4xf32>
    %210 = vector.extract_strided_slice %143 {offsets = [0, 48], sizes = [4, 16], strides = [1, 1]} : vector<4x64xf32> to vector<4x16xf32>
    %cst_80 = arith.constant dense<0.000000e+00> : vector<4x16xf32>
    %211 = tpu.matmul %209, %210, %cst_80 {dimension_numbers = #tpu.dot_dimension_numbers<[1], [0], [0], [1], [0, 0, 1, 1], [], []>} : vector<4x4xf32>, vector<4x16xf32>, vector<4x16xf32> -> vector<4x16xf32>
    %212 = tpu.concatenate %160, %177, %194, %211 in 1 : vector<4x16xf32>, vector<4x16xf32>, vector<4x16xf32>, vector<4x16xf32> -> vector<4x64xf32>
    %c0_81 = arith.constant 0 : index
    %c0_82 = arith.constant 0 : index
    %213 = vector.load %arg19[%c0_81, %c0_82] : memref<64x512xf32, #tpu.memory_space<vmem>>, vector<64x512xf32>
    %cst_83 = arith.constant dense<0.000000e+00> : vector<4x512xf32>
    %214 = tpu.matmul %128, %213, %cst_83 {dimension_numbers = #tpu.dot_dimension_numbers<[1], [0], [0], [1], [0, 0, 1, 1], [], []>} : vector<4x64xf32>, vector<64x512xf32>, vector<4x512xf32> -> vector<4x512xf32>
    %c0_84 = arith.constant 0 : index
    %c0_85 = arith.constant 0 : index
    %215 = vector.load %arg22[%c0_84, %c0_85] : memref<1x512xf32, #tpu.memory_space<vmem>>, vector<1x512xf32>
    %216 = vector.broadcast %215 : vector<1x512xf32> to vector<4x512xf32>
    %217 = arith.addf %214, %216 : vector<4x512xf32>
    %c0_86 = arith.constant 0 : index
    %c0_87 = arith.constant 0 : index
    %218 = vector.load %arg20[%c0_86, %c0_87] : memref<64x512xf32, #tpu.memory_space<vmem>>, vector<64x512xf32>
    %c0_88 = arith.constant 0 : index
    %c0_89 = arith.constant 0 : index
    %219 = vector.load %arg21[%c0_88, %c0_89] : memref<64x512xf32, #tpu.memory_space<vmem>>, vector<64x512xf32>
    %cst_90 = arith.constant 0.000000e+00 : f32
    %220 = vector.broadcast %cst_90 : f32 to vector<4x64xf32>
    %cst_91 = arith.constant 0.000000e+00 : f32
    %221 = vector.broadcast %cst_91 : f32 to vector<4x64xf32>
    %cst_92 = arith.constant 0.000000e+00 : f32
    %222 = vector.broadcast %cst_92 : f32 to vector<4x128xf32>
    %cst_93 = arith.constant dense<0.000000e+00> : vector<4x512xf32>
    %223 = tpu.matmul %220, %218, %cst_93 {dimension_numbers = #tpu.dot_dimension_numbers<[1], [0], [0], [1], [0, 0, 1, 1], [], []>} : vector<4x64xf32>, vector<64x512xf32>, vector<4x512xf32> -> vector<4x512xf32>
    %224 = arith.addf %217, %223 : vector<4x512xf32>
    %cst_94 = arith.constant dense<0.000000e+00> : vector<4x512xf32>
    %225 = tpu.matmul %221, %219, %cst_94 {dimension_numbers = #tpu.dot_dimension_numbers<[1], [0], [0], [1], [0, 0, 1, 1], [], []>} : vector<4x64xf32>, vector<64x512xf32>, vector<4x512xf32> -> vector<4x512xf32>
    %226 = arith.addf %224, %225 : vector<4x512xf32>
    %227 = vector.extract_strided_slice %226 {offsets = [0, 0], sizes = [4, 128], strides = [1, 1]} : vector<4x512xf32> to vector<4x128xf32>
    %cst_95 = arith.constant 0.000000e+00 : f32
    %228 = vector.broadcast %cst_95 : f32 to vector<4x128xf32>
    %229 = arith.subf %228, %227 : vector<4x128xf32>
    %230 = math.exp %229 : vector<4x128xf32>
    %cst_96 = arith.constant 1.000000e+00 : f32
    %231 = vector.broadcast %cst_96 : f32 to vector<4x128xf32>
    %232 = arith.addf %231, %230 : vector<4x128xf32>
    %cst_97 = arith.constant 1.000000e+00 : f32
    %233 = vector.broadcast %cst_97 : f32 to vector<4x128xf32>
    %234 = arith.divf %233, %232 : vector<4x128xf32>
    %235 = vector.extract_strided_slice %226 {offsets = [0, 128], sizes = [4, 128], strides = [1, 1]} : vector<4x512xf32> to vector<4x128xf32>
    %cst_98 = arith.constant 0.000000e+00 : f32
    %236 = vector.broadcast %cst_98 : f32 to vector<4x128xf32>
    %237 = arith.subf %236, %235 : vector<4x128xf32>
    %238 = math.exp %237 : vector<4x128xf32>
    %cst_99 = arith.constant 1.000000e+00 : f32
    %239 = vector.broadcast %cst_99 : f32 to vector<4x128xf32>
    %240 = arith.addf %239, %238 : vector<4x128xf32>
    %cst_100 = arith.constant 1.000000e+00 : f32
    %241 = vector.broadcast %cst_100 : f32 to vector<4x128xf32>
    %242 = arith.divf %241, %240 : vector<4x128xf32>
    %243 = vector.extract_strided_slice %226 {offsets = [0, 256], sizes = [4, 128], strides = [1, 1]} : vector<4x512xf32> to vector<4x128xf32>
    %244 = math.tanh %243 : vector<4x128xf32>
    %245 = vector.extract_strided_slice %226 {offsets = [0, 384], sizes = [4, 128], strides = [1, 1]} : vector<4x512xf32> to vector<4x128xf32>
    %cst_101 = arith.constant 0.000000e+00 : f32
    %246 = vector.broadcast %cst_101 : f32 to vector<4x128xf32>
    %247 = arith.subf %246, %245 : vector<4x128xf32>
    %248 = math.exp %247 : vector<4x128xf32>
    %cst_102 = arith.constant 1.000000e+00 : f32
    %249 = vector.broadcast %cst_102 : f32 to vector<4x128xf32>
    %250 = arith.addf %249, %248 : vector<4x128xf32>
    %cst_103 = arith.constant 1.000000e+00 : f32
    %251 = vector.broadcast %cst_103 : f32 to vector<4x128xf32>
    %252 = arith.divf %251, %250 : vector<4x128xf32>
    %253 = arith.mulf %242, %222 : vector<4x128xf32>
    %254 = arith.mulf %234, %244 : vector<4x128xf32>
    %255 = arith.addf %253, %254 : vector<4x128xf32>
    %256 = math.tanh %255 : vector<4x128xf32>
    %257 = arith.mulf %252, %256 : vector<4x128xf32>
    %258 = vector.extract_strided_slice %257 {offsets = [0, 0], sizes = [4, 64], strides = [1, 1]} : vector<4x128xf32> to vector<4x64xf32>
    %259 = arith.addf %128, %258 : vector<4x64xf32>
    %260 = tpu.transpose %212, [1, 0] : vector<4x64xf32> -> vector<64x4xf32>
    %cst_104 = arith.constant dense<0.000000e+00> : vector<4x4xf32>
    %261 = tpu.matmul %259, %260, %cst_104 {dimension_numbers = #tpu.dot_dimension_numbers<[1], [0], [0], [1], [0, 0, 1, 1], [], []>} : vector<4x64xf32>, vector<64x4xf32>, vector<4x4xf32> -> vector<4x4xf32>
    %cst_105 = arith.constant dense<0xFF800000> : vector<4xf32>
    %262 = vector.multi_reduction <maximumf>, %261, %cst_105 [1] : vector<4x4xf32> to vector<4xf32>
    %263 = vector.shape_cast %262 : vector<4xf32> to vector<4x1xf32>
    %264 = vector.broadcast %263 : vector<4x1xf32> to vector<4x4xf32>
    %265 = arith.subf %261, %264 : vector<4x4xf32>
    %266 = math.exp %265 : vector<4x4xf32>
    %cst_106 = arith.constant dense<0.000000e+00> : vector<4xf32>
    %267 = vector.multi_reduction <add>, %266, %cst_106 [1] : vector<4x4xf32> to vector<4xf32>
    %268 = vector.shape_cast %267 : vector<4xf32> to vector<4x1xf32>
    %269 = vector.broadcast %268 : vector<4x1xf32> to vector<4x4xf32>
    %270 = arith.divf %266, %269 : vector<4x4xf32>
    %cst_107 = arith.constant dense<0.000000e+00> : vector<4x64xf32>
    %271 = tpu.matmul %270, %212, %cst_107 {dimension_numbers = #tpu.dot_dimension_numbers<[1], [0], [0], [1], [0, 0, 1, 1], [], []>} : vector<4x4xf32>, vector<4x64xf32>, vector<4x64xf32> -> vector<4x64xf32>
    %cst_108 = arith.constant dense<0.000000e+00> : vector<4x512xf32>
    %272 = tpu.matmul %259, %218, %cst_108 {dimension_numbers = #tpu.dot_dimension_numbers<[1], [0], [0], [1], [0, 0, 1, 1], [], []>} : vector<4x64xf32>, vector<64x512xf32>, vector<4x512xf32> -> vector<4x512xf32>
    %273 = arith.addf %217, %272 : vector<4x512xf32>
    %cst_109 = arith.constant dense<0.000000e+00> : vector<4x512xf32>
    %274 = tpu.matmul %271, %219, %cst_109 {dimension_numbers = #tpu.dot_dimension_numbers<[1], [0], [0], [1], [0, 0, 1, 1], [], []>} : vector<4x64xf32>, vector<64x512xf32>, vector<4x512xf32> -> vector<4x512xf32>
    %275 = arith.addf %273, %274 : vector<4x512xf32>
    %276 = vector.extract_strided_slice %275 {offsets = [0, 0], sizes = [4, 128], strides = [1, 1]} : vector<4x512xf32> to vector<4x128xf32>
    %cst_110 = arith.constant 0.000000e+00 : f32
    %277 = vector.broadcast %cst_110 : f32 to vector<4x128xf32>
    %278 = arith.subf %277, %276 : vector<4x128xf32>
    %279 = math.exp %278 : vector<4x128xf32>
    %cst_111 = arith.constant 1.000000e+00 : f32
    %280 = vector.broadcast %cst_111 : f32 to vector<4x128xf32>
    %281 = arith.addf %280, %279 : vector<4x128xf32>
    %cst_112 = arith.constant 1.000000e+00 : f32
    %282 = vector.broadcast %cst_112 : f32 to vector<4x128xf32>
    %283 = arith.divf %282, %281 : vector<4x128xf32>
    %284 = vector.extract_strided_slice %275 {offsets = [0, 128], sizes = [4, 128], strides = [1, 1]} : vector<4x512xf32> to vector<4x128xf32>
    %cst_113 = arith.constant 0.000000e+00 : f32
    %285 = vector.broadcast %cst_113 : f32 to vector<4x128xf32>
    %286 = arith.subf %285, %284 : vector<4x128xf32>
    %287 = math.exp %286 : vector<4x128xf32>
    %cst_114 = arith.constant 1.000000e+00 : f32
    %288 = vector.broadcast %cst_114 : f32 to vector<4x128xf32>
    %289 = arith.addf %288, %287 : vector<4x128xf32>
    %cst_115 = arith.constant 1.000000e+00 : f32
    %290 = vector.broadcast %cst_115 : f32 to vector<4x128xf32>
    %291 = arith.divf %290, %289 : vector<4x128xf32>
    %292 = vector.extract_strided_slice %275 {offsets = [0, 256], sizes = [4, 128], strides = [1, 1]} : vector<4x512xf32> to vector<4x128xf32>
    %293 = math.tanh %292 : vector<4x128xf32>
    %294 = vector.extract_strided_slice %275 {offsets = [0, 384], sizes = [4, 128], strides = [1, 1]} : vector<4x512xf32> to vector<4x128xf32>
    %cst_116 = arith.constant 0.000000e+00 : f32
    %295 = vector.broadcast %cst_116 : f32 to vector<4x128xf32>
    %296 = arith.subf %295, %294 : vector<4x128xf32>
    %297 = math.exp %296 : vector<4x128xf32>
    %cst_117 = arith.constant 1.000000e+00 : f32
    %298 = vector.broadcast %cst_117 : f32 to vector<4x128xf32>
    %299 = arith.addf %298, %297 : vector<4x128xf32>
    %cst_118 = arith.constant 1.000000e+00 : f32
    %300 = vector.broadcast %cst_118 : f32 to vector<4x128xf32>
    %301 = arith.divf %300, %299 : vector<4x128xf32>
    %302 = arith.mulf %291, %255 : vector<4x128xf32>
    %303 = arith.mulf %283, %293 : vector<4x128xf32>
    %304 = arith.addf %302, %303 : vector<4x128xf32>
    %305 = math.tanh %304 : vector<4x128xf32>
    %306 = arith.mulf %301, %305 : vector<4x128xf32>
    %307 = vector.extract_strided_slice %306 {offsets = [0, 0], sizes = [4, 64], strides = [1, 1]} : vector<4x128xf32> to vector<4x64xf32>
    %308 = arith.addf %128, %307 : vector<4x64xf32>
    %cst_119 = arith.constant dense<0.000000e+00> : vector<64xf32>
    %309 = vector.multi_reduction <add>, %212, %cst_119 [0] : vector<4x64xf32> to vector<64xf32>
    %310 = vector.shape_cast %309 : vector<64xf32> to vector<1x64xf32>
    %cst_120 = arith.constant 4.000000e+00 : f32
    %311 = vector.broadcast %cst_120 : f32 to vector<1x64xf32>
    %312 = arith.divf %310, %311 : vector<1x64xf32>
    %313 = vector.broadcast %312 : vector<1x64xf32> to vector<4x64xf32>
    %314 = arith.mulf %308, %313 : vector<4x64xf32>
    %cst_121 = arith.constant dense<0.000000e+00> : vector<4xf32>
    %315 = vector.multi_reduction <add>, %314, %cst_121 [1] : vector<4x64xf32> to vector<4xf32>
    %316 = vector.shape_cast %315 : vector<4xf32> to vector<4x1xf32>
    %c0_122 = arith.constant 0 : index
    %c0_123 = arith.constant 0 : index
    %317 = vector.load %arg23[%c0_122, %c0_123] : memref<4x1xf32, #tpu.memory_space<vmem>>, vector<4x1xf32>
    tpu.vector_store %arg23[%c0_122, %c0_123], %316 {strides = array<i32>} : memref<4x1xf32, #tpu.memory_space<vmem>>, vector<4x1xf32>,
    return
  }
}

</mosaic_0001>

<llo_original>
// kernel: matcher_forward.1
$region0: #{matcher_forward.1}
  #allocation0 [shape = 'u32[]', space=smem, size = 0x4, offset = 0x4, fixed_abs, tag = 'smem constant byte address 0x4 - core index']
  #allocation1 [shape = 'u32[144,128]{1,0:T(1,128)}', space=vmem, size = 0x12000, scoped, tag = 'internal scratch']
  #allocation2 [shape = 's32[1,1]{1,0:T(1,128)S(1)}', space=vmem, size = 0x200, scoped, tag = 'scoped memory for matcher_forward.1']
  %s0 = inlined_call_operand.<no memory space> [shape: s32[1,1], index: 0, kind: input, shape index: {}]
  %s1 = inlined_call_operand.vmem [shape: s32[16,16], index: 1, kind: input, shape index: {}]
  %s2 = inlined_call_operand.vmem [shape: s32[16,16], index: 2, kind: input, shape index: {}]
  %s3 = inlined_call_operand.vmem [shape: f32[16,16], index: 3, kind: input, shape index: {}]
  %s4 = inlined_call_operand.vmem [shape: f32[16,1], index: 4, kind: input, shape index: {}]
  %s5 = inlined_call_operand.vmem [shape: s32[16,1], index: 5, kind: input, shape index: {}]
  %s6 = inlined_call_operand.vmem [shape: f32[16,1], index: 6, kind: input, shape index: {}]
  %s7 = inlined_call_operand.hbm [shape: f32[24,32], index: 7, kind: input, shape index: {}]
  %s8 = inlined_call_operand.vmem [shape: f32[32,24], index: 8, kind: input, shape index: {}]
  %s9 = inlined_call_operand.hbm [shape: f32[32,32], index: 9, kind: input, shape index: {}]
  %s10 = inlined_call_operand.hbm [shape: f32[32,32], index: 10, kind: input, shape index: {}]
  %s11 = inlined_call_operand.hbm [shape: f32[1,32], index: 11, kind: input, shape index: {}]
  %s12 = inlined_call_operand.hbm [shape: f32[1,64], index: 12, kind: input, shape index: {}]
  %s13 = inlined_call_operand.vmem [shape: f32[64,64], index: 13, kind: input, shape index: {}]
  %s14 = inlined_call_operand.hbm [shape: f32[1,64], index: 14, kind: input, shape index: {}]
  %s15 = inlined_call_operand.hbm [shape: f32[64,64], index: 15, kind: input, shape index: {}]
  %s16 = inlined_call_operand.hbm [shape: f32[1,64], index: 16, kind: input, shape index: {}]
  %s17 = inlined_call_operand.hbm [shape: f32[64,64], index: 17, kind: input, shape index: {}]
  %s18 = inlined_call_operand.hbm [shape: f32[1,64], index: 18, kind: input, shape index: {}]
  %s19 = inlined_call_operand.vmem [shape: f32[64,512], index: 19, kind: input, shape index: {}]
  %s20 = inlined_call_operand.hbm [shape: f32[64,512], index: 20, kind: input, shape index: {}]
  %s21 = inlined_call_operand.hbm [shape: f32[64,512], index: 21, kind: input, shape index: {}]
  %s22 = inlined_call_operand.hbm [shape: f32[1,512], index: 22, kind: input, shape index: {}]
  %s23 = inlined_call_operand.vmem [shape: f32[4,1], index: 23, kind: output, shape index: {}]
  %s24 = sld [smem:[#allocation0]]
  $region154: #{matcher_forward.1} parent=0
    _
  %s26 = ssub.s32 1, %s24
  %s27 = scalar_select 0, %s26, %s24
  %v28 = vstv %s0
  %29 = vst [vmem:[#allocation2] sm:$0x1] %v28
  $region1: #{matcher_forward.1} parent=0
    #allocation3 [shape = 'u8[12288]{0}', space=vmem, size = 0x3000, scoped, tag = 'input window, operand 7, single buffered']
    #allocation4 [shape = 's32[1]{0}', space=sflag, size = 0x4, scoped, tag = 'scoped memory for matcher_forward.1']
    #allocation5 [shape = 'u8[16384]{0}', space=vmem, size = 0x4000, scoped, tag = 'input window, operand 9, single buffered']
    #allocation6 [shape = 's32[1]{0}', space=sflag, size = 0x4, scoped, tag = 'scoped memory for matcher_forward.1']
    #allocation7 [shape = 'u8[16384]{0}', space=vmem, size = 0x4000, scoped, tag = 'input window, operand 10, single buffered']
    #allocation8 [shape = 'u8[512]{0}', space=vmem, size = 0x400, scoped, tag = 'input window, operand 11, single buffered']
    #allocation9 [shape = 's32[1]{0}', space=sflag, size = 0x4, scoped, tag = 'scoped memory for matcher_forward.1']
    #allocation10 [shape = 'u8[512]{0}', space=vmem, size = 0x400, scoped, tag = 'input window, operand 12, single buffered']
    #allocation11 [shape = 'u8[512]{0}', space=vmem, size = 0x400, scoped, tag = 'input window, operand 14, single buffered']
    #allocation12 [shape = 's32[1]{0}', space=sflag, size = 0x4, scoped, tag = 'scoped memory for matcher_forward.1']
    #allocation13 [shape = 'u8[32768]{0}', space=vmem, size = 0x8000, scoped, tag = 'input window, operand 15, single buffered']
    #allocation14 [shape = 'u8[512]{0}', space=vmem, size = 0x400, scoped, tag = 'input window, operand 16, single buffered']
    #allocation15 [shape = 's32[1]{0}', space=sflag, size = 0x4, scoped, tag = 'scoped memory for matcher_forward.1']
    #allocation16 [shape = 'u8[32768]{0}', space=vmem, size = 0x8000, scoped, tag = 'input window, operand 17, single buffered']
    #allocation17 [shape = 'u8[512]{0}', space=vmem, size = 0x400, scoped, tag = 'input window, operand 18, single buffered']
    #allocation18 [shape = 's32[1]{0}', space=sflag, size = 0x4, scoped, tag = 'scoped memory for matcher_forward.1']
    #allocation19 [shape = 'u8[131072]{0}', space=vmem, size = 0x20000, scoped, tag = 'input window, operand 20, single buffered']
    #allocation20 [shape = 'u8[131072]{0}', space=vmem, size = 0x20000, scoped, tag = 'input window, operand 21, single buffered']
    #allocation21 [shape = 's32[1]{0}', space=sflag, size = 0x4, scoped, tag = 'scoped memory for matcher_forward.1']
    #allocation22 [shape = 'u8[2048]{0}', space=vmem, size = 0x800, scoped, tag = 'input window, operand 22, single buffered']
    %30 = vsyncpa [#allocation4], 0
    %31 = vsyncpa [#allocation6], 0
    %32 = vsyncpa [#allocation9], 0
    %33 = vsyncpa [#allocation12], 0
    %34 = vsyncpa [#allocation15], 0
    %35 = vsyncpa [#allocation18], 0
    %36 = vsyncpa [#allocation21], 0
    // Predicated region
    $region2: #{matcher_forward.1} parent=1 // pred_check
      _
    $region3: #{matcher_forward.1} parent=1 // pred_check_branch
      %38 = sbr.rel (0) target = $region5
    $region4: #{matcher_forward.1} parent=1 // pred_region
      _
    $region5: #{matcher_forward.1} parent=1 // pred_fallthru
      _
    // Predicated region
    $region6: #{matcher_forward.1} parent=1 // pred_check
      _
    $region7: #{matcher_forward.1} parent=1 // pred_check_branch
      %40 = sbr.rel (0) target = $region9
    $region8: #{matcher_forward.1} parent=1 // pred_region
      _
    $region9: #{matcher_forward.1} parent=1 // pred_fallthru
      _
    // Predicated region
    $region10: #{matcher_forward.1} parent=1 // pred_check
      _
    $region11: #{matcher_forward.1} parent=1 // pred_check_branch
      %42 = sbr.rel (0) target = $region13
    $region12: #{matcher_forward.1} parent=1 // pred_region
      _
    $region13: #{matcher_forward.1} parent=1 // pred_fallthru
      _
    // Predicated region
    $region14: #{matcher_forward.1} parent=1 // pred_check
      _
    $region15: #{matcher_forward.1} parent=1 // pred_check_branch
      %44 = sbr.rel (0) target = $region17
    $region16: #{matcher_forward.1} parent=1 // pred_region
      _
    $region17: #{matcher_forward.1} parent=1 // pred_fallthru
      _
    // Predicated region
    $region18: #{matcher_forward.1} parent=1 // pred_check
      _
    $region19: #{matcher_forward.1} parent=1 // pred_check_branch
      %46 = sbr.rel (0) target = $region21
    $region20: #{matcher_forward.1} parent=1 // pred_region
      _
    $region21: #{matcher_forward.1} parent=1 // pred_fallthru
      _
    // Predicated region
    $region22: #{matcher_forward.1} parent=1 // pred_check
      _
    $region23: #{matcher_forward.1} parent=1 // pred_check_branch
      %48 = sbr.rel (0) target = $region25
    $region24: #{matcher_forward.1} parent=1 // pred_region
      _
    $region25: #{matcher_forward.1} parent=1 // pred_fallthru
      _
    // Predicated region
    $region26: #{matcher_forward.1} parent=1 // pred_check
      _
    $region27: #{matcher_forward.1} parent=1 // pred_check_branch
      %50 = sbr.rel (0) target = $region29
    $region28: #{matcher_forward.1} parent=1 // pred_region
      _
    $region29: #{matcher_forward.1} parent=1 // pred_fallthru
      _
    // Predicated region
    $region30: #{matcher_forward.1} parent=1 // pred_check
      _
    $region31: #{matcher_forward.1} parent=1 // pred_check_branch
      %52 = sbr.rel (0) target = $region33
    $region32: #{matcher_forward.1} parent=1 // pred_region
      %s54 = ssub.s32 384, 384
      %55 = vsyncadd [#allocation4], %s54
      %s56 = sshll.u32 [#allocation3], 4
      %s57 = int_to_ptr.vmem [resolvable:$true] %s56
      %62 = dma.hbm_to_vmem [thread:$0]  %s7, 384, %s57, [#allocation4], 128, 128, 8
    $region33: #{matcher_forward.1} parent=1 // pred_fallthru
      _
    // Predicated region
    $region34: #{matcher_forward.1} parent=1 // pred_check
      _
    $region35: #{matcher_forward.1} parent=1 // pred_check_branch
      %64 = sbr.rel (0) target = $region37
    $region36: #{matcher_forward.1} parent=1 // pred_region
      _
    $region37: #{matcher_forward.1} parent=1 // pred_fallthru
      _
    // Predicated region
    $region38: #{matcher_forward.1} parent=1 // pred_check
      _
    $region39: #{matcher_forward.1} parent=1 // pred_check_branch
      %66 = sbr.rel (0) target = $region41
    $region40: #{matcher_forward.1} parent=1 // pred_region
      %s68 = ssub.s32 512, 512
      %69 = vsyncadd [#allocation6], %s68
      %s70 = sshll.u32 [#allocation5], 4
      %s71 = int_to_ptr.vmem [resolvable:$true] %s70
      %76 = dma.hbm_to_vmem [thread:$0]  %s9, 512, %s71, [#allocation6], 128, 128, 8
    $region41: #{matcher_forward.1} parent=1 // pred_fallthru
      _
    // Predicated region
    $region42: #{matcher_forward.1} parent=1 // pred_check
      _
    $region43: #{matcher_forward.1} parent=1 // pred_check_branch
      %78 = sbr.rel (0) target = $region45
    $region44: #{matcher_forward.1} parent=1 // pred_region
      %s80 = ssub.s32 512, 512
      %81 = vsyncadd [#allocation6], %s80
      %s82 = sshll.u32 [#allocation7], 4
      %s83 = int_to_ptr.vmem [resolvable:$true] %s82
      %88 = dma.hbm_to_vmem [thread:$0]  %s10, 512, %s83, [#allocation6], 128, 128, 8
    $region45: #{matcher_forward.1} parent=1 // pred_fallthru
      _
    // Predicated region
    $region46: #{matcher_forward.1} parent=1 // pred_check
      _
    $region47: #{matcher_forward.1} parent=1 // pred_check_branch
      %90 = sbr.rel (0) target = $region49
    $region48: #{matcher_forward.1} parent=1 // pred_region
      %s92 = ssub.s32 16, 16
      %93 = vsyncadd [#allocation9], %s92
      %s95 = sshll.u32 [#allocation8], 4
      %s96 = int_to_ptr.vmem [resolvable:$true] %s95
      %98 = dma.hbm_to_vmem [thread:$0]  %s11, 16, %s96, [#allocation9]
    $region49: #{matcher_forward.1} parent=1 // pred_fallthru
      _
    // Predicated region
    $region50: #{matcher_forward.1} parent=1 // pred_check
      _
    $region51: #{matcher_forward.1} parent=1 // pred_check_branch
      %100 = sbr.rel (0) target = $region53
    $region52: #{matcher_forward.1} parent=1 // pred_region
      %s102 = ssub.s32 16, 16
      %103 = vsyncadd [#allocation9], %s102
      %s105 = sshll.u32 [#allocation10], 4
      %s106 = int_to_ptr.vmem [resolvable:$true] %s105
      %108 = dma.hbm_to_vmem [thread:$0]  %s12, 16, %s106, [#allocation9]
    $region53: #{matcher_forward.1} parent=1 // pred_fallthru
      _
    // Predicated region
    $region54: #{matcher_forward.1} parent=1 // pred_check
      _
    $region55: #{matcher_forward.1} parent=1 // pred_check_branch
      %110 = sbr.rel (0) target = $region57
    $region56: #{matcher_forward.1} parent=1 // pred_region
      _
    $region57: #{matcher_forward.1} parent=1 // pred_fallthru
      _
    // Predicated region
    $region58: #{matcher_forward.1} parent=1 // pred_check
      _
    $region59: #{matcher_forward.1} parent=1 // pred_check_branch
      %112 = sbr.rel (0) target = $region61
    $region60: #{matcher_forward.1} parent=1 // pred_region
      %s114 = ssub.s32 16, 16
      %115 = vsyncadd [#allocation12], %s114
      %s117 = sshll.u32 [#allocation11], 4
      %s118 = int_to_ptr.vmem [resolvable:$true] %s117
      %120 = dma.hbm_to_vmem [thread:$0]  %s14, 16, %s118, [#allocation12]
    $region61: #{matcher_forward.1} parent=1 // pred_fallthru
      _
    // Predicated region
    $region62: #{matcher_forward.1} parent=1 // pred_check
      _
    $region63: #{matcher_forward.1} parent=1 // pred_check_branch
      %122 = sbr.rel (0) target = $region65
    $region64: #{matcher_forward.1} parent=1 // pred_region
      %s124 = ssub.s32 1024, 1024
      %125 = vsyncadd [#allocation12], %s124
      %s126 = sshll.u32 [#allocation13], 4
      %s127 = int_to_ptr.vmem [resolvable:$true] %s126
      %132 = dma.hbm_to_vmem [thread:$0]  %s15, 1024, %s127, [#allocation12], 128, 128, 8
    $region65: #{matcher_forward.1} parent=1 // pred_fallthru
      _
    // Predicated region
    $region66: #{matcher_forward.1} parent=1 // pred_check
      _
    $region67: #{matcher_forward.1} parent=1 // pred_check_branch
      %134 = sbr.rel (0) target = $region69
    $region68: #{matcher_forward.1} parent=1 // pred_region
      %s136 = ssub.s32 16, 16
      %137 = vsyncadd [#allocation15], %s136
      %s139 = sshll.u32 [#allocation14], 4
      %s140 = int_to_ptr.vmem [resolvable:$true] %s139
      %142 = dma.hbm_to_vmem [thread:$0]  %s16, 16, %s140, [#allocation15]
    $region69: #{matcher_forward.1} parent=1 // pred_fallthru
      _
    // Predicated region
    $region70: #{matcher_forward.1} parent=1 // pred_check
      _
    $region71: #{matcher_forward.1} parent=1 // pred_check_branch
      %144 = sbr.rel (0) target = $region73
    $region72: #{matcher_forward.1} parent=1 // pred_region
      %s146 = ssub.s32 1024, 1024
      %147 = vsyncadd [#allocation15], %s146
      %s148 = sshll.u32 [#allocation16], 4
      %s149 = int_to_ptr.vmem [resolvable:$true] %s148
      %154 = dma.hbm_to_vmem [thread:$0]  %s17, 1024, %s149, [#allocation15], 128, 128, 8
    $region73: #{matcher_forward.1} parent=1 // pred_fallthru
      _
    // Predicated region
    $region74: #{matcher_forward.1} parent=1 // pred_check
      _
    $region75: #{matcher_forward.1} parent=1 // pred_check_branch
      %156 = sbr.rel (0) target = $region77
    $region76: #{matcher_forward.1} parent=1 // pred_region
      %s158 = ssub.s32 16, 16
      %159 = vsyncadd [#allocation18], %s158
      %s161 = sshll.u32 [#allocation17], 4
      %s162 = int_to_ptr.vmem [resolvable:$true] %s161
      %164 = dma.hbm_to_vmem [thread:$0]  %s18, 16, %s162, [#allocation18]
    $region77: #{matcher_forward.1} parent=1 // pred_fallthru
      _
    // Predicated region
    $region78: #{matcher_forward.1} parent=1 // pred_check
      _
    $region79: #{matcher_forward.1} parent=1 // pred_check_branch
      %166 = sbr.rel (0) target = $region81
    $region80: #{matcher_forward.1} parent=1 // pred_region
      _
    $region81: #{matcher_forward.1} parent=1 // pred_fallthru
      _
    // Predicated region
    $region82: #{matcher_forward.1} parent=1 // pred_check
      _
    $region83: #{matcher_forward.1} parent=1 // pred_check_branch
      %168 = sbr.rel (0) target = $region85
    $region84: #{matcher_forward.1} parent=1 // pred_region
      %s170 = ssub.s32 4096, 4096
      %171 = vsyncadd [#allocation18], %s170
      %s172 = sshll.u32 [#allocation19], 4
      %s173 = int_to_ptr.vmem [resolvable:$true] %s172
      %178 = dma.hbm_to_vmem [thread:$0]  %s20, 4096, %s173, [#allocation18], 512, 512, 32
    $region85: #{matcher_forward.1} parent=1 // pred_fallthru
      _
    // Predicated region
    $region86: #{matcher_forward.1} parent=1 // pred_check
      _
    $region87: #{matcher_forward.1} parent=1 // pred_check_branch
      %180 = sbr.rel (0) target = $region89
    $region88: #{matcher_forward.1} parent=1 // pred_region
      %s182 = ssub.s32 4096, 4096
      %183 = vsyncadd [#allocation21], %s182
      %s184 = sshll.u32 [#allocation20], 4
      %s185 = int_to_ptr.vmem [resolvable:$true] %s184
      %190 = dma.hbm_to_vmem [thread:$0]  %s21, 4096, %s185, [#allocation21], 512, 512, 32
    $region89: #{matcher_forward.1} parent=1 // pred_fallthru
      _
    // Predicated region
    $region90: #{matcher_forward.1} parent=1 // pred_check
      _
    $region91: #{matcher_forward.1} parent=1 // pred_check_branch
      %192 = sbr.rel (0) target = $region93
    $region92: #{matcher_forward.1} parent=1 // pred_region
      %s194 = ssub.s32 64, 64
      %195 = vsyncadd [#allocation21], %s194
      %s197 = sshll.u32 [#allocation22], 4
      %s198 = int_to_ptr.vmem [resolvable:$true] %s197
      %200 = dma.hbm_to_vmem [thread:$0]  %s22, 64, %s198, [#allocation21]
    $region93: #{matcher_forward.1} parent=1 // pred_fallthru
      _
    // Predicated region
    $region94: #{matcher_forward.1} parent=1 // pred_check
      _
    $region95: #{matcher_forward.1} parent=1 // pred_check_branch
      %202 = sbr.rel (0) target = $region97
    $region96: #{matcher_forward.1} parent=1 // pred_region
      %203 = dma.done [#allocation4], 384
    $region97: #{matcher_forward.1} parent=1 // pred_fallthru
      _
    // Predicated region
    $region98: #{matcher_forward.1} parent=1 // pred_check
      _
    $region99: #{matcher_forward.1} parent=1 // pred_check_branch
      %205 = sbr.rel (0) target = $region101
    $region100: #{matcher_forward.1} parent=1 // pred_region
      %206 = dma.done [#allocation6], 512
    $region101: #{matcher_forward.1} parent=1 // pred_fallthru
      _
    // Predicated region
    $region102: #{matcher_forward.1} parent=1 // pred_check
      _
    $region103: #{matcher_forward.1} parent=1 // pred_check_branch
      %208 = sbr.rel (0) target = $region105
    $region104: #{matcher_forward.1} parent=1 // pred_region
      %209 = dma.done [#allocation6], 512
    $region105: #{matcher_forward.1} parent=1 // pred_fallthru
      _
    // Predicated region
    $region106: #{matcher_forward.1} parent=1 // pred_check
      _
    $region107: #{matcher_forward.1} parent=1 // pred_check_branch
      %211 = sbr.rel (0) target = $region109
    $region108: #{matcher_forward.1} parent=1 // pred_region
      %212 = dma.done [#allocation9], 16
    $region109: #{matcher_forward.1} parent=1 // pred_fallthru
      _
    // Predicated region
    $region110: #{matcher_forward.1} parent=1 // pred_check
      _
    $region111: #{matcher_forward.1} parent=1 // pred_check_branch
      %214 = sbr.rel (0) target = $region113
    $region112: #{matcher_forward.1} parent=1 // pred_region
      %215 = dma.done [#allocation9], 16
    $region113: #{matcher_forward.1} parent=1 // pred_fallthru
      _
    // Predicated region
    $region114: #{matcher_forward.1} parent=1 // pred_check
      _
    $region115: #{matcher_forward.1} parent=1 // pred_check_branch
      %217 = sbr.rel (0) target = $region117
    $region116: #{matcher_forward.1} parent=1 // pred_region
      %218 = dma.done [#allocation12], 16
    $region117: #{matcher_forward.1} parent=1 // pred_fallthru
      _
    // Predicated region
    $region118: #{matcher_forward.1} parent=1 // pred_check
      _
    $region119: #{matcher_forward.1} parent=1 // pred_check_branch
      %220 = sbr.rel (0) target = $region121
    $region120: #{matcher_forward.1} parent=1 // pred_region
      %221 = dma.done [#allocation12], 1024
    $region121: #{matcher_forward.1} parent=1 // pred_fallthru
      _
    // Predicated region
    $region122: #{matcher_forward.1} parent=1 // pred_check
      _
    $region123: #{matcher_forward.1} parent=1 // pred_check_branch
      %223 = sbr.rel (0) target = $region125
    $region124: #{matcher_forward.1} parent=1 // pred_region
      %224 = dma.done [#allocation15], 16
    $region125: #{matcher_forward.1} parent=1 // pred_fallthru
      _
    // Predicated region
    $region126: #{matcher_forward.1} parent=1 // pred_check
      _
    $region127: #{matcher_forward.1} parent=1 // pred_check_branch
      %226 = sbr.rel (0) target = $region129
    $region128: #{matcher_forward.1} parent=1 // pred_region
      %227 = dma.done [#allocation15], 1024
    $region129: #{matcher_forward.1} parent=1 // pred_fallthru
      _
    // Predicated region
    $region130: #{matcher_forward.1} parent=1 // pred_check
      _
    $region131: #{matcher_forward.1} parent=1 // pred_check_branch
      %229 = sbr.rel (0) target = $region133
    $region132: #{matcher_forward.1} parent=1 // pred_region
      %230 = dma.done [#allocation18], 16
    $region133: #{matcher_forward.1} parent=1 // pred_fallthru
      _
    // Predicated region
    $region134: #{matcher_forward.1} parent=1 // pred_check
      _
    $region135: #{matcher_forward.1} parent=1 // pred_check_branch
      %232 = sbr.rel (0) target = $region137
    $region136: #{matcher_forward.1} parent=1 // pred_region
      %233 = dma.done [#allocation18], 4096
    $region137: #{matcher_forward.1} parent=1 // pred_fallthru
      _
    // Predicated region
    $region138: #{matcher_forward.1} parent=1 // pred_check
      _
    $region139: #{matcher_forward.1} parent=1 // pred_check_branch
      %235 = sbr.rel (0) target = $region141
    $region140: #{matcher_forward.1} parent=1 // pred_region
      %236 = dma.done [#allocation21], 4096
    $region141: #{matcher_forward.1} parent=1 // pred_fallthru
      _
    // Predicated region
    $region142: #{matcher_forward.1} parent=1 // pred_check
      _
    $region143: #{matcher_forward.1} parent=1 // pred_check_branch
      %238 = sbr.rel (0) target = $region145
    $region144: #{matcher_forward.1} parent=1 // pred_region
      %239 = dma.done [#allocation21], 64
    $region145: #{matcher_forward.1} parent=1 // pred_fallthru
      _
    %v240 = vld [vmem:[#allocation3] sm:$0xff]
    %v241 = vld [vmem:[#allocation3 + $0x8] sm:$0xff]
    %v242 = vld [vmem:[#allocation3 + $0x10] sm:$0xff]
    %v243 = vld [vmem:[%s1] sm:$0xff]
    %v244 = vld [vmem:[%s1 + $0x8] sm:$0xff]
    %v245 = vld [vmem:[%s4] sm:$0xff]
    %v246 = vld [vmem:[%s4 + $0x8] sm:$0xff]
    %v247 = vlaneseq
    %v248 = vand.u32 %v247, 127
    %v249 = vlaneseq
    %v250 = vshrl.u32 %v249, 7
    %v251 = vsub.s32 0, %v250
    %v252 = vrot.slane %v243, %v251
    %254 = vbcast.lane.b32.xlu0 %v252, 256
    %v255 = vpop.permute.xlu0 %254
    %s257 = sor.u32 256, 8
    %258 = vbcast.lane.b32.xlu0 %v252, %s257
    %v259 = vpop.permute.xlu0 %258
    %v260 = vlaneseq
    %v261 = vshrl.u32 %v260, 7
    %v262 = vsub.s32 1, %v261
    %v263 = vrot.slane %v243, %v262
    %265 = vbcast.lane.b32.xlu0 %v263, 256
    %v266 = vpop.permute.xlu0 %265
    %s268 = sor.u32 256, 8
    %269 = vbcast.lane.b32.xlu0 %v263, %s268
    %v270 = vpop.permute.xlu0 %269
    %v271 = vlaneseq
    %v272 = vshrl.u32 %v271, 7
    %v273 = vsub.s32 2, %v272
    %v274 = vrot.slane %v243, %v273
    %276 = vbcast.lane.b32.xlu0 %v274, 256
    %v277 = vpop.permute.xlu0 %276
    %s279 = sor.u32 256, 8
    %280 = vbcast.lane.b32.xlu0 %v274, %s279
    %v281 = vpop.permute.xlu0 %280
    %v282 = vlaneseq
    %v283 = vshrl.u32 %v282, 7
    %v284 = vsub.s32 3, %v283
    %v285 = vrot.slane %v243, %v284
    %287 = vbcast.lane.b32.xlu0 %v285, 256
    %v288 = vpop.permute.xlu0 %287
    %s290 = sor.u32 256, 8
    %291 = vbcast.lane.b32.xlu0 %v285, %s290
    %v292 = vpop.permute.xlu0 %291
    %v293 = vlaneseq
    %v294 = vshrl.u32 %v293, 7
    %v295 = vsub.s32 4, %v294
    %v296 = vrot.slane %v243, %v295
    %298 = vbcast.lane.b32.xlu0 %v296, 256
    %v299 = vpop.permute.xlu0 %298
    %s301 = sor.u32 256, 8
    %302 = vbcast.lane.b32.xlu0 %v296, %s301
    %v303 = vpop.permute.xlu0 %302
    %v304 = vlaneseq
    %v305 = vshrl.u32 %v304, 7
    %v306 = vsub.s32 5, %v305
    %v307 = vrot.slane %v243, %v306
    %309 = vbcast.lane.b32.xlu0 %v307, 256
    %v310 = vpop.permute.xlu0 %309
    %s312 = sor.u32 256, 8
    %313 = vbcast.lane.b32.xlu0 %v307, %s312
    %v314 = vpop.permute.xlu0 %313
    %v315 = vlaneseq
    %v316 = vshrl.u32 %v315, 7
    %v317 = vsub.s32 6, %v316
    %v318 = vrot.slane %v243, %v317
    %320 = vbcast.lane.b32.xlu0 %v318, 256
    %v321 = vpop.permute.xlu0 %320
    %s323 = sor.u32 256, 8
    %324 = vbcast.lane.b32.xlu0 %v318, %s323
    %v325 = vpop.permute.xlu0 %324
    %v326 = vlaneseq
    %v327 = vshrl.u32 %v326, 7
    %v328 = vsub.s32 7, %v327
    %v329 = vrot.slane %v243, %v328
    %331 = vbcast.lane.b32.xlu0 %v329, 256
    %v332 = vpop.permute.xlu0 %331
    %s334 = sor.u32 256, 8
    %335 = vbcast.lane.b32.xlu0 %v329, %s334
    %v336 = vpop.permute.xlu0 %335
    %v337 = vlaneseq
    %v338 = vshrl.u32 %v337, 7
    %v339 = vsub.s32 0, %v338
    %v340 = vrot.slane %v244, %v339
    %342 = vbcast.lane.b32.xlu0 %v340, 256
    %v343 = vpop.permute.xlu0 %342
    %s345 = sor.u32 256, 8
    %346 = vbcast.lane.b32.xlu0 %v340, %s345
    %v347 = vpop.permute.xlu0 %346
    %v348 = vlaneseq
    %v349 = vshrl.u32 %v348, 7
    %v350 = vsub.s32 1, %v349
    %v351 = vrot.slane %v244, %v350
    %353 = vbcast.lane.b32.xlu0 %v351, 256
    %v354 = vpop.permute.xlu0 %353
    %s356 = sor.u32 256, 8
    %357 = vbcast.lane.b32.xlu0 %v351, %s356
    %v358 = vpop.permute.xlu0 %357
    %v359 = vlaneseq
    %v360 = vshrl.u32 %v359, 7
    %v361 = vsub.s32 2, %v360
    %v362 = vrot.slane %v244, %v361
    %364 = vbcast.lane.b32.xlu0 %v362, 256
    %v365 = vpop.permute.xlu0 %364
    %s367 = sor.u32 256, 8
    %368 = vbcast.lane.b32.xlu0 %v362, %s367
    %v369 = vpop.permute.xlu0 %368
    %v370 = vlaneseq
    %v371 = vshrl.u32 %v370, 7
    %v372 = vsub.s32 3, %v371
    %v373 = vrot.slane %v244, %v372
    %375 = vbcast.lane.b32.xlu0 %v373, 256
    %v376 = vpop.permute.xlu0 %375
    %s378 = sor.u32 256, 8
    %379 = vbcast.lane.b32.xlu0 %v373, %s378
    %v380 = vpop.permute.xlu0 %379
    %v381 = vlaneseq
    %v382 = vshrl.u32 %v381, 7
    %v383 = vsub.s32 4, %v382
    %v384 = vrot.slane %v244, %v383
    %386 = vbcast.lane.b32.xlu0 %v384, 256
    %v387 = vpop.permute.xlu0 %386
    %s389 = sor.u32 256, 8
    %390 = vbcast.lane.b32.xlu0 %v384, %s389
    %v391 = vpop.permute.xlu0 %390
    %v392 = vlaneseq
    %v393 = vshrl.u32 %v392, 7
    %v394 = vsub.s32 5, %v393
    %v395 = vrot.slane %v244, %v394
    %397 = vbcast.lane.b32.xlu0 %v395, 256
    %v398 = vpop.permute.xlu0 %397
    %s400 = sor.u32 256, 8
    %401 = vbcast.lane.b32.xlu0 %v395, %s400
    %v402 = vpop.permute.xlu0 %401
    %v403 = vlaneseq
    %v404 = vshrl.u32 %v403, 7
    %v405 = vsub.s32 6, %v404
    %v406 = vrot.slane %v244, %v405
    %408 = vbcast.lane.b32.xlu0 %v406, 256
    %v409 = vpop.permute.xlu0 %408
    %s411 = sor.u32 256, 8
    %412 = vbcast.lane.b32.xlu0 %v406, %s411
    %v413 = vpop.permute.xlu0 %412
    %v414 = vlaneseq
    %v415 = vshrl.u32 %v414, 7
    %v416 = vsub.s32 7, %v415
    %v417 = vrot.slane %v244, %v416
    %419 = vbcast.lane.b32.xlu0 %v417, 256
    %v420 = vpop.permute.xlu0 %419
    %s422 = sor.u32 256, 8
    %423 = vbcast.lane.b32.xlu0 %v417, %s422
    %v424 = vpop.permute.xlu0 %423
    %vm425 = vcmp.eq.s32.totalorder %v255, %v248
    %vm426 = vcmp.eq.s32.totalorder %v259, %v248
    %vm427 = vcmp.eq.s32.totalorder %v266, %v248
    %vm428 = vcmp.eq.s32.totalorder %v270, %v248
    %vm429 = vcmp.eq.s32.totalorder %v277, %v248
    %vm430 = vcmp.eq.s32.totalorder %v281, %v248
    %vm431 = vcmp.eq.s32.totalorder %v288, %v248
    %vm432 = vcmp.eq.s32.totalorder %v292, %v248
    %vm433 = vcmp.eq.s32.totalorder %v299, %v248
    %vm434 = vcmp.eq.s32.totalorder %v303, %v248
    %vm435 = vcmp.eq.s32.totalorder %v310, %v248
    %vm436 = vcmp.eq.s32.totalorder %v314, %v248
    %vm437 = vcmp.eq.s32.totalorder %v321, %v248
    %vm438 = vcmp.eq.s32.totalorder %v325, %v248
    %vm439 = vcmp.eq.s32.totalorder %v332, %v248
    %vm440 = vcmp.eq.s32.totalorder %v336, %v248
    %vm441 = vcmp.eq.s32.totalorder %v343, %v248
    %vm442 = vcmp.eq.s32.totalorder %v347, %v248
    %vm443 = vcmp.eq.s32.totalorder %v354, %v248
    %vm444 = vcmp.eq.s32.totalorder %v358, %v248
    %vm445 = vcmp.eq.s32.totalorder %v365, %v248
    %vm446 = vcmp.eq.s32.totalorder %v369, %v248
    %vm447 = vcmp.eq.s32.totalorder %v376, %v248
    %vm448 = vcmp.eq.s32.totalorder %v380, %v248
    %vm449 = vcmp.eq.s32.totalorder %v387, %v248
    %vm450 = vcmp.eq.s32.totalorder %v391, %v248
    %vm451 = vcmp.eq.s32.totalorder %v398, %v248
    %vm452 = vcmp.eq.s32.totalorder %v402, %v248
    %vm453 = vcmp.eq.s32.totalorder %v409, %v248
    %vm454 = vcmp.eq.s32.totalorder %v413, %v248
    %vm455 = vcmp.eq.s32.totalorder %v420, %v248
    %vm456 = vcmp.eq.s32.totalorder %v424, %v248
    %v457 = vsel %vm425, 1, 0
    %v458 = vsel %vm426, 1, 0
    %v459 = vsel %vm427, 1, 0
    %v460 = vsel %vm428, 1, 0
    %v461 = vsel %vm429, 1, 0
    %v462 = vsel %vm430, 1, 0
    %v463 = vsel %vm431, 1, 0
    %v464 = vsel %vm432, 1, 0
    %v465 = vsel %vm433, 1, 0
    %v466 = vsel %vm434, 1, 0
    %v467 = vsel %vm435, 1, 0
    %v468 = vsel %vm436, 1, 0
    %v469 = vsel %vm437, 1, 0
    %v470 = vsel %vm438, 1, 0
    %v471 = vsel %vm439, 1, 0
    %v472 = vsel %vm440, 1, 0
    %v473 = vsel %vm441, 1, 0
    %v474 = vsel %vm442, 1, 0
    %v475 = vsel %vm443, 1, 0
    %v476 = vsel %vm444, 1, 0
    %v477 = vsel %vm445, 1, 0
    %v478 = vsel %vm446, 1, 0
    %v479 = vsel %vm447, 1, 0
    %v480 = vsel %vm448, 1, 0
    %v481 = vsel %vm449, 1, 0
    %v482 = vsel %vm450, 1, 0
    %v483 = vsel %vm451, 1, 0
    %v484 = vsel %vm452, 1, 0
    %v485 = vsel %vm453, 1, 0
    %v486 = vsel %vm454, 1, 0
    %v487 = vsel %vm455, 1, 0
    %v488 = vsel %vm456, 1, 0
    %v489 = vcvt.s32.f32 %v457
    %v490 = vcvt.s32.f32 %v458
    %v491 = vcvt.s32.f32 %v459
    %v492 = vcvt.s32.f32 %v460
    %v493 = vcvt.s32.f32 %v461
    %v494 = vcvt.s32.f32 %v462
    %v495 = vcvt.s32.f32 %v463
    %v496 = vcvt.s32.f32 %v464
    %v497 = vcvt.s32.f32 %v465
    %v498 = vcvt.s32.f32 %v466
    %v499 = vcvt.s32.f32 %v467
    %v500 = vcvt.s32.f32 %v468
    %v501 = vcvt.s32.f32 %v469
    %v502 = vcvt.s32.f32 %v470
    %v503 = vcvt.s32.f32 %v471
    %v504 = vcvt.s32.f32 %v472
    %v505 = vcvt.s32.f32 %v473
    %v506 = vcvt.s32.f32 %v474
    %v507 = vcvt.s32.f32 %v475
    %v508 = vcvt.s32.f32 %v476
    %v509 = vcvt.s32.f32 %v477
    %v510 = vcvt.s32.f32 %v478
    %v511 = vcvt.s32.f32 %v479
    %v512 = vcvt.s32.f32 %v480
    %v513 = vcvt.s32.f32 %v481
    %v514 = vcvt.s32.f32 %v482
    %v515 = vcvt.s32.f32 %v483
    %v516 = vcvt.s32.f32 %v484
    %v517 = vcvt.s32.f32 %v485
    %v518 = vcvt.s32.f32 %v486
    %v519 = vcvt.s32.f32 %v487
    %v520 = vcvt.s32.f32 %v488
    %v521 = vld [vmem:[%s2] sm:$0xff]
    %v522 = vld [vmem:[%s2 + $0x8] sm:$0xff]
    %v523 = vlaneseq
    %v524 = vshrl.u32 %v523, 7
    %v525 = vsub.s32 0, %v524
    %v526 = vrot.slane %v521, %v525
    %528 = vbcast.lane.b32.xlu0 %v526, 256
    %v529 = vpop.permute.xlu0 %528
    %s531 = sor.u32 256, 8
    %532 = vbcast.lane.b32.xlu0 %v526, %s531
    %v533 = vpop.permute.xlu0 %532
    %v534 = vlaneseq
    %v535 = vshrl.u32 %v534, 7
    %v536 = vsub.s32 1, %v535
    %v537 = vrot.slane %v521, %v536
    %539 = vbcast.lane.b32.xlu0 %v537, 256
    %v540 = vpop.permute.xlu0 %539
    %s542 = sor.u32 256, 8
    %543 = vbcast.lane.b32.xlu0 %v537, %s542
    %v544 = vpop.permute.xlu0 %543
    %v545 = vlaneseq
    %v546 = vshrl.u32 %v545, 7
    %v547 = vsub.s32 2, %v546
    %v548 = vrot.slane %v521, %v547
    %550 = vbcast.lane.b32.xlu0 %v548, 256
    %v551 = vpop.permute.xlu0 %550
    %s553 = sor.u32 256, 8
    %554 = vbcast.lane.b32.xlu0 %v548, %s553
    %v555 = vpop.permute.xlu0 %554
    %v556 = vlaneseq
    %v557 = vshrl.u32 %v556, 7
    %v558 = vsub.s32 3, %v557
    %v559 = vrot.slane %v521, %v558
    %561 = vbcast.lane.b32.xlu0 %v559, 256
    %v562 = vpop.permute.xlu0 %561
    %s564 = sor.u32 256, 8
    %565 = vbcast.lane.b32.xlu0 %v559, %s564
    %v566 = vpop.permute.xlu0 %565
    %v567 = vlaneseq
    %v568 = vshrl.u32 %v567, 7
    %v569 = vsub.s32 4, %v568
    %v570 = vrot.slane %v521, %v569
    %572 = vbcast.lane.b32.xlu0 %v570, 256
    %v573 = vpop.permute.xlu0 %572
    %s575 = sor.u32 256, 8
    %576 = vbcast.lane.b32.xlu0 %v570, %s575
    %v577 = vpop.permute.xlu0 %576
    %v578 = vlaneseq
    %v579 = vshrl.u32 %v578, 7
    %v580 = vsub.s32 5, %v579
    %v581 = vrot.slane %v521, %v580
    %583 = vbcast.lane.b32.xlu0 %v581, 256
    %v584 = vpop.permute.xlu0 %583
    %s586 = sor.u32 256, 8
    %587 = vbcast.lane.b32.xlu0 %v581, %s586
    %v588 = vpop.permute.xlu0 %587
    %v589 = vlaneseq
    %v590 = vshrl.u32 %v589, 7
    %v591 = vsub.s32 6, %v590
    %v592 = vrot.slane %v521, %v591
    %594 = vbcast.lane.b32.xlu0 %v592, 256
    %v595 = vpop.permute.xlu0 %594
    %s597 = sor.u32 256, 8
    %598 = vbcast.lane.b32.xlu0 %v592, %s597
    %v599 = vpop.permute.xlu0 %598
    %v600 = vlaneseq
    %v601 = vshrl.u32 %v600, 7
    %v602 = vsub.s32 7, %v601
    %v603 = vrot.slane %v521, %v602
    %605 = vbcast.lane.b32.xlu0 %v603, 256
    %v606 = vpop.permute.xlu0 %605
    %s608 = sor.u32 256, 8
    %609 = vbcast.lane.b32.xlu0 %v603, %s608
    %v610 = vpop.permute.xlu0 %609
    %v611 = vlaneseq
    %v612 = vshrl.u32 %v611, 7
    %v613 = vsub.s32 0, %v612
    %v614 = vrot.slane %v522, %v613
    %616 = vbcast.lane.b32.xlu0 %v614, 256
    %v617 = vpop.permute.xlu0 %616
    %s619 = sor.u32 256, 8
    %620 = vbcast.lane.b32.xlu0 %v614, %s619
    %v621 = vpop.permute.xlu0 %620
    %v622 = vlaneseq
    %v623 = vshrl.u32 %v622, 7
    %v624 = vsub.s32 1, %v623
    %v625 = vrot.slane %v522, %v624
    %627 = vbcast.lane.b32.xlu0 %v625, 256
    %v628 = vpop.permute.xlu0 %627
    %s630 = sor.u32 256, 8
    %631 = vbcast.lane.b32.xlu0 %v625, %s630
    %v632 = vpop.permute.xlu0 %631
    %v633 = vlaneseq
    %v634 = vshrl.u32 %v633, 7
    %v635 = vsub.s32 2, %v634
    %v636 = vrot.slane %v522, %v635
    %638 = vbcast.lane.b32.xlu0 %v636, 256
    %v639 = vpop.permute.xlu0 %638
    %s641 = sor.u32 256, 8
    %642 = vbcast.lane.b32.xlu0 %v636, %s641
    %v643 = vpop.permute.xlu0 %642
    %v644 = vlaneseq
    %v645 = vshrl.u32 %v644, 7
    %v646 = vsub.s32 3, %v645
    %v647 = vrot.slane %v522, %v646
    %649 = vbcast.lane.b32.xlu0 %v647, 256
    %v650 = vpop.permute.xlu0 %649
    %s652 = sor.u32 256, 8
    %653 = vbcast.lane.b32.xlu0 %v647, %s652
    %v654 = vpop.permute.xlu0 %653
    %v655 = vlaneseq
    %v656 = vshrl.u32 %v655, 7
    %v657 = vsub.s32 4, %v656
    %v658 = vrot.slane %v522, %v657
    %660 = vbcast.lane.b32.xlu0 %v658, 256
    %v661 = vpop.permute.xlu0 %660
    %s663 = sor.u32 256, 8
    %664 = vbcast.lane.b32.xlu0 %v658, %s663
    %v665 = vpop.permute.xlu0 %664
    %v666 = vlaneseq
    %v667 = vshrl.u32 %v666, 7
    %v668 = vsub.s32 5, %v667
    %v669 = vrot.slane %v522, %v668
    %671 = vbcast.lane.b32.xlu0 %v669, 256
    %v672 = vpop.permute.xlu0 %671
    %s674 = sor.u32 256, 8
    %675 = vbcast.lane.b32.xlu0 %v669, %s674
    %v676 = vpop.permute.xlu0 %675
    %v677 = vlaneseq
    %v678 = vshrl.u32 %v677, 7
    %v679 = vsub.s32 6, %v678
    %v680 = vrot.slane %v522, %v679
    %682 = vbcast.lane.b32.xlu0 %v680, 256
    %v683 = vpop.permute.xlu0 %682
    %s685 = sor.u32 256, 8
    %686 = vbcast.lane.b32.xlu0 %v680, %s685
    %v687 = vpop.permute.xlu0 %686
    %v688 = vlaneseq
    %v689 = vshrl.u32 %v688, 7
    %v690 = vsub.s32 7, %v689
    %v691 = vrot.slane %v522, %v690
    %693 = vbcast.lane.b32.xlu0 %v691, 256
    %v694 = vpop.permute.xlu0 %693
    %s696 = sor.u32 256, 8
    %697 = vbcast.lane.b32.xlu0 %v691, %s696
    %v698 = vpop.permute.xlu0 %697
    %vm699 = vcmp.eq.s32.totalorder %v529, %v248
    %vm700 = vcmp.eq.s32.totalorder %v533, %v248
    %vm701 = vcmp.eq.s32.totalorder %v540, %v248
    %vm702 = vcmp.eq.s32.totalorder %v544, %v248
    %vm703 = vcmp.eq.s32.totalorder %v551, %v248
    %vm704 = vcmp.eq.s32.totalorder %v555, %v248
    %vm705 = vcmp.eq.s32.totalorder %v562, %v248
    %vm706 = vcmp.eq.s32.totalorder %v566, %v248
    %vm707 = vcmp.eq.s32.totalorder %v573, %v248
    %vm708 = vcmp.eq.s32.totalorder %v577, %v248
    %vm709 = vcmp.eq.s32.totalorder %v584, %v248
    %vm710 = vcmp.eq.s32.totalorder %v588, %v248
    %vm711 = vcmp.eq.s32.totalorder %v595, %v248
    %vm712 = vcmp.eq.s32.totalorder %v599, %v248
    %vm713 = vcmp.eq.s32.totalorder %v606, %v248
    %vm714 = vcmp.eq.s32.totalorder %v610, %v248
    %vm715 = vcmp.eq.s32.totalorder %v617, %v248
    %vm716 = vcmp.eq.s32.totalorder %v621, %v248
    %vm717 = vcmp.eq.s32.totalorder %v628, %v248
    %vm718 = vcmp.eq.s32.totalorder %v632, %v248
    %vm719 = vcmp.eq.s32.totalorder %v639, %v248
    %vm720 = vcmp.eq.s32.totalorder %v643, %v248
    %vm721 = vcmp.eq.s32.totalorder %v650, %v248
    %vm722 = vcmp.eq.s32.totalorder %v654, %v248
    %vm723 = vcmp.eq.s32.totalorder %v661, %v248
    %vm724 = vcmp.eq.s32.totalorder %v665, %v248
    %vm725 = vcmp.eq.s32.totalorder %v672, %v248
    %vm726 = vcmp.eq.s32.totalorder %v676, %v248
    %vm727 = vcmp.eq.s32.totalorder %v683, %v248
    %vm728 = vcmp.eq.s32.totalorder %v687, %v248
    %vm729 = vcmp.eq.s32.totalorder %v694, %v248
    %vm730 = vcmp.eq.s32.totalorder %v698, %v248
    %v731 = vsel %vm699, 1, 0
    %v732 = vsel %vm700, 1, 0
    %v733 = vsel %vm701, 1, 0
    %v734 = vsel %vm702, 1, 0
    %v735 = vsel %vm703, 1, 0
    %v736 = vsel %vm704, 1, 0
    %v737 = vsel %vm705, 1, 0
    %v738 = vsel %vm706, 1, 0
    %v739 = vsel %vm707, 1, 0
    %v740 = vsel %vm708, 1, 0
    %v741 = vsel %vm709, 1, 0
    %v742 = vsel %vm710, 1, 0
    %v743 = vsel %vm711, 1, 0
    %v744 = vsel %vm712, 1, 0
    %v745 = vsel %vm713, 1, 0
    %v746 = vsel %vm714, 1, 0
    %v747 = vsel %vm715, 1, 0
    %v748 = vsel %vm716, 1, 0
    %v749 = vsel %vm717, 1, 0
    %v750 = vsel %vm718, 1, 0
    %v751 = vsel %vm719, 1, 0
    %v752 = vsel %vm720, 1, 0
    %v753 = vsel %vm721, 1, 0
    %v754 = vsel %vm722, 1, 0
    %v755 = vsel %vm723, 1, 0
    %v756 = vsel %vm724, 1, 0
    %v757 = vsel %vm725, 1, 0
    %v758 = vsel %vm726, 1, 0
    %v759 = vsel %vm727, 1, 0
    %v760 = vsel %vm728, 1, 0
    %v761 = vsel %vm729, 1, 0
    %v762 = vsel %vm730, 1, 0
    %v763 = vcvt.s32.f32 %v731
    %v764 = vcvt.s32.f32 %v732
    %v765 = vcvt.s32.f32 %v733
    %v766 = vcvt.s32.f32 %v734
    %v767 = vcvt.s32.f32 %v735
    %v768 = vcvt.s32.f32 %v736
    %v769 = vcvt.s32.f32 %v737
    %v770 = vcvt.s32.f32 %v738
    %v771 = vcvt.s32.f32 %v739
    %v772 = vcvt.s32.f32 %v740
    %v773 = vcvt.s32.f32 %v741
    %v774 = vcvt.s32.f32 %v742
    %v775 = vcvt.s32.f32 %v743
    %v776 = vcvt.s32.f32 %v744
    %v777 = vcvt.s32.f32 %v745
    %v778 = vcvt.s32.f32 %v746
    %v779 = vcvt.s32.f32 %v747
    %v780 = vcvt.s32.f32 %v748
    %v781 = vcvt.s32.f32 %v749
    %v782 = vcvt.s32.f32 %v750
    %v783 = vcvt.s32.f32 %v751
    %v784 = vcvt.s32.f32 %v752
    %v785 = vcvt.s32.f32 %v753
    %v786 = vcvt.s32.f32 %v754
    %v787 = vcvt.s32.f32 %v755
    %v788 = vcvt.s32.f32 %v756
    %v789 = vcvt.s32.f32 %v757
    %v790 = vcvt.s32.f32 %v758
    %v791 = vcvt.s32.f32 %v759
    %v792 = vcvt.s32.f32 %v760
    %v793 = vcvt.s32.f32 %v761
    %v794 = vcvt.s32.f32 %v762
    %v795 = vld [vmem:[%s5] sm:$0xff]
    %v796 = vld [vmem:[%s5 + $0x8] sm:$0xff]
    %797 = vset.pattern.permute.xlu0 0
    %798 = vperm.xlu0 %797, %v795
    %v799 = vpop.permute.xlu0 %798
    %800 = vset.pattern.permute.xlu0 0
    %801 = vperm.xlu0 %800, %v796
    %v802 = vpop.permute.xlu0 %801
    %vm803 = vcmp.eq.s32.totalorder %v799, %v248
    %vm804 = vcmp.eq.s32.totalorder %v802, %v248
    %v805 = vsel %vm803, 1, 0
    %v806 = vsel %vm804, 1, 0
    %v807 = vcvt.s32.f32 %v805
    %v808 = vcvt.s32.f32 %v806
    %v809 = vld [vmem:[#allocation2] sm:$0x1]
    %810 = vset.pattern.permute.xlu0 0
    %811 = vperm.xlu0 %810, %v809
    %v812 = vpop.permute.xlu0 %811
    %v813 = vlaneseq
    %v814 = vshrl.u32 %v813, 7
    %v815 = vsub.s32 0, %v814
    %v816 = vrot.slane %v812, %v815
    %vm817 = vcmp.eq.s32.totalorder %v816, %v248
    %v818 = vsel %vm817, 1, 0
    %v819 = vcvt.s32.f32 %v818
    %vm820 = vcmask 195584
    %v822 = vsel %vm820, %v819, 0
    %824 = vmatprep.subr.mxu0 0.0
    %825 = vmatpush1.msra.mxu0 0.0
    %826 = vmatprep.subr.mxu0 0.0
    %827 = vmatpush1.msra.mxu0 0.0
    %828 = vmatprep.subr.mxu0 0.0
    %829 = vmatpush1.msra.mxu0 0.0
    %830 = vmatprep.subr.mxu0 0.0
    %831 = vmatpush1.msra.mxu0 0.0
    %832 = vmatprep.subr.mxu0 0.0
    %833 = vmatpush1.msra.mxu0 0.0
    %834 = vmatprep.subr.mxu0 0.0
    %835 = vmatpush1.msra.mxu0 0.0
    %836 = vmatprep.subr.mxu0 0.0
    %837 = vmatpush1.msra.mxu0 0.0
    %838 = vmatprep.subr.mxu0 0.0
    %839 = vmatpush1.msra.mxu0 0.0
    %840 = vmatprep.subr.mxu0 0.0
    %841 = vmatpush1.msra.mxu0 0.0
    %842 = vmatprep.subr.mxu0 0.0
    %843 = vmatpush1.msra.mxu0 0.0
    %844 = vmatprep.subr.mxu0 0.0
    %845 = vmatpush1.msra.mxu0 0.0
    %846 = vmatprep.subr.mxu0 0.0
    %847 = vmatpush1.msra.mxu0 0.0
    %848 = vmatprep.subr.mxu0 0.0
    %849 = vmatpush1.msra.mxu0 0.0
    %850 = vmatprep.subr.mxu0 0.0
    %851 = vmatpush1.msra.mxu0 %v242
    %852 = vmatprep.subr.mxu0 0.0
    %853 = vmatpush1.msra.mxu0 %v241
    %854 = vmatprep.subr.mxu0 0.0
    %855 = vmatpush1.msra.mxu0 %v240
    %856 = vmatprep.subr.mxu0 0.0
    %857 = vmatpush2.msra.mxu0 0.0
    %858 = vmatprep.subr.mxu0 0.0
    %859 = vmatpush2.msra.mxu0 0.0
    %860 = vmatprep.subr.mxu0 0.0
    %861 = vmatpush2.msra.mxu0 0.0
    %862 = vmatprep.subr.mxu0 0.0
    %863 = vmatpush2.msra.mxu0 0.0
    %864 = vmatprep.subr.mxu0 0.0
    %865 = vmatpush2.msra.mxu0 0.0
    %866 = vmatprep.subr.mxu0 0.0
    %867 = vmatpush2.msra.mxu0 0.0
    %868 = vmatprep.subr.mxu0 0.0
    %869 = vmatpush2.msra.mxu0 0.0
    %870 = vmatprep.subr.mxu0 0.0
    %871 = vmatpush2.msra.mxu0 0.0
    %872 = vmatprep.subr.mxu0 0.0
    %873 = vmatpush2.msra.mxu0 0.0
    %874 = vmatprep.subr.mxu0 0.0
    %875 = vmatpush2.msra.mxu0 0.0
    %876 = vmatprep.subr.mxu0 0.0
    %877 = vmatpush2.msra.mxu0 0.0
    %878 = vmatprep.subr.mxu0 0.0
    %879 = vmatpush2.msra.mxu0 0.0
    %880 = vmatprep.subr.mxu0 0.0
    %881 = vmatpush2.msra.mxu0 0.0
    %882 = vmatprep.subr.mxu0 0.0
    %883 = vmatpush2.msra.mxu0 0.0
    %884 = vmatprep.subr.mxu0 0.0
    %885 = vmatpush2.msra.mxu0 0.0
    %886 = vmatprep.subr.mxu0 0.0
    %887 = vmatpush2.msra.mxu0 0.0
    %888 = vmatprep.mubr.f32.mxu0 0.0
    %889 = vmatmul.mubr.f32.gmra.mxu0 %v822
    %v890 = vpop.f32.mrf.mxu0
    %v891 = vadd.f32 0.0, %v890
    %v892 = vpop.f32.mrf.mxu0
    %893 = vdwg.mxu0
    %v894 = vld [vmem:[%s8] sm:$0xff]
    %v895 = vld [vmem:[%s8 + $0x8] sm:$0xff]
    %v896 = vld [vmem:[%s8 + $0x10] sm:$0xff]
    %v897 = vld [vmem:[%s8 + $0x18] sm:$0xff]
    %vm898 = vcmask 261120
    %v900 = vsel %vm898, %v891, 0
    %902 = vmatprep.subr.mxu0 0.0
    %903 = vmatpush1.msra.mxu0 0.0
    %904 = vmatprep.subr.mxu0 0.0
    %905 = vmatpush1.msra.mxu0 0.0
    %906 = vmatprep.subr.mxu0 0.0
    %907 = vmatpush1.msra.mxu0 0.0
    %908 = vmatprep.subr.mxu0 0.0
    %909 = vmatpush1.msra.mxu0 0.0
    %910 = vmatprep.subr.mxu0 0.0
    %911 = vmatpush1.msra.mxu0 0.0
    %912 = vmatprep.subr.mxu0 0.0
    %913 = vmatpush1.msra.mxu0 0.0
    %914 = vmatprep.subr.mxu0 0.0
    %915 = vmatpush1.msra.mxu0 0.0
    %916 = vmatprep.subr.mxu0 0.0
    %917 = vmatpush1.msra.mxu0 0.0
    %918 = vmatprep.subr.mxu0 0.0
    %919 = vmatpush1.msra.mxu0 0.0
    %920 = vmatprep.subr.mxu0 0.0
    %921 = vmatpush1.msra.mxu0 0.0
    %922 = vmatprep.subr.mxu0 0.0
    %923 = vmatpush1.msra.mxu0 0.0
    %924 = vmatprep.subr.mxu0 0.0
    %925 = vmatpush1.msra.mxu0 0.0
    %926 = vmatprep.subr.mxu0 0.0
    %927 = vmatpush1.msra.mxu0 %v897
    %928 = vmatprep.subr.mxu0 0.0
    %929 = vmatpush1.msra.mxu0 %v896
    %930 = vmatprep.subr.mxu0 0.0
    %931 = vmatpush1.msra.mxu0 %v895
    %932 = vmatprep.subr.mxu0 0.0
    %933 = vmatpush1.msra.mxu0 %v894
    %934 = vmatprep.subr.mxu0 0.0
    %935 = vmatpush2.msra.mxu0 0.0
    %936 = vmatprep.subr.mxu0 0.0
    %937 = vmatpush2.msra.mxu0 0.0
    %938 = vmatprep.subr.mxu0 0.0
    %939 = vmatpush2.msra.mxu0 0.0
    %940 = vmatprep.subr.mxu0 0.0
    %941 = vmatpush2.msra.mxu0 0.0
    %942 = vmatprep.subr.mxu0 0.0
    %943 = vmatpush2.msra.mxu0 0.0
    %944 = vmatprep.subr.mxu0 0.0
    %945 = vmatpush2.msra.mxu0 0.0
    %946 = vmatprep.subr.mxu0 0.0
    %947 = vmatpush2.msra.mxu0 0.0
    %948 = vmatprep.subr.mxu0 0.0
    %949 = vmatpush2.msra.mxu0 0.0
    %950 = vmatprep.subr.mxu0 0.0
    %951 = vmatpush2.msra.mxu0 0.0
    %952 = vmatprep.subr.mxu0 0.0
    %953 = vmatpush2.msra.mxu0 0.0
    %954 = vmatprep.subr.mxu0 0.0
    %955 = vmatpush2.msra.mxu0 0.0
    %956 = vmatprep.subr.mxu0 0.0
    %957 = vmatpush2.msra.mxu0 0.0
    %958 = vmatprep.subr.mxu0 0.0
    %959 = vmatpush2.msra.mxu0 0.0
    %960 = vmatprep.subr.mxu0 0.0
    %961 = vmatpush2.msra.mxu0 0.0
    %962 = vmatprep.subr.mxu0 0.0
    %963 = vmatpush2.msra.mxu0 0.0
    %964 = vmatprep.subr.mxu0 0.0
    %965 = vmatpush2.msra.mxu0 0.0
    %966 = vmatprep.mubr.f32.mxu0 0.0
    %967 = vmatmul.mubr.f32.gmra.mxu0 %v900
    %v968 = vpop.f32.mrf.mxu0
    %v969 = vadd.f32 0.0, %v968
    %v970 = vpop.f32.mrf.mxu0
    %971 = vdwg.mxu0
    %v972 = vlaneseq
    %v973 = vshrl.u32 %v972, 7
    %v974 = vsub.s32 0, %v973
    %v975 = vrot.slane %v969, %v974
    %v976 = vmul.f32 %v489, %v975
    %v977 = vmul.f32 %v490, %v975
    %v978 = vmul.f32 %v491, %v975
    %v979 = vmul.f32 %v492, %v975
    %v980 = vmul.f32 %v493, %v975
    %v981 = vmul.f32 %v494, %v975
    %v982 = vmul.f32 %v495, %v975
    %v983 = vmul.f32 %v496, %v975
    %v984 = vmul.f32 %v497, %v975
    %v985 = vmul.f32 %v498, %v975
    %v986 = vmul.f32 %v499, %v975
    %v987 = vmul.f32 %v500, %v975
    %v988 = vmul.f32 %v501, %v975
    %v989 = vmul.f32 %v502, %v975
    %v990 = vmul.f32 %v503, %v975
    %v991 = vmul.f32 %v504, %v975
    %v992 = vmul.f32 %v505, %v975
    %v993 = vmul.f32 %v506, %v975
    %v994 = vmul.f32 %v507, %v975
    %v995 = vmul.f32 %v508, %v975
    %v996 = vmul.f32 %v509, %v975
    %v997 = vmul.f32 %v510, %v975
    %v998 = vmul.f32 %v511, %v975
    %v999 = vmul.f32 %v512, %v975
    %v1000 = vmul.f32 %v513, %v975
    %v1001 = vmul.f32 %v514, %v975
    %v1002 = vmul.f32 %v515, %v975
    %v1003 = vmul.f32 %v516, %v975
    %v1004 = vmul.f32 %v517, %v975
    %v1005 = vmul.f32 %v518, %v975
    %v1006 = vmul.f32 %v519, %v975
    %v1007 = vmul.f32 %v520, %v975
    %v1008 = vsel %vm820, %v976, 0.0
    %1009 = vadd.xlane.f32.xlu0 %v1008
    %v1010 = vpop.xlane.xlu0 %1009
    %v1011 = vsel %vm820, %v977, 0.0
    %1012 = vadd.xlane.f32.xlu0 %v1011
    %v1013 = vpop.xlane.xlu0 %1012
    %v1014 = vsel %vm820, %v978, 0.0
    %1015 = vadd.xlane.f32.xlu0 %v1014
    %v1016 = vpop.xlane.xlu0 %1015
    %v1017 = vsel %vm820, %v979, 0.0
    %1018 = vadd.xlane.f32.xlu0 %v1017
    %v1019 = vpop.xlane.xlu0 %1018
    %v1020 = vsel %vm820, %v980, 0.0
    %1021 = vadd.xlane.f32.xlu0 %v1020
    %v1022 = vpop.xlane.xlu0 %1021
    %v1023 = vsel %vm820, %v981, 0.0
    %1024 = vadd.xlane.f32.xlu0 %v1023
    %v1025 = vpop.xlane.xlu0 %1024
    %v1026 = vsel %vm820, %v982, 0.0
    %1027 = vadd.xlane.f32.xlu0 %v1026
    %v1028 = vpop.xlane.xlu0 %1027
    %v1029 = vsel %vm820, %v983, 0.0
    %1030 = vadd.xlane.f32.xlu0 %v1029
    %v1031 = vpop.xlane.xlu0 %1030
    %v1032 = vsel %vm820, %v984, 0.0
    %1033 = vadd.xlane.f32.xlu0 %v1032
    %v1034 = vpop.xlane.xlu0 %1033
    %v1035 = vsel %vm820, %v985, 0.0
    %1036 = vadd.xlane.f32.xlu0 %v1035
    %v1037 = vpop.xlane.xlu0 %1036
    %v1038 = vsel %vm820, %v986, 0.0
    %1039 = vadd.xlane.f32.xlu0 %v1038
    %v1040 = vpop.xlane.xlu0 %1039
    %v1041 = vsel %vm820, %v987, 0.0
    %1042 = vadd.xlane.f32.xlu0 %v1041
    %v1043 = vpop.xlane.xlu0 %1042
    %v1044 = vsel %vm820, %v988, 0.0
    %1045 = vadd.xlane.f32.xlu0 %v1044
    %v1046 = vpop.xlane.xlu0 %1045
    %v1047 = vsel %vm820, %v989, 0.0
    %1048 = vadd.xlane.f32.xlu0 %v1047
    %v1049 = vpop.xlane.xlu0 %1048
    %v1050 = vsel %vm820, %v990, 0.0
    %1051 = vadd.xlane.f32.xlu0 %v1050
    %v1052 = vpop.xlane.xlu0 %1051
    %v1053 = vsel %vm820, %v991, 0.0
    %1054 = vadd.xlane.f32.xlu0 %v1053
    %v1055 = vpop.xlane.xlu0 %1054
    %v1056 = vsel %vm820, %v992, 0.0
    %1057 = vadd.xlane.f32.xlu0 %v1056
    %v1058 = vpop.xlane.xlu0 %1057
    %v1059 = vsel %vm820, %v993, 0.0
    %1060 = vadd.xlane.f32.xlu0 %v1059
    %v1061 = vpop.xlane.xlu0 %1060
    %v1062 = vsel %vm820, %v994, 0.0
    %1063 = vadd.xlane.f32.xlu0 %v1062
    %v1064 = vpop.xlane.xlu0 %1063
    %v1065 = vsel %vm820, %v995, 0.0
    %1066 = vadd.xlane.f32.xlu0 %v1065
    %v1067 = vpop.xlane.xlu0 %1066
    %v1068 = vsel %vm820, %v996, 0.0
    %1069 = vadd.xlane.f32.xlu0 %v1068
    %v1070 = vpop.xlane.xlu0 %1069
    %v1071 = vsel %vm820, %v997, 0.0
    %1072 = vadd.xlane.f32.xlu0 %v1071
    %v1073 = vpop.xlane.xlu0 %1072
    %v1074 = vsel %vm820, %v998, 0.0
    %1075 = vadd.xlane.f32.xlu0 %v1074
    %v1076 = vpop.xlane.xlu0 %1075
    %v1077 = vsel %vm820, %v999, 0.0
    %1078 = vadd.xlane.f32.xlu0 %v1077
    %v1079 = vpop.xlane.xlu0 %1078
    %v1080 = vsel %vm820, %v1000, 0.0
    %1081 = vadd.xlane.f32.xlu0 %v1080
    %v1082 = vpop.xlane.xlu0 %1081
    %v1083 = vsel %vm820, %v1001, 0.0
    %1084 = vadd.xlane.f32.xlu0 %v1083
    %v1085 = vpop.xlane.xlu0 %1084
    %v1086 = vsel %vm820, %v1002, 0.0
    %1087 = vadd.xlane.f32.xlu0 %v1086
    %v1088 = vpop.xlane.xlu0 %1087
    %v1089 = vsel %vm820, %v1003, 0.0
    %1090 = vadd.xlane.f32.xlu0 %v1089
    %v1091 = vpop.xlane.xlu0 %1090
    %v1092 = vsel %vm820, %v1004, 0.0
    %1093 = vadd.xlane.f32.xlu0 %v1092
    %v1094 = vpop.xlane.xlu0 %1093
    %v1095 = vsel %vm820, %v1005, 0.0
    %1096 = vadd.xlane.f32.xlu0 %v1095
    %v1097 = vpop.xlane.xlu0 %1096
    %v1098 = vsel %vm820, %v1006, 0.0
    %1099 = vadd.xlane.f32.xlu0 %v1098
    %v1100 = vpop.xlane.xlu0 %1099
    %v1101 = vsel %vm820, %v1007, 0.0
    %1102 = vadd.xlane.f32.xlu0 %v1101
    %v1103 = vpop.xlane.xlu0 %1102
    %v1104 = vld [vmem:[%s3] sm:$0xff]
    %v1105 = vld [vmem:[%s3 + $0x8] sm:$0xff]
    %1107 = vset.pattern.permute.xlu0 0
    %1108 = vperm.xlu0 %1107, %v245
    %v1109 = vpop.permute.xlu0 %1108
    %1112 = vset.pattern.permute.xlu0 0
    %1113 = vperm.xlu0 %1112, %v246
    %v1114 = vpop.permute.xlu0 %1113
    %v1116 = vsub.f32 %v1104, %v1109
    %v1117 = vsub.f32 %v1105, %v1114
    %v1118 = vlaneseq
    %v1119 = vshrl.u32 %v1118, 7
    %v1120 = vsub.s32 0, %v1119
    %v1121 = vrot.slane %v1116, %v1120
    %1123 = vbcast.lane.b32.xlu0 %v1121, 256
    %v1124 = vpop.permute.xlu0 %1123
    %s1126 = sor.u32 256, 8
    %1127 = vbcast.lane.b32.xlu0 %v1121, %s1126
    %v1128 = vpop.permute.xlu0 %1127
    %v1129 = vlaneseq
    %v1130 = vshrl.u32 %v1129, 7
    %v1131 = vsub.s32 1, %v1130
    %v1132 = vrot.slane %v1116, %v1131
    %1134 = vbcast.lane.b32.xlu0 %v1132, 256
    %v1135 = vpop.permute.xlu0 %1134
    %s1137 = sor.u32 256, 8
    %1138 = vbcast.lane.b32.xlu0 %v1132, %s1137
    %v1139 = vpop.permute.xlu0 %1138
    %v1140 = vlaneseq
    %v1141 = vshrl.u32 %v1140, 7
    %v1142 = vsub.s32 2, %v1141
    %v1143 = vrot.slane %v1116, %v1142
    %1145 = vbcast.lane.b32.xlu0 %v1143, 256
    %v1146 = vpop.permute.xlu0 %1145
    %s1148 = sor.u32 256, 8
    %1149 = vbcast.lane.b32.xlu0 %v1143, %s1148
    %v1150 = vpop.permute.xlu0 %1149
    %v1151 = vlaneseq
    %v1152 = vshrl.u32 %v1151, 7
    %v1153 = vsub.s32 3, %v1152
    %v1154 = vrot.slane %v1116, %v1153
    %1156 = vbcast.lane.b32.xlu0 %v1154, 256
    %v1157 = vpop.permute.xlu0 %1156
    %s1159 = sor.u32 256, 8
    %1160 = vbcast.lane.b32.xlu0 %v1154, %s1159
    %v1161 = vpop.permute.xlu0 %1160
    %v1162 = vlaneseq
    %v1163 = vshrl.u32 %v1162, 7
    %v1164 = vsub.s32 4, %v1163
    %v1165 = vrot.slane %v1116, %v1164
    %1167 = vbcast.lane.b32.xlu0 %v1165, 256
    %v1168 = vpop.permute.xlu0 %1167
    %s1170 = sor.u32 256, 8
    %1171 = vbcast.lane.b32.xlu0 %v1165, %s1170
    %v1172 = vpop.permute.xlu0 %1171
    %v1173 = vlaneseq
    %v1174 = vshrl.u32 %v1173, 7
    %v1175 = vsub.s32 5, %v1174
    %v1176 = vrot.slane %v1116, %v1175
    %1178 = vbcast.lane.b32.xlu0 %v1176, 256
    %v1179 = vpop.permute.xlu0 %1178
    %s1181 = sor.u32 256, 8
    %1182 = vbcast.lane.b32.xlu0 %v1176, %s1181
    %v1183 = vpop.permute.xlu0 %1182
    %v1184 = vlaneseq
    %v1185 = vshrl.u32 %v1184, 7
    %v1186 = vsub.s32 6, %v1185
    %v1187 = vrot.slane %v1116, %v1186
    %1189 = vbcast.lane.b32.xlu0 %v1187, 256
    %v1190 = vpop.permute.xlu0 %1189
    %s1192 = sor.u32 256, 8
    %1193 = vbcast.lane.b32.xlu0 %v1187, %s1192
    %v1194 = vpop.permute.xlu0 %1193
    %v1195 = vlaneseq
    %v1196 = vshrl.u32 %v1195, 7
    %v1197 = vsub.s32 7, %v1196
    %v1198 = vrot.slane %v1116, %v1197
    %1200 = vbcast.lane.b32.xlu0 %v1198, 256
    %v1201 = vpop.permute.xlu0 %1200
    %s1203 = sor.u32 256, 8
    %1204 = vbcast.lane.b32.xlu0 %v1198, %s1203
    %v1205 = vpop.permute.xlu0 %1204
    %v1206 = vlaneseq
    %v1207 = vshrl.u32 %v1206, 7
    %v1208 = vsub.s32 0, %v1207
    %v1209 = vrot.slane %v1117, %v1208
    %1211 = vbcast.lane.b32.xlu0 %v1209, 256
    %v1212 = vpop.permute.xlu0 %1211
    %s1214 = sor.u32 256, 8
    %1215 = vbcast.lane.b32.xlu0 %v1209, %s1214
    %v1216 = vpop.permute.xlu0 %1215
    %v1217 = vlaneseq
    %v1218 = vshrl.u32 %v1217, 7
    %v1219 = vsub.s32 1, %v1218
    %v1220 = vrot.slane %v1117, %v1219
    %1222 = vbcast.lane.b32.xlu0 %v1220, 256
    %v1223 = vpop.permute.xlu0 %1222
    %s1225 = sor.u32 256, 8
    %1226 = vbcast.lane.b32.xlu0 %v1220, %s1225
    %v1227 = vpop.permute.xlu0 %1226
    %v1228 = vlaneseq
    %v1229 = vshrl.u32 %v1228, 7
    %v1230 = vsub.s32 2, %v1229
    %v1231 = vrot.slane %v1117, %v1230
    %1233 = vbcast.lane.b32.xlu0 %v1231, 256
    %v1234 = vpop.permute.xlu0 %1233
    %s1236 = sor.u32 256, 8
    %1237 = vbcast.lane.b32.xlu0 %v1231, %s1236
    %v1238 = vpop.permute.xlu0 %1237
    %v1239 = vlaneseq
    %v1240 = vshrl.u32 %v1239, 7
    %v1241 = vsub.s32 3, %v1240
    %v1242 = vrot.slane %v1117, %v1241
    %1244 = vbcast.lane.b32.xlu0 %v1242, 256
    %v1245 = vpop.permute.xlu0 %1244
    %s1247 = sor.u32 256, 8
    %1248 = vbcast.lane.b32.xlu0 %v1242, %s1247
    %v1249 = vpop.permute.xlu0 %1248
    %v1250 = vlaneseq
    %v1251 = vshrl.u32 %v1250, 7
    %v1252 = vsub.s32 4, %v1251
    %v1253 = vrot.slane %v1117, %v1252
    %1255 = vbcast.lane.b32.xlu0 %v1253, 256
    %v1256 = vpop.permute.xlu0 %1255
    %s1258 = sor.u32 256, 8
    %1259 = vbcast.lane.b32.xlu0 %v1253, %s1258
    %v1260 = vpop.permute.xlu0 %1259
    %v1261 = vlaneseq
    %v1262 = vshrl.u32 %v1261, 7
    %v1263 = vsub.s32 5, %v1262
    %v1264 = vrot.slane %v1117, %v1263
    %1266 = vbcast.lane.b32.xlu0 %v1264, 256
    %v1267 = vpop.permute.xlu0 %1266
    %s1269 = sor.u32 256, 8
    %1270 = vbcast.lane.b32.xlu0 %v1264, %s1269
    %v1271 = vpop.permute.xlu0 %1270
    %v1272 = vlaneseq
    %v1273 = vshrl.u32 %v1272, 7
    %v1274 = vsub.s32 6, %v1273
    %v1275 = vrot.slane %v1117, %v1274
    %1277 = vbcast.lane.b32.xlu0 %v1275, 256
    %v1278 = vpop.permute.xlu0 %1277
    %s1280 = sor.u32 256, 8
    %1281 = vbcast.lane.b32.xlu0 %v1275, %s1280
    %v1282 = vpop.permute.xlu0 %1281
    %v1283 = vlaneseq
    %v1284 = vshrl.u32 %v1283, 7
    %v1285 = vsub.s32 7, %v1284
    %v1286 = vrot.slane %v1117, %v1285
    %1288 = vbcast.lane.b32.xlu0 %v1286, 256
    %v1289 = vpop.permute.xlu0 %1288
    %s1291 = sor.u32 256, 8
    %1292 = vbcast.lane.b32.xlu0 %v1286, %s1291
    %v1293 = vpop.permute.xlu0 %1292
    %v1294 = vld [vmem:[#allocation8] sm:$0x1]
    %v1296 = vlaneseq
    %v1297 = vshrl.u32 %v1296, 7
    %v1298 = vsub.s32 0, %v1297
    %v1299 = vrot.slane %v1294, %v1298
    %v1301 = vmul.f32 %v1124, %v1299
    %v1302 = vmul.f32 %v1128, %v1299
    %v1303 = vmul.f32 %v1135, %v1299
    %v1304 = vmul.f32 %v1139, %v1299
    %v1305 = vmul.f32 %v1146, %v1299
    %v1306 = vmul.f32 %v1150, %v1299
    %v1307 = vmul.f32 %v1157, %v1299
    %v1308 = vmul.f32 %v1161, %v1299
    %v1309 = vmul.f32 %v1168, %v1299
    %v1310 = vmul.f32 %v1172, %v1299
    %v1311 = vmul.f32 %v1179, %v1299
    %v1312 = vmul.f32 %v1183, %v1299
    %v1313 = vmul.f32 %v1190, %v1299
    %v1314 = vmul.f32 %v1194, %v1299
    %v1315 = vmul.f32 %v1201, %v1299
    %v1316 = vmul.f32 %v1205, %v1299
    %v1317 = vmul.f32 %v1212, %v1299
    %v1318 = vmul.f32 %v1216, %v1299
    %v1319 = vmul.f32 %v1223, %v1299
    %v1320 = vmul.f32 %v1227, %v1299
    %v1321 = vmul.f32 %v1234, %v1299
    %v1322 = vmul.f32 %v1238, %v1299
    %v1323 = vmul.f32 %v1245, %v1299
    %v1324 = vmul.f32 %v1249, %v1299
    %v1325 = vmul.f32 %v1256, %v1299
    %v1326 = vmul.f32 %v1260, %v1299
    %v1327 = vmul.f32 %v1267, %v1299
    %v1328 = vmul.f32 %v1271, %v1299
    %v1329 = vmul.f32 %v1278, %v1299
    %v1330 = vmul.f32 %v1282, %v1299
    %v1331 = vmul.f32 %v1289, %v1299
    %v1332 = vmul.f32 %v1293, %v1299
    %v1333 = vand.u32 2147483647, %v1301
    %vm1334 = vcmp.le.f32.partialorder %v1333, 0.7853982
    %vm1335 = vcmp.lt.s32.totalorder %v1301, 0
    %v1336 = vand.u32 %v1301, 2139095040
    %v1337 = vshrl.u32 %v1336, 23
    %v1338 = vsub.s32 %v1337, 127
    %v1339 = vand.u32 2147483647, %v1301
    %v1340 = vand.u32 %v1339, 8388607
    %v1341 = vor.u32 %v1340, 8388608
    %v1342 = vsub.s32 0, %v1341
    %v1343 = vadd.s32 %v1338, 1
    %vm1344 = vcmp.gt.s32.totalorder %v1343, 0
    %v1345 = vsel %vm1344, %v1343, 0
    %v1346 = vshrl.u32 %v1345, 5
    %v1347 = vand.u32 %v1345, 31
    %v1348 = vsub.s32 32, %v1347
    %v1349 = vshrl.u32 683565275, %v1348
    %v1350 = vshll.u32 683565275, %v1347
    %v1351 = vshrl.u32 2475754826, %v1348
    %v1352 = vor.u32 %v1350, %v1351
    %v1353 = vshll.u32 2475754826, %v1347
    %v1354 = vshrl.u32 2131351028, %v1348
    %v1355 = vor.u32 %v1353, %v1354
    %v1356 = vshll.u32 2131351028, %v1347
    %v1357 = vshrl.u32 2102212464, %v1348
    %v1358 = vor.u32 %v1356, %v1357
    %v1359 = vshll.u32 2102212464, %v1347
    %v1360 = vshrl.u32 920167782, %v1348
    %v1361 = vor.u32 %v1359, %v1360
    %v1362 = vshll.u32 920167782, %v1347
    %v1363 = vshrl.u32 1326507024, %v1348
    %v1364 = vor.u32 %v1362, %v1363
    %vm1365 = vcmp.lt.s32.totalorder %v1346, 1
    %vm1366 = vcmp.lt.s32.totalorder %v1346, 2
    %vm1367 = vcmp.lt.s32.totalorder %v1346, 3
    %vm1368 = vcmp.lt.s32.totalorder %v1346, 4
    %v1369 = vsel %vm1365, %v1349, %v1352
    %v1370 = vsel %vm1368, %v1358, 2102212464
    %v1371 = vsel %vm1367, %v1355, %v1370
    %v1372 = vsel %vm1366, %v1369, %v1371
    %v1373 = vsel %vm1365, %v1352, %v1355
    %v1374 = vsel %vm1368, %v1361, 920167782
    %v1375 = vsel %vm1367, %v1358, %v1374
    %v1376 = vsel %vm1366, %v1373, %v1375
    %v1377 = vsel %vm1365, %v1355, %v1358
    %v1378 = vsel %vm1368, %v1364, 1326507024
    %v1379 = vsel %vm1367, %v1361, %v1378
    %v1380 = vsel %vm1366, %v1377, %v1379
    %v1381 = vshll.u32 %v1341, 8
    %v1382 = vmul.u32.u64.compose %v1381, %v1380
    %v1383 = vextract.low.u32 %v1382
    %v1384 = vextract.high.u32 %v1382
    %v1385 = vmul.u32.u64.compose %v1381, %v1376
    %v1386 = vextract.low.u32 %v1385
    %v1387 = vextract.high.u32 %v1385
    %v1388 = vmul.u32 %v1381, %v1372
    %v1389 = vadd.s32 %v1384, %v1386
    %vm1390 = vc.u32 %v1384, %v1386
    %v1391 = vadd.s32 %v1387, 1
    %v1392 = vsel %vm1390, %v1391, %v1387
    %v1393 = vadd.s32 %v1388, %v1392
    %v1394 = vadd.s32 %v1393, 536870912
    %v1395 = vshrl.u32 %v1394, 30
    %v1396 = vshll.u32 %v1395, 30
    %v1397 = vsub.s32 %v1393, %v1396
    %vm1398 = vcmp.lt.s32.totalorder %v1397, 0
    %v1399 = vsub.s32 0, %v1397
    %v1400 = vsel %vm1398, %v1399, %v1397
    %v1401 = vclz %v1400
    %v1402 = vsub.s32 %v1401, 2
    %vm1403 = vcmp.gt.s32.totalorder 0, %v1402
    %v1404 = vsel %vm1403, 0, %v1402
    %v1405 = vsub.s32 32, %v1404
    %v1406 = vshll.u32 %v1397, %v1404
    %v1407 = vshrl.u32 %v1389, %v1405
    %v1408 = vor.u32 %v1406, %v1407
    %v1409 = vsub.s32 4294967266, %v1404
    %v1410 = vadd.s32 %v1409, 127
    %v1411 = vshll.u32 %v1410, 23
    %v1412 = vor.u32 4788187, %v1411
    %v1413 = vand.u32 2147483647, %v1412
    %v1415 = vcvt.s32.f32 %v1408
    %v1416 = vmul.f32 %v1415, %v1413
    %v1417 = vxor.u32 %v1416, 2147483648
    %v1418 = vsel %vm1335, %v1417, %v1416
    %v1419 = vsub.s32 4, %v1395
    %v1420 = vsel %vm1335, %v1419, %v1395
    %v1421 = vsel %vm1334, %v1301, %v1418
    %v1422 = vsel %vm1334, 0, %v1420
    %v1423 = vcosq.f32.pop %v1421
    %v1424 = vsinq.f32.pop %v1421
    %vm1425 = vweird.f32 %v1301
    %v1426 = vand.u32 %v1422, 3
    %vm1427 = vcmp.lt.s32.totalorder %v1426, 2
    %vm1428 = vcmp.eq.s32.totalorder %v1426, 0
    %v1429 = vxor.u32 %v1424, 2147483648
    %v1430 = vsel %vm1428, %v1423, %v1429
    %vm1431 = vcmp.eq.s32.totalorder %v1426, 2
    %v1432 = vxor.u32 %v1423, 2147483648
    %v1433 = vsel %vm1431, %v1432, %v1424
    %v1434 = vsel %vm1427, %v1430, %v1433
    %v1435 = vsel %vm1425, nan, %v1434
    %v1436 = vand.u32 2147483647, %v1302
    %vm1437 = vcmp.le.f32.partialorder %v1436, 0.7853982
    %vm1438 = vcmp.lt.s32.totalorder %v1302, 0
    %v1439 = vand.u32 %v1302, 2139095040
    %v1440 = vshrl.u32 %v1439, 23
    %v1441 = vsub.s32 %v1440, 127
    %v1442 = vand.u32 2147483647, %v1302
    %v1443 = vand.u32 %v1442, 8388607
    %v1444 = vor.u32 %v1443, 8388608
    %v1445 = vsub.s32 0, %v1444
    %v1446 = vadd.s32 %v1441, 1
    %vm1447 = vcmp.gt.s32.totalorder %v1446, 0
    %v1448 = vsel %vm1447, %v1446, 0
    %v1449 = vshrl.u32 %v1448, 5
    %v1450 = vand.u32 %v1448, 31
    %v1451 = vsub.s32 32, %v1450
    %v1452 = vshrl.u32 683565275, %v1451
    %v1453 = vshll.u32 683565275, %v1450
    %v1454 = vshrl.u32 2475754826, %v1451
    %v1455 = vor.u32 %v1453, %v1454
    %v1456 = vshll.u32 2475754826, %v1450
    %v1457 = vshrl.u32 2131351028, %v1451
    %v1458 = vor.u32 %v1456, %v1457
    %v1459 = vshll.u32 2131351028, %v1450
    %v1460 = vshrl.u32 2102212464, %v1451
    %v1461 = vor.u32 %v1459, %v1460
    %v1462 = vshll.u32 2102212464, %v1450
    %v1463 = vshrl.u32 920167782, %v1451
    %v1464 = vor.u32 %v1462, %v1463
    %v1465 = vshll.u32 920167782, %v1450
    %v1466 = vshrl.u32 1326507024, %v1451
    %v1467 = vor.u32 %v1465, %v1466
    %vm1468 = vcmp.lt.s32.totalorder %v1449, 1
    %vm1469 = vcmp.lt.s32.totalorder %v1449, 2
    %vm1470 = vcmp.lt.s32.totalorder %v1449, 3
    %vm1471 = vcmp.lt.s32.totalorder %v1449, 4
    %v1472 = vsel %vm1468, %v1452, %v1455
    %v1473 = vsel %vm1471, %v1461, 2102212464
    %v1474 = vsel %vm1470, %v1458, %v1473
    %v1475 = vsel %vm1469, %v1472, %v1474
    %v1476 = vsel %vm1468, %v1455, %v1458
    %v1477 = vsel %vm1471, %v1464, 920167782
    %v1478 = vsel %vm1470, %v1461, %v1477
    %v1479 = vsel %vm1469, %v1476, %v1478
    %v1480 = vsel %vm1468, %v1458, %v1461
    %v1481 = vsel %vm1471, %v1467, 1326507024
    %v1482 = vsel %vm1470, %v1464, %v1481
    %v1483 = vsel %vm1469, %v1480, %v1482
    %v1484 = vshll.u32 %v1444, 8
    %v1485 = vmul.u32.u64.compose %v1484, %v1483
    %v1486 = vextract.low.u32 %v1485
    %v1487 = vextract.high.u32 %v1485
    %v1488 = vmul.u32.u64.compose %v1484, %v1479
    %v1489 = vextract.low.u32 %v1488
    %v1490 = vextract.high.u32 %v1488
    %v1491 = vmul.u32 %v1484, %v1475
    %v1492 = vadd.s32 %v1487, %v1489
    %vm1493 = vc.u32 %v1487, %v1489
    %v1494 = vadd.s32 %v1490, 1
    %v1495 = vsel %vm1493, %v1494, %v1490
    %v1496 = vadd.s32 %v1491, %v1495
    %v1497 = vadd.s32 %v1496, 536870912
    %v1498 = vshrl.u32 %v1497, 30
    %v1499 = vshll.u32 %v1498, 30
    %v1500 = vsub.s32 %v1496, %v1499
    %vm1501 = vcmp.lt.s32.totalorder %v1500, 0
    %v1502 = vsub.s32 0, %v1500
    %v1503 = vsel %vm1501, %v1502, %v1500
    %v1504 = vclz %v1503
    %v1505 = vsub.s32 %v1504, 2
    %vm1506 = vcmp.gt.s32.totalorder 0, %v1505
    %v1507 = vsel %vm1506, 0, %v1505
    %v1508 = vsub.s32 32, %v1507
    %v1509 = vshll.u32 %v1500, %v1507
    %v1510 = vshrl.u32 %v1492, %v1508
    %v1511 = vor.u32 %v1509, %v1510
    %v1512 = vsub.s32 4294967266, %v1507
    %v1513 = vadd.s32 %v1512, 127
    %v1514 = vshll.u32 %v1513, 23
    %v1515 = vor.u32 4788187, %v1514
    %v1516 = vand.u32 2147483647, %v1515
    %v1518 = vcvt.s32.f32 %v1511
    %v1519 = vmul.f32 %v1518, %v1516
    %v1520 = vxor.u32 %v1519, 2147483648
    %v1521 = vsel %vm1438, %v1520, %v1519
    %v1522 = vsub.s32 4, %v1498
    %v1523 = vsel %vm1438, %v1522, %v1498
    %v1524 = vsel %vm1437, %v1302, %v1521
    %v1525 = vsel %vm1437, 0, %v1523
    %v1526 = vcosq.f32.pop %v1524
    %v1527 = vsinq.f32.pop %v1524
    %vm1528 = vweird.f32 %v1302
    %v1529 = vand.u32 %v1525, 3
    %vm1530 = vcmp.lt.s32.totalorder %v1529, 2
    %vm1531 = vcmp.eq.s32.totalorder %v1529, 0
    %v1532 = vxor.u32 %v1527, 2147483648
    %v1533 = vsel %vm1531, %v1526, %v1532
    %vm1534 = vcmp.eq.s32.totalorder %v1529, 2
    %v1535 = vxor.u32 %v1526, 2147483648
    %v1536 = vsel %vm1534, %v1535, %v1527
    %v1537 = vsel %vm1530, %v1533, %v1536
    %v1538 = vsel %vm1528, nan, %v1537
    %v1539 = vand.u32 2147483647, %v1303
    %vm1540 = vcmp.le.f32.partialorder %v1539, 0.7853982
    %vm1541 = vcmp.lt.s32.totalorder %v1303, 0
    %v1542 = vand.u32 %v1303, 2139095040
    %v1543 = vshrl.u32 %v1542, 23
    %v1544 = vsub.s32 %v1543, 127
    %v1545 = vand.u32 2147483647, %v1303
    %v1546 = vand.u32 %v1545, 8388607
    %v1547 = vor.u32 %v1546, 8388608
    %v1548 = vsub.s32 0, %v1547
    %v1549 = vadd.s32 %v1544, 1
    %vm1550 = vcmp.gt.s32.totalorder %v1549, 0
    %v1551 = vsel %vm1550, %v1549, 0
    %v1552 = vshrl.u32 %v1551, 5
    %v1553 = vand.u32 %v1551, 31
    %v1554 = vsub.s32 32, %v1553
    %v1555 = vshrl.u32 683565275, %v1554
    %v1556 = vshll.u32 683565275, %v1553
    %v1557 = vshrl.u32 2475754826, %v1554
    %v1558 = vor.u32 %v1556, %v1557
    %v1559 = vshll.u32 2475754826, %v1553
    %v1560 = vshrl.u32 2131351028, %v1554
    %v1561 = vor.u32 %v1559, %v1560
    %v1562 = vshll.u32 2131351028, %v1553
    %v1563 = vshrl.u32 2102212464, %v1554
    %v1564 = vor.u32 %v1562, %v1563
    %v1565 = vshll.u32 2102212464, %v1553
    %v1566 = vshrl.u32 920167782, %v1554
    %v1567 = vor.u32 %v1565, %v1566
    %v1568 = vshll.u32 920167782, %v1553
    %v1569 = vshrl.u32 1326507024, %v1554
    %v1570 = vor.u32 %v1568, %v1569
    %vm1571 = vcmp.lt.s32.totalorder %v1552, 1
    %vm1572 = vcmp.lt.s32.totalorder %v1552, 2
    %vm1573 = vcmp.lt.s32.totalorder %v1552, 3
    %vm1574 = vcmp.lt.s32.totalorder %v1552, 4
    %v1575 = vsel %vm1571, %v1555, %v1558
    %v1576 = vsel %vm1574, %v1564, 2102212464
    %v1577 = vsel %vm1573, %v1561, %v1576
    %v1578 = vsel %vm1572, %v1575, %v1577
    %v1579 = vsel %vm1571, %v1558, %v1561
    %v1580 = vsel %vm1574, %v1567, 920167782
    %v1581 = vsel %vm1573, %v1564, %v1580
    %v1582 = vsel %vm1572, %v1579, %v1581
    %v1583 = vsel %vm1571, %v1561, %v1564
    %v1584 = vsel %vm1574, %v1570, 1326507024
    %v1585 = vsel %vm1573, %v1567, %v1584
    %v1586 = vsel %vm1572, %v1583, %v1585
    %v1587 = vshll.u32 %v1547, 8
    %v1588 = vmul.u32.u64.compose %v1587, %v1586
    %v1589 = vextract.low.u32 %v1588
    %v1590 = vextract.high.u32 %v1588
    %v1591 = vmul.u32.u64.compose %v1587, %v1582
    %v1592 = vextract.low.u32 %v1591
    %v1593 = vextract.high.u32 %v1591
    %v1594 = vmul.u32 %v1587, %v1578
    %v1595 = vadd.s32 %v1590, %v1592
    %vm1596 = vc.u32 %v1590, %v1592
    %v1597 = vadd.s32 %v1593, 1
    %v1598 = vsel %vm1596, %v1597, %v1593
    %v1599 = vadd.s32 %v1594, %v1598
    %v1600 = vadd.s32 %v1599, 536870912
    %v1601 = vshrl.u32 %v1600, 30
    %v1602 = vshll.u32 %v1601, 30
    %v1603 = vsub.s32 %v1599, %v1602
    %vm1604 = vcmp.lt.s32.totalorder %v1603, 0
    %v1605 = vsub.s32 0, %v1603
    %v1606 = vsel %vm1604, %v1605, %v1603
    %v1607 = vclz %v1606
    %v1608 = vsub.s32 %v1607, 2
    %vm1609 = vcmp.gt.s32.totalorder 0, %v1608
    %v1610 = vsel %vm1609, 0, %v1608
    %v1611 = vsub.s32 32, %v1610
    %v1612 = vshll.u32 %v1603, %v1610
    %v1613 = vshrl.u32 %v1595, %v1611
    %v1614 = vor.u32 %v1612, %v1613
    %v1615 = vsub.s32 4294967266, %v1610
    %v1616 = vadd.s32 %v1615, 127
    %v1617 = vshll.u32 %v1616, 23
    %v1618 = vor.u32 4788187, %v1617
    %v1619 = vand.u32 2147483647, %v1618
    %v1621 = vcvt.s32.f32 %v1614
    %v1622 = vmul.f32 %v1621, %v1619
    %v1623 = vxor.u32 %v1622, 2147483648
    %v1624 = vsel %vm1541, %v1623, %v1622
    %v1625 = vsub.s32 4, %v1601
    %v1626 = vsel %vm1541, %v1625, %v1601
    %v1627 = vsel %vm1540, %v1303, %v1624
    %v1628 = vsel %vm1540, 0, %v1626
    %v1629 = vcosq.f32.pop %v1627
    %v1630 = vsinq.f32.pop %v1627
    %vm1631 = vweird.f32 %v1303
    %v1632 = vand.u32 %v1628, 3
    %vm1633 = vcmp.lt.s32.totalorder %v1632, 2
    %vm1634 = vcmp.eq.s32.totalorder %v1632, 0
    %v1635 = vxor.u32 %v1630, 2147483648
    %v1636 = vsel %vm1634, %v1629, %v1635
    %vm1637 = vcmp.eq.s32.totalorder %v1632, 2
    %v1638 = vxor.u32 %v1629, 2147483648
    %v1639 = vsel %vm1637, %v1638, %v1630
    %v1640 = vsel %vm1633, %v1636, %v1639
    %v1641 = vsel %vm1631, nan, %v1640
    %v1642 = vand.u32 2147483647, %v1304
    %vm1643 = vcmp.le.f32.partialorder %v1642, 0.7853982
    %vm1644 = vcmp.lt.s32.totalorder %v1304, 0
    %v1645 = vand.u32 %v1304, 2139095040
    %v1646 = vshrl.u32 %v1645, 23
    %v1647 = vsub.s32 %v1646, 127
    %v1648 = vand.u32 2147483647, %v1304
    %v1649 = vand.u32 %v1648, 8388607
    %v1650 = vor.u32 %v1649, 8388608
    %v1651 = vsub.s32 0, %v1650
    %v1652 = vadd.s32 %v1647, 1
    %vm1653 = vcmp.gt.s32.totalorder %v1652, 0
    %v1654 = vsel %vm1653, %v1652, 0
    %v1655 = vshrl.u32 %v1654, 5
    %v1656 = vand.u32 %v1654, 31
    %v1657 = vsub.s32 32, %v1656
    %v1658 = vshrl.u32 683565275, %v1657
    %v1659 = vshll.u32 683565275, %v1656
    %v1660 = vshrl.u32 2475754826, %v1657
    %v1661 = vor.u32 %v1659, %v1660
    %v1662 = vshll.u32 2475754826, %v1656
    %v1663 = vshrl.u32 2131351028, %v1657
    %v1664 = vor.u32 %v1662, %v1663
    %v1665 = vshll.u32 2131351028, %v1656
    %v1666 = vshrl.u32 2102212464, %v1657
    %v1667 = vor.u32 %v1665, %v1666
    %v1668 = vshll.u32 2102212464, %v1656
    %v1669 = vshrl.u32 920167782, %v1657
    %v1670 = vor.u32 %v1668, %v1669
    %v1671 = vshll.u32 920167782, %v1656
    %v1672 = vshrl.u32 1326507024, %v1657
    %v1673 = vor.u32 %v1671, %v1672
    %vm1674 = vcmp.lt.s32.totalorder %v1655, 1
    %vm1675 = vcmp.lt.s32.totalorder %v1655, 2
    %vm1676 = vcmp.lt.s32.totalorder %v1655, 3
    %vm1677 = vcmp.lt.s32.totalorder %v1655, 4
    %v1678 = vsel %vm1674, %v1658, %v1661
    %v1679 = vsel %vm1677, %v1667, 2102212464
    %v1680 = vsel %vm1676, %v1664, %v1679
    %v1681 = vsel %vm1675, %v1678, %v1680
    %v1682 = vsel %vm1674, %v1661, %v1664
    %v1683 = vsel %vm1677, %v1670, 920167782
    %v1684 = vsel %vm1676, %v1667, %v1683
    %v1685 = vsel %vm1675, %v1682, %v1684
    %v1686 = vsel %vm1674, %v1664, %v1667
    %v1687 = vsel %vm1677, %v1673, 1326507024
    %v1688 = vsel %vm1676, %v1670, %v1687
    %v1689 = vsel %vm1675, %v1686, %v1688
    %v1690 = vshll.u32 %v1650, 8
    %v1691 = vmul.u32.u64.compose %v1690, %v1689
    %v1692 = vextract.low.u32 %v1691
    %v1693 = vextract.high.u32 %v1691
    %v1694 = vmul.u32.u64.compose %v1690, %v1685
    %v1695 = vextract.low.u32 %v1694
    %v1696 = vextract.high.u32 %v1694
    %v1697 = vmul.u32 %v1690, %v1681
    %v1698 = vadd.s32 %v1693, %v1695
    %vm1699 = vc.u32 %v1693, %v1695
    %v1700 = vadd.s32 %v1696, 1
    %v1701 = vsel %vm1699, %v1700, %v1696
    %v1702 = vadd.s32 %v1697, %v1701
    %v1703 = vadd.s32 %v1702, 536870912
    %v1704 = vshrl.u32 %v1703, 30
    %v1705 = vshll.u32 %v1704, 30
    %v1706 = vsub.s32 %v1702, %v1705
    %vm1707 = vcmp.lt.s32.totalorder %v1706, 0
    %v1708 = vsub.s32 0, %v1706
    %v1709 = vsel %vm1707, %v1708, %v1706
    %v1710 = vclz %v1709
    %v1711 = vsub.s32 %v1710, 2
    %vm1712 = vcmp.gt.s32.totalorder 0, %v1711
    %v1713 = vsel %vm1712, 0, %v1711
    %v1714 = vsub.s32 32, %v1713
    %v1715 = vshll.u32 %v1706, %v1713
    %v1716 = vshrl.u32 %v1698, %v1714
    %v1717 = vor.u32 %v1715, %v1716
    %v1718 = vsub.s32 4294967266, %v1713
    %v1719 = vadd.s32 %v1718, 127
    %v1720 = vshll.u32 %v1719, 23
    %v1721 = vor.u32 4788187, %v1720
    %v1722 = vand.u32 2147483647, %v1721
    %v1724 = vcvt.s32.f32 %v1717
    %v1725 = vmul.f32 %v1724, %v1722
    %v1726 = vxor.u32 %v1725, 2147483648
    %v1727 = vsel %vm1644, %v1726, %v1725
    %v1728 = vsub.s32 4, %v1704
    %v1729 = vsel %vm1644, %v1728, %v1704
    %v1730 = vsel %vm1643, %v1304, %v1727
    %v1731 = vsel %vm1643, 0, %v1729
    %v1732 = vcosq.f32.pop %v1730
    %v1733 = vsinq.f32.pop %v1730
    %vm1734 = vweird.f32 %v1304
    %v1735 = vand.u32 %v1731, 3
    %vm1736 = vcmp.lt.s32.totalorder %v1735, 2
    %vm1737 = vcmp.eq.s32.totalorder %v1735, 0
    %v1738 = vxor.u32 %v1733, 2147483648
    %v1739 = vsel %vm1737, %v1732, %v1738
    %vm1740 = vcmp.eq.s32.totalorder %v1735, 2
    %v1741 = vxor.u32 %v1732, 2147483648
    %v1742 = vsel %vm1740, %v1741, %v1733
    %v1743 = vsel %vm1736, %v1739, %v1742
    %v1744 = vsel %vm1734, nan, %v1743
    %v1745 = vand.u32 2147483647, %v1305
    %vm1746 = vcmp.le.f32.partialorder %v1745, 0.7853982
    %vm1747 = vcmp.lt.s32.totalorder %v1305, 0
    %v1748 = vand.u32 %v1305, 2139095040
    %v1749 = vshrl.u32 %v1748, 23
    %v1750 = vsub.s32 %v1749, 127
    %v1751 = vand.u32 2147483647, %v1305
    %v1752 = vand.u32 %v1751, 8388607
    %v1753 = vor.u32 %v1752, 8388608
    %v1754 = vsub.s32 0, %v1753
    %v1755 = vadd.s32 %v1750, 1
    %vm1756 = vcmp.gt.s32.totalorder %v1755, 0
    %v1757 = vsel %vm1756, %v1755, 0
    %v1758 = vshrl.u32 %v1757, 5
    %v1759 = vand.u32 %v1757, 31
    %v1760 = vsub.s32 32, %v1759
    %v1761 = vshrl.u32 683565275, %v1760
    %v1762 = vshll.u32 683565275, %v1759
    %v1763 = vshrl.u32 2475754826, %v1760
    %v1764 = vor.u32 %v1762, %v1763
    %v1765 = vshll.u32 2475754826, %v1759
    %v1766 = vshrl.u32 2131351028, %v1760
    %v1767 = vor.u32 %v1765, %v1766
    %v1768 = vshll.u32 2131351028, %v1759
    %v1769 = vshrl.u32 2102212464, %v1760
    %v1770 = vor.u32 %v1768, %v1769
    %v1771 = vshll.u32 2102212464, %v1759
    %v1772 = vshrl.u32 920167782, %v1760
    %v1773 = vor.u32 %v1771, %v1772
    %v1774 = vshll.u32 920167782, %v1759
    %v1775 = vshrl.u32 1326507024, %v1760
    %v1776 = vor.u32 %v1774, %v1775
    %vm1777 = vcmp.lt.s32.totalorder %v1758, 1
    %vm1778 = vcmp.lt.s32.totalorder %v1758, 2
    %vm1779 = vcmp.lt.s32.totalorder %v1758, 3
    %vm1780 = vcmp.lt.s32.totalorder %v1758, 4
    %v1781 = vsel %vm1777, %v1761, %v1764
    %v1782 = vsel %vm1780, %v1770, 2102212464
    %v1783 = vsel %vm1779, %v1767, %v1782
    %v1784 = vsel %vm1778, %v1781, %v1783
    %v1785 = vsel %vm1777, %v1764, %v1767
    %v1786 = vsel %vm1780, %v1773, 920167782
    %v1787 = vsel %vm1779, %v1770, %v1786
    %v1788 = vsel %vm1778, %v1785, %v1787
    %v1789 = vsel %vm1777, %v1767, %v1770
    %v1790 = vsel %vm1780, %v1776, 1326507024
    %v1791 = vsel %vm1779, %v1773, %v1790
    %v1792 = vsel %vm1778, %v1789, %v1791
    %v1793 = vshll.u32 %v1753, 8
    %v1794 = vmul.u32.u64.compose %v1793, %v1792
    %v1795 = vextract.low.u32 %v1794
    %v1796 = vextract.high.u32 %v1794
    %v1797 = vmul.u32.u64.compose %v1793, %v1788
    %v1798 = vextract.low.u32 %v1797
    %v1799 = vextract.high.u32 %v1797
    %v1800 = vmul.u32 %v1793, %v1784
    %v1801 = vadd.s32 %v1796, %v1798
    %vm1802 = vc.u32 %v1796, %v1798
    %v1803 = vadd.s32 %v1799, 1
    %v1804 = vsel %vm1802, %v1803, %v1799
    %v1805 = vadd.s32 %v1800, %v1804
    %v1806 = vadd.s32 %v1805, 536870912
    %v1807 = vshrl.u32 %v1806, 30
    %v1808 = vshll.u32 %v1807, 30
    %v1809 = vsub.s32 %v1805, %v1808
    %vm1810 = vcmp.lt.s32.totalorder %v1809, 0
    %v1811 = vsub.s32 0, %v1809
    %v1812 = vsel %vm1810, %v1811, %v1809
    %v1813 = vclz %v1812
    %v1814 = vsub.s32 %v1813, 2
    %vm1815 = vcmp.gt.s32.totalorder 0, %v1814
    %v1816 = vsel %vm1815, 0, %v1814
    %v1817 = vsub.s32 32, %v1816
    %v1818 = vshll.u32 %v1809, %v1816
    %v1819 = vshrl.u32 %v1801, %v1817
    %v1820 = vor.u32 %v1818, %v1819
    %v1821 = vsub.s32 4294967266, %v1816
    %v1822 = vadd.s32 %v1821, 127
    %v1823 = vshll.u32 %v1822, 23
    %v1824 = vor.u32 4788187, %v1823
    %v1825 = vand.u32 2147483647, %v1824
    %v1827 = vcvt.s32.f32 %v1820
    %v1828 = vmul.f32 %v1827, %v1825
    %v1829 = vxor.u32 %v1828, 2147483648
    %v1830 = vsel %vm1747, %v1829, %v1828
    %v1831 = vsub.s32 4, %v1807
    %v1832 = vsel %vm1747, %v1831, %v1807
    %v1833 = vsel %vm1746, %v1305, %v1830
    %v1834 = vsel %vm1746, 0, %v1832
    %v1835 = vcosq.f32.pop %v1833
    %v1836 = vsinq.f32.pop %v1833
    %vm1837 = vweird.f32 %v1305
    %v1838 = vand.u32 %v1834, 3
    %vm1839 = vcmp.lt.s32.totalorder %v1838, 2
    %vm1840 = vcmp.eq.s32.totalorder %v1838, 0
    %v1841 = vxor.u32 %v1836, 2147483648
    %v1842 = vsel %vm1840, %v1835, %v1841
    %vm1843 = vcmp.eq.s32.totalorder %v1838, 2
    %v1844 = vxor.u32 %v1835, 2147483648
    %v1845 = vsel %vm1843, %v1844, %v1836
    %v1846 = vsel %vm1839, %v1842, %v1845
    %v1847 = vsel %vm1837, nan, %v1846
    %v1848 = vand.u32 2147483647, %v1306
    %vm1849 = vcmp.le.f32.partialorder %v1848, 0.7853982
    %vm1850 = vcmp.lt.s32.totalorder %v1306, 0
    %v1851 = vand.u32 %v1306, 2139095040
    %v1852 = vshrl.u32 %v1851, 23
    %v1853 = vsub.s32 %v1852, 127
    %v1854 = vand.u32 2147483647, %v1306
    %v1855 = vand.u32 %v1854, 8388607
    %v1856 = vor.u32 %v1855, 8388608
    %v1857 = vsub.s32 0, %v1856
    %v1858 = vadd.s32 %v1853, 1
    %vm1859 = vcmp.gt.s32.totalorder %v1858, 0
    %v1860 = vsel %vm1859, %v1858, 0
    %v1861 = vshrl.u32 %v1860, 5
    %v1862 = vand.u32 %v1860, 31
    %v1863 = vsub.s32 32, %v1862
    %v1864 = vshrl.u32 683565275, %v1863
    %v1865 = vshll.u32 683565275, %v1862
    %v1866 = vshrl.u32 2475754826, %v1863
    %v1867 = vor.u32 %v1865, %v1866
    %v1868 = vshll.u32 2475754826, %v1862
    %v1869 = vshrl.u32 2131351028, %v1863
    %v1870 = vor.u32 %v1868, %v1869
    %v1871 = vshll.u32 2131351028, %v1862
    %v1872 = vshrl.u32 2102212464, %v1863
    %v1873 = vor.u32 %v1871, %v1872
    %v1874 = vshll.u32 2102212464, %v1862
    %v1875 = vshrl.u32 920167782, %v1863
    %v1876 = vor.u32 %v1874, %v1875
    %v1877 = vshll.u32 920167782, %v1862
    %v1878 = vshrl.u32 1326507024, %v1863
    %v1879 = vor.u32 %v1877, %v1878
    %vm1880 = vcmp.lt.s32.totalorder %v1861, 1
    %vm1881 = vcmp.lt.s32.totalorder %v1861, 2
    %vm1882 = vcmp.lt.s32.totalorder %v1861, 3
    %vm1883 = vcmp.lt.s32.totalorder %v1861, 4
    %v1884 = vsel %vm1880, %v1864, %v1867
    %v1885 = vsel %vm1883, %v1873, 2102212464
    %v1886 = vsel %vm1882, %v1870, %v1885
    %v1887 = vsel %vm1881, %v1884, %v1886
    %v1888 = vsel %vm1880, %v1867, %v1870
    %v1889 = vsel %vm1883, %v1876, 920167782
    %v1890 = vsel %vm1882, %v1873, %v1889
    %v1891 = vsel %vm1881, %v1888, %v1890
    %v1892 = vsel %vm1880, %v1870, %v1873
    %v1893 = vsel %vm1883, %v1879, 1326507024
    %v1894 = vsel %vm1882, %v1876, %v1893
    %v1895 = vsel %vm1881, %v1892, %v1894
    %v1896 = vshll.u32 %v1856, 8
    %v1897 = vmul.u32.u64.compose %v1896, %v1895
    %v1898 = vextract.low.u32 %v1897
    %v1899 = vextract.high.u32 %v1897
    %v1900 = vmul.u32.u64.compose %v1896, %v1891
    %v1901 = vextract.low.u32 %v1900
    %v1902 = vextract.high.u32 %v1900
    %v1903 = vmul.u32 %v1896, %v1887
    %v1904 = vadd.s32 %v1899, %v1901
    %vm1905 = vc.u32 %v1899, %v1901
    %v1906 = vadd.s32 %v1902, 1
    %v1907 = vsel %vm1905, %v1906, %v1902
    %v1908 = vadd.s32 %v1903, %v1907
    %v1909 = vadd.s32 %v1908, 536870912
    %v1910 = vshrl.u32 %v1909, 30
    %v1911 = vshll.u32 %v1910, 30
    %v1912 = vsub.s32 %v1908, %v1911
    %vm1913 = vcmp.lt.s32.totalorder %v1912, 0
    %v1914 = vsub.s32 0, %v1912
    %v1915 = vsel %vm1913, %v1914, %v1912
    %v1916 = vclz %v1915
    %v1917 = vsub.s32 %v1916, 2
    %vm1918 = vcmp.gt.s32.totalorder 0, %v1917
    %v1919 = vsel %vm1918, 0, %v1917
    %v1920 = vsub.s32 32, %v1919
    %v1921 = vshll.u32 %v1912, %v1919
    %v1922 = vshrl.u32 %v1904, %v1920
    %v1923 = vor.u32 %v1921, %v1922
    %v1924 = vsub.s32 4294967266, %v1919
    %v1925 = vadd.s32 %v1924, 127
    %v1926 = vshll.u32 %v1925, 23
    %v1927 = vor.u32 4788187, %v1926
    %v1928 = vand.u32 2147483647, %v1927
    %v1930 = vcvt.s32.f32 %v1923
    %v1931 = vmul.f32 %v1930, %v1928
    %v1932 = vxor.u32 %v1931, 2147483648
    %v1933 = vsel %vm1850, %v1932, %v1931
    %v1934 = vsub.s32 4, %v1910
    %v1935 = vsel %vm1850, %v1934, %v1910
    %v1936 = vsel %vm1849, %v1306, %v1933
    %v1937 = vsel %vm1849, 0, %v1935
    %v1938 = vcosq.f32.pop %v1936
    %v1939 = vsinq.f32.pop %v1936
    %vm1940 = vweird.f32 %v1306
    %v1941 = vand.u32 %v1937, 3
    %vm1942 = vcmp.lt.s32.totalorder %v1941, 2
    %vm1943 = vcmp.eq.s32.totalorder %v1941, 0
    %v1944 = vxor.u32 %v1939, 2147483648
    %v1945 = vsel %vm1943, %v1938, %v1944
    %vm1946 = vcmp.eq.s32.totalorder %v1941, 2
    %v1947 = vxor.u32 %v1938, 2147483648
    %v1948 = vsel %vm1946, %v1947, %v1939
    %v1949 = vsel %vm1942, %v1945, %v1948
    %v1950 = vsel %vm1940, nan, %v1949
    %v1951 = vand.u32 2147483647, %v1307
    %vm1952 = vcmp.le.f32.partialorder %v1951, 0.7853982
    %vm1953 = vcmp.lt.s32.totalorder %v1307, 0
    %v1954 = vand.u32 %v1307, 2139095040
    %v1955 = vshrl.u32 %v1954, 23
    %v1956 = vsub.s32 %v1955, 127
    %v1957 = vand.u32 2147483647, %v1307
    %v1958 = vand.u32 %v1957, 8388607
    %v1959 = vor.u32 %v1958, 8388608
    %v1960 = vsub.s32 0, %v1959
    %v1961 = vadd.s32 %v1956, 1
    %vm1962 = vcmp.gt.s32.totalorder %v1961, 0
    %v1963 = vsel %vm1962, %v1961, 0
    %v1964 = vshrl.u32 %v1963, 5
    %v1965 = vand.u32 %v1963, 31
    %v1966 = vsub.s32 32, %v1965
    %v1967 = vshrl.u32 683565275, %v1966
    %v1968 = vshll.u32 683565275, %v1965
    %v1969 = vshrl.u32 2475754826, %v1966
    %v1970 = vor.u32 %v1968, %v1969
    %v1971 = vshll.u32 2475754826, %v1965
    %v1972 = vshrl.u32 2131351028, %v1966
    %v1973 = vor.u32 %v1971, %v1972
    %v1974 = vshll.u32 2131351028, %v1965
    %v1975 = vshrl.u32 2102212464, %v1966
    %v1976 = vor.u32 %v1974, %v1975
    %v1977 = vshll.u32 2102212464, %v1965
    %v1978 = vshrl.u32 920167782, %v1966
    %v1979 = vor.u32 %v1977, %v1978
    %v1980 = vshll.u32 920167782, %v1965
    %v1981 = vshrl.u32 1326507024, %v1966
    %v1982 = vor.u32 %v1980, %v1981
    %vm1983 = vcmp.lt.s32.totalorder %v1964, 1
    %vm1984 = vcmp.lt.s32.totalorder %v1964, 2
    %vm1985 = vcmp.lt.s32.totalorder %v1964, 3
    %vm1986 = vcmp.lt.s32.totalorder %v1964, 4
    %v1987 = vsel %vm1983, %v1967, %v1970
    %v1988 = vsel %vm1986, %v1976, 2102212464
    %v1989 = vsel %vm1985, %v1973, %v1988
    %v1990 = vsel %vm1984, %v1987, %v1989
    %v1991 = vsel %vm1983, %v1970, %v1973
    %v1992 = vsel %vm1986, %v1979, 920167782
    %v1993 = vsel %vm1985, %v1976, %v1992
    %v1994 = vsel %vm1984, %v1991, %v1993
    %v1995 = vsel %vm1983, %v1973, %v1976
    %v1996 = vsel %vm1986, %v1982, 1326507024
    %v1997 = vsel %vm1985, %v1979, %v1996
    %v1998 = vsel %vm1984, %v1995, %v1997
    %v1999 = vshll.u32 %v1959, 8
    %v2000 = vmul.u32.u64.compose %v1999, %v1998
    %v2001 = vextract.low.u32 %v2000
    %v2002 = vextract.high.u32 %v2000
    %v2003 = vmul.u32.u64.compose %v1999, %v1994
    %v2004 = vextract.low.u32 %v2003
    %v2005 = vextract.high.u32 %v2003
    %v2006 = vmul.u32 %v1999, %v1990
    %v2007 = vadd.s32 %v2002, %v2004
    %vm2008 = vc.u32 %v2002, %v2004
    %v2009 = vadd.s32 %v2005, 1
    %v2010 = vsel %vm2008, %v2009, %v2005
    %v2011 = vadd.s32 %v2006, %v2010
    %v2012 = vadd.s32 %v2011, 536870912
    %v2013 = vshrl.u32 %v2012, 30
    %v2014 = vshll.u32 %v2013, 30
    %v2015 = vsub.s32 %v2011, %v2014
    %vm2016 = vcmp.lt.s32.totalorder %v2015, 0
    %v2017 = vsub.s32 0, %v2015
    %v2018 = vsel %vm2016, %v2017, %v2015
    %v2019 = vclz %v2018
    %v2020 = vsub.s32 %v2019, 2
    %vm2021 = vcmp.gt.s32.totalorder 0, %v2020
    %v2022 = vsel %vm2021, 0, %v2020
    %v2023 = vsub.s32 32, %v2022
    %v2024 = vshll.u32 %v2015, %v2022
    %v2025 = vshrl.u32 %v2007, %v2023
    %v2026 = vor.u32 %v2024, %v2025
    %v2027 = vsub.s32 4294967266, %v2022
    %v2028 = vadd.s32 %v2027, 127
    %v2029 = vshll.u32 %v2028, 23
    %v2030 = vor.u32 4788187, %v2029
    %v2031 = vand.u32 2147483647, %v2030
    %v2033 = vcvt.s32.f32 %v2026
    %v2034 = vmul.f32 %v2033, %v2031
    %v2035 = vxor.u32 %v2034, 2147483648
    %v2036 = vsel %vm1953, %v2035, %v2034
    %v2037 = vsub.s32 4, %v2013
    %v2038 = vsel %vm1953, %v2037, %v2013
    %v2039 = vsel %vm1952, %v1307, %v2036
    %v2040 = vsel %vm1952, 0, %v2038
    %v2041 = vcosq.f32.pop %v2039
    %v2042 = vsinq.f32.pop %v2039
    %vm2043 = vweird.f32 %v1307
    %v2044 = vand.u32 %v2040, 3
    %vm2045 = vcmp.lt.s32.totalorder %v2044, 2
    %vm2046 = vcmp.eq.s32.totalorder %v2044, 0
    %v2047 = vxor.u32 %v2042, 2147483648
    %v2048 = vsel %vm2046, %v2041, %v2047
    %vm2049 = vcmp.eq.s32.totalorder %v2044, 2
    %v2050 = vxor.u32 %v2041, 2147483648
    %v2051 = vsel %vm2049, %v2050, %v2042
    %v2052 = vsel %vm2045, %v2048, %v2051
    %v2053 = vsel %vm2043, nan, %v2052
    %v2054 = vand.u32 2147483647, %v1308
    %vm2055 = vcmp.le.f32.partialorder %v2054, 0.7853982
    %vm2056 = vcmp.lt.s32.totalorder %v1308, 0
    %v2057 = vand.u32 %v1308, 2139095040
    %v2058 = vshrl.u32 %v2057, 23
    %v2059 = vsub.s32 %v2058, 127
    %v2060 = vand.u32 2147483647, %v1308
    %v2061 = vand.u32 %v2060, 8388607
    %v2062 = vor.u32 %v2061, 8388608
    %v2063 = vsub.s32 0, %v2062
    %v2064 = vadd.s32 %v2059, 1
    %vm2065 = vcmp.gt.s32.totalorder %v2064, 0
    %v2066 = vsel %vm2065, %v2064, 0
    %v2067 = vshrl.u32 %v2066, 5
    %v2068 = vand.u32 %v2066, 31
    %v2069 = vsub.s32 32, %v2068
    %v2070 = vshrl.u32 683565275, %v2069
    %v2071 = vshll.u32 683565275, %v2068
    %v2072 = vshrl.u32 2475754826, %v2069
    %v2073 = vor.u32 %v2071, %v2072
    %v2074 = vshll.u32 2475754826, %v2068
    %v2075 = vshrl.u32 2131351028, %v2069
    %v2076 = vor.u32 %v2074, %v2075
    %v2077 = vshll.u32 2131351028, %v2068
    %v2078 = vshrl.u32 2102212464, %v2069
    %v2079 = vor.u32 %v2077, %v2078
    %v2080 = vshll.u32 2102212464, %v2068
    %v2081 = vshrl.u32 920167782, %v2069
    %v2082 = vor.u32 %v2080, %v2081
    %v2083 = vshll.u32 920167782, %v2068
    %v2084 = vshrl.u32 1326507024, %v2069
    %v2085 = vor.u32 %v2083, %v2084
    %vm2086 = vcmp.lt.s32.totalorder %v2067, 1
    %vm2087 = vcmp.lt.s32.totalorder %v2067, 2
    %vm2088 = vcmp.lt.s32.totalorder %v2067, 3
    %vm2089 = vcmp.lt.s32.totalorder %v2067, 4
    %v2090 = vsel %vm2086, %v2070, %v2073
    %v2091 = vsel %vm2089, %v2079, 2102212464
    %v2092 = vsel %vm2088, %v2076, %v2091
    %v2093 = vsel %vm2087, %v2090, %v2092
    %v2094 = vsel %vm2086, %v2073, %v2076
    %v2095 = vsel %vm2089, %v2082, 920167782
    %v2096 = vsel %vm2088, %v2079, %v2095
    %v2097 = vsel %vm2087, %v2094, %v2096
    %v2098 = vsel %vm2086, %v2076, %v2079
    %v2099 = vsel %vm2089, %v2085, 1326507024
    %v2100 = vsel %vm2088, %v2082, %v2099
    %v2101 = vsel %vm2087, %v2098, %v2100
    %v2102 = vshll.u32 %v2062, 8
    %v2103 = vmul.u32.u64.compose %v2102, %v2101
    %v2104 = vextract.low.u32 %v2103
    %v2105 = vextract.high.u32 %v2103
    %v2106 = vmul.u32.u64.compose %v2102, %v2097
    %v2107 = vextract.low.u32 %v2106
    %v2108 = vextract.high.u32 %v2106
    %v2109 = vmul.u32 %v2102, %v2093
    %v2110 = vadd.s32 %v2105, %v2107
    %vm2111 = vc.u32 %v2105, %v2107
    %v2112 = vadd.s32 %v2108, 1
    %v2113 = vsel %vm2111, %v2112, %v2108
    %v2114 = vadd.s32 %v2109, %v2113
    %v2115 = vadd.s32 %v2114, 536870912
    %v2116 = vshrl.u32 %v2115, 30
    %v2117 = vshll.u32 %v2116, 30
    %v2118 = vsub.s32 %v2114, %v2117
    %vm2119 = vcmp.lt.s32.totalorder %v2118, 0
    %v2120 = vsub.s32 0, %v2118
    %v2121 = vsel %vm2119, %v2120, %v2118
    %v2122 = vclz %v2121
    %v2123 = vsub.s32 %v2122, 2
    %vm2124 = vcmp.gt.s32.totalorder 0, %v2123
    %v2125 = vsel %vm2124, 0, %v2123
    %v2126 = vsub.s32 32, %v2125
    %v2127 = vshll.u32 %v2118, %v2125
    %v2128 = vshrl.u32 %v2110, %v2126
    %v2129 = vor.u32 %v2127, %v2128
    %v2130 = vsub.s32 4294967266, %v2125
    %v2131 = vadd.s32 %v2130, 127
    %v2132 = vshll.u32 %v2131, 23
    %v2133 = vor.u32 4788187, %v2132
    %v2134 = vand.u32 2147483647, %v2133
    %v2136 = vcvt.s32.f32 %v2129
    %v2137 = vmul.f32 %v2136, %v2134
    %v2138 = vxor.u32 %v2137, 2147483648
    %v2139 = vsel %vm2056, %v2138, %v2137
    %v2140 = vsub.s32 4, %v2116
    %v2141 = vsel %vm2056, %v2140, %v2116
    %v2142 = vsel %vm2055, %v1308, %v2139
    %v2143 = vsel %vm2055, 0, %v2141
    %v2144 = vcosq.f32.pop %v2142
    %v2145 = vsinq.f32.pop %v2142
    %vm2146 = vweird.f32 %v1308
    %v2147 = vand.u32 %v2143, 3
    %vm2148 = vcmp.lt.s32.totalorder %v2147, 2
    %vm2149 = vcmp.eq.s32.totalorder %v2147, 0
    %v2150 = vxor.u32 %v2145, 2147483648
    %v2151 = vsel %vm2149, %v2144, %v2150
    %vm2152 = vcmp.eq.s32.totalorder %v2147, 2
    %v2153 = vxor.u32 %v2144, 2147483648
    %v2154 = vsel %vm2152, %v2153, %v2145
    %v2155 = vsel %vm2148, %v2151, %v2154
    %v2156 = vsel %vm2146, nan, %v2155
    %v2157 = vand.u32 2147483647, %v1309
    %vm2158 = vcmp.le.f32.partialorder %v2157, 0.7853982
    %vm2159 = vcmp.lt.s32.totalorder %v1309, 0
    %v2160 = vand.u32 %v1309, 2139095040
    %v2161 = vshrl.u32 %v2160, 23
    %v2162 = vsub.s32 %v2161, 127
    %v2163 = vand.u32 2147483647, %v1309
    %v2164 = vand.u32 %v2163, 8388607
    %v2165 = vor.u32 %v2164, 8388608
    %v2166 = vsub.s32 0, %v2165
    %v2167 = vadd.s32 %v2162, 1
    %vm2168 = vcmp.gt.s32.totalorder %v2167, 0
    %v2169 = vsel %vm2168, %v2167, 0
    %v2170 = vshrl.u32 %v2169, 5
    %v2171 = vand.u32 %v2169, 31
    %v2172 = vsub.s32 32, %v2171
    %v2173 = vshrl.u32 683565275, %v2172
    %v2174 = vshll.u32 683565275, %v2171
    %v2175 = vshrl.u32 2475754826, %v2172
    %v2176 = vor.u32 %v2174, %v2175
    %v2177 = vshll.u32 2475754826, %v2171
    %v2178 = vshrl.u32 2131351028, %v2172
    %v2179 = vor.u32 %v2177, %v2178
    %v2180 = vshll.u32 2131351028, %v2171
    %v2181 = vshrl.u32 2102212464, %v2172
    %v2182 = vor.u32 %v2180, %v2181
    %v2183 = vshll.u32 2102212464, %v2171
    %v2184 = vshrl.u32 920167782, %v2172
    %v2185 = vor.u32 %v2183, %v2184
    %v2186 = vshll.u32 920167782, %v2171
    %v2187 = vshrl.u32 1326507024, %v2172
    %v2188 = vor.u32 %v2186, %v2187
    %vm2189 = vcmp.lt.s32.totalorder %v2170, 1
    %vm2190 = vcmp.lt.s32.totalorder %v2170, 2
    %vm2191 = vcmp.lt.s32.totalorder %v2170, 3
    %vm2192 = vcmp.lt.s32.totalorder %v2170, 4
    %v2193 = vsel %vm2189, %v2173, %v2176
    %v2194 = vsel %vm2192, %v2182, 2102212464
    %v2195 = vsel %vm2191, %v2179, %v2194
    %v2196 = vsel %vm2190, %v2193, %v2195
    %v2197 = vsel %vm2189, %v2176, %v2179
    %v2198 = vsel %vm2192, %v2185, 920167782
    %v2199 = vsel %vm2191, %v2182, %v2198
    %v2200 = vsel %vm2190, %v2197, %v2199
    %v2201 = vsel %vm2189, %v2179, %v2182
    %v2202 = vsel %vm2192, %v2188, 1326507024
    %v2203 = vsel %vm2191, %v2185, %v2202
    %v2204 = vsel %vm2190, %v2201, %v2203
    %v2205 = vshll.u32 %v2165, 8
    %v2206 = vmul.u32.u64.compose %v2205, %v2204
    %v2207 = vextract.low.u32 %v2206
    %v2208 = vextract.high.u32 %v2206
    %v2209 = vmul.u32.u64.compose %v2205, %v2200
    %v2210 = vextract.low.u32 %v2209
    %v2211 = vextract.high.u32 %v2209
    %v2212 = vmul.u32 %v2205, %v2196
    %v2213 = vadd.s32 %v2208, %v2210
    %vm2214 = vc.u32 %v2208, %v2210
    %v2215 = vadd.s32 %v2211, 1
    %v2216 = vsel %vm2214, %v2215, %v2211
    %v2217 = vadd.s32 %v2212, %v2216
    %v2218 = vadd.s32 %v2217, 536870912
    %v2219 = vshrl.u32 %v2218, 30
    %v2220 = vshll.u32 %v2219, 30
    %v2221 = vsub.s32 %v2217, %v2220
    %vm2222 = vcmp.lt.s32.totalorder %v2221, 0
    %v2223 = vsub.s32 0, %v2221
    %v2224 = vsel %vm2222, %v2223, %v2221
    %v2225 = vclz %v2224
    %v2226 = vsub.s32 %v2225, 2
    %vm2227 = vcmp.gt.s32.totalorder 0, %v2226
    %v2228 = vsel %vm2227, 0, %v2226
    %v2229 = vsub.s32 32, %v2228
    %v2230 = vshll.u32 %v2221, %v2228
    %v2231 = vshrl.u32 %v2213, %v2229
    %v2232 = vor.u32 %v2230, %v2231
    %v2233 = vsub.s32 4294967266, %v2228
    %v2234 = vadd.s32 %v2233, 127
    %v2235 = vshll.u32 %v2234, 23
    %v2236 = vor.u32 4788187, %v2235
    %v2237 = vand.u32 2147483647, %v2236
    %v2239 = vcvt.s32.f32 %v2232
    %v2240 = vmul.f32 %v2239, %v2237
    %v2241 = vxor.u32 %v2240, 2147483648
    %v2242 = vsel %vm2159, %v2241, %v2240
    %v2243 = vsub.s32 4, %v2219
    %v2244 = vsel %vm2159, %v2243, %v2219
    %v2245 = vsel %vm2158, %v1309, %v2242
    %v2246 = vsel %vm2158, 0, %v2244
    %v2247 = vcosq.f32.pop %v2245
    %v2248 = vsinq.f32.pop %v2245
    %vm2249 = vweird.f32 %v1309
    %v2250 = vand.u32 %v2246, 3
    %vm2251 = vcmp.lt.s32.totalorder %v2250, 2
    %vm2252 = vcmp.eq.s32.totalorder %v2250, 0
    %v2253 = vxor.u32 %v2248, 2147483648
    %v2254 = vsel %vm2252, %v2247, %v2253
    %vm2255 = vcmp.eq.s32.totalorder %v2250, 2
    %v2256 = vxor.u32 %v2247, 2147483648
    %v2257 = vsel %vm2255, %v2256, %v2248
    %v2258 = vsel %vm2251, %v2254, %v2257
    %v2259 = vsel %vm2249, nan, %v2258
    %v2260 = vand.u32 2147483647, %v1310
    %vm2261 = vcmp.le.f32.partialorder %v2260, 0.7853982
    %vm2262 = vcmp.lt.s32.totalorder %v1310, 0
    %v2263 = vand.u32 %v1310, 2139095040
    %v2264 = vshrl.u32 %v2263, 23
    %v2265 = vsub.s32 %v2264, 127
    %v2266 = vand.u32 2147483647, %v1310
    %v2267 = vand.u32 %v2266, 8388607
    %v2268 = vor.u32 %v2267, 8388608
    %v2269 = vsub.s32 0, %v2268
    %v2270 = vadd.s32 %v2265, 1
    %vm2271 = vcmp.gt.s32.totalorder %v2270, 0
    %v2272 = vsel %vm2271, %v2270, 0
    %v2273 = vshrl.u32 %v2272, 5
    %v2274 = vand.u32 %v2272, 31
    %v2275 = vsub.s32 32, %v2274
    %v2276 = vshrl.u32 683565275, %v2275
    %v2277 = vshll.u32 683565275, %v2274
    %v2278 = vshrl.u32 2475754826, %v2275
    %v2279 = vor.u32 %v2277, %v2278
    %v2280 = vshll.u32 2475754826, %v2274
    %v2281 = vshrl.u32 2131351028, %v2275
    %v2282 = vor.u32 %v2280, %v2281
    %v2283 = vshll.u32 2131351028, %v2274
    %v2284 = vshrl.u32 2102212464, %v2275
    %v2285 = vor.u32 %v2283, %v2284
    %v2286 = vshll.u32 2102212464, %v2274
    %v2287 = vshrl.u32 920167782, %v2275
    %v2288 = vor.u32 %v2286, %v2287
    %v2289 = vshll.u32 920167782, %v2274
    %v2290 = vshrl.u32 1326507024, %v2275
    %v2291 = vor.u32 %v2289, %v2290
    %vm2292 = vcmp.lt.s32.totalorder %v2273, 1
    %vm2293 = vcmp.lt.s32.totalorder %v2273, 2
    %vm2294 = vcmp.lt.s32.totalorder %v2273, 3
    %vm2295 = vcmp.lt.s32.totalorder %v2273, 4
    %v2296 = vsel %vm2292, %v2276, %v2279
    %v2297 = vsel %vm2295, %v2285, 2102212464
    %v2298 = vsel %vm2294, %v2282, %v2297
    %v2299 = vsel %vm2293, %v2296, %v2298
    %v2300 = vsel %vm2292, %v2279, %v2282
    %v2301 = vsel %vm2295, %v2288, 920167782
    %v2302 = vsel %vm2294, %v2285, %v2301
    %v2303 = vsel %vm2293, %v2300, %v2302
    %v2304 = vsel %vm2292, %v2282, %v2285
    %v2305 = vsel %vm2295, %v2291, 1326507024
    %v2306 = vsel %vm2294, %v2288, %v2305
    %v2307 = vsel %vm2293, %v2304, %v2306
    %v2308 = vshll.u32 %v2268, 8
    %v2309 = vmul.u32.u64.compose %v2308, %v2307
    %v2310 = vextract.low.u32 %v2309
    %v2311 = vextract.high.u32 %v2309
    %v2312 = vmul.u32.u64.compose %v2308, %v2303
    %v2313 = vextract.low.u32 %v2312
    %v2314 = vextract.high.u32 %v2312
    %v2315 = vmul.u32 %v2308, %v2299
    %v2316 = vadd.s32 %v2311, %v2313
    %vm2317 = vc.u32 %v2311, %v2313
    %v2318 = vadd.s32 %v2314, 1
    %v2319 = vsel %vm2317, %v2318, %v2314
    %v2320 = vadd.s32 %v2315, %v2319
    %v2321 = vadd.s32 %v2320, 536870912
    %v2322 = vshrl.u32 %v2321, 30
    %v2323 = vshll.u32 %v2322, 30
    %v2324 = vsub.s32 %v2320, %v2323
    %vm2325 = vcmp.lt.s32.totalorder %v2324, 0
    %v2326 = vsub.s32 0, %v2324
    %v2327 = vsel %vm2325, %v2326, %v2324
    %v2328 = vclz %v2327
    %v2329 = vsub.s32 %v2328, 2
    %vm2330 = vcmp.gt.s32.totalorder 0, %v2329
    %v2331 = vsel %vm2330, 0, %v2329
    %v2332 = vsub.s32 32, %v2331
    %v2333 = vshll.u32 %v2324, %v2331
    %v2334 = vshrl.u32 %v2316, %v2332
    %v2335 = vor.u32 %v2333, %v2334
    %v2336 = vsub.s32 4294967266, %v2331
    %v2337 = vadd.s32 %v2336, 127
    %v2338 = vshll.u32 %v2337, 23
    %v2339 = vor.u32 4788187, %v2338
    %v2340 = vand.u32 2147483647, %v2339
    %v2342 = vcvt.s32.f32 %v2335
    %v2343 = vmul.f32 %v2342, %v2340
    %v2344 = vxor.u32 %v2343, 2147483648
    %v2345 = vsel %vm2262, %v2344, %v2343
    %v2346 = vsub.s32 4, %v2322
    %v2347 = vsel %vm2262, %v2346, %v2322
    %v2348 = vsel %vm2261, %v1310, %v2345
    %v2349 = vsel %vm2261, 0, %v2347
    %v2350 = vcosq.f32.pop %v2348
    %v2351 = vsinq.f32.pop %v2348
    %vm2352 = vweird.f32 %v1310
    %v2353 = vand.u32 %v2349, 3
    %vm2354 = vcmp.lt.s32.totalorder %v2353, 2
    %vm2355 = vcmp.eq.s32.totalorder %v2353, 0
    %v2356 = vxor.u32 %v2351, 2147483648
    %v2357 = vsel %vm2355, %v2350, %v2356
    %vm2358 = vcmp.eq.s32.totalorder %v2353, 2
    %v2359 = vxor.u32 %v2350, 2147483648
    %v2360 = vsel %vm2358, %v2359, %v2351
    %v2361 = vsel %vm2354, %v2357, %v2360
    %v2362 = vsel %vm2352, nan, %v2361
    %v2363 = vand.u32 2147483647, %v1311
    %vm2364 = vcmp.le.f32.partialorder %v2363, 0.7853982
    %vm2365 = vcmp.lt.s32.totalorder %v1311, 0
    %v2366 = vand.u32 %v1311, 2139095040
    %v2367 = vshrl.u32 %v2366, 23
    %v2368 = vsub.s32 %v2367, 127
    %v2369 = vand.u32 2147483647, %v1311
    %v2370 = vand.u32 %v2369, 8388607
    %v2371 = vor.u32 %v2370, 8388608
    %v2372 = vsub.s32 0, %v2371
    %v2373 = vadd.s32 %v2368, 1
    %vm2374 = vcmp.gt.s32.totalorder %v2373, 0
    %v2375 = vsel %vm2374, %v2373, 0
    %v2376 = vshrl.u32 %v2375, 5
    %v2377 = vand.u32 %v2375, 31
    %v2378 = vsub.s32 32, %v2377
    %v2379 = vshrl.u32 683565275, %v2378
    %v2380 = vshll.u32 683565275, %v2377
    %v2381 = vshrl.u32 2475754826, %v2378
    %v2382 = vor.u32 %v2380, %v2381
    %v2383 = vshll.u32 2475754826, %v2377
    %v2384 = vshrl.u32 2131351028, %v2378
    %v2385 = vor.u32 %v2383, %v2384
    %v2386 = vshll.u32 2131351028, %v2377
    %v2387 = vshrl.u32 2102212464, %v2378
    %v2388 = vor.u32 %v2386, %v2387
    %v2389 = vshll.u32 2102212464, %v2377
    %v2390 = vshrl.u32 920167782, %v2378
    %v2391 = vor.u32 %v2389, %v2390
    %v2392 = vshll.u32 920167782, %v2377
    %v2393 = vshrl.u32 1326507024, %v2378
    %v2394 = vor.u32 %v2392, %v2393
    %vm2395 = vcmp.lt.s32.totalorder %v2376, 1
    %vm2396 = vcmp.lt.s32.totalorder %v2376, 2
    %vm2397 = vcmp.lt.s32.totalorder %v2376, 3
    %vm2398 = vcmp.lt.s32.totalorder %v2376, 4
    %v2399 = vsel %vm2395, %v2379, %v2382
    %v2400 = vsel %vm2398, %v2388, 2102212464
    %v2401 = vsel %vm2397, %v2385, %v2400
    %v2402 = vsel %vm2396, %v2399, %v2401
    %v2403 = vsel %vm2395, %v2382, %v2385
    %v2404 = vsel %vm2398, %v2391, 920167782
    %v2405 = vsel %vm2397, %v2388, %v2404
    %v2406 = vsel %vm2396, %v2403, %v2405
    %v2407 = vsel %vm2395, %v2385, %v2388
    %v2408 = vsel %vm2398, %v2394, 1326507024
    %v2409 = vsel %vm2397, %v2391, %v2408
    %v2410 = vsel %vm2396, %v2407, %v2409
    %v2411 = vshll.u32 %v2371, 8
    %v2412 = vmul.u32.u64.compose %v2411, %v2410
    %v2413 = vextract.low.u32 %v2412
    %v2414 = vextract.high.u32 %v2412
    %v2415 = vmul.u32.u64.compose %v2411, %v2406
    %v2416 = vextract.low.u32 %v2415
    %v2417 = vextract.high.u32 %v2415
    %v2418 = vmul.u32 %v2411, %v2402
    %v2419 = vadd.s32 %v2414, %v2416
    %vm2420 = vc.u32 %v2414, %v2416
    %v2421 = vadd.s32 %v2417, 1
    %v2422 = vsel %vm2420, %v2421, %v2417
    %v2423 = vadd.s32 %v2418, %v2422
    %v2424 = vadd.s32 %v2423, 536870912
    %v2425 = vshrl.u32 %v2424, 30
    %v2426 = vshll.u32 %v2425, 30
    %v2427 = vsub.s32 %v2423, %v2426
    %vm2428 = vcmp.lt.s32.totalorder %v2427, 0
    %v2429 = vsub.s32 0, %v2427
    %v2430 = vsel %vm2428, %v2429, %v2427
    %v2431 = vclz %v2430
    %v2432 = vsub.s32 %v2431, 2
    %vm2433 = vcmp.gt.s32.totalorder 0, %v2432
    %v2434 = vsel %vm2433, 0, %v2432
    %v2435 = vsub.s32 32, %v2434
    %v2436 = vshll.u32 %v2427, %v2434
    %v2437 = vshrl.u32 %v2419, %v2435
    %v2438 = vor.u32 %v2436, %v2437
    %v2439 = vsub.s32 4294967266, %v2434
    %v2440 = vadd.s32 %v2439, 127
    %v2441 = vshll.u32 %v2440, 23
    %v2442 = vor.u32 4788187, %v2441
    %v2443 = vand.u32 2147483647, %v2442
    %v2445 = vcvt.s32.f32 %v2438
    %v2446 = vmul.f32 %v2445, %v2443
    %v2447 = vxor.u32 %v2446, 2147483648
    %v2448 = vsel %vm2365, %v2447, %v2446
    %v2449 = vsub.s32 4, %v2425
    %v2450 = vsel %vm2365, %v2449, %v2425
    %v2451 = vsel %vm2364, %v1311, %v2448
    %v2452 = vsel %vm2364, 0, %v2450
    %v2453 = vcosq.f32.pop %v2451
    %v2454 = vsinq.f32.pop %v2451
    %vm2455 = vweird.f32 %v1311
    %v2456 = vand.u32 %v2452, 3
    %vm2457 = vcmp.lt.s32.totalorder %v2456, 2
    %vm2458 = vcmp.eq.s32.totalorder %v2456, 0
    %v2459 = vxor.u32 %v2454, 2147483648
    %v2460 = vsel %vm2458, %v2453, %v2459
    %vm2461 = vcmp.eq.s32.totalorder %v2456, 2
    %v2462 = vxor.u32 %v2453, 2147483648
    %v2463 = vsel %vm2461, %v2462, %v2454
    %v2464 = vsel %vm2457, %v2460, %v2463
    %v2465 = vsel %vm2455, nan, %v2464
    %v2466 = vand.u32 2147483647, %v1312
    %vm2467 = vcmp.le.f32.partialorder %v2466, 0.7853982
    %vm2468 = vcmp.lt.s32.totalorder %v1312, 0
    %v2469 = vand.u32 %v1312, 2139095040
    %v2470 = vshrl.u32 %v2469, 23
    %v2471 = vsub.s32 %v2470, 127
    %v2472 = vand.u32 2147483647, %v1312
    %v2473 = vand.u32 %v2472, 8388607
    %v2474 = vor.u32 %v2473, 8388608
    %v2475 = vsub.s32 0, %v2474
    %v2476 = vadd.s32 %v2471, 1
    %vm2477 = vcmp.gt.s32.totalorder %v2476, 0
    %v2478 = vsel %vm2477, %v2476, 0
    %v2479 = vshrl.u32 %v2478, 5
    %v2480 = vand.u32 %v2478, 31
    %v2481 = vsub.s32 32, %v2480
    %v2482 = vshrl.u32 683565275, %v2481
    %v2483 = vshll.u32 683565275, %v2480
    %v2484 = vshrl.u32 2475754826, %v2481
    %v2485 = vor.u32 %v2483, %v2484
    %v2486 = vshll.u32 2475754826, %v2480
    %v2487 = vshrl.u32 2131351028, %v2481
    %v2488 = vor.u32 %v2486, %v2487
    %v2489 = vshll.u32 2131351028, %v2480
    %v2490 = vshrl.u32 2102212464, %v2481
    %v2491 = vor.u32 %v2489, %v2490
    %v2492 = vshll.u32 2102212464, %v2480
    %v2493 = vshrl.u32 920167782, %v2481
    %v2494 = vor.u32 %v2492, %v2493
    %v2495 = vshll.u32 920167782, %v2480
    %v2496 = vshrl.u32 1326507024, %v2481
    %v2497 = vor.u32 %v2495, %v2496
    %vm2498 = vcmp.lt.s32.totalorder %v2479, 1
    %vm2499 = vcmp.lt.s32.totalorder %v2479, 2
    %vm2500 = vcmp.lt.s32.totalorder %v2479, 3
    %vm2501 = vcmp.lt.s32.totalorder %v2479, 4
    %v2502 = vsel %vm2498, %v2482, %v2485
    %v2503 = vsel %vm2501, %v2491, 2102212464
    %v2504 = vsel %vm2500, %v2488, %v2503
    %v2505 = vsel %vm2499, %v2502, %v2504
    %v2506 = vsel %vm2498, %v2485, %v2488
    %v2507 = vsel %vm2501, %v2494, 920167782
    %v2508 = vsel %vm2500, %v2491, %v2507
    %v2509 = vsel %vm2499, %v2506, %v2508
    %v2510 = vsel %vm2498, %v2488, %v2491
    %v2511 = vsel %vm2501, %v2497, 1326507024
    %v2512 = vsel %vm2500, %v2494, %v2511
    %v2513 = vsel %vm2499, %v2510, %v2512
    %v2514 = vshll.u32 %v2474, 8
    %v2515 = vmul.u32.u64.compose %v2514, %v2513
    %v2516 = vextract.low.u32 %v2515
    %v2517 = vextract.high.u32 %v2515
    %v2518 = vmul.u32.u64.compose %v2514, %v2509
    %v2519 = vextract.low.u32 %v2518
    %v2520 = vextract.high.u32 %v2518
    %v2521 = vmul.u32 %v2514, %v2505
    %v2522 = vadd.s32 %v2517, %v2519
    %vm2523 = vc.u32 %v2517, %v2519
    %v2524 = vadd.s32 %v2520, 1
    %v2525 = vsel %vm2523, %v2524, %v2520
    %v2526 = vadd.s32 %v2521, %v2525
    %v2527 = vadd.s32 %v2526, 536870912
    %v2528 = vshrl.u32 %v2527, 30
    %v2529 = vshll.u32 %v2528, 30
    %v2530 = vsub.s32 %v2526, %v2529
    %vm2531 = vcmp.lt.s32.totalorder %v2530, 0
    %v2532 = vsub.s32 0, %v2530
    %v2533 = vsel %vm2531, %v2532, %v2530
    %v2534 = vclz %v2533
    %v2535 = vsub.s32 %v2534, 2
    %vm2536 = vcmp.gt.s32.totalorder 0, %v2535
    %v2537 = vsel %vm2536, 0, %v2535
    %v2538 = vsub.s32 32, %v2537
    %v2539 = vshll.u32 %v2530, %v2537
    %v2540 = vshrl.u32 %v2522, %v2538
    %v2541 = vor.u32 %v2539, %v2540
    %v2542 = vsub.s32 4294967266, %v2537
    %v2543 = vadd.s32 %v2542, 127
    %v2544 = vshll.u32 %v2543, 23
    %v2545 = vor.u32 4788187, %v2544
    %v2546 = vand.u32 2147483647, %v2545
    %v2548 = vcvt.s32.f32 %v2541
    %v2549 = vmul.f32 %v2548, %v2546
    %v2550 = vxor.u32 %v2549, 2147483648
    %v2551 = vsel %vm2468, %v2550, %v2549
    %v2552 = vsub.s32 4, %v2528
    %v2553 = vsel %vm2468, %v2552, %v2528
    %v2554 = vsel %vm2467, %v1312, %v2551
    %v2555 = vsel %vm2467, 0, %v2553
    %v2556 = vcosq.f32.pop %v2554
    %v2557 = vsinq.f32.pop %v2554
    %vm2558 = vweird.f32 %v1312
    %v2559 = vand.u32 %v2555, 3
    %vm2560 = vcmp.lt.s32.totalorder %v2559, 2
    %vm2561 = vcmp.eq.s32.totalorder %v2559, 0
    %v2562 = vxor.u32 %v2557, 2147483648
    %v2563 = vsel %vm2561, %v2556, %v2562
    %vm2564 = vcmp.eq.s32.totalorder %v2559, 2
    %v2565 = vxor.u32 %v2556, 2147483648
    %v2566 = vsel %vm2564, %v2565, %v2557
    %v2567 = vsel %vm2560, %v2563, %v2566
    %v2568 = vsel %vm2558, nan, %v2567
    %v2569 = vand.u32 2147483647, %v1313
    %vm2570 = vcmp.le.f32.partialorder %v2569, 0.7853982
    %vm2571 = vcmp.lt.s32.totalorder %v1313, 0
    %v2572 = vand.u32 %v1313, 2139095040
    %v2573 = vshrl.u32 %v2572, 23
    %v2574 = vsub.s32 %v2573, 127
    %v2575 = vand.u32 2147483647, %v1313
    %v2576 = vand.u32 %v2575, 8388607
    %v2577 = vor.u32 %v2576, 8388608
    %v2578 = vsub.s32 0, %v2577
    %v2579 = vadd.s32 %v2574, 1
    %vm2580 = vcmp.gt.s32.totalorder %v2579, 0
    %v2581 = vsel %vm2580, %v2579, 0
    %v2582 = vshrl.u32 %v2581, 5
    %v2583 = vand.u32 %v2581, 31
    %v2584 = vsub.s32 32, %v2583
    %v2585 = vshrl.u32 683565275, %v2584
    %v2586 = vshll.u32 683565275, %v2583
    %v2587 = vshrl.u32 2475754826, %v2584
    %v2588 = vor.u32 %v2586, %v2587
    %v2589 = vshll.u32 2475754826, %v2583
    %v2590 = vshrl.u32 2131351028, %v2584
    %v2591 = vor.u32 %v2589, %v2590
    %v2592 = vshll.u32 2131351028, %v2583
    %v2593 = vshrl.u32 2102212464, %v2584
    %v2594 = vor.u32 %v2592, %v2593
    %v2595 = vshll.u32 2102212464, %v2583
    %v2596 = vshrl.u32 920167782, %v2584
    %v2597 = vor.u32 %v2595, %v2596
    %v2598 = vshll.u32 920167782, %v2583
    %v2599 = vshrl.u32 1326507024, %v2584
    %v2600 = vor.u32 %v2598, %v2599
    %vm2601 = vcmp.lt.s32.totalorder %v2582, 1
    %vm2602 = vcmp.lt.s32.totalorder %v2582, 2
    %vm2603 = vcmp.lt.s32.totalorder %v2582, 3
    %vm2604 = vcmp.lt.s32.totalorder %v2582, 4
    %v2605 = vsel %vm2601, %v2585, %v2588
    %v2606 = vsel %vm2604, %v2594, 2102212464
    %v2607 = vsel %vm2603, %v2591, %v2606
    %v2608 = vsel %vm2602, %v2605, %v2607
    %v2609 = vsel %vm2601, %v2588, %v2591
    %v2610 = vsel %vm2604, %v2597, 920167782
    %v2611 = vsel %vm2603, %v2594, %v2610
    %v2612 = vsel %vm2602, %v2609, %v2611
    %v2613 = vsel %vm2601, %v2591, %v2594
    %v2614 = vsel %vm2604, %v2600, 1326507024
    %v2615 = vsel %vm2603, %v2597, %v2614
    %v2616 = vsel %vm2602, %v2613, %v2615
    %v2617 = vshll.u32 %v2577, 8
    %v2618 = vmul.u32.u64.compose %v2617, %v2616
    %v2619 = vextract.low.u32 %v2618
    %v2620 = vextract.high.u32 %v2618
    %v2621 = vmul.u32.u64.compose %v2617, %v2612
    %v2622 = vextract.low.u32 %v2621
    %v2623 = vextract.high.u32 %v2621
    %v2624 = vmul.u32 %v2617, %v2608
    %v2625 = vadd.s32 %v2620, %v2622
    %vm2626 = vc.u32 %v2620, %v2622
    %v2627 = vadd.s32 %v2623, 1
    %v2628 = vsel %vm2626, %v2627, %v2623
    %v2629 = vadd.s32 %v2624, %v2628
    %v2630 = vadd.s32 %v2629, 536870912
    %v2631 = vshrl.u32 %v2630, 30
    %v2632 = vshll.u32 %v2631, 30
    %v2633 = vsub.s32 %v2629, %v2632
    %vm2634 = vcmp.lt.s32.totalorder %v2633, 0
    %v2635 = vsub.s32 0, %v2633
    %v2636 = vsel %vm2634, %v2635, %v2633
    %v2637 = vclz %v2636
    %v2638 = vsub.s32 %v2637, 2
    %vm2639 = vcmp.gt.s32.totalorder 0, %v2638
    %v2640 = vsel %vm2639, 0, %v2638
    %v2641 = vsub.s32 32, %v2640
    %v2642 = vshll.u32 %v2633, %v2640
    %v2643 = vshrl.u32 %v2625, %v2641
    %v2644 = vor.u32 %v2642, %v2643
    %v2645 = vsub.s32 4294967266, %v2640
    %v2646 = vadd.s32 %v2645, 127
    %v2647 = vshll.u32 %v2646, 23
    %v2648 = vor.u32 4788187, %v2647
    %v2649 = vand.u32 2147483647, %v2648
    %v2651 = vcvt.s32.f32 %v2644
    %v2652 = vmul.f32 %v2651, %v2649
    %v2653 = vxor.u32 %v2652, 2147483648
    %v2654 = vsel %vm2571, %v2653, %v2652
    %v2655 = vsub.s32 4, %v2631
    %v2656 = vsel %vm2571, %v2655, %v2631
    %v2657 = vsel %vm2570, %v1313, %v2654
    %v2658 = vsel %vm2570, 0, %v2656
    %v2659 = vcosq.f32.pop %v2657
    %v2660 = vsinq.f32.pop %v2657
    %vm2661 = vweird.f32 %v1313
    %v2662 = vand.u32 %v2658, 3
    %vm2663 = vcmp.lt.s32.totalorder %v2662, 2
    %vm2664 = vcmp.eq.s32.totalorder %v2662, 0
    %v2665 = vxor.u32 %v2660, 2147483648
    %v2666 = vsel %vm2664, %v2659, %v2665
    %vm2667 = vcmp.eq.s32.totalorder %v2662, 2
    %v2668 = vxor.u32 %v2659, 2147483648
    %v2669 = vsel %vm2667, %v2668, %v2660
    %v2670 = vsel %vm2663, %v2666, %v2669
    %v2671 = vsel %vm2661, nan, %v2670
    %v2672 = vand.u32 2147483647, %v1314
    %vm2673 = vcmp.le.f32.partialorder %v2672, 0.7853982
    %vm2674 = vcmp.lt.s32.totalorder %v1314, 0
    %v2675 = vand.u32 %v1314, 2139095040
    %v2676 = vshrl.u32 %v2675, 23
    %v2677 = vsub.s32 %v2676, 127
    %v2678 = vand.u32 2147483647, %v1314
    %v2679 = vand.u32 %v2678, 8388607
    %v2680 = vor.u32 %v2679, 8388608
    %v2681 = vsub.s32 0, %v2680
    %v2682 = vadd.s32 %v2677, 1
    %vm2683 = vcmp.gt.s32.totalorder %v2682, 0
    %v2684 = vsel %vm2683, %v2682, 0
    %v2685 = vshrl.u32 %v2684, 5
    %v2686 = vand.u32 %v2684, 31
    %v2687 = vsub.s32 32, %v2686
    %v2688 = vshrl.u32 683565275, %v2687
    %v2689 = vshll.u32 683565275, %v2686
    %v2690 = vshrl.u32 2475754826, %v2687
    %v2691 = vor.u32 %v2689, %v2690
    %v2692 = vshll.u32 2475754826, %v2686
    %v2693 = vshrl.u32 2131351028, %v2687
    %v2694 = vor.u32 %v2692, %v2693
    %v2695 = vshll.u32 2131351028, %v2686
    %v2696 = vshrl.u32 2102212464, %v2687
    %v2697 = vor.u32 %v2695, %v2696
    %v2698 = vshll.u32 2102212464, %v2686
    %v2699 = vshrl.u32 920167782, %v2687
    %v2700 = vor.u32 %v2698, %v2699
    %v2701 = vshll.u32 920167782, %v2686
    %v2702 = vshrl.u32 1326507024, %v2687
    %v2703 = vor.u32 %v2701, %v2702
    %vm2704 = vcmp.lt.s32.totalorder %v2685, 1
    %vm2705 = vcmp.lt.s32.totalorder %v2685, 2
    %vm2706 = vcmp.lt.s32.totalorder %v2685, 3
    %vm2707 = vcmp.lt.s32.totalorder %v2685, 4
    %v2708 = vsel %vm2704, %v2688, %v2691
    %v2709 = vsel %vm2707, %v2697, 2102212464
    %v2710 = vsel %vm2706, %v2694, %v2709
    %v2711 = vsel %vm2705, %v2708, %v2710
    %v2712 = vsel %vm2704, %v2691, %v2694
    %v2713 = vsel %vm2707, %v2700, 920167782
    %v2714 = vsel %vm2706, %v2697, %v2713
    %v2715 = vsel %vm2705, %v2712, %v2714
    %v2716 = vsel %vm2704, %v2694, %v2697
    %v2717 = vsel %vm2707, %v2703, 1326507024
    %v2718 = vsel %vm2706, %v2700, %v2717
    %v2719 = vsel %vm2705, %v2716, %v2718
    %v2720 = vshll.u32 %v2680, 8
    %v2721 = vmul.u32.u64.compose %v2720, %v2719
    %v2722 = vextract.low.u32 %v2721
    %v2723 = vextract.high.u32 %v2721
    %v2724 = vmul.u32.u64.compose %v2720, %v2715
    %v2725 = vextract.low.u32 %v2724
    %v2726 = vextract.high.u32 %v2724
    %v2727 = vmul.u32 %v2720, %v2711
    %v2728 = vadd.s32 %v2723, %v2725
    %vm2729 = vc.u32 %v2723, %v2725
    %v2730 = vadd.s32 %v2726, 1
    %v2731 = vsel %vm2729, %v2730, %v2726
    %v2732 = vadd.s32 %v2727, %v2731
    %v2733 = vadd.s32 %v2732, 536870912
    %v2734 = vshrl.u32 %v2733, 30
    %v2735 = vshll.u32 %v2734, 30
    %v2736 = vsub.s32 %v2732, %v2735
    %vm2737 = vcmp.lt.s32.totalorder %v2736, 0
    %v2738 = vsub.s32 0, %v2736
    %v2739 = vsel %vm2737, %v2738, %v2736
    %v2740 = vclz %v2739
    %v2741 = vsub.s32 %v2740, 2
    %vm2742 = vcmp.gt.s32.totalorder 0, %v2741
    %v2743 = vsel %vm2742, 0, %v2741
    %v2744 = vsub.s32 32, %v2743
    %v2745 = vshll.u32 %v2736, %v2743
    %v2746 = vshrl.u32 %v2728, %v2744
    %v2747 = vor.u32 %v2745, %v2746
    %v2748 = vsub.s32 4294967266, %v2743
    %v2749 = vadd.s32 %v2748, 127
    %v2750 = vshll.u32 %v2749, 23
    %v2751 = vor.u32 4788187, %v2750
    %v2752 = vand.u32 2147483647, %v2751
    %v2754 = vcvt.s32.f32 %v2747
    %v2755 = vmul.f32 %v2754, %v2752
    %v2756 = vxor.u32 %v2755, 2147483648
    %v2757 = vsel %vm2674, %v2756, %v2755
    %v2758 = vsub.s32 4, %v2734
    %v2759 = vsel %vm2674, %v2758, %v2734
    %v2760 = vsel %vm2673, %v1314, %v2757
    %v2761 = vsel %vm2673, 0, %v2759
    %v2762 = vcosq.f32.pop %v2760
    %v2763 = vsinq.f32.pop %v2760
    %vm2764 = vweird.f32 %v1314
    %v2765 = vand.u32 %v2761, 3
    %vm2766 = vcmp.lt.s32.totalorder %v2765, 2
    %vm2767 = vcmp.eq.s32.totalorder %v2765, 0
    %v2768 = vxor.u32 %v2763, 2147483648
    %v2769 = vsel %vm2767, %v2762, %v2768
    %vm2770 = vcmp.eq.s32.totalorder %v2765, 2
    %v2771 = vxor.u32 %v2762, 2147483648
    %v2772 = vsel %vm2770, %v2771, %v2763
    %v2773 = vsel %vm2766, %v2769, %v2772
    %v2774 = vsel %vm2764, nan, %v2773
    %v2775 = vand.u32 2147483647, %v1315
    %vm2776 = vcmp.le.f32.partialorder %v2775, 0.7853982
    %vm2777 = vcmp.lt.s32.totalorder %v1315, 0
    %v2778 = vand.u32 %v1315, 2139095040
    %v2779 = vshrl.u32 %v2778, 23
    %v2780 = vsub.s32 %v2779, 127
    %v2781 = vand.u32 2147483647, %v1315
    %v2782 = vand.u32 %v2781, 8388607
    %v2783 = vor.u32 %v2782, 8388608
    %v2784 = vsub.s32 0, %v2783
    %v2785 = vadd.s32 %v2780, 1
    %vm2786 = vcmp.gt.s32.totalorder %v2785, 0
    %v2787 = vsel %vm2786, %v2785, 0
    %v2788 = vshrl.u32 %v2787, 5
    %v2789 = vand.u32 %v2787, 31
    %v2790 = vsub.s32 32, %v2789
    %v2791 = vshrl.u32 683565275, %v2790
    %v2792 = vshll.u32 683565275, %v2789
    %v2793 = vshrl.u32 2475754826, %v2790
    %v2794 = vor.u32 %v2792, %v2793
    %v2795 = vshll.u32 2475754826, %v2789
    %v2796 = vshrl.u32 2131351028, %v2790
    %v2797 = vor.u32 %v2795, %v2796
    %v2798 = vshll.u32 2131351028, %v2789
    %v2799 = vshrl.u32 2102212464, %v2790
    %v2800 = vor.u32 %v2798, %v2799
    %v2801 = vshll.u32 2102212464, %v2789
    %v2802 = vshrl.u32 920167782, %v2790
    %v2803 = vor.u32 %v2801, %v2802
    %v2804 = vshll.u32 920167782, %v2789
    %v2805 = vshrl.u32 1326507024, %v2790
    %v2806 = vor.u32 %v2804, %v2805
    %vm2807 = vcmp.lt.s32.totalorder %v2788, 1
    %vm2808 = vcmp.lt.s32.totalorder %v2788, 2
    %vm2809 = vcmp.lt.s32.totalorder %v2788, 3
    %vm2810 = vcmp.lt.s32.totalorder %v2788, 4
    %v2811 = vsel %vm2807, %v2791, %v2794
    %v2812 = vsel %vm2810, %v2800, 2102212464
    %v2813 = vsel %vm2809, %v2797, %v2812
    %v2814 = vsel %vm2808, %v2811, %v2813
    %v2815 = vsel %vm2807, %v2794, %v2797
    %v2816 = vsel %vm2810, %v2803, 920167782
    %v2817 = vsel %vm2809, %v2800, %v2816
    %v2818 = vsel %vm2808, %v2815, %v2817
    %v2819 = vsel %vm2807, %v2797, %v2800
    %v2820 = vsel %vm2810, %v2806, 1326507024
    %v2821 = vsel %vm2809, %v2803, %v2820
    %v2822 = vsel %vm2808, %v2819, %v2821
    %v2823 = vshll.u32 %v2783, 8
    %v2824 = vmul.u32.u64.compose %v2823, %v2822
    %v2825 = vextract.low.u32 %v2824
    %v2826 = vextract.high.u32 %v2824
    %v2827 = vmul.u32.u64.compose %v2823, %v2818
    %v2828 = vextract.low.u32 %v2827
    %v2829 = vextract.high.u32 %v2827
    %v2830 = vmul.u32 %v2823, %v2814
    %v2831 = vadd.s32 %v2826, %v2828
    %vm2832 = vc.u32 %v2826, %v2828
    %v2833 = vadd.s32 %v2829, 1
    %v2834 = vsel %vm2832, %v2833, %v2829
    %v2835 = vadd.s32 %v2830, %v2834
    %v2836 = vadd.s32 %v2835, 536870912
    %v2837 = vshrl.u32 %v2836, 30
    %v2838 = vshll.u32 %v2837, 30
    %v2839 = vsub.s32 %v2835, %v2838
    %vm2840 = vcmp.lt.s32.totalorder %v2839, 0
    %v2841 = vsub.s32 0, %v2839
    %v2842 = vsel %vm2840, %v2841, %v2839
    %v2843 = vclz %v2842
    %v2844 = vsub.s32 %v2843, 2
    %vm2845 = vcmp.gt.s32.totalorder 0, %v2844
    %v2846 = vsel %vm2845, 0, %v2844
    %v2847 = vsub.s32 32, %v2846
    %v2848 = vshll.u32 %v2839, %v2846
    %v2849 = vshrl.u32 %v2831, %v2847
    %v2850 = vor.u32 %v2848, %v2849
    %v2851 = vsub.s32 4294967266, %v2846
    %v2852 = vadd.s32 %v2851, 127
    %v2853 = vshll.u32 %v2852, 23
    %v2854 = vor.u32 4788187, %v2853
    %v2855 = vand.u32 2147483647, %v2854
    %v2857 = vcvt.s32.f32 %v2850
    %v2858 = vmul.f32 %v2857, %v2855
    %v2859 = vxor.u32 %v2858, 2147483648
    %v2860 = vsel %vm2777, %v2859, %v2858
    %v2861 = vsub.s32 4, %v2837
    %v2862 = vsel %vm2777, %v2861, %v2837
    %v2863 = vsel %vm2776, %v1315, %v2860
    %v2864 = vsel %vm2776, 0, %v2862
    %v2865 = vcosq.f32.pop %v2863
    %v2866 = vsinq.f32.pop %v2863
    %vm2867 = vweird.f32 %v1315
    %v2868 = vand.u32 %v2864, 3
    %vm2869 = vcmp.lt.s32.totalorder %v2868, 2
    %vm2870 = vcmp.eq.s32.totalorder %v2868, 0
    %v2871 = vxor.u32 %v2866, 2147483648
    %v2872 = vsel %vm2870, %v2865, %v2871
    %vm2873 = vcmp.eq.s32.totalorder %v2868, 2
    %v2874 = vxor.u32 %v2865, 2147483648
    %v2875 = vsel %vm2873, %v2874, %v2866
    %v2876 = vsel %vm2869, %v2872, %v2875
    %v2877 = vsel %vm2867, nan, %v2876
    %v2878 = vand.u32 2147483647, %v1316
    %vm2879 = vcmp.le.f32.partialorder %v2878, 0.7853982
    %vm2880 = vcmp.lt.s32.totalorder %v1316, 0
    %v2881 = vand.u32 %v1316, 2139095040
    %v2882 = vshrl.u32 %v2881, 23
    %v2883 = vsub.s32 %v2882, 127
    %v2884 = vand.u32 2147483647, %v1316
    %v2885 = vand.u32 %v2884, 8388607
    %v2886 = vor.u32 %v2885, 8388608
    %v2887 = vsub.s32 0, %v2886
    %v2888 = vadd.s32 %v2883, 1
    %vm2889 = vcmp.gt.s32.totalorder %v2888, 0
    %v2890 = vsel %vm2889, %v2888, 0
    %v2891 = vshrl.u32 %v2890, 5
    %v2892 = vand.u32 %v2890, 31
    %v2893 = vsub.s32 32, %v2892
    %v2894 = vshrl.u32 683565275, %v2893
    %v2895 = vshll.u32 683565275, %v2892
    %v2896 = vshrl.u32 2475754826, %v2893
    %v2897 = vor.u32 %v2895, %v2896
    %v2898 = vshll.u32 2475754826, %v2892
    %v2899 = vshrl.u32 2131351028, %v2893
    %v2900 = vor.u32 %v2898, %v2899
    %v2901 = vshll.u32 2131351028, %v2892
    %v2902 = vshrl.u32 2102212464, %v2893
    %v2903 = vor.u32 %v2901, %v2902
    %v2904 = vshll.u32 2102212464, %v2892
    %v2905 = vshrl.u32 920167782, %v2893
    %v2906 = vor.u32 %v2904, %v2905
    %v2907 = vshll.u32 920167782, %v2892
    %v2908 = vshrl.u32 1326507024, %v2893
    %v2909 = vor.u32 %v2907, %v2908
    %vm2910 = vcmp.lt.s32.totalorder %v2891, 1
    %vm2911 = vcmp.lt.s32.totalorder %v2891, 2
    %vm2912 = vcmp.lt.s32.totalorder %v2891, 3
    %vm2913 = vcmp.lt.s32.totalorder %v2891, 4
    %v2914 = vsel %vm2910, %v2894, %v2897
    %v2915 = vsel %vm2913, %v2903, 2102212464
    %v2916 = vsel %vm2912, %v2900, %v2915
    %v2917 = vsel %vm2911, %v2914, %v2916
    %v2918 = vsel %vm2910, %v2897, %v2900
    %v2919 = vsel %vm2913, %v2906, 920167782
    %v2920 = vsel %vm2912, %v2903, %v2919
    %v2921 = vsel %vm2911, %v2918, %v2920
    %v2922 = vsel %vm2910, %v2900, %v2903
    %v2923 = vsel %vm2913, %v2909, 1326507024
    %v2924 = vsel %vm2912, %v2906, %v2923
    %v2925 = vsel %vm2911, %v2922, %v2924
    %v2926 = vshll.u32 %v2886, 8
    %v2927 = vmul.u32.u64.compose %v2926, %v2925
    %v2928 = vextract.low.u32 %v2927
    %v2929 = vextract.high.u32 %v2927
    %v2930 = vmul.u32.u64.compose %v2926, %v2921
    %v2931 = vextract.low.u32 %v2930
    %v2932 = vextract.high.u32 %v2930
    %v2933 = vmul.u32 %v2926, %v2917
    %v2934 = vadd.s32 %v2929, %v2931
    %vm2935 = vc.u32 %v2929, %v2931
    %v2936 = vadd.s32 %v2932, 1
    %v2937 = vsel %vm2935, %v2936, %v2932
    %v2938 = vadd.s32 %v2933, %v2937
    %v2939 = vadd.s32 %v2938, 536870912
    %v2940 = vshrl.u32 %v2939, 30
    %v2941 = vshll.u32 %v2940, 30
    %v2942 = vsub.s32 %v2938, %v2941
    %vm2943 = vcmp.lt.s32.totalorder %v2942, 0
    %v2944 = vsub.s32 0, %v2942
    %v2945 = vsel %vm2943, %v2944, %v2942
    %v2946 = vclz %v2945
    %v2947 = vsub.s32 %v2946, 2
    %vm2948 = vcmp.gt.s32.totalorder 0, %v2947
    %v2949 = vsel %vm2948, 0, %v2947
    %v2950 = vsub.s32 32, %v2949
    %v2951 = vshll.u32 %v2942, %v2949
    %v2952 = vshrl.u32 %v2934, %v2950
    %v2953 = vor.u32 %v2951, %v2952
    %v2954 = vsub.s32 4294967266, %v2949
    %v2955 = vadd.s32 %v2954, 127
    %v2956 = vshll.u32 %v2955, 23
    %v2957 = vor.u32 4788187, %v2956
    %v2958 = vand.u32 2147483647, %v2957
    %v2960 = vcvt.s32.f32 %v2953
    %v2961 = vmul.f32 %v2960, %v2958
    %v2962 = vxor.u32 %v2961, 2147483648
    %v2963 = vsel %vm2880, %v2962, %v2961
    %v2964 = vsub.s32 4, %v2940
    %v2965 = vsel %vm2880, %v2964, %v2940
    %v2966 = vsel %vm2879, %v1316, %v2963
    %v2967 = vsel %vm2879, 0, %v2965
    %v2968 = vcosq.f32.pop %v2966
    %v2969 = vsinq.f32.pop %v2966
    %vm2970 = vweird.f32 %v1316
    %v2971 = vand.u32 %v2967, 3
    %vm2972 = vcmp.lt.s32.totalorder %v2971, 2
    %vm2973 = vcmp.eq.s32.totalorder %v2971, 0
    %v2974 = vxor.u32 %v2969, 2147483648
    %v2975 = vsel %vm2973, %v2968, %v2974
    %vm2976 = vcmp.eq.s32.totalorder %v2971, 2
    %v2977 = vxor.u32 %v2968, 2147483648
    %v2978 = vsel %vm2976, %v2977, %v2969
    %v2979 = vsel %vm2972, %v2975, %v2978
    %v2980 = vsel %vm2970, nan, %v2979
    %v2981 = vand.u32 2147483647, %v1317
    %vm2982 = vcmp.le.f32.partialorder %v2981, 0.7853982
    %vm2983 = vcmp.lt.s32.totalorder %v1317, 0
    %v2984 = vand.u32 %v1317, 2139095040
    %v2985 = vshrl.u32 %v2984, 23
    %v2986 = vsub.s32 %v2985, 127
    %v2987 = vand.u32 2147483647, %v1317
    %v2988 = vand.u32 %v2987, 8388607
    %v2989 = vor.u32 %v2988, 8388608
    %v2990 = vsub.s32 0, %v2989
    %v2991 = vadd.s32 %v2986, 1
    %vm2992 = vcmp.gt.s32.totalorder %v2991, 0
    %v2993 = vsel %vm2992, %v2991, 0
    %v2994 = vshrl.u32 %v2993, 5
    %v2995 = vand.u32 %v2993, 31
    %v2996 = vsub.s32 32, %v2995
    %v2997 = vshrl.u32 683565275, %v2996
    %v2998 = vshll.u32 683565275, %v2995
    %v2999 = vshrl.u32 2475754826, %v2996
    %v3000 = vor.u32 %v2998, %v2999
    %v3001 = vshll.u32 2475754826, %v2995
    %v3002 = vshrl.u32 2131351028, %v2996
    %v3003 = vor.u32 %v3001, %v3002
    %v3004 = vshll.u32 2131351028, %v2995
    %v3005 = vshrl.u32 2102212464, %v2996
    %v3006 = vor.u32 %v3004, %v3005
    %v3007 = vshll.u32 2102212464, %v2995
    %v3008 = vshrl.u32 920167782, %v2996
    %v3009 = vor.u32 %v3007, %v3008
    %v3010 = vshll.u32 920167782, %v2995
    %v3011 = vshrl.u32 1326507024, %v2996
    %v3012 = vor.u32 %v3010, %v3011
    %vm3013 = vcmp.lt.s32.totalorder %v2994, 1
    %vm3014 = vcmp.lt.s32.totalorder %v2994, 2
    %vm3015 = vcmp.lt.s32.totalorder %v2994, 3
    %vm3016 = vcmp.lt.s32.totalorder %v2994, 4
    %v3017 = vsel %vm3013, %v2997, %v3000
    %v3018 = vsel %vm3016, %v3006, 2102212464
    %v3019 = vsel %vm3015, %v3003, %v3018
    %v3020 = vsel %vm3014, %v3017, %v3019
    %v3021 = vsel %vm3013, %v3000, %v3003
    %v3022 = vsel %vm3016, %v3009, 920167782
    %v3023 = vsel %vm3015, %v3006, %v3022
    %v3024 = vsel %vm3014, %v3021, %v3023
    %v3025 = vsel %vm3013, %v3003, %v3006
    %v3026 = vsel %vm3016, %v3012, 1326507024
    %v3027 = vsel %vm3015, %v3009, %v3026
    %v3028 = vsel %vm3014, %v3025, %v3027
    %v3029 = vshll.u32 %v2989, 8
    %v3030 = vmul.u32.u64.compose %v3029, %v3028
    %v3031 = vextract.low.u32 %v3030
    %v3032 = vextract.high.u32 %v3030
    %v3033 = vmul.u32.u64.compose %v3029, %v3024
    %v3034 = vextract.low.u32 %v3033
    %v3035 = vextract.high.u32 %v3033
    %v3036 = vmul.u32 %v3029, %v3020
    %v3037 = vadd.s32 %v3032, %v3034
    %vm3038 = vc.u32 %v3032, %v3034
    %v3039 = vadd.s32 %v3035, 1
    %v3040 = vsel %vm3038, %v3039, %v3035
    %v3041 = vadd.s32 %v3036, %v3040
    %v3042 = vadd.s32 %v3041, 536870912
    %v3043 = vshrl.u32 %v3042, 30
    %v3044 = vshll.u32 %v3043, 30
    %v3045 = vsub.s32 %v3041, %v3044
    %vm3046 = vcmp.lt.s32.totalorder %v3045, 0
    %v3047 = vsub.s32 0, %v3045
    %v3048 = vsel %vm3046, %v3047, %v3045
    %v3049 = vclz %v3048
    %v3050 = vsub.s32 %v3049, 2
    %vm3051 = vcmp.gt.s32.totalorder 0, %v3050
    %v3052 = vsel %vm3051, 0, %v3050
    %v3053 = vsub.s32 32, %v3052
    %v3054 = vshll.u32 %v3045, %v3052
    %v3055 = vshrl.u32 %v3037, %v3053
    %v3056 = vor.u32 %v3054, %v3055
    %v3057 = vsub.s32 4294967266, %v3052
    %v3058 = vadd.s32 %v3057, 127
    %v3059 = vshll.u32 %v3058, 23
    %v3060 = vor.u32 4788187, %v3059
    %v3061 = vand.u32 2147483647, %v3060
    %v3063 = vcvt.s32.f32 %v3056
    %v3064 = vmul.f32 %v3063, %v3061
    %v3065 = vxor.u32 %v3064, 2147483648
    %v3066 = vsel %vm2983, %v3065, %v3064
    %v3067 = vsub.s32 4, %v3043
    %v3068 = vsel %vm2983, %v3067, %v3043
    %v3069 = vsel %vm2982, %v1317, %v3066
    %v3070 = vsel %vm2982, 0, %v3068
    %v3071 = vcosq.f32.pop %v3069
    %v3072 = vsinq.f32.pop %v3069
    %vm3073 = vweird.f32 %v1317
    %v3074 = vand.u32 %v3070, 3
    %vm3075 = vcmp.lt.s32.totalorder %v3074, 2
    %vm3076 = vcmp.eq.s32.totalorder %v3074, 0
    %v3077 = vxor.u32 %v3072, 2147483648
    %v3078 = vsel %vm3076, %v3071, %v3077
    %vm3079 = vcmp.eq.s32.totalorder %v3074, 2
    %v3080 = vxor.u32 %v3071, 2147483648
    %v3081 = vsel %vm3079, %v3080, %v3072
    %v3082 = vsel %vm3075, %v3078, %v3081
    %v3083 = vsel %vm3073, nan, %v3082
    %v3084 = vand.u32 2147483647, %v1318
    %vm3085 = vcmp.le.f32.partialorder %v3084, 0.7853982
    %vm3086 = vcmp.lt.s32.totalorder %v1318, 0
    %v3087 = vand.u32 %v1318, 2139095040
    %v3088 = vshrl.u32 %v3087, 23
    %v3089 = vsub.s32 %v3088, 127
    %v3090 = vand.u32 2147483647, %v1318
    %v3091 = vand.u32 %v3090, 8388607
    %v3092 = vor.u32 %v3091, 8388608
    %v3093 = vsub.s32 0, %v3092
    %v3094 = vadd.s32 %v3089, 1
    %vm3095 = vcmp.gt.s32.totalorder %v3094, 0
    %v3096 = vsel %vm3095, %v3094, 0
    %v3097 = vshrl.u32 %v3096, 5
    %v3098 = vand.u32 %v3096, 31
    %v3099 = vsub.s32 32, %v3098
    %v3100 = vshrl.u32 683565275, %v3099
    %v3101 = vshll.u32 683565275, %v3098
    %v3102 = vshrl.u32 2475754826, %v3099
    %v3103 = vor.u32 %v3101, %v3102
    %v3104 = vshll.u32 2475754826, %v3098
    %v3105 = vshrl.u32 2131351028, %v3099
    %v3106 = vor.u32 %v3104, %v3105
    %v3107 = vshll.u32 2131351028, %v3098
    %v3108 = vshrl.u32 2102212464, %v3099
    %v3109 = vor.u32 %v3107, %v3108
    %v3110 = vshll.u32 2102212464, %v3098
    %v3111 = vshrl.u32 920167782, %v3099
    %v3112 = vor.u32 %v3110, %v3111
    %v3113 = vshll.u32 920167782, %v3098
    %v3114 = vshrl.u32 1326507024, %v3099
    %v3115 = vor.u32 %v3113, %v3114
    %vm3116 = vcmp.lt.s32.totalorder %v3097, 1
    %vm3117 = vcmp.lt.s32.totalorder %v3097, 2
    %vm3118 = vcmp.lt.s32.totalorder %v3097, 3
    %vm3119 = vcmp.lt.s32.totalorder %v3097, 4
    %v3120 = vsel %vm3116, %v3100, %v3103
    %v3121 = vsel %vm3119, %v3109, 2102212464
    %v3122 = vsel %vm3118, %v3106, %v3121
    %v3123 = vsel %vm3117, %v3120, %v3122
    %v3124 = vsel %vm3116, %v3103, %v3106
    %v3125 = vsel %vm3119, %v3112, 920167782
    %v3126 = vsel %vm3118, %v3109, %v3125
    %v3127 = vsel %vm3117, %v3124, %v3126
    %v3128 = vsel %vm3116, %v3106, %v3109
    %v3129 = vsel %vm3119, %v3115, 1326507024
    %v3130 = vsel %vm3118, %v3112, %v3129
    %v3131 = vsel %vm3117, %v3128, %v3130
    %v3132 = vshll.u32 %v3092, 8
    %v3133 = vmul.u32.u64.compose %v3132, %v3131
    %v3134 = vextract.low.u32 %v3133
    %v3135 = vextract.high.u32 %v3133
    %v3136 = vmul.u32.u64.compose %v3132, %v3127
    %v3137 = vextract.low.u32 %v3136
    %v3138 = vextract.high.u32 %v3136
    %v3139 = vmul.u32 %v3132, %v3123
    %v3140 = vadd.s32 %v3135, %v3137
    %vm3141 = vc.u32 %v3135, %v3137
    %v3142 = vadd.s32 %v3138, 1
    %v3143 = vsel %vm3141, %v3142, %v3138
    %v3144 = vadd.s32 %v3139, %v3143
    %v3145 = vadd.s32 %v3144, 536870912
    %v3146 = vshrl.u32 %v3145, 30
    %v3147 = vshll.u32 %v3146, 30
    %v3148 = vsub.s32 %v3144, %v3147
    %vm3149 = vcmp.lt.s32.totalorder %v3148, 0
    %v3150 = vsub.s32 0, %v3148
    %v3151 = vsel %vm3149, %v3150, %v3148
    %v3152 = vclz %v3151
    %v3153 = vsub.s32 %v3152, 2
    %vm3154 = vcmp.gt.s32.totalorder 0, %v3153
    %v3155 = vsel %vm3154, 0, %v3153
    %v3156 = vsub.s32 32, %v3155
    %v3157 = vshll.u32 %v3148, %v3155
    %v3158 = vshrl.u32 %v3140, %v3156
    %v3159 = vor.u32 %v3157, %v3158
    %v3160 = vsub.s32 4294967266, %v3155
    %v3161 = vadd.s32 %v3160, 127
    %v3162 = vshll.u32 %v3161, 23
    %v3163 = vor.u32 4788187, %v3162
    %v3164 = vand.u32 2147483647, %v3163
    %v3166 = vcvt.s32.f32 %v3159
    %v3167 = vmul.f32 %v3166, %v3164
    %v3168 = vxor.u32 %v3167, 2147483648
    %v3169 = vsel %vm3086, %v3168, %v3167
    %v3170 = vsub.s32 4, %v3146
    %v3171 = vsel %vm3086, %v3170, %v3146
    %v3172 = vsel %vm3085, %v1318, %v3169
    %v3173 = vsel %vm3085, 0, %v3171
    %v3174 = vcosq.f32.pop %v3172
    %v3175 = vsinq.f32.pop %v3172
    %vm3176 = vweird.f32 %v1318
    %v3177 = vand.u32 %v3173, 3
    %vm3178 = vcmp.lt.s32.totalorder %v3177, 2
    %vm3179 = vcmp.eq.s32.totalorder %v3177, 0
    %v3180 = vxor.u32 %v3175, 2147483648
    %v3181 = vsel %vm3179, %v3174, %v3180
    %vm3182 = vcmp.eq.s32.totalorder %v3177, 2
    %v3183 = vxor.u32 %v3174, 2147483648
    %v3184 = vsel %vm3182, %v3183, %v3175
    %v3185 = vsel %vm3178, %v3181, %v3184
    %v3186 = vsel %vm3176, nan, %v3185
    %v3187 = vand.u32 2147483647, %v1319
    %vm3188 = vcmp.le.f32.partialorder %v3187, 0.7853982
    %vm3189 = vcmp.lt.s32.totalorder %v1319, 0
    %v3190 = vand.u32 %v1319, 2139095040
    %v3191 = vshrl.u32 %v3190, 23
    %v3192 = vsub.s32 %v3191, 127
    %v3193 = vand.u32 2147483647, %v1319
    %v3194 = vand.u32 %v3193, 8388607
    %v3195 = vor.u32 %v3194, 8388608
    %v3196 = vsub.s32 0, %v3195
    %v3197 = vadd.s32 %v3192, 1
    %vm3198 = vcmp.gt.s32.totalorder %v3197, 0
    %v3199 = vsel %vm3198, %v3197, 0
    %v3200 = vshrl.u32 %v3199, 5
    %v3201 = vand.u32 %v3199, 31
    %v3202 = vsub.s32 32, %v3201
    %v3203 = vshrl.u32 683565275, %v3202
    %v3204 = vshll.u32 683565275, %v3201
    %v3205 = vshrl.u32 2475754826, %v3202
    %v3206 = vor.u32 %v3204, %v3205
    %v3207 = vshll.u32 2475754826, %v3201
    %v3208 = vshrl.u32 2131351028, %v3202
    %v3209 = vor.u32 %v3207, %v3208
    %v3210 = vshll.u32 2131351028, %v3201
    %v3211 = vshrl.u32 2102212464, %v3202
    %v3212 = vor.u32 %v3210, %v3211
    %v3213 = vshll.u32 2102212464, %v3201
    %v3214 = vshrl.u32 920167782, %v3202
    %v3215 = vor.u32 %v3213, %v3214
    %v3216 = vshll.u32 920167782, %v3201
    %v3217 = vshrl.u32 1326507024, %v3202
    %v3218 = vor.u32 %v3216, %v3217
    %vm3219 = vcmp.lt.s32.totalorder %v3200, 1
    %vm3220 = vcmp.lt.s32.totalorder %v3200, 2
    %vm3221 = vcmp.lt.s32.totalorder %v3200, 3
    %vm3222 = vcmp.lt.s32.totalorder %v3200, 4
    %v3223 = vsel %vm3219, %v3203, %v3206
    %v3224 = vsel %vm3222, %v3212, 2102212464
    %v3225 = vsel %vm3221, %v3209, %v3224
    %v3226 = vsel %vm3220, %v3223, %v3225
    %v3227 = vsel %vm3219, %v3206, %v3209
    %v3228 = vsel %vm3222, %v3215, 920167782
    %v3229 = vsel %vm3221, %v3212, %v3228
    %v3230 = vsel %vm3220, %v3227, %v3229
    %v3231 = vsel %vm3219, %v3209, %v3212
    %v3232 = vsel %vm3222, %v3218, 1326507024
    %v3233 = vsel %vm3221, %v3215, %v3232
    %v3234 = vsel %vm3220, %v3231, %v3233
    %v3235 = vshll.u32 %v3195, 8
    %v3236 = vmul.u32.u64.compose %v3235, %v3234
    %v3237 = vextract.low.u32 %v3236
    %v3238 = vextract.high.u32 %v3236
    %v3239 = vmul.u32.u64.compose %v3235, %v3230
    %v3240 = vextract.low.u32 %v3239
    %v3241 = vextract.high.u32 %v3239
    %v3242 = vmul.u32 %v3235, %v3226
    %v3243 = vadd.s32 %v3238, %v3240
    %vm3244 = vc.u32 %v3238, %v3240
    %v3245 = vadd.s32 %v3241, 1
    %v3246 = vsel %vm3244, %v3245, %v3241
    %v3247 = vadd.s32 %v3242, %v3246
    %v3248 = vadd.s32 %v3247, 536870912
    %v3249 = vshrl.u32 %v3248, 30
    %v3250 = vshll.u32 %v3249, 30
    %v3251 = vsub.s32 %v3247, %v3250
    %vm3252 = vcmp.lt.s32.totalorder %v3251, 0
    %v3253 = vsub.s32 0, %v3251
    %v3254 = vsel %vm3252, %v3253, %v3251
    %v3255 = vclz %v3254
    %v3256 = vsub.s32 %v3255, 2
    %vm3257 = vcmp.gt.s32.totalorder 0, %v3256
    %v3258 = vsel %vm3257, 0, %v3256
    %v3259 = vsub.s32 32, %v3258
    %v3260 = vshll.u32 %v3251, %v3258
    %v3261 = vshrl.u32 %v3243, %v3259
    %v3262 = vor.u32 %v3260, %v3261
    %v3263 = vsub.s32 4294967266, %v3258
    %v3264 = vadd.s32 %v3263, 127
    %v3265 = vshll.u32 %v3264, 23
    %v3266 = vor.u32 4788187, %v3265
    %v3267 = vand.u32 2147483647, %v3266
    %v3269 = vcvt.s32.f32 %v3262
    %v3270 = vmul.f32 %v3269, %v3267
    %v3271 = vxor.u32 %v3270, 2147483648
    %v3272 = vsel %vm3189, %v3271, %v3270
    %v3273 = vsub.s32 4, %v3249
    %v3274 = vsel %vm3189, %v3273, %v3249
    %v3275 = vsel %vm3188, %v1319, %v3272
    %v3276 = vsel %vm3188, 0, %v3274
    %v3277 = vcosq.f32.pop %v3275
    %v3278 = vsinq.f32.pop %v3275
    %vm3279 = vweird.f32 %v1319
    %v3280 = vand.u32 %v3276, 3
    %vm3281 = vcmp.lt.s32.totalorder %v3280, 2
    %vm3282 = vcmp.eq.s32.totalorder %v3280, 0
    %v3283 = vxor.u32 %v3278, 2147483648
    %v3284 = vsel %vm3282, %v3277, %v3283
    %vm3285 = vcmp.eq.s32.totalorder %v3280, 2
    %v3286 = vxor.u32 %v3277, 2147483648
    %v3287 = vsel %vm3285, %v3286, %v3278
    %v3288 = vsel %vm3281, %v3284, %v3287
    %v3289 = vsel %vm3279, nan, %v3288
    %v3290 = vand.u32 2147483647, %v1320
    %vm3291 = vcmp.le.f32.partialorder %v3290, 0.7853982
    %vm3292 = vcmp.lt.s32.totalorder %v1320, 0
    %v3293 = vand.u32 %v1320, 2139095040
    %v3294 = vshrl.u32 %v3293, 23
    %v3295 = vsub.s32 %v3294, 127
    %v3296 = vand.u32 2147483647, %v1320
    %v3297 = vand.u32 %v3296, 8388607
    %v3298 = vor.u32 %v3297, 8388608
    %v3299 = vsub.s32 0, %v3298
    %v3300 = vadd.s32 %v3295, 1
    %vm3301 = vcmp.gt.s32.totalorder %v3300, 0
    %v3302 = vsel %vm3301, %v3300, 0
    %v3303 = vshrl.u32 %v3302, 5
    %v3304 = vand.u32 %v3302, 31
    %v3305 = vsub.s32 32, %v3304
    %v3306 = vshrl.u32 683565275, %v3305
    %v3307 = vshll.u32 683565275, %v3304
    %v3308 = vshrl.u32 2475754826, %v3305
    %v3309 = vor.u32 %v3307, %v3308
    %v3310 = vshll.u32 2475754826, %v3304
    %v3311 = vshrl.u32 2131351028, %v3305
    %v3312 = vor.u32 %v3310, %v3311
    %v3313 = vshll.u32 2131351028, %v3304
    %v3314 = vshrl.u32 2102212464, %v3305
    %v3315 = vor.u32 %v3313, %v3314
    %v3316 = vshll.u32 2102212464, %v3304
    %v3317 = vshrl.u32 920167782, %v3305
    %v3318 = vor.u32 %v3316, %v3317
    %v3319 = vshll.u32 920167782, %v3304
    %v3320 = vshrl.u32 1326507024, %v3305
    %v3321 = vor.u32 %v3319, %v3320
    %vm3322 = vcmp.lt.s32.totalorder %v3303, 1
    %vm3323 = vcmp.lt.s32.totalorder %v3303, 2
    %vm3324 = vcmp.lt.s32.totalorder %v3303, 3
    %vm3325 = vcmp.lt.s32.totalorder %v3303, 4
    %v3326 = vsel %vm3322, %v3306, %v3309
    %v3327 = vsel %vm3325, %v3315, 2102212464
    %v3328 = vsel %vm3324, %v3312, %v3327
    %v3329 = vsel %vm3323, %v3326, %v3328
    %v3330 = vsel %vm3322, %v3309, %v3312
    %v3331 = vsel %vm3325, %v3318, 920167782
    %v3332 = vsel %vm3324, %v3315, %v3331
    %v3333 = vsel %vm3323, %v3330, %v3332
    %v3334 = vsel %vm3322, %v3312, %v3315
    %v3335 = vsel %vm3325, %v3321, 1326507024
    %v3336 = vsel %vm3324, %v3318, %v3335
    %v3337 = vsel %vm3323, %v3334, %v3336
    %v3338 = vshll.u32 %v3298, 8
    %v3339 = vmul.u32.u64.compose %v3338, %v3337
    %v3340 = vextract.low.u32 %v3339
    %v3341 = vextract.high.u32 %v3339
    %v3342 = vmul.u32.u64.compose %v3338, %v3333
    %v3343 = vextract.low.u32 %v3342
    %v3344 = vextract.high.u32 %v3342
    %v3345 = vmul.u32 %v3338, %v3329
    %v3346 = vadd.s32 %v3341, %v3343
    %vm3347 = vc.u32 %v3341, %v3343
    %v3348 = vadd.s32 %v3344, 1
    %v3349 = vsel %vm3347, %v3348, %v3344
    %v3350 = vadd.s32 %v3345, %v3349
    %v3351 = vadd.s32 %v3350, 536870912
    %v3352 = vshrl.u32 %v3351, 30
    %v3353 = vshll.u32 %v3352, 30
    %v3354 = vsub.s32 %v3350, %v3353
    %vm3355 = vcmp.lt.s32.totalorder %v3354, 0
    %v3356 = vsub.s32 0, %v3354
    %v3357 = vsel %vm3355, %v3356, %v3354
    %v3358 = vclz %v3357
    %v3359 = vsub.s32 %v3358, 2
    %vm3360 = vcmp.gt.s32.totalorder 0, %v3359
    %v3361 = vsel %vm3360, 0, %v3359
    %v3362 = vsub.s32 32, %v3361
    %v3363 = vshll.u32 %v3354, %v3361
    %v3364 = vshrl.u32 %v3346, %v3362
    %v3365 = vor.u32 %v3363, %v3364
    %v3366 = vsub.s32 4294967266, %v3361
    %v3367 = vadd.s32 %v3366, 127
    %v3368 = vshll.u32 %v3367, 23
    %v3369 = vor.u32 4788187, %v3368
    %v3370 = vand.u32 2147483647, %v3369
    %v3372 = vcvt.s32.f32 %v3365
    %v3373 = vmul.f32 %v3372, %v3370
    %v3374 = vxor.u32 %v3373, 2147483648
    %v3375 = vsel %vm3292, %v3374, %v3373
    %v3376 = vsub.s32 4, %v3352
    %v3377 = vsel %vm3292, %v3376, %v3352
    %v3378 = vsel %vm3291, %v1320, %v3375
    %v3379 = vsel %vm3291, 0, %v3377
    %v3380 = vcosq.f32.pop %v3378
    %v3381 = vsinq.f32.pop %v3378
    %vm3382 = vweird.f32 %v1320
    %v3383 = vand.u32 %v3379, 3
    %vm3384 = vcmp.lt.s32.totalorder %v3383, 2
    %vm3385 = vcmp.eq.s32.totalorder %v3383, 0
    %v3386 = vxor.u32 %v3381, 2147483648
    %v3387 = vsel %vm3385, %v3380, %v3386
    %vm3388 = vcmp.eq.s32.totalorder %v3383, 2
    %v3389 = vxor.u32 %v3380, 2147483648
    %v3390 = vsel %vm3388, %v3389, %v3381
    %v3391 = vsel %vm3384, %v3387, %v3390
    %v3392 = vsel %vm3382, nan, %v3391
    %v3393 = vand.u32 2147483647, %v1321
    %vm3394 = vcmp.le.f32.partialorder %v3393, 0.7853982
    %vm3395 = vcmp.lt.s32.totalorder %v1321, 0
    %v3396 = vand.u32 %v1321, 2139095040
    %v3397 = vshrl.u32 %v3396, 23
    %v3398 = vsub.s32 %v3397, 127
    %v3399 = vand.u32 2147483647, %v1321
    %v3400 = vand.u32 %v3399, 8388607
    %v3401 = vor.u32 %v3400, 8388608
    %v3402 = vsub.s32 0, %v3401
    %v3403 = vadd.s32 %v3398, 1
    %vm3404 = vcmp.gt.s32.totalorder %v3403, 0
    %v3405 = vsel %vm3404, %v3403, 0
    %v3406 = vshrl.u32 %v3405, 5
    %v3407 = vand.u32 %v3405, 31
    %v3408 = vsub.s32 32, %v3407
    %v3409 = vshrl.u32 683565275, %v3408
    %v3410 = vshll.u32 683565275, %v3407
    %v3411 = vshrl.u32 2475754826, %v3408
    %v3412 = vor.u32 %v3410, %v3411
    %v3413 = vshll.u32 2475754826, %v3407
    %v3414 = vshrl.u32 2131351028, %v3408
    %v3415 = vor.u32 %v3413, %v3414
    %v3416 = vshll.u32 2131351028, %v3407
    %v3417 = vshrl.u32 2102212464, %v3408
    %v3418 = vor.u32 %v3416, %v3417
    %v3419 = vshll.u32 2102212464, %v3407
    %v3420 = vshrl.u32 920167782, %v3408
    %v3421 = vor.u32 %v3419, %v3420
    %v3422 = vshll.u32 920167782, %v3407
    %v3423 = vshrl.u32 1326507024, %v3408
    %v3424 = vor.u32 %v3422, %v3423
    %vm3425 = vcmp.lt.s32.totalorder %v3406, 1
    %vm3426 = vcmp.lt.s32.totalorder %v3406, 2
    %vm3427 = vcmp.lt.s32.totalorder %v3406, 3
    %vm3428 = vcmp.lt.s32.totalorder %v3406, 4
    %v3429 = vsel %vm3425, %v3409, %v3412
    %v3430 = vsel %vm3428, %v3418, 2102212464
    %v3431 = vsel %vm3427, %v3415, %v3430
    %v3432 = vsel %vm3426, %v3429, %v3431
    %v3433 = vsel %vm3425, %v3412, %v3415
    %v3434 = vsel %vm3428, %v3421, 920167782
    %v3435 = vsel %vm3427, %v3418, %v3434
    %v3436 = vsel %vm3426, %v3433, %v3435
    %v3437 = vsel %vm3425, %v3415, %v3418
    %v3438 = vsel %vm3428, %v3424, 1326507024
    %v3439 = vsel %vm3427, %v3421, %v3438
    %v3440 = vsel %vm3426, %v3437, %v3439
    %v3441 = vshll.u32 %v3401, 8
    %v3442 = vmul.u32.u64.compose %v3441, %v3440
    %v3443 = vextract.low.u32 %v3442
    %v3444 = vextract.high.u32 %v3442
    %v3445 = vmul.u32.u64.compose %v3441, %v3436
    %v3446 = vextract.low.u32 %v3445
    %v3447 = vextract.high.u32 %v3445
    %v3448 = vmul.u32 %v3441, %v3432
    %v3449 = vadd.s32 %v3444, %v3446
    %vm3450 = vc.u32 %v3444, %v3446
    %v3451 = vadd.s32 %v3447, 1
    %v3452 = vsel %vm3450, %v3451, %v3447
    %v3453 = vadd.s32 %v3448, %v3452
    %v3454 = vadd.s32 %v3453, 536870912
    %v3455 = vshrl.u32 %v3454, 30
    %v3456 = vshll.u32 %v3455, 30
    %v3457 = vsub.s32 %v3453, %v3456
    %vm3458 = vcmp.lt.s32.totalorder %v3457, 0
    %v3459 = vsub.s32 0, %v3457
    %v3460 = vsel %vm3458, %v3459, %v3457
    %v3461 = vclz %v3460
    %v3462 = vsub.s32 %v3461, 2
    %vm3463 = vcmp.gt.s32.totalorder 0, %v3462
    %v3464 = vsel %vm3463, 0, %v3462
    %v3465 = vsub.s32 32, %v3464
    %v3466 = vshll.u32 %v3457, %v3464
    %v3467 = vshrl.u32 %v3449, %v3465
    %v3468 = vor.u32 %v3466, %v3467
    %v3469 = vsub.s32 4294967266, %v3464
    %v3470 = vadd.s32 %v3469, 127
    %v3471 = vshll.u32 %v3470, 23
    %v3472 = vor.u32 4788187, %v3471
    %v3473 = vand.u32 2147483647, %v3472
    %v3475 = vcvt.s32.f32 %v3468
    %v3476 = vmul.f32 %v3475, %v3473
    %v3477 = vxor.u32 %v3476, 2147483648
    %v3478 = vsel %vm3395, %v3477, %v3476
    %v3479 = vsub.s32 4, %v3455
    %v3480 = vsel %vm3395, %v3479, %v3455
    %v3481 = vsel %vm3394, %v1321, %v3478
    %v3482 = vsel %vm3394, 0, %v3480
    %v3483 = vcosq.f32.pop %v3481
    %v3484 = vsinq.f32.pop %v3481
    %vm3485 = vweird.f32 %v1321
    %v3486 = vand.u32 %v3482, 3
    %vm3487 = vcmp.lt.s32.totalorder %v3486, 2
    %vm3488 = vcmp.eq.s32.totalorder %v3486, 0
    %v3489 = vxor.u32 %v3484, 2147483648
    %v3490 = vsel %vm3488, %v3483, %v3489
    %vm3491 = vcmp.eq.s32.totalorder %v3486, 2
    %v3492 = vxor.u32 %v3483, 2147483648
    %v3493 = vsel %vm3491, %v3492, %v3484
    %v3494 = vsel %vm3487, %v3490, %v3493
    %v3495 = vsel %vm3485, nan, %v3494
    %v3496 = vand.u32 2147483647, %v1322
    %vm3497 = vcmp.le.f32.partialorder %v3496, 0.7853982
    %vm3498 = vcmp.lt.s32.totalorder %v1322, 0
    %v3499 = vand.u32 %v1322, 2139095040
    %v3500 = vshrl.u32 %v3499, 23
    %v3501 = vsub.s32 %v3500, 127
    %v3502 = vand.u32 2147483647, %v1322
    %v3503 = vand.u32 %v3502, 8388607
    %v3504 = vor.u32 %v3503, 8388608
    %v3505 = vsub.s32 0, %v3504
    %v3506 = vadd.s32 %v3501, 1
    %vm3507 = vcmp.gt.s32.totalorder %v3506, 0
    %v3508 = vsel %vm3507, %v3506, 0
    %v3509 = vshrl.u32 %v3508, 5
    %v3510 = vand.u32 %v3508, 31
    %v3511 = vsub.s32 32, %v3510
    %v3512 = vshrl.u32 683565275, %v3511
    %v3513 = vshll.u32 683565275, %v3510
    %v3514 = vshrl.u32 2475754826, %v3511
    %v3515 = vor.u32 %v3513, %v3514
    %v3516 = vshll.u32 2475754826, %v3510
    %v3517 = vshrl.u32 2131351028, %v3511
    %v3518 = vor.u32 %v3516, %v3517
    %v3519 = vshll.u32 2131351028, %v3510
    %v3520 = vshrl.u32 2102212464, %v3511
    %v3521 = vor.u32 %v3519, %v3520
    %v3522 = vshll.u32 2102212464, %v3510
    %v3523 = vshrl.u32 920167782, %v3511
    %v3524 = vor.u32 %v3522, %v3523
    %v3525 = vshll.u32 920167782, %v3510
    %v3526 = vshrl.u32 1326507024, %v3511
    %v3527 = vor.u32 %v3525, %v3526
    %vm3528 = vcmp.lt.s32.totalorder %v3509, 1
    %vm3529 = vcmp.lt.s32.totalorder %v3509, 2
    %vm3530 = vcmp.lt.s32.totalorder %v3509, 3
    %vm3531 = vcmp.lt.s32.totalorder %v3509, 4
    %v3532 = vsel %vm3528, %v3512, %v3515
    %v3533 = vsel %vm3531, %v3521, 2102212464
    %v3534 = vsel %vm3530, %v3518, %v3533
    %v3535 = vsel %vm3529, %v3532, %v3534
    %v3536 = vsel %vm3528, %v3515, %v3518
    %v3537 = vsel %vm3531, %v3524, 920167782
    %v3538 = vsel %vm3530, %v3521, %v3537
    %v3539 = vsel %vm3529, %v3536, %v3538
    %v3540 = vsel %vm3528, %v3518, %v3521
    %v3541 = vsel %vm3531, %v3527, 1326507024
    %v3542 = vsel %vm3530, %v3524, %v3541
    %v3543 = vsel %vm3529, %v3540, %v3542
    %v3544 = vshll.u32 %v3504, 8
    %v3545 = vmul.u32.u64.compose %v3544, %v3543
    %v3546 = vextract.low.u32 %v3545
    %v3547 = vextract.high.u32 %v3545
    %v3548 = vmul.u32.u64.compose %v3544, %v3539
    %v3549 = vextract.low.u32 %v3548
    %v3550 = vextract.high.u32 %v3548
    %v3551 = vmul.u32 %v3544, %v3535
    %v3552 = vadd.s32 %v3547, %v3549
    %vm3553 = vc.u32 %v3547, %v3549
    %v3554 = vadd.s32 %v3550, 1
    %v3555 = vsel %vm3553, %v3554, %v3550
    %v3556 = vadd.s32 %v3551, %v3555
    %v3557 = vadd.s32 %v3556, 536870912
    %v3558 = vshrl.u32 %v3557, 30
    %v3559 = vshll.u32 %v3558, 30
    %v3560 = vsub.s32 %v3556, %v3559
    %vm3561 = vcmp.lt.s32.totalorder %v3560, 0
    %v3562 = vsub.s32 0, %v3560
    %v3563 = vsel %vm3561, %v3562, %v3560
    %v3564 = vclz %v3563
    %v3565 = vsub.s32 %v3564, 2
    %vm3566 = vcmp.gt.s32.totalorder 0, %v3565
    %v3567 = vsel %vm3566, 0, %v3565
    %v3568 = vsub.s32 32, %v3567
    %v3569 = vshll.u32 %v3560, %v3567
    %v3570 = vshrl.u32 %v3552, %v3568
    %v3571 = vor.u32 %v3569, %v3570
    %v3572 = vsub.s32 4294967266, %v3567
    %v3573 = vadd.s32 %v3572, 127
    %v3574 = vshll.u32 %v3573, 23
    %v3575 = vor.u32 4788187, %v3574
    %v3576 = vand.u32 2147483647, %v3575
    %v3578 = vcvt.s32.f32 %v3571
    %v3579 = vmul.f32 %v3578, %v3576
    %v3580 = vxor.u32 %v3579, 2147483648
    %v3581 = vsel %vm3498, %v3580, %v3579
    %v3582 = vsub.s32 4, %v3558
    %v3583 = vsel %vm3498, %v3582, %v3558
    %v3584 = vsel %vm3497, %v1322, %v3581
    %v3585 = vsel %vm3497, 0, %v3583
    %v3586 = vcosq.f32.pop %v3584
    %v3587 = vsinq.f32.pop %v3584
    %vm3588 = vweird.f32 %v1322
    %v3589 = vand.u32 %v3585, 3
    %vm3590 = vcmp.lt.s32.totalorder %v3589, 2
    %vm3591 = vcmp.eq.s32.totalorder %v3589, 0
    %v3592 = vxor.u32 %v3587, 2147483648
    %v3593 = vsel %vm3591, %v3586, %v3592
    %vm3594 = vcmp.eq.s32.totalorder %v3589, 2
    %v3595 = vxor.u32 %v3586, 2147483648
    %v3596 = vsel %vm3594, %v3595, %v3587
    %v3597 = vsel %vm3590, %v3593, %v3596
    %v3598 = vsel %vm3588, nan, %v3597
    %v3599 = vand.u32 2147483647, %v1323
    %vm3600 = vcmp.le.f32.partialorder %v3599, 0.7853982
    %vm3601 = vcmp.lt.s32.totalorder %v1323, 0
    %v3602 = vand.u32 %v1323, 2139095040
    %v3603 = vshrl.u32 %v3602, 23
    %v3604 = vsub.s32 %v3603, 127
    %v3605 = vand.u32 2147483647, %v1323
    %v3606 = vand.u32 %v3605, 8388607
    %v3607 = vor.u32 %v3606, 8388608
    %v3608 = vsub.s32 0, %v3607
    %v3609 = vadd.s32 %v3604, 1
    %vm3610 = vcmp.gt.s32.totalorder %v3609, 0
    %v3611 = vsel %vm3610, %v3609, 0
    %v3612 = vshrl.u32 %v3611, 5
    %v3613 = vand.u32 %v3611, 31
    %v3614 = vsub.s32 32, %v3613
    %v3615 = vshrl.u32 683565275, %v3614
    %v3616 = vshll.u32 683565275, %v3613
    %v3617 = vshrl.u32 2475754826, %v3614
    %v3618 = vor.u32 %v3616, %v3617
    %v3619 = vshll.u32 2475754826, %v3613
    %v3620 = vshrl.u32 2131351028, %v3614
    %v3621 = vor.u32 %v3619, %v3620
    %v3622 = vshll.u32 2131351028, %v3613
    %v3623 = vshrl.u32 2102212464, %v3614
    %v3624 = vor.u32 %v3622, %v3623
    %v3625 = vshll.u32 2102212464, %v3613
    %v3626 = vshrl.u32 920167782, %v3614
    %v3627 = vor.u32 %v3625, %v3626
    %v3628 = vshll.u32 920167782, %v3613
    %v3629 = vshrl.u32 1326507024, %v3614
    %v3630 = vor.u32 %v3628, %v3629
    %vm3631 = vcmp.lt.s32.totalorder %v3612, 1
    %vm3632 = vcmp.lt.s32.totalorder %v3612, 2
    %vm3633 = vcmp.lt.s32.totalorder %v3612, 3
    %vm3634 = vcmp.lt.s32.totalorder %v3612, 4
    %v3635 = vsel %vm3631, %v3615, %v3618
    %v3636 = vsel %vm3634, %v3624, 2102212464
    %v3637 = vsel %vm3633, %v3621, %v3636
    %v3638 = vsel %vm3632, %v3635, %v3637
    %v3639 = vsel %vm3631, %v3618, %v3621
    %v3640 = vsel %vm3634, %v3627, 920167782
    %v3641 = vsel %vm3633, %v3624, %v3640
    %v3642 = vsel %vm3632, %v3639, %v3641
    %v3643 = vsel %vm3631, %v3621, %v3624
    %v3644 = vsel %vm3634, %v3630, 1326507024
    %v3645 = vsel %vm3633, %v3627, %v3644
    %v3646 = vsel %vm3632, %v3643, %v3645
    %v3647 = vshll.u32 %v3607, 8
    %v3648 = vmul.u32.u64.compose %v3647, %v3646
    %v3649 = vextract.low.u32 %v3648
    %v3650 = vextract.high.u32 %v3648
    %v3651 = vmul.u32.u64.compose %v3647, %v3642
    %v3652 = vextract.low.u32 %v3651
    %v3653 = vextract.high.u32 %v3651
    %v3654 = vmul.u32 %v3647, %v3638
    %v3655 = vadd.s32 %v3650, %v3652
    %vm3656 = vc.u32 %v3650, %v3652
    %v3657 = vadd.s32 %v3653, 1
    %v3658 = vsel %vm3656, %v3657, %v3653
    %v3659 = vadd.s32 %v3654, %v3658
    %v3660 = vadd.s32 %v3659, 536870912
    %v3661 = vshrl.u32 %v3660, 30
    %v3662 = vshll.u32 %v3661, 30
    %v3663 = vsub.s32 %v3659, %v3662
    %vm3664 = vcmp.lt.s32.totalorder %v3663, 0
    %v3665 = vsub.s32 0, %v3663
    %v3666 = vsel %vm3664, %v3665, %v3663
    %v3667 = vclz %v3666
    %v3668 = vsub.s32 %v3667, 2
    %vm3669 = vcmp.gt.s32.totalorder 0, %v3668
    %v3670 = vsel %vm3669, 0, %v3668
    %v3671 = vsub.s32 32, %v3670
    %v3672 = vshll.u32 %v3663, %v3670
    %v3673 = vshrl.u32 %v3655, %v3671
    %v3674 = vor.u32 %v3672, %v3673
    %v3675 = vsub.s32 4294967266, %v3670
    %v3676 = vadd.s32 %v3675, 127
    %v3677 = vshll.u32 %v3676, 23
    %v3678 = vor.u32 4788187, %v3677
    %v3679 = vand.u32 2147483647, %v3678
    %v3681 = vcvt.s32.f32 %v3674
    %v3682 = vmul.f32 %v3681, %v3679
    %v3683 = vxor.u32 %v3682, 2147483648
    %v3684 = vsel %vm3601, %v3683, %v3682
    %v3685 = vsub.s32 4, %v3661
    %v3686 = vsel %vm3601, %v3685, %v3661
    %v3687 = vsel %vm3600, %v1323, %v3684
    %v3688 = vsel %vm3600, 0, %v3686
    %v3689 = vcosq.f32.pop %v3687
    %v3690 = vsinq.f32.pop %v3687
    %vm3691 = vweird.f32 %v1323
    %v3692 = vand.u32 %v3688, 3
    %vm3693 = vcmp.lt.s32.totalorder %v3692, 2
    %vm3694 = vcmp.eq.s32.totalorder %v3692, 0
    %v3695 = vxor.u32 %v3690, 2147483648
    %v3696 = vsel %vm3694, %v3689, %v3695
    %vm3697 = vcmp.eq.s32.totalorder %v3692, 2
    %v3698 = vxor.u32 %v3689, 2147483648
    %v3699 = vsel %vm3697, %v3698, %v3690
    %v3700 = vsel %vm3693, %v3696, %v3699
    %v3701 = vsel %vm3691, nan, %v3700
    %v3702 = vand.u32 2147483647, %v1324
    %vm3703 = vcmp.le.f32.partialorder %v3702, 0.7853982
    %vm3704 = vcmp.lt.s32.totalorder %v1324, 0
    %v3705 = vand.u32 %v1324, 2139095040
    %v3706 = vshrl.u32 %v3705, 23
    %v3707 = vsub.s32 %v3706, 127
    %v3708 = vand.u32 2147483647, %v1324
    %v3709 = vand.u32 %v3708, 8388607
    %v3710 = vor.u32 %v3709, 8388608
    %v3711 = vsub.s32 0, %v3710
    %v3712 = vadd.s32 %v3707, 1
    %vm3713 = vcmp.gt.s32.totalorder %v3712, 0
    %v3714 = vsel %vm3713, %v3712, 0
    %v3715 = vshrl.u32 %v3714, 5
    %v3716 = vand.u32 %v3714, 31
    %v3717 = vsub.s32 32, %v3716
    %v3718 = vshrl.u32 683565275, %v3717
    %v3719 = vshll.u32 683565275, %v3716
    %v3720 = vshrl.u32 2475754826, %v3717
    %v3721 = vor.u32 %v3719, %v3720
    %v3722 = vshll.u32 2475754826, %v3716
    %v3723 = vshrl.u32 2131351028, %v3717
    %v3724 = vor.u32 %v3722, %v3723
    %v3725 = vshll.u32 2131351028, %v3716
    %v3726 = vshrl.u32 2102212464, %v3717
    %v3727 = vor.u32 %v3725, %v3726
    %v3728 = vshll.u32 2102212464, %v3716
    %v3729 = vshrl.u32 920167782, %v3717
    %v3730 = vor.u32 %v3728, %v3729
    %v3731 = vshll.u32 920167782, %v3716
    %v3732 = vshrl.u32 1326507024, %v3717
    %v3733 = vor.u32 %v3731, %v3732
    %vm3734 = vcmp.lt.s32.totalorder %v3715, 1
    %vm3735 = vcmp.lt.s32.totalorder %v3715, 2
    %vm3736 = vcmp.lt.s32.totalorder %v3715, 3
    %vm3737 = vcmp.lt.s32.totalorder %v3715, 4
    %v3738 = vsel %vm3734, %v3718, %v3721
    %v3739 = vsel %vm3737, %v3727, 2102212464
    %v3740 = vsel %vm3736, %v3724, %v3739
    %v3741 = vsel %vm3735, %v3738, %v3740
    %v3742 = vsel %vm3734, %v3721, %v3724
    %v3743 = vsel %vm3737, %v3730, 920167782
    %v3744 = vsel %vm3736, %v3727, %v3743
    %v3745 = vsel %vm3735, %v3742, %v3744
    %v3746 = vsel %vm3734, %v3724, %v3727
    %v3747 = vsel %vm3737, %v3733, 1326507024
    %v3748 = vsel %vm3736, %v3730, %v3747
    %v3749 = vsel %vm3735, %v3746, %v3748
    %v3750 = vshll.u32 %v3710, 8
    %v3751 = vmul.u32.u64.compose %v3750, %v3749
    %v3752 = vextract.low.u32 %v3751
    %v3753 = vextract.high.u32 %v3751
    %v3754 = vmul.u32.u64.compose %v3750, %v3745
    %v3755 = vextract.low.u32 %v3754
    %v3756 = vextract.high.u32 %v3754
    %v3757 = vmul.u32 %v3750, %v3741
    %v3758 = vadd.s32 %v3753, %v3755
    %vm3759 = vc.u32 %v3753, %v3755
    %v3760 = vadd.s32 %v3756, 1
    %v3761 = vsel %vm3759, %v3760, %v3756
    %v3762 = vadd.s32 %v3757, %v3761
    %v3763 = vadd.s32 %v3762, 536870912
    %v3764 = vshrl.u32 %v3763, 30
    %v3765 = vshll.u32 %v3764, 30
    %v3766 = vsub.s32 %v3762, %v3765
    %vm3767 = vcmp.lt.s32.totalorder %v3766, 0
    %v3768 = vsub.s32 0, %v3766
    %v3769 = vsel %vm3767, %v3768, %v3766
    %v3770 = vclz %v3769
    %v3771 = vsub.s32 %v3770, 2
    %vm3772 = vcmp.gt.s32.totalorder 0, %v3771
    %v3773 = vsel %vm3772, 0, %v3771
    %v3774 = vsub.s32 32, %v3773
    %v3775 = vshll.u32 %v3766, %v3773
    %v3776 = vshrl.u32 %v3758, %v3774
    %v3777 = vor.u32 %v3775, %v3776
    %v3778 = vsub.s32 4294967266, %v3773
    %v3779 = vadd.s32 %v3778, 127
    %v3780 = vshll.u32 %v3779, 23
    %v3781 = vor.u32 4788187, %v3780
    %v3782 = vand.u32 2147483647, %v3781
    %v3784 = vcvt.s32.f32 %v3777
    %v3785 = vmul.f32 %v3784, %v3782
    %v3786 = vxor.u32 %v3785, 2147483648
    %v3787 = vsel %vm3704, %v3786, %v3785
    %v3788 = vsub.s32 4, %v3764
    %v3789 = vsel %vm3704, %v3788, %v3764
    %v3790 = vsel %vm3703, %v1324, %v3787
    %v3791 = vsel %vm3703, 0, %v3789
    %v3792 = vcosq.f32.pop %v3790
    %v3793 = vsinq.f32.pop %v3790
    %vm3794 = vweird.f32 %v1324
    %v3795 = vand.u32 %v3791, 3
    %vm3796 = vcmp.lt.s32.totalorder %v3795, 2
    %vm3797 = vcmp.eq.s32.totalorder %v3795, 0
    %v3798 = vxor.u32 %v3793, 2147483648
    %v3799 = vsel %vm3797, %v3792, %v3798
    %vm3800 = vcmp.eq.s32.totalorder %v3795, 2
    %v3801 = vxor.u32 %v3792, 2147483648
    %v3802 = vsel %vm3800, %v3801, %v3793
    %v3803 = vsel %vm3796, %v3799, %v3802
    %v3804 = vsel %vm3794, nan, %v3803
    %v3805 = vand.u32 2147483647, %v1325
    %vm3806 = vcmp.le.f32.partialorder %v3805, 0.7853982
    %vm3807 = vcmp.lt.s32.totalorder %v1325, 0
    %v3808 = vand.u32 %v1325, 2139095040
    %v3809 = vshrl.u32 %v3808, 23
    %v3810 = vsub.s32 %v3809, 127
    %v3811 = vand.u32 2147483647, %v1325
    %v3812 = vand.u32 %v3811, 8388607
    %v3813 = vor.u32 %v3812, 8388608
    %v3814 = vsub.s32 0, %v3813
    %v3815 = vadd.s32 %v3810, 1
    %vm3816 = vcmp.gt.s32.totalorder %v3815, 0
    %v3817 = vsel %vm3816, %v3815, 0
    %v3818 = vshrl.u32 %v3817, 5
    %v3819 = vand.u32 %v3817, 31
    %v3820 = vsub.s32 32, %v3819
    %v3821 = vshrl.u32 683565275, %v3820
    %v3822 = vshll.u32 683565275, %v3819
    %v3823 = vshrl.u32 2475754826, %v3820
    %v3824 = vor.u32 %v3822, %v3823
    %v3825 = vshll.u32 2475754826, %v3819
    %v3826 = vshrl.u32 2131351028, %v3820
    %v3827 = vor.u32 %v3825, %v3826
    %v3828 = vshll.u32 2131351028, %v3819
    %v3829 = vshrl.u32 2102212464, %v3820
    %v3830 = vor.u32 %v3828, %v3829
    %v3831 = vshll.u32 2102212464, %v3819
    %v3832 = vshrl.u32 920167782, %v3820
    %v3833 = vor.u32 %v3831, %v3832
    %v3834 = vshll.u32 920167782, %v3819
    %v3835 = vshrl.u32 1326507024, %v3820
    %v3836 = vor.u32 %v3834, %v3835
    %vm3837 = vcmp.lt.s32.totalorder %v3818, 1
    %vm3838 = vcmp.lt.s32.totalorder %v3818, 2
    %vm3839 = vcmp.lt.s32.totalorder %v3818, 3
    %vm3840 = vcmp.lt.s32.totalorder %v3818, 4
    %v3841 = vsel %vm3837, %v3821, %v3824
    %v3842 = vsel %vm3840, %v3830, 2102212464
    %v3843 = vsel %vm3839, %v3827, %v3842
    %v3844 = vsel %vm3838, %v3841, %v3843
    %v3845 = vsel %vm3837, %v3824, %v3827
    %v3846 = vsel %vm3840, %v3833, 920167782
    %v3847 = vsel %vm3839, %v3830, %v3846
    %v3848 = vsel %vm3838, %v3845, %v3847
    %v3849 = vsel %vm3837, %v3827, %v3830
    %v3850 = vsel %vm3840, %v3836, 1326507024
    %v3851 = vsel %vm3839, %v3833, %v3850
    %v3852 = vsel %vm3838, %v3849, %v3851
    %v3853 = vshll.u32 %v3813, 8
    %v3854 = vmul.u32.u64.compose %v3853, %v3852
    %v3855 = vextract.low.u32 %v3854
    %v3856 = vextract.high.u32 %v3854
    %v3857 = vmul.u32.u64.compose %v3853, %v3848
    %v3858 = vextract.low.u32 %v3857
    %v3859 = vextract.high.u32 %v3857
    %v3860 = vmul.u32 %v3853, %v3844
    %v3861 = vadd.s32 %v3856, %v3858
    %vm3862 = vc.u32 %v3856, %v3858
    %v3863 = vadd.s32 %v3859, 1
    %v3864 = vsel %vm3862, %v3863, %v3859
    %v3865 = vadd.s32 %v3860, %v3864
    %v3866 = vadd.s32 %v3865, 536870912
    %v3867 = vshrl.u32 %v3866, 30
    %v3868 = vshll.u32 %v3867, 30
    %v3869 = vsub.s32 %v3865, %v3868
    %vm3870 = vcmp.lt.s32.totalorder %v3869, 0
    %v3871 = vsub.s32 0, %v3869
    %v3872 = vsel %vm3870, %v3871, %v3869
    %v3873 = vclz %v3872
    %v3874 = vsub.s32 %v3873, 2
    %vm3875 = vcmp.gt.s32.totalorder 0, %v3874
    %v3876 = vsel %vm3875, 0, %v3874
    %v3877 = vsub.s32 32, %v3876
    %v3878 = vshll.u32 %v3869, %v3876
    %v3879 = vshrl.u32 %v3861, %v3877
    %v3880 = vor.u32 %v3878, %v3879
    %v3881 = vsub.s32 4294967266, %v3876
    %v3882 = vadd.s32 %v3881, 127
    %v3883 = vshll.u32 %v3882, 23
    %v3884 = vor.u32 4788187, %v3883
    %v3885 = vand.u32 2147483647, %v3884
    %v3887 = vcvt.s32.f32 %v3880
    %v3888 = vmul.f32 %v3887, %v3885
    %v3889 = vxor.u32 %v3888, 2147483648
    %v3890 = vsel %vm3807, %v3889, %v3888
    %v3891 = vsub.s32 4, %v3867
    %v3892 = vsel %vm3807, %v3891, %v3867
    %v3893 = vsel %vm3806, %v1325, %v3890
    %v3894 = vsel %vm3806, 0, %v3892
    %v3895 = vcosq.f32.pop %v3893
    %v3896 = vsinq.f32.pop %v3893
    %vm3897 = vweird.f32 %v1325
    %v3898 = vand.u32 %v3894, 3
    %vm3899 = vcmp.lt.s32.totalorder %v3898, 2
    %vm3900 = vcmp.eq.s32.totalorder %v3898, 0
    %v3901 = vxor.u32 %v3896, 2147483648
    %v3902 = vsel %vm3900, %v3895, %v3901
    %vm3903 = vcmp.eq.s32.totalorder %v3898, 2
    %v3904 = vxor.u32 %v3895, 2147483648
    %v3905 = vsel %vm3903, %v3904, %v3896
    %v3906 = vsel %vm3899, %v3902, %v3905
    %v3907 = vsel %vm3897, nan, %v3906
    %v3908 = vand.u32 2147483647, %v1326
    %vm3909 = vcmp.le.f32.partialorder %v3908, 0.7853982
    %vm3910 = vcmp.lt.s32.totalorder %v1326, 0
    %v3911 = vand.u32 %v1326, 2139095040
    %v3912 = vshrl.u32 %v3911, 23
    %v3913 = vsub.s32 %v3912, 127
    %v3914 = vand.u32 2147483647, %v1326
    %v3915 = vand.u32 %v3914, 8388607
    %v3916 = vor.u32 %v3915, 8388608
    %v3917 = vsub.s32 0, %v3916
    %v3918 = vadd.s32 %v3913, 1
    %vm3919 = vcmp.gt.s32.totalorder %v3918, 0
    %v3920 = vsel %vm3919, %v3918, 0
    %v3921 = vshrl.u32 %v3920, 5
    %v3922 = vand.u32 %v3920, 31
    %v3923 = vsub.s32 32, %v3922
    %v3924 = vshrl.u32 683565275, %v3923
    %v3925 = vshll.u32 683565275, %v3922
    %v3926 = vshrl.u32 2475754826, %v3923
    %v3927 = vor.u32 %v3925, %v3926
    %v3928 = vshll.u32 2475754826, %v3922
    %v3929 = vshrl.u32 2131351028, %v3923
    %v3930 = vor.u32 %v3928, %v3929
    %v3931 = vshll.u32 2131351028, %v3922
    %v3932 = vshrl.u32 2102212464, %v3923
    %v3933 = vor.u32 %v3931, %v3932
    %v3934 = vshll.u32 2102212464, %v3922
    %v3935 = vshrl.u32 920167782, %v3923
    %v3936 = vor.u32 %v3934, %v3935
    %v3937 = vshll.u32 920167782, %v3922
    %v3938 = vshrl.u32 1326507024, %v3923
    %v3939 = vor.u32 %v3937, %v3938
    %vm3940 = vcmp.lt.s32.totalorder %v3921, 1
    %vm3941 = vcmp.lt.s32.totalorder %v3921, 2
    %vm3942 = vcmp.lt.s32.totalorder %v3921, 3
    %vm3943 = vcmp.lt.s32.totalorder %v3921, 4
    %v3944 = vsel %vm3940, %v3924, %v3927
    %v3945 = vsel %vm3943, %v3933, 2102212464
    %v3946 = vsel %vm3942, %v3930, %v3945
    %v3947 = vsel %vm3941, %v3944, %v3946
    %v3948 = vsel %vm3940, %v3927, %v3930
    %v3949 = vsel %vm3943, %v3936, 920167782
    %v3950 = vsel %vm3942, %v3933, %v3949
    %v3951 = vsel %vm3941, %v3948, %v3950
    %v3952 = vsel %vm3940, %v3930, %v3933
    %v3953 = vsel %vm3943, %v3939, 1326507024
    %v3954 = vsel %vm3942, %v3936, %v3953
    %v3955 = vsel %vm3941, %v3952, %v3954
    %v3956 = vshll.u32 %v3916, 8
    %v3957 = vmul.u32.u64.compose %v3956, %v3955
    %v3958 = vextract.low.u32 %v3957
    %v3959 = vextract.high.u32 %v3957
    %v3960 = vmul.u32.u64.compose %v3956, %v3951
    %v3961 = vextract.low.u32 %v3960
    %v3962 = vextract.high.u32 %v3960
    %v3963 = vmul.u32 %v3956, %v3947
    %v3964 = vadd.s32 %v3959, %v3961
    %vm3965 = vc.u32 %v3959, %v3961
    %v3966 = vadd.s32 %v3962, 1
    %v3967 = vsel %vm3965, %v3966, %v3962
    %v3968 = vadd.s32 %v3963, %v3967
    %v3969 = vadd.s32 %v3968, 536870912
    %v3970 = vshrl.u32 %v3969, 30
    %v3971 = vshll.u32 %v3970, 30
    %v3972 = vsub.s32 %v3968, %v3971
    %vm3973 = vcmp.lt.s32.totalorder %v3972, 0
    %v3974 = vsub.s32 0, %v3972
    %v3975 = vsel %vm3973, %v3974, %v3972
    %v3976 = vclz %v3975
    %v3977 = vsub.s32 %v3976, 2
    %vm3978 = vcmp.gt.s32.totalorder 0, %v3977
    %v3979 = vsel %vm3978, 0, %v3977
    %v3980 = vsub.s32 32, %v3979
    %v3981 = vshll.u32 %v3972, %v3979
    %v3982 = vshrl.u32 %v3964, %v3980
    %v3983 = vor.u32 %v3981, %v3982
    %v3984 = vsub.s32 4294967266, %v3979
    %v3985 = vadd.s32 %v3984, 127
    %v3986 = vshll.u32 %v3985, 23
    %v3987 = vor.u32 4788187, %v3986
    %v3988 = vand.u32 2147483647, %v3987
    %v3990 = vcvt.s32.f32 %v3983
    %v3991 = vmul.f32 %v3990, %v3988
    %v3992 = vxor.u32 %v3991, 2147483648
    %v3993 = vsel %vm3910, %v3992, %v3991
    %v3994 = vsub.s32 4, %v3970
    %v3995 = vsel %vm3910, %v3994, %v3970
    %v3996 = vsel %vm3909, %v1326, %v3993
    %v3997 = vsel %vm3909, 0, %v3995
    %v3998 = vcosq.f32.pop %v3996
    %v3999 = vsinq.f32.pop %v3996
    %vm4000 = vweird.f32 %v1326
    %v4001 = vand.u32 %v3997, 3
    %vm4002 = vcmp.lt.s32.totalorder %v4001, 2
    %vm4003 = vcmp.eq.s32.totalorder %v4001, 0
    %v4004 = vxor.u32 %v3999, 2147483648
    %v4005 = vsel %vm4003, %v3998, %v4004
    %vm4006 = vcmp.eq.s32.totalorder %v4001, 2
    %v4007 = vxor.u32 %v3998, 2147483648
    %v4008 = vsel %vm4006, %v4007, %v3999
    %v4009 = vsel %vm4002, %v4005, %v4008
    %v4010 = vsel %vm4000, nan, %v4009
    %v4011 = vand.u32 2147483647, %v1327
    %vm4012 = vcmp.le.f32.partialorder %v4011, 0.7853982
    %vm4013 = vcmp.lt.s32.totalorder %v1327, 0
    %v4014 = vand.u32 %v1327, 2139095040
    %v4015 = vshrl.u32 %v4014, 23
    %v4016 = vsub.s32 %v4015, 127
    %v4017 = vand.u32 2147483647, %v1327
    %v4018 = vand.u32 %v4017, 8388607
    %v4019 = vor.u32 %v4018, 8388608
    %v4020 = vsub.s32 0, %v4019
    %v4021 = vadd.s32 %v4016, 1
    %vm4022 = vcmp.gt.s32.totalorder %v4021, 0
    %v4023 = vsel %vm4022, %v4021, 0
    %v4024 = vshrl.u32 %v4023, 5
    %v4025 = vand.u32 %v4023, 31
    %v4026 = vsub.s32 32, %v4025
    %v4027 = vshrl.u32 683565275, %v4026
    %v4028 = vshll.u32 683565275, %v4025
    %v4029 = vshrl.u32 2475754826, %v4026
    %v4030 = vor.u32 %v4028, %v4029
    %v4031 = vshll.u32 2475754826, %v4025
    %v4032 = vshrl.u32 2131351028, %v4026
    %v4033 = vor.u32 %v4031, %v4032
    %v4034 = vshll.u32 2131351028, %v4025
    %v4035 = vshrl.u32 2102212464, %v4026
    %v4036 = vor.u32 %v4034, %v4035
    %v4037 = vshll.u32 2102212464, %v4025
    %v4038 = vshrl.u32 920167782, %v4026
    %v4039 = vor.u32 %v4037, %v4038
    %v4040 = vshll.u32 920167782, %v4025
    %v4041 = vshrl.u32 1326507024, %v4026
    %v4042 = vor.u32 %v4040, %v4041
    %vm4043 = vcmp.lt.s32.totalorder %v4024, 1
    %vm4044 = vcmp.lt.s32.totalorder %v4024, 2
    %vm4045 = vcmp.lt.s32.totalorder %v4024, 3
    %vm4046 = vcmp.lt.s32.totalorder %v4024, 4
    %v4047 = vsel %vm4043, %v4027, %v4030
    %v4048 = vsel %vm4046, %v4036, 2102212464
    %v4049 = vsel %vm4045, %v4033, %v4048
    %v4050 = vsel %vm4044, %v4047, %v4049
    %v4051 = vsel %vm4043, %v4030, %v4033
    %v4052 = vsel %vm4046, %v4039, 920167782
    %v4053 = vsel %vm4045, %v4036, %v4052
    %v4054 = vsel %vm4044, %v4051, %v4053
    %v4055 = vsel %vm4043, %v4033, %v4036
    %v4056 = vsel %vm4046, %v4042, 1326507024
    %v4057 = vsel %vm4045, %v4039, %v4056
    %v4058 = vsel %vm4044, %v4055, %v4057
    %v4059 = vshll.u32 %v4019, 8
    %v4060 = vmul.u32.u64.compose %v4059, %v4058
    %v4061 = vextract.low.u32 %v4060
    %v4062 = vextract.high.u32 %v4060
    %v4063 = vmul.u32.u64.compose %v4059, %v4054
    %v4064 = vextract.low.u32 %v4063
    %v4065 = vextract.high.u32 %v4063
    %v4066 = vmul.u32 %v4059, %v4050
    %v4067 = vadd.s32 %v4062, %v4064
    %vm4068 = vc.u32 %v4062, %v4064
    %v4069 = vadd.s32 %v4065, 1
    %v4070 = vsel %vm4068, %v4069, %v4065
    %v4071 = vadd.s32 %v4066, %v4070
    %v4072 = vadd.s32 %v4071, 536870912
    %v4073 = vshrl.u32 %v4072, 30
    %v4074 = vshll.u32 %v4073, 30
    %v4075 = vsub.s32 %v4071, %v4074
    %vm4076 = vcmp.lt.s32.totalorder %v4075, 0
    %v4077 = vsub.s32 0, %v4075
    %v4078 = vsel %vm4076, %v4077, %v4075
    %v4079 = vclz %v4078
    %v4080 = vsub.s32 %v4079, 2
    %vm4081 = vcmp.gt.s32.totalorder 0, %v4080
    %v4082 = vsel %vm4081, 0, %v4080
    %v4083 = vsub.s32 32, %v4082
    %v4084 = vshll.u32 %v4075, %v4082
    %v4085 = vshrl.u32 %v4067, %v4083
    %v4086 = vor.u32 %v4084, %v4085
    %v4087 = vsub.s32 4294967266, %v4082
    %v4088 = vadd.s32 %v4087, 127
    %v4089 = vshll.u32 %v4088, 23
    %v4090 = vor.u32 4788187, %v4089
    %v4091 = vand.u32 2147483647, %v4090
    %v4093 = vcvt.s32.f32 %v4086
    %v4094 = vmul.f32 %v4093, %v4091
    %v4095 = vxor.u32 %v4094, 2147483648
    %v4096 = vsel %vm4013, %v4095, %v4094
    %v4097 = vsub.s32 4, %v4073
    %v4098 = vsel %vm4013, %v4097, %v4073
    %v4099 = vsel %vm4012, %v1327, %v4096
    %v4100 = vsel %vm4012, 0, %v4098
    %v4101 = vcosq.f32.pop %v4099
    %v4102 = vsinq.f32.pop %v4099
    %vm4103 = vweird.f32 %v1327
    %v4104 = vand.u32 %v4100, 3
    %vm4105 = vcmp.lt.s32.totalorder %v4104, 2
    %vm4106 = vcmp.eq.s32.totalorder %v4104, 0
    %v4107 = vxor.u32 %v4102, 2147483648
    %v4108 = vsel %vm4106, %v4101, %v4107
    %vm4109 = vcmp.eq.s32.totalorder %v4104, 2
    %v4110 = vxor.u32 %v4101, 2147483648
    %v4111 = vsel %vm4109, %v4110, %v4102
    %v4112 = vsel %vm4105, %v4108, %v4111
    %v4113 = vsel %vm4103, nan, %v4112
    %v4114 = vand.u32 2147483647, %v1328
    %vm4115 = vcmp.le.f32.partialorder %v4114, 0.7853982
    %vm4116 = vcmp.lt.s32.totalorder %v1328, 0
    %v4117 = vand.u32 %v1328, 2139095040
    %v4118 = vshrl.u32 %v4117, 23
    %v4119 = vsub.s32 %v4118, 127
    %v4120 = vand.u32 2147483647, %v1328
    %v4121 = vand.u32 %v4120, 8388607
    %v4122 = vor.u32 %v4121, 8388608
    %v4123 = vsub.s32 0, %v4122
    %v4124 = vadd.s32 %v4119, 1
    %vm4125 = vcmp.gt.s32.totalorder %v4124, 0
    %v4126 = vsel %vm4125, %v4124, 0
    %v4127 = vshrl.u32 %v4126, 5
    %v4128 = vand.u32 %v4126, 31
    %v4129 = vsub.s32 32, %v4128
    %v4130 = vshrl.u32 683565275, %v4129
    %v4131 = vshll.u32 683565275, %v4128
    %v4132 = vshrl.u32 2475754826, %v4129
    %v4133 = vor.u32 %v4131, %v4132
    %v4134 = vshll.u32 2475754826, %v4128
    %v4135 = vshrl.u32 2131351028, %v4129
    %v4136 = vor.u32 %v4134, %v4135
    %v4137 = vshll.u32 2131351028, %v4128
    %v4138 = vshrl.u32 2102212464, %v4129
    %v4139 = vor.u32 %v4137, %v4138
    %v4140 = vshll.u32 2102212464, %v4128
    %v4141 = vshrl.u32 920167782, %v4129
    %v4142 = vor.u32 %v4140, %v4141
    %v4143 = vshll.u32 920167782, %v4128
    %v4144 = vshrl.u32 1326507024, %v4129
    %v4145 = vor.u32 %v4143, %v4144
    %vm4146 = vcmp.lt.s32.totalorder %v4127, 1
    %vm4147 = vcmp.lt.s32.totalorder %v4127, 2
    %vm4148 = vcmp.lt.s32.totalorder %v4127, 3
    %vm4149 = vcmp.lt.s32.totalorder %v4127, 4
    %v4150 = vsel %vm4146, %v4130, %v4133
    %v4151 = vsel %vm4149, %v4139, 2102212464
    %v4152 = vsel %vm4148, %v4136, %v4151
    %v4153 = vsel %vm4147, %v4150, %v4152
    %v4154 = vsel %vm4146, %v4133, %v4136
    %v4155 = vsel %vm4149, %v4142, 920167782
    %v4156 = vsel %vm4148, %v4139, %v4155
    %v4157 = vsel %vm4147, %v4154, %v4156
    %v4158 = vsel %vm4146, %v4136, %v4139
    %v4159 = vsel %vm4149, %v4145, 1326507024
    %v4160 = vsel %vm4148, %v4142, %v4159
    %v4161 = vsel %vm4147, %v4158, %v4160
    %v4162 = vshll.u32 %v4122, 8
    %v4163 = vmul.u32.u64.compose %v4162, %v4161
    %v4164 = vextract.low.u32 %v4163
    %v4165 = vextract.high.u32 %v4163
    %v4166 = vmul.u32.u64.compose %v4162, %v4157
    %v4167 = vextract.low.u32 %v4166
    %v4168 = vextract.high.u32 %v4166
    %v4169 = vmul.u32 %v4162, %v4153
    %v4170 = vadd.s32 %v4165, %v4167
    %vm4171 = vc.u32 %v4165, %v4167
    %v4172 = vadd.s32 %v4168, 1
    %v4173 = vsel %vm4171, %v4172, %v4168
    %v4174 = vadd.s32 %v4169, %v4173
    %v4175 = vadd.s32 %v4174, 536870912
    %v4176 = vshrl.u32 %v4175, 30
    %v4177 = vshll.u32 %v4176, 30
    %v4178 = vsub.s32 %v4174, %v4177
    %vm4179 = vcmp.lt.s32.totalorder %v4178, 0
    %v4180 = vsub.s32 0, %v4178
    %v4181 = vsel %vm4179, %v4180, %v4178
    %v4182 = vclz %v4181
    %v4183 = vsub.s32 %v4182, 2
    %vm4184 = vcmp.gt.s32.totalorder 0, %v4183
    %v4185 = vsel %vm4184, 0, %v4183
    %v4186 = vsub.s32 32, %v4185
    %v4187 = vshll.u32 %v4178, %v4185
    %v4188 = vshrl.u32 %v4170, %v4186
    %v4189 = vor.u32 %v4187, %v4188
    %v4190 = vsub.s32 4294967266, %v4185
    %v4191 = vadd.s32 %v4190, 127
    %v4192 = vshll.u32 %v4191, 23
    %v4193 = vor.u32 4788187, %v4192
    %v4194 = vand.u32 2147483647, %v4193
    %v4196 = vcvt.s32.f32 %v4189
    %v4197 = vmul.f32 %v4196, %v4194
    %v4198 = vxor.u32 %v4197, 2147483648
    %v4199 = vsel %vm4116, %v4198, %v4197
    %v4200 = vsub.s32 4, %v4176
    %v4201 = vsel %vm4116, %v4200, %v4176
    %v4202 = vsel %vm4115, %v1328, %v4199
    %v4203 = vsel %vm4115, 0, %v4201
    %v4204 = vcosq.f32.pop %v4202
    %v4205 = vsinq.f32.pop %v4202
    %vm4206 = vweird.f32 %v1328
    %v4207 = vand.u32 %v4203, 3
    %vm4208 = vcmp.lt.s32.totalorder %v4207, 2
    %vm4209 = vcmp.eq.s32.totalorder %v4207, 0
    %v4210 = vxor.u32 %v4205, 2147483648
    %v4211 = vsel %vm4209, %v4204, %v4210
    %vm4212 = vcmp.eq.s32.totalorder %v4207, 2
    %v4213 = vxor.u32 %v4204, 2147483648
    %v4214 = vsel %vm4212, %v4213, %v4205
    %v4215 = vsel %vm4208, %v4211, %v4214
    %v4216 = vsel %vm4206, nan, %v4215
    %v4217 = vand.u32 2147483647, %v1329
    %vm4218 = vcmp.le.f32.partialorder %v4217, 0.7853982
    %vm4219 = vcmp.lt.s32.totalorder %v1329, 0
    %v4220 = vand.u32 %v1329, 2139095040
    %v4221 = vshrl.u32 %v4220, 23
    %v4222 = vsub.s32 %v4221, 127
    %v4223 = vand.u32 2147483647, %v1329
    %v4224 = vand.u32 %v4223, 8388607
    %v4225 = vor.u32 %v4224, 8388608
    %v4226 = vsub.s32 0, %v4225
    %v4227 = vadd.s32 %v4222, 1
    %vm4228 = vcmp.gt.s32.totalorder %v4227, 0
    %v4229 = vsel %vm4228, %v4227, 0
    %v4230 = vshrl.u32 %v4229, 5
    %v4231 = vand.u32 %v4229, 31
    %v4232 = vsub.s32 32, %v4231
    %v4233 = vshrl.u32 683565275, %v4232
    %v4234 = vshll.u32 683565275, %v4231
    %v4235 = vshrl.u32 2475754826, %v4232
    %v4236 = vor.u32 %v4234, %v4235
    %v4237 = vshll.u32 2475754826, %v4231
    %v4238 = vshrl.u32 2131351028, %v4232
    %v4239 = vor.u32 %v4237, %v4238
    %v4240 = vshll.u32 2131351028, %v4231
    %v4241 = vshrl.u32 2102212464, %v4232
    %v4242 = vor.u32 %v4240, %v4241
    %v4243 = vshll.u32 2102212464, %v4231
    %v4244 = vshrl.u32 920167782, %v4232
    %v4245 = vor.u32 %v4243, %v4244
    %v4246 = vshll.u32 920167782, %v4231
    %v4247 = vshrl.u32 1326507024, %v4232
    %v4248 = vor.u32 %v4246, %v4247
    %vm4249 = vcmp.lt.s32.totalorder %v4230, 1
    %vm4250 = vcmp.lt.s32.totalorder %v4230, 2
    %vm4251 = vcmp.lt.s32.totalorder %v4230, 3
    %vm4252 = vcmp.lt.s32.totalorder %v4230, 4
    %v4253 = vsel %vm4249, %v4233, %v4236
    %v4254 = vsel %vm4252, %v4242, 2102212464
    %v4255 = vsel %vm4251, %v4239, %v4254
    %v4256 = vsel %vm4250, %v4253, %v4255
    %v4257 = vsel %vm4249, %v4236, %v4239
    %v4258 = vsel %vm4252, %v4245, 920167782
    %v4259 = vsel %vm4251, %v4242, %v4258
    %v4260 = vsel %vm4250, %v4257, %v4259
    %v4261 = vsel %vm4249, %v4239, %v4242
    %v4262 = vsel %vm4252, %v4248, 1326507024
    %v4263 = vsel %vm4251, %v4245, %v4262
    %v4264 = vsel %vm4250, %v4261, %v4263
    %v4265 = vshll.u32 %v4225, 8
    %v4266 = vmul.u32.u64.compose %v4265, %v4264
    %v4267 = vextract.low.u32 %v4266
    %v4268 = vextract.high.u32 %v4266
    %v4269 = vmul.u32.u64.compose %v4265, %v4260
    %v4270 = vextract.low.u32 %v4269
    %v4271 = vextract.high.u32 %v4269
    %v4272 = vmul.u32 %v4265, %v4256
    %v4273 = vadd.s32 %v4268, %v4270
    %vm4274 = vc.u32 %v4268, %v4270
    %v4275 = vadd.s32 %v4271, 1
    %v4276 = vsel %vm4274, %v4275, %v4271
    %v4277 = vadd.s32 %v4272, %v4276
    %v4278 = vadd.s32 %v4277, 536870912
    %v4279 = vshrl.u32 %v4278, 30
    %v4280 = vshll.u32 %v4279, 30
    %v4281 = vsub.s32 %v4277, %v4280
    %vm4282 = vcmp.lt.s32.totalorder %v4281, 0
    %v4283 = vsub.s32 0, %v4281
    %v4284 = vsel %vm4282, %v4283, %v4281
    %v4285 = vclz %v4284
    %v4286 = vsub.s32 %v4285, 2
    %vm4287 = vcmp.gt.s32.totalorder 0, %v4286
    %v4288 = vsel %vm4287, 0, %v4286
    %v4289 = vsub.s32 32, %v4288
    %v4290 = vshll.u32 %v4281, %v4288
    %v4291 = vshrl.u32 %v4273, %v4289
    %v4292 = vor.u32 %v4290, %v4291
    %v4293 = vsub.s32 4294967266, %v4288
    %v4294 = vadd.s32 %v4293, 127
    %v4295 = vshll.u32 %v4294, 23
    %v4296 = vor.u32 4788187, %v4295
    %v4297 = vand.u32 2147483647, %v4296
    %v4299 = vcvt.s32.f32 %v4292
    %v4300 = vmul.f32 %v4299, %v4297
    %v4301 = vxor.u32 %v4300, 2147483648
    %v4302 = vsel %vm4219, %v4301, %v4300
    %v4303 = vsub.s32 4, %v4279
    %v4304 = vsel %vm4219, %v4303, %v4279
    %v4305 = vsel %vm4218, %v1329, %v4302
    %v4306 = vsel %vm4218, 0, %v4304
    %v4307 = vcosq.f32.pop %v4305
    %v4308 = vsinq.f32.pop %v4305
    %vm4309 = vweird.f32 %v1329
    %v4310 = vand.u32 %v4306, 3
    %vm4311 = vcmp.lt.s32.totalorder %v4310, 2
    %vm4312 = vcmp.eq.s32.totalorder %v4310, 0
    %v4313 = vxor.u32 %v4308, 2147483648
    %v4314 = vsel %vm4312, %v4307, %v4313
    %vm4315 = vcmp.eq.s32.totalorder %v4310, 2
    %v4316 = vxor.u32 %v4307, 2147483648
    %v4317 = vsel %vm4315, %v4316, %v4308
    %v4318 = vsel %vm4311, %v4314, %v4317
    %v4319 = vsel %vm4309, nan, %v4318
    %v4320 = vand.u32 2147483647, %v1330
    %vm4321 = vcmp.le.f32.partialorder %v4320, 0.7853982
    %vm4322 = vcmp.lt.s32.totalorder %v1330, 0
    %v4323 = vand.u32 %v1330, 2139095040
    %v4324 = vshrl.u32 %v4323, 23
    %v4325 = vsub.s32 %v4324, 127
    %v4326 = vand.u32 2147483647, %v1330
    %v4327 = vand.u32 %v4326, 8388607
    %v4328 = vor.u32 %v4327, 8388608
    %v4329 = vsub.s32 0, %v4328
    %v4330 = vadd.s32 %v4325, 1
    %vm4331 = vcmp.gt.s32.totalorder %v4330, 0
    %v4332 = vsel %vm4331, %v4330, 0
    %v4333 = vshrl.u32 %v4332, 5
    %v4334 = vand.u32 %v4332, 31
    %v4335 = vsub.s32 32, %v4334
    %v4336 = vshrl.u32 683565275, %v4335
    %v4337 = vshll.u32 683565275, %v4334
    %v4338 = vshrl.u32 2475754826, %v4335
    %v4339 = vor.u32 %v4337, %v4338
    %v4340 = vshll.u32 2475754826, %v4334
    %v4341 = vshrl.u32 2131351028, %v4335
    %v4342 = vor.u32 %v4340, %v4341
    %v4343 = vshll.u32 2131351028, %v4334
    %v4344 = vshrl.u32 2102212464, %v4335
    %v4345 = vor.u32 %v4343, %v4344
    %v4346 = vshll.u32 2102212464, %v4334
    %v4347 = vshrl.u32 920167782, %v4335
    %v4348 = vor.u32 %v4346, %v4347
    %v4349 = vshll.u32 920167782, %v4334
    %v4350 = vshrl.u32 1326507024, %v4335
    %v4351 = vor.u32 %v4349, %v4350
    %vm4352 = vcmp.lt.s32.totalorder %v4333, 1
    %vm4353 = vcmp.lt.s32.totalorder %v4333, 2
    %vm4354 = vcmp.lt.s32.totalorder %v4333, 3
    %vm4355 = vcmp.lt.s32.totalorder %v4333, 4
    %v4356 = vsel %vm4352, %v4336, %v4339
    %v4357 = vsel %vm4355, %v4345, 2102212464
    %v4358 = vsel %vm4354, %v4342, %v4357
    %v4359 = vsel %vm4353, %v4356, %v4358
    %v4360 = vsel %vm4352, %v4339, %v4342
    %v4361 = vsel %vm4355, %v4348, 920167782
    %v4362 = vsel %vm4354, %v4345, %v4361
    %v4363 = vsel %vm4353, %v4360, %v4362
    %v4364 = vsel %vm4352, %v4342, %v4345
    %v4365 = vsel %vm4355, %v4351, 1326507024
    %v4366 = vsel %vm4354, %v4348, %v4365
    %v4367 = vsel %vm4353, %v4364, %v4366
    %v4368 = vshll.u32 %v4328, 8
    %v4369 = vmul.u32.u64.compose %v4368, %v4367
    %v4370 = vextract.low.u32 %v4369
    %v4371 = vextract.high.u32 %v4369
    %v4372 = vmul.u32.u64.compose %v4368, %v4363
    %v4373 = vextract.low.u32 %v4372
    %v4374 = vextract.high.u32 %v4372
    %v4375 = vmul.u32 %v4368, %v4359
    %v4376 = vadd.s32 %v4371, %v4373
    %vm4377 = vc.u32 %v4371, %v4373
    %v4378 = vadd.s32 %v4374, 1
    %v4379 = vsel %vm4377, %v4378, %v4374
    %v4380 = vadd.s32 %v4375, %v4379
    %v4381 = vadd.s32 %v4380, 536870912
    %v4382 = vshrl.u32 %v4381, 30
    %v4383 = vshll.u32 %v4382, 30
    %v4384 = vsub.s32 %v4380, %v4383
    %vm4385 = vcmp.lt.s32.totalorder %v4384, 0
    %v4386 = vsub.s32 0, %v4384
    %v4387 = vsel %vm4385, %v4386, %v4384
    %v4388 = vclz %v4387
    %v4389 = vsub.s32 %v4388, 2
    %vm4390 = vcmp.gt.s32.totalorder 0, %v4389
    %v4391 = vsel %vm4390, 0, %v4389
    %v4392 = vsub.s32 32, %v4391
    %v4393 = vshll.u32 %v4384, %v4391
    %v4394 = vshrl.u32 %v4376, %v4392
    %v4395 = vor.u32 %v4393, %v4394
    %v4396 = vsub.s32 4294967266, %v4391
    %v4397 = vadd.s32 %v4396, 127
    %v4398 = vshll.u32 %v4397, 23
    %v4399 = vor.u32 4788187, %v4398
    %v4400 = vand.u32 2147483647, %v4399
    %v4402 = vcvt.s32.f32 %v4395
    %v4403 = vmul.f32 %v4402, %v4400
    %v4404 = vxor.u32 %v4403, 2147483648
    %v4405 = vsel %vm4322, %v4404, %v4403
    %v4406 = vsub.s32 4, %v4382
    %v4407 = vsel %vm4322, %v4406, %v4382
    %v4408 = vsel %vm4321, %v1330, %v4405
    %v4409 = vsel %vm4321, 0, %v4407
    %v4410 = vcosq.f32.pop %v4408
    %v4411 = vsinq.f32.pop %v4408
    %vm4412 = vweird.f32 %v1330
    %v4413 = vand.u32 %v4409, 3
    %vm4414 = vcmp.lt.s32.totalorder %v4413, 2
    %vm4415 = vcmp.eq.s32.totalorder %v4413, 0
    %v4416 = vxor.u32 %v4411, 2147483648
    %v4417 = vsel %vm4415, %v4410, %v4416
    %vm4418 = vcmp.eq.s32.totalorder %v4413, 2
    %v4419 = vxor.u32 %v4410, 2147483648
    %v4420 = vsel %vm4418, %v4419, %v4411
    %v4421 = vsel %vm4414, %v4417, %v4420
    %v4422 = vsel %vm4412, nan, %v4421
    %v4423 = vand.u32 2147483647, %v1331
    %vm4424 = vcmp.le.f32.partialorder %v4423, 0.7853982
    %vm4425 = vcmp.lt.s32.totalorder %v1331, 0
    %v4426 = vand.u32 %v1331, 2139095040
    %v4427 = vshrl.u32 %v4426, 23
    %v4428 = vsub.s32 %v4427, 127
    %v4429 = vand.u32 2147483647, %v1331
    %v4430 = vand.u32 %v4429, 8388607
    %v4431 = vor.u32 %v4430, 8388608
    %v4432 = vsub.s32 0, %v4431
    %v4433 = vadd.s32 %v4428, 1
    %vm4434 = vcmp.gt.s32.totalorder %v4433, 0
    %v4435 = vsel %vm4434, %v4433, 0
    %v4436 = vshrl.u32 %v4435, 5
    %v4437 = vand.u32 %v4435, 31
    %v4438 = vsub.s32 32, %v4437
    %v4439 = vshrl.u32 683565275, %v4438
    %v4440 = vshll.u32 683565275, %v4437
    %v4441 = vshrl.u32 2475754826, %v4438
    %v4442 = vor.u32 %v4440, %v4441
    %v4443 = vshll.u32 2475754826, %v4437
    %v4444 = vshrl.u32 2131351028, %v4438
    %v4445 = vor.u32 %v4443, %v4444
    %v4446 = vshll.u32 2131351028, %v4437
    %v4447 = vshrl.u32 2102212464, %v4438
    %v4448 = vor.u32 %v4446, %v4447
    %v4449 = vshll.u32 2102212464, %v4437
    %v4450 = vshrl.u32 920167782, %v4438
    %v4451 = vor.u32 %v4449, %v4450
    %v4452 = vshll.u32 920167782, %v4437
    %v4453 = vshrl.u32 1326507024, %v4438
    %v4454 = vor.u32 %v4452, %v4453
    %vm4455 = vcmp.lt.s32.totalorder %v4436, 1
    %vm4456 = vcmp.lt.s32.totalorder %v4436, 2
    %vm4457 = vcmp.lt.s32.totalorder %v4436, 3
    %vm4458 = vcmp.lt.s32.totalorder %v4436, 4
    %v4459 = vsel %vm4455, %v4439, %v4442
    %v4460 = vsel %vm4458, %v4448, 2102212464
    %v4461 = vsel %vm4457, %v4445, %v4460
    %v4462 = vsel %vm4456, %v4459, %v4461
    %v4463 = vsel %vm4455, %v4442, %v4445
    %v4464 = vsel %vm4458, %v4451, 920167782
    %v4465 = vsel %vm4457, %v4448, %v4464
    %v4466 = vsel %vm4456, %v4463, %v4465
    %v4467 = vsel %vm4455, %v4445, %v4448
    %v4468 = vsel %vm4458, %v4454, 1326507024
    %v4469 = vsel %vm4457, %v4451, %v4468
    %v4470 = vsel %vm4456, %v4467, %v4469
    %v4471 = vshll.u32 %v4431, 8
    %v4472 = vmul.u32.u64.compose %v4471, %v4470
    %v4473 = vextract.low.u32 %v4472
    %v4474 = vextract.high.u32 %v4472
    %v4475 = vmul.u32.u64.compose %v4471, %v4466
    %v4476 = vextract.low.u32 %v4475
    %v4477 = vextract.high.u32 %v4475
    %v4478 = vmul.u32 %v4471, %v4462
    %v4479 = vadd.s32 %v4474, %v4476
    %vm4480 = vc.u32 %v4474, %v4476
    %v4481 = vadd.s32 %v4477, 1
    %v4482 = vsel %vm4480, %v4481, %v4477
    %v4483 = vadd.s32 %v4478, %v4482
    %v4484 = vadd.s32 %v4483, 536870912
    %v4485 = vshrl.u32 %v4484, 30
    %v4486 = vshll.u32 %v4485, 30
    %v4487 = vsub.s32 %v4483, %v4486
    %vm4488 = vcmp.lt.s32.totalorder %v4487, 0
    %v4489 = vsub.s32 0, %v4487
    %v4490 = vsel %vm4488, %v4489, %v4487
    %v4491 = vclz %v4490
    %v4492 = vsub.s32 %v4491, 2
    %vm4493 = vcmp.gt.s32.totalorder 0, %v4492
    %v4494 = vsel %vm4493, 0, %v4492
    %v4495 = vsub.s32 32, %v4494
    %v4496 = vshll.u32 %v4487, %v4494
    %v4497 = vshrl.u32 %v4479, %v4495
    %v4498 = vor.u32 %v4496, %v4497
    %v4499 = vsub.s32 4294967266, %v4494
    %v4500 = vadd.s32 %v4499, 127
    %v4501 = vshll.u32 %v4500, 23
    %v4502 = vor.u32 4788187, %v4501
    %v4503 = vand.u32 2147483647, %v4502
    %v4505 = vcvt.s32.f32 %v4498
    %v4506 = vmul.f32 %v4505, %v4503
    %v4507 = vxor.u32 %v4506, 2147483648
    %v4508 = vsel %vm4425, %v4507, %v4506
    %v4509 = vsub.s32 4, %v4485
    %v4510 = vsel %vm4425, %v4509, %v4485
    %v4511 = vsel %vm4424, %v1331, %v4508
    %v4512 = vsel %vm4424, 0, %v4510
    %v4513 = vcosq.f32.pop %v4511
    %v4514 = vsinq.f32.pop %v4511
    %vm4515 = vweird.f32 %v1331
    %v4516 = vand.u32 %v4512, 3
    %vm4517 = vcmp.lt.s32.totalorder %v4516, 2
    %vm4518 = vcmp.eq.s32.totalorder %v4516, 0
    %v4519 = vxor.u32 %v4514, 2147483648
    %v4520 = vsel %vm4518, %v4513, %v4519
    %vm4521 = vcmp.eq.s32.totalorder %v4516, 2
    %v4522 = vxor.u32 %v4513, 2147483648
    %v4523 = vsel %vm4521, %v4522, %v4514
    %v4524 = vsel %vm4517, %v4520, %v4523
    %v4525 = vsel %vm4515, nan, %v4524
    %v4526 = vand.u32 2147483647, %v1332
    %vm4527 = vcmp.le.f32.partialorder %v4526, 0.7853982
    %vm4528 = vcmp.lt.s32.totalorder %v1332, 0
    %v4529 = vand.u32 %v1332, 2139095040
    %v4530 = vshrl.u32 %v4529, 23
    %v4531 = vsub.s32 %v4530, 127
    %v4532 = vand.u32 2147483647, %v1332
    %v4533 = vand.u32 %v4532, 8388607
    %v4534 = vor.u32 %v4533, 8388608
    %v4535 = vsub.s32 0, %v4534
    %v4536 = vadd.s32 %v4531, 1
    %vm4537 = vcmp.gt.s32.totalorder %v4536, 0
    %v4538 = vsel %vm4537, %v4536, 0
    %v4539 = vshrl.u32 %v4538, 5
    %v4540 = vand.u32 %v4538, 31
    %v4541 = vsub.s32 32, %v4540
    %v4542 = vshrl.u32 683565275, %v4541
    %v4543 = vshll.u32 683565275, %v4540
    %v4544 = vshrl.u32 2475754826, %v4541
    %v4545 = vor.u32 %v4543, %v4544
    %v4546 = vshll.u32 2475754826, %v4540
    %v4547 = vshrl.u32 2131351028, %v4541
    %v4548 = vor.u32 %v4546, %v4547
    %v4549 = vshll.u32 2131351028, %v4540
    %v4550 = vshrl.u32 2102212464, %v4541
    %v4551 = vor.u32 %v4549, %v4550
    %v4552 = vshll.u32 2102212464, %v4540
    %v4553 = vshrl.u32 920167782, %v4541
    %v4554 = vor.u32 %v4552, %v4553
    %v4555 = vshll.u32 920167782, %v4540
    %v4556 = vshrl.u32 1326507024, %v4541
    %v4557 = vor.u32 %v4555, %v4556
    %vm4558 = vcmp.lt.s32.totalorder %v4539, 1
    %vm4559 = vcmp.lt.s32.totalorder %v4539, 2
    %vm4560 = vcmp.lt.s32.totalorder %v4539, 3
    %vm4561 = vcmp.lt.s32.totalorder %v4539, 4
    %v4562 = vsel %vm4558, %v4542, %v4545
    %v4563 = vsel %vm4561, %v4551, 2102212464
    %v4564 = vsel %vm4560, %v4548, %v4563
    %v4565 = vsel %vm4559, %v4562, %v4564
    %v4566 = vsel %vm4558, %v4545, %v4548
    %v4567 = vsel %vm4561, %v4554, 920167782
    %v4568 = vsel %vm4560, %v4551, %v4567
    %v4569 = vsel %vm4559, %v4566, %v4568
    %v4570 = vsel %vm4558, %v4548, %v4551
    %v4571 = vsel %vm4561, %v4557, 1326507024
    %v4572 = vsel %vm4560, %v4554, %v4571
    %v4573 = vsel %vm4559, %v4570, %v4572
    %v4574 = vshll.u32 %v4534, 8
    %v4575 = vmul.u32.u64.compose %v4574, %v4573
    %v4576 = vextract.low.u32 %v4575
    %v4577 = vextract.high.u32 %v4575
    %v4578 = vmul.u32.u64.compose %v4574, %v4569
    %v4579 = vextract.low.u32 %v4578
    %v4580 = vextract.high.u32 %v4578
    %v4581 = vmul.u32 %v4574, %v4565
    %v4582 = vadd.s32 %v4577, %v4579
    %vm4583 = vc.u32 %v4577, %v4579
    %v4584 = vadd.s32 %v4580, 1
    %v4585 = vsel %vm4583, %v4584, %v4580
    %v4586 = vadd.s32 %v4581, %v4585
    %v4587 = vadd.s32 %v4586, 536870912
    %v4588 = vshrl.u32 %v4587, 30
    %v4589 = vshll.u32 %v4588, 30
    %v4590 = vsub.s32 %v4586, %v4589
    %vm4591 = vcmp.lt.s32.totalorder %v4590, 0
    %v4592 = vsub.s32 0, %v4590
    %v4593 = vsel %vm4591, %v4592, %v4590
    %v4594 = vclz %v4593
    %v4595 = vsub.s32 %v4594, 2
    %vm4596 = vcmp.gt.s32.totalorder 0, %v4595
    %v4597 = vsel %vm4596, 0, %v4595
    %v4598 = vsub.s32 32, %v4597
    %v4599 = vshll.u32 %v4590, %v4597
    %v4600 = vshrl.u32 %v4582, %v4598
    %v4601 = vor.u32 %v4599, %v4600
    %v4602 = vsub.s32 4294967266, %v4597
    %v4603 = vadd.s32 %v4602, 127
    %v4604 = vshll.u32 %v4603, 23
    %v4605 = vor.u32 4788187, %v4604
    %v4606 = vand.u32 2147483647, %v4605
    %v4608 = vcvt.s32.f32 %v4601
    %v4609 = vmul.f32 %v4608, %v4606
    %v4610 = vxor.u32 %v4609, 2147483648
    %v4611 = vsel %vm4528, %v4610, %v4609
    %v4612 = vsub.s32 4, %v4588
    %v4613 = vsel %vm4528, %v4612, %v4588
    %v4614 = vsel %vm4527, %v1332, %v4611
    %v4615 = vsel %vm4527, 0, %v4613
    %v4616 = vcosq.f32.pop %v4614
    %v4617 = vsinq.f32.pop %v4614
    %vm4618 = vweird.f32 %v1332
    %v4619 = vand.u32 %v4615, 3
    %vm4620 = vcmp.lt.s32.totalorder %v4619, 2
    %vm4621 = vcmp.eq.s32.totalorder %v4619, 0
    %v4622 = vxor.u32 %v4617, 2147483648
    %v4623 = vsel %vm4621, %v4616, %v4622
    %vm4624 = vcmp.eq.s32.totalorder %v4619, 2
    %v4625 = vxor.u32 %v4616, 2147483648
    %v4626 = vsel %vm4624, %v4625, %v4617
    %v4627 = vsel %vm4620, %v4623, %v4626
    %v4628 = vsel %vm4618, nan, %v4627
    %v4629 = vsel %vm898, %v1435, 0.0
    %4630 = vadd.xlane.f32.xlu0 %v4629
    %v4631 = vpop.xlane.xlu0 %4630
    %v4632 = vsel %vm898, %v1538, 0.0
    %4633 = vadd.xlane.f32.xlu0 %v4632
    %v4634 = vpop.xlane.xlu0 %4633
    %v4635 = vsel %vm898, %v1641, 0.0
    %4636 = vadd.xlane.f32.xlu0 %v4635
    %v4637 = vpop.xlane.xlu0 %4636
    %v4638 = vsel %vm898, %v1744, 0.0
    %4639 = vadd.xlane.f32.xlu0 %v4638
    %v4640 = vpop.xlane.xlu0 %4639
    %v4641 = vsel %vm898, %v1847, 0.0
    %4642 = vadd.xlane.f32.xlu0 %v4641
    %v4643 = vpop.xlane.xlu0 %4642
    %v4644 = vsel %vm898, %v1950, 0.0
    %4645 = vadd.xlane.f32.xlu0 %v4644
    %v4646 = vpop.xlane.xlu0 %4645
    %v4647 = vsel %vm898, %v2053, 0.0
    %4648 = vadd.xlane.f32.xlu0 %v4647
    %v4649 = vpop.xlane.xlu0 %4648
    %v4650 = vsel %vm898, %v2156, 0.0
    %4651 = vadd.xlane.f32.xlu0 %v4650
    %v4652 = vpop.xlane.xlu0 %4651
    %v4653 = vsel %vm898, %v2259, 0.0
    %4654 = vadd.xlane.f32.xlu0 %v4653
    %v4655 = vpop.xlane.xlu0 %4654
    %v4656 = vsel %vm898, %v2362, 0.0
    %4657 = vadd.xlane.f32.xlu0 %v4656
    %v4658 = vpop.xlane.xlu0 %4657
    %v4659 = vsel %vm898, %v2465, 0.0
    %4660 = vadd.xlane.f32.xlu0 %v4659
    %v4661 = vpop.xlane.xlu0 %4660
    %v4662 = vsel %vm898, %v2568, 0.0
    %4663 = vadd.xlane.f32.xlu0 %v4662
    %v4664 = vpop.xlane.xlu0 %4663
    %v4665 = vsel %vm898, %v2671, 0.0
    %4666 = vadd.xlane.f32.xlu0 %v4665
    %v4667 = vpop.xlane.xlu0 %4666
    %v4668 = vsel %vm898, %v2774, 0.0
    %4669 = vadd.xlane.f32.xlu0 %v4668
    %v4670 = vpop.xlane.xlu0 %4669
    %v4671 = vsel %vm898, %v2877, 0.0
    %4672 = vadd.xlane.f32.xlu0 %v4671
    %v4673 = vpop.xlane.xlu0 %4672
    %v4674 = vsel %vm898, %v2980, 0.0
    %4675 = vadd.xlane.f32.xlu0 %v4674
    %v4676 = vpop.xlane.xlu0 %4675
    %v4677 = vsel %vm898, %v3083, 0.0
    %4678 = vadd.xlane.f32.xlu0 %v4677
    %v4679 = vpop.xlane.xlu0 %4678
    %v4680 = vsel %vm898, %v3186, 0.0
    %4681 = vadd.xlane.f32.xlu0 %v4680
    %v4682 = vpop.xlane.xlu0 %4681
    %v4683 = vsel %vm898, %v3289, 0.0
    %4684 = vadd.xlane.f32.xlu0 %v4683
    %v4685 = vpop.xlane.xlu0 %4684
    %v4686 = vsel %vm898, %v3392, 0.0
    %4687 = vadd.xlane.f32.xlu0 %v4686
    %v4688 = vpop.xlane.xlu0 %4687
    %v4689 = vsel %vm898, %v3495, 0.0
    %4690 = vadd.xlane.f32.xlu0 %v4689
    %v4691 = vpop.xlane.xlu0 %4690
    %v4692 = vsel %vm898, %v3598, 0.0
    %4693 = vadd.xlane.f32.xlu0 %v4692
    %v4694 = vpop.xlane.xlu0 %4693
    %v4695 = vsel %vm898, %v3701, 0.0
    %4696 = vadd.xlane.f32.xlu0 %v4695
    %v4697 = vpop.xlane.xlu0 %4696
    %v4698 = vsel %vm898, %v3804, 0.0
    %4699 = vadd.xlane.f32.xlu0 %v4698
    %v4700 = vpop.xlane.xlu0 %4699
    %v4701 = vsel %vm898, %v3907, 0.0
    %4702 = vadd.xlane.f32.xlu0 %v4701
    %v4703 = vpop.xlane.xlu0 %4702
    %v4704 = vsel %vm898, %v4010, 0.0
    %4705 = vadd.xlane.f32.xlu0 %v4704
    %v4706 = vpop.xlane.xlu0 %4705
    %v4707 = vsel %vm898, %v4113, 0.0
    %4708 = vadd.xlane.f32.xlu0 %v4707
    %v4709 = vpop.xlane.xlu0 %4708
    %v4710 = vsel %vm898, %v4216, 0.0
    %4711 = vadd.xlane.f32.xlu0 %v4710
    %v4712 = vpop.xlane.xlu0 %4711
    %v4713 = vsel %vm898, %v4319, 0.0
    %4714 = vadd.xlane.f32.xlu0 %v4713
    %v4715 = vpop.xlane.xlu0 %4714
    %v4716 = vsel %vm898, %v4422, 0.0
    %4717 = vadd.xlane.f32.xlu0 %v4716
    %v4718 = vpop.xlane.xlu0 %4717
    %v4719 = vsel %vm898, %v4525, 0.0
    %4720 = vadd.xlane.f32.xlu0 %v4719
    %v4721 = vpop.xlane.xlu0 %4720
    %v4722 = vsel %vm898, %v4628, 0.0
    %4723 = vadd.xlane.f32.xlu0 %v4722
    %v4724 = vpop.xlane.xlu0 %4723
    %v4725 = vmul.f32 %v4631, 0.03125
    %v4726 = vmul.f32 %v4634, 0.03125
    %v4727 = vmul.f32 %v4637, 0.03125
    %v4728 = vmul.f32 %v4640, 0.03125
    %v4729 = vmul.f32 %v4643, 0.03125
    %v4730 = vmul.f32 %v4646, 0.03125
    %v4731 = vmul.f32 %v4649, 0.03125
    %v4732 = vmul.f32 %v4652, 0.03125
    %v4733 = vmul.f32 %v4655, 0.03125
    %v4734 = vmul.f32 %v4658, 0.03125
    %v4735 = vmul.f32 %v4661, 0.03125
    %v4736 = vmul.f32 %v4664, 0.03125
    %v4737 = vmul.f32 %v4667, 0.03125
    %v4738 = vmul.f32 %v4670, 0.03125
    %v4739 = vmul.f32 %v4673, 0.03125
    %v4740 = vmul.f32 %v4676, 0.03125
    %v4741 = vmul.f32 %v4679, 0.03125
    %v4742 = vmul.f32 %v4682, 0.03125
    %v4743 = vmul.f32 %v4685, 0.03125
    %v4744 = vmul.f32 %v4688, 0.03125
    %v4745 = vmul.f32 %v4691, 0.03125
    %v4746 = vmul.f32 %v4694, 0.03125
    %v4747 = vmul.f32 %v4697, 0.03125
    %v4748 = vmul.f32 %v4700, 0.03125
    %v4749 = vmul.f32 %v4703, 0.03125
    %v4750 = vmul.f32 %v4706, 0.03125
    %v4751 = vmul.f32 %v4709, 0.03125
    %v4752 = vmul.f32 %v4712, 0.03125
    %v4753 = vmul.f32 %v4715, 0.03125
    %v4754 = vmul.f32 %v4718, 0.03125
    %v4755 = vmul.f32 %v4721, 0.03125
    %v4756 = vmul.f32 %v4724, 0.03125
    %vm4757 = vcmp.eq.s32.totalorder %v243, 20
    %vm4758 = vcmp.eq.s32.totalorder %v244, 20
    %v4759 = vmul.f32 %v4725, %v1010
    %v4760 = vmul.f32 %v4726, %v1013
    %v4761 = vmul.f32 %v4727, %v1016
    %v4762 = vmul.f32 %v4728, %v1019
    %v4763 = vmul.f32 %v4729, %v1022
    %v4764 = vmul.f32 %v4730, %v1025
    %v4765 = vmul.f32 %v4731, %v1028
    %v4766 = vmul.f32 %v4732, %v1031
    %v4767 = vmul.f32 %v4733, %v1034
    %v4768 = vmul.f32 %v4734, %v1037
    %v4769 = vmul.f32 %v4735, %v1040
    %v4770 = vmul.f32 %v4736, %v1043
    %v4771 = vmul.f32 %v4737, %v1046
    %v4772 = vmul.f32 %v4738, %v1049
    %v4773 = vmul.f32 %v4739, %v1052
    %v4774 = vmul.f32 %v4740, %v1055
    %v4775 = vmul.f32 %v4741, %v1058
    %v4776 = vmul.f32 %v4742, %v1061
    %v4777 = vmul.f32 %v4743, %v1064
    %v4778 = vmul.f32 %v4744, %v1067
    %v4779 = vmul.f32 %v4745, %v1070
    %v4780 = vmul.f32 %v4746, %v1073
    %v4781 = vmul.f32 %v4747, %v1076
    %v4782 = vmul.f32 %v4748, %v1079
    %v4783 = vmul.f32 %v4749, %v1082
    %v4784 = vmul.f32 %v4750, %v1085
    %v4785 = vmul.f32 %v4751, %v1088
    %v4786 = vmul.f32 %v4752, %v1091
    %v4787 = vmul.f32 %v4753, %v1094
    %v4788 = vmul.f32 %v4754, %v1097
    %v4789 = vmul.f32 %v4755, %v1100
    %v4790 = vmul.f32 %v4756, %v1103
    %v4823 = vlaneseq
    %v4824 = vshrl.u32 %v4823, 7
    %v4825 = vsub.s32 %v248, %v4824
    %v4826 = vrot.slane %v4759, %v4825
    %v4827 = vadd.s32 %v248, 4294967288
    %v4828 = vlaneseq
    %v4829 = vshrl.u32 %v4828, 7
    %v4830 = vsub.s32 %v4827, %v4829
    %v4831 = vrot.slane %v4760, %v4830
    %vm4832 = vcmask 130112
    %v4833 = vsel %vm4832, %v4831, %v4826
    %v4834 = vlaneseq
    %v4835 = vshrl.u32 %v4834, 7
    %v4836 = vsub.s32 %v248, %v4835
    %v4837 = vrot.slane %v4761, %v4836
    %v4838 = vlaneseq
    %v4839 = vshrl.u32 %v4838, 7
    %v4840 = vsub.s32 %v4827, %v4839
    %v4841 = vrot.slane %v4762, %v4840
    %v4842 = vsel %vm4832, %v4841, %v4837
    %v4843 = vlaneseq
    %v4844 = vshrl.u32 %v4843, 7
    %v4845 = vsub.s32 %v248, %v4844
    %v4846 = vrot.slane %v4763, %v4845
    %v4847 = vlaneseq
    %v4848 = vshrl.u32 %v4847, 7
    %v4849 = vsub.s32 %v4827, %v4848
    %v4850 = vrot.slane %v4764, %v4849
    %v4851 = vsel %vm4832, %v4850, %v4846
    %v4852 = vlaneseq
    %v4853 = vshrl.u32 %v4852, 7
    %v4854 = vsub.s32 %v248, %v4853
    %v4855 = vrot.slane %v4765, %v4854
    %v4856 = vlaneseq
    %v4857 = vshrl.u32 %v4856, 7
    %v4858 = vsub.s32 %v4827, %v4857
    %v4859 = vrot.slane %v4766, %v4858
    %v4860 = vsel %vm4832, %v4859, %v4855
    %v4861 = vlaneseq
    %v4862 = vshrl.u32 %v4861, 7
    %v4863 = vsub.s32 %v248, %v4862
    %v4864 = vrot.slane %v4767, %v4863
    %v4865 = vlaneseq
    %v4866 = vshrl.u32 %v4865, 7
    %v4867 = vsub.s32 %v4827, %v4866
    %v4868 = vrot.slane %v4768, %v4867
    %v4869 = vsel %vm4832, %v4868, %v4864
    %v4870 = vlaneseq
    %v4871 = vshrl.u32 %v4870, 7
    %v4872 = vsub.s32 %v248, %v4871
    %v4873 = vrot.slane %v4769, %v4872
    %v4874 = vlaneseq
    %v4875 = vshrl.u32 %v4874, 7
    %v4876 = vsub.s32 %v4827, %v4875
    %v4877 = vrot.slane %v4770, %v4876
    %v4878 = vsel %vm4832, %v4877, %v4873
    %v4879 = vlaneseq
    %v4880 = vshrl.u32 %v4879, 7
    %v4881 = vsub.s32 %v248, %v4880
    %v4882 = vrot.slane %v4771, %v4881
    %v4883 = vlaneseq
    %v4884 = vshrl.u32 %v4883, 7
    %v4885 = vsub.s32 %v4827, %v4884
    %v4886 = vrot.slane %v4772, %v4885
    %v4887 = vsel %vm4832, %v4886, %v4882
    %v4888 = vlaneseq
    %v4889 = vshrl.u32 %v4888, 7
    %v4890 = vsub.s32 %v248, %v4889
    %v4891 = vrot.slane %v4773, %v4890
    %v4892 = vlaneseq
    %v4893 = vshrl.u32 %v4892, 7
    %v4894 = vsub.s32 %v4827, %v4893
    %v4895 = vrot.slane %v4774, %v4894
    %v4896 = vsel %vm4832, %v4895, %v4891
    %v4897 = vlaneseq
    %v4898 = vshrl.u32 %v4897, 7
    %v4899 = vsub.s32 %v248, %v4898
    %v4900 = vrot.slane %v4775, %v4899
    %v4901 = vlaneseq
    %v4902 = vshrl.u32 %v4901, 7
    %v4903 = vsub.s32 %v4827, %v4902
    %v4904 = vrot.slane %v4776, %v4903
    %v4905 = vsel %vm4832, %v4904, %v4900
    %v4906 = vlaneseq
    %v4907 = vshrl.u32 %v4906, 7
    %v4908 = vsub.s32 %v248, %v4907
    %v4909 = vrot.slane %v4777, %v4908
    %v4910 = vlaneseq
    %v4911 = vshrl.u32 %v4910, 7
    %v4912 = vsub.s32 %v4827, %v4911
    %v4913 = vrot.slane %v4778, %v4912
    %v4914 = vsel %vm4832, %v4913, %v4909
    %v4915 = vlaneseq
    %v4916 = vshrl.u32 %v4915, 7
    %v4917 = vsub.s32 %v248, %v4916
    %v4918 = vrot.slane %v4779, %v4917
    %v4919 = vlaneseq
    %v4920 = vshrl.u32 %v4919, 7
    %v4921 = vsub.s32 %v4827, %v4920
    %v4922 = vrot.slane %v4780, %v4921
    %v4923 = vsel %vm4832, %v4922, %v4918
    %v4924 = vlaneseq
    %v4925 = vshrl.u32 %v4924, 7
    %v4926 = vsub.s32 %v248, %v4925
    %v4927 = vrot.slane %v4781, %v4926
    %v4928 = vlaneseq
    %v4929 = vshrl.u32 %v4928, 7
    %v4930 = vsub.s32 %v4827, %v4929
    %v4931 = vrot.slane %v4782, %v4930
    %v4932 = vsel %vm4832, %v4931, %v4927
    %v4933 = vlaneseq
    %v4934 = vshrl.u32 %v4933, 7
    %v4935 = vsub.s32 %v248, %v4934
    %v4936 = vrot.slane %v4783, %v4935
    %v4937 = vlaneseq
    %v4938 = vshrl.u32 %v4937, 7
    %v4939 = vsub.s32 %v4827, %v4938
    %v4940 = vrot.slane %v4784, %v4939
    %v4941 = vsel %vm4832, %v4940, %v4936
    %v4942 = vlaneseq
    %v4943 = vshrl.u32 %v4942, 7
    %v4944 = vsub.s32 %v248, %v4943
    %v4945 = vrot.slane %v4785, %v4944
    %v4946 = vlaneseq
    %v4947 = vshrl.u32 %v4946, 7
    %v4948 = vsub.s32 %v4827, %v4947
    %v4949 = vrot.slane %v4786, %v4948
    %v4950 = vsel %vm4832, %v4949, %v4945
    %v4951 = vlaneseq
    %v4952 = vshrl.u32 %v4951, 7
    %v4953 = vsub.s32 %v248, %v4952
    %v4954 = vrot.slane %v4787, %v4953
    %v4955 = vlaneseq
    %v4956 = vshrl.u32 %v4955, 7
    %v4957 = vsub.s32 %v4827, %v4956
    %v4958 = vrot.slane %v4788, %v4957
    %v4959 = vsel %vm4832, %v4958, %v4954
    %v4960 = vlaneseq
    %v4961 = vshrl.u32 %v4960, 7
    %v4962 = vsub.s32 %v248, %v4961
    %v4963 = vrot.slane %v4789, %v4962
    %v4964 = vlaneseq
    %v4965 = vshrl.u32 %v4964, 7
    %v4966 = vsub.s32 %v4827, %v4965
    %v4967 = vrot.slane %v4790, %v4966
    %v4968 = vsel %vm4832, %v4967, %v4963
    %vm4969 = vcmask 1041409
    %v4970 = vsel %vm4969, %v4842, %v4833
    %vm4971 = vcmask 1042434
    %v4972 = vsel %vm4971, %v4851, %v4970
    %vm4973 = vcmask 1043459
    %v4974 = vsel %vm4973, %v4860, %v4972
    %vm4975 = vcmask 1044484
    %v4976 = vsel %vm4975, %v4869, %v4974
    %vm4977 = vcmask 1045509
    %v4978 = vsel %vm4977, %v4878, %v4976
    %vm4979 = vcmask 1046534
    %v4980 = vsel %vm4979, %v4887, %v4978
    %vm4981 = vcmask 1047559
    %v4982 = vsel %vm4981, %v4896, %v4980
    %v4983 = vsel %vm4969, %v4914, %v4905
    %v4984 = vsel %vm4971, %v4923, %v4983
    %v4985 = vsel %vm4973, %v4932, %v4984
    %v4986 = vsel %vm4975, %v4941, %v4985
    %v4987 = vsel %vm4977, %v4950, %v4986
    %v4988 = vsel %vm4979, %v4959, %v4987
    %v4989 = vsel %vm4981, %v4968, %v4988
    %v4992 = vsel %vm4757, -1e+30, %v4982
    %v4993 = vsel %vm4758, -1e+30, %v4989
    %vm4994 = vcmask 130048
    %v4995 = vsel %vm4994, %v4992, -inf
    %4996 = vmax.xlane.f32.xlu0 %v4995
    %v4997 = vpop.xlane.xlu0 %4996
    %v4998 = vsel %vm4994, %v4993, -inf
    %4999 = vmax.xlane.f32.xlu0 %v4998
    %v5000 = vpop.xlane.xlu0 %4999
    %v5001 = vsub.f32 %v4992, %v4997
    %v5002 = vsub.f32 %v4993, %v5000
    %v5003 = vmul.f32 %v5001, 1.442695
    %v5004 = vpow.pop %v5003
    %v5005 = vmul.f32 %v5002, 1.442695
    %v5006 = vpow.pop %v5005
    %v5007 = vsel %vm4994, %v5004, 0.0
    %5008 = vadd.xlane.f32.xlu0 %v5007
    %v5009 = vpop.xlane.xlu0 %5008
    %v5010 = vsel %vm4994, %v5006, 0.0
    %5011 = vadd.xlane.f32.xlu0 %v5010
    %v5012 = vpop.xlane.xlu0 %5011
    %v5013 = vrcp.pop %v5009
    %v5014 = vmul.f32 %v5004, %v5013
    %v5015 = vrcp.pop %v5012
    %v5016 = vmul.f32 %v5006, %v5015
    %v5017 = vlaneseq
    %v5018 = vshrl.u32 %v5017, 7
    %v5019 = vsub.s32 0, %v5018
    %v5020 = vrot.slane %v5014, %v5019
    %5022 = vbcast.lane.b32.xlu0 %v5020, 256
    %v5023 = vpop.permute.xlu0 %5022
    %s5025 = sor.u32 256, 8
    %5026 = vbcast.lane.b32.xlu0 %v5020, %s5025
    %v5027 = vpop.permute.xlu0 %5026
    %v5028 = vlaneseq
    %v5029 = vshrl.u32 %v5028, 7
    %v5030 = vsub.s32 1, %v5029
    %v5031 = vrot.slane %v5014, %v5030
    %5033 = vbcast.lane.b32.xlu0 %v5031, 256
    %v5034 = vpop.permute.xlu0 %5033
    %s5036 = sor.u32 256, 8
    %5037 = vbcast.lane.b32.xlu0 %v5031, %s5036
    %v5038 = vpop.permute.xlu0 %5037
    %v5039 = vlaneseq
    %v5040 = vshrl.u32 %v5039, 7
    %v5041 = vsub.s32 2, %v5040
    %v5042 = vrot.slane %v5014, %v5041
    %5044 = vbcast.lane.b32.xlu0 %v5042, 256
    %v5045 = vpop.permute.xlu0 %5044
    %s5047 = sor.u32 256, 8
    %5048 = vbcast.lane.b32.xlu0 %v5042, %s5047
    %v5049 = vpop.permute.xlu0 %5048
    %v5050 = vlaneseq
    %v5051 = vshrl.u32 %v5050, 7
    %v5052 = vsub.s32 3, %v5051
    %v5053 = vrot.slane %v5014, %v5052
    %5055 = vbcast.lane.b32.xlu0 %v5053, 256
    %v5056 = vpop.permute.xlu0 %5055
    %s5058 = sor.u32 256, 8
    %5059 = vbcast.lane.b32.xlu0 %v5053, %s5058
    %v5060 = vpop.permute.xlu0 %5059
    %v5061 = vlaneseq
    %v5062 = vshrl.u32 %v5061, 7
    %v5063 = vsub.s32 4, %v5062
    %v5064 = vrot.slane %v5014, %v5063
    %5066 = vbcast.lane.b32.xlu0 %v5064, 256
    %v5067 = vpop.permute.xlu0 %5066
    %s5069 = sor.u32 256, 8
    %5070 = vbcast.lane.b32.xlu0 %v5064, %s5069
    %v5071 = vpop.permute.xlu0 %5070
    %v5072 = vlaneseq
    %v5073 = vshrl.u32 %v5072, 7
    %v5074 = vsub.s32 5, %v5073
    %v5075 = vrot.slane %v5014, %v5074
    %5077 = vbcast.lane.b32.xlu0 %v5075, 256
    %v5078 = vpop.permute.xlu0 %5077
    %s5080 = sor.u32 256, 8
    %5081 = vbcast.lane.b32.xlu0 %v5075, %s5080
    %v5082 = vpop.permute.xlu0 %5081
    %v5083 = vlaneseq
    %v5084 = vshrl.u32 %v5083, 7
    %v5085 = vsub.s32 6, %v5084
    %v5086 = vrot.slane %v5014, %v5085
    %5088 = vbcast.lane.b32.xlu0 %v5086, 256
    %v5089 = vpop.permute.xlu0 %5088
    %s5091 = sor.u32 256, 8
    %5092 = vbcast.lane.b32.xlu0 %v5086, %s5091
    %v5093 = vpop.permute.xlu0 %5092
    %v5094 = vlaneseq
    %v5095 = vshrl.u32 %v5094, 7
    %v5096 = vsub.s32 7, %v5095
    %v5097 = vrot.slane %v5014, %v5096
    %5099 = vbcast.lane.b32.xlu0 %v5097, 256
    %v5100 = vpop.permute.xlu0 %5099
    %s5102 = sor.u32 256, 8
    %5103 = vbcast.lane.b32.xlu0 %v5097, %s5102
    %v5104 = vpop.permute.xlu0 %5103
    %v5105 = vlaneseq
    %v5106 = vshrl.u32 %v5105, 7
    %v5107 = vsub.s32 0, %v5106
    %v5108 = vrot.slane %v5016, %v5107
    %5110 = vbcast.lane.b32.xlu0 %v5108, 256
    %v5111 = vpop.permute.xlu0 %5110
    %s5113 = sor.u32 256, 8
    %5114 = vbcast.lane.b32.xlu0 %v5108, %s5113
    %v5115 = vpop.permute.xlu0 %5114
    %v5116 = vlaneseq
    %v5117 = vshrl.u32 %v5116, 7
    %v5118 = vsub.s32 1, %v5117
    %v5119 = vrot.slane %v5016, %v5118
    %5121 = vbcast.lane.b32.xlu0 %v5119, 256
    %v5122 = vpop.permute.xlu0 %5121
    %s5124 = sor.u32 256, 8
    %5125 = vbcast.lane.b32.xlu0 %v5119, %s5124
    %v5126 = vpop.permute.xlu0 %5125
    %v5127 = vlaneseq
    %v5128 = vshrl.u32 %v5127, 7
    %v5129 = vsub.s32 2, %v5128
    %v5130 = vrot.slane %v5016, %v5129
    %5132 = vbcast.lane.b32.xlu0 %v5130, 256
    %v5133 = vpop.permute.xlu0 %5132
    %s5135 = sor.u32 256, 8
    %5136 = vbcast.lane.b32.xlu0 %v5130, %s5135
    %v5137 = vpop.permute.xlu0 %5136
    %v5138 = vlaneseq
    %v5139 = vshrl.u32 %v5138, 7
    %v5140 = vsub.s32 3, %v5139
    %v5141 = vrot.slane %v5016, %v5140
    %5143 = vbcast.lane.b32.xlu0 %v5141, 256
    %v5144 = vpop.permute.xlu0 %5143
    %s5146 = sor.u32 256, 8
    %5147 = vbcast.lane.b32.xlu0 %v5141, %s5146
    %v5148 = vpop.permute.xlu0 %5147
    %v5149 = vlaneseq
    %v5150 = vshrl.u32 %v5149, 7
    %v5151 = vsub.s32 4, %v5150
    %v5152 = vrot.slane %v5016, %v5151
    %5154 = vbcast.lane.b32.xlu0 %v5152, 256
    %v5155 = vpop.permute.xlu0 %5154
    %s5157 = sor.u32 256, 8
    %5158 = vbcast.lane.b32.xlu0 %v5152, %s5157
    %v5159 = vpop.permute.xlu0 %5158
    %v5160 = vlaneseq
    %v5161 = vshrl.u32 %v5160, 7
    %v5162 = vsub.s32 5, %v5161
    %v5163 = vrot.slane %v5016, %v5162
    %5165 = vbcast.lane.b32.xlu0 %v5163, 256
    %v5166 = vpop.permute.xlu0 %5165
    %s5168 = sor.u32 256, 8
    %5169 = vbcast.lane.b32.xlu0 %v5163, %s5168
    %v5170 = vpop.permute.xlu0 %5169
    %v5171 = vlaneseq
    %v5172 = vshrl.u32 %v5171, 7
    %v5173 = vsub.s32 6, %v5172
    %v5174 = vrot.slane %v5016, %v5173
    %5176 = vbcast.lane.b32.xlu0 %v5174, 256
    %v5177 = vpop.permute.xlu0 %5176
    %s5179 = sor.u32 256, 8
    %5180 = vbcast.lane.b32.xlu0 %v5174, %s5179
    %v5181 = vpop.permute.xlu0 %5180
    %v5182 = vlaneseq
    %v5183 = vshrl.u32 %v5182, 7
    %v5184 = vsub.s32 7, %v5183
    %v5185 = vrot.slane %v5016, %v5184
    %5187 = vbcast.lane.b32.xlu0 %v5185, 256
    %v5188 = vpop.permute.xlu0 %5187
    %s5190 = sor.u32 256, 8
    %5191 = vbcast.lane.b32.xlu0 %v5185, %s5190
    %v5192 = vpop.permute.xlu0 %5191
    %v5193 = vmul.f32 %v5023, %v763
    %v5194 = vmul.f32 %v5027, %v764
    %v5195 = vmul.f32 %v5034, %v765
    %v5196 = vmul.f32 %v5038, %v766
    %v5197 = vmul.f32 %v5045, %v767
    %v5198 = vmul.f32 %v5049, %v768
    %v5199 = vmul.f32 %v5056, %v769
    %v5200 = vmul.f32 %v5060, %v770
    %v5201 = vmul.f32 %v5067, %v771
    %v5202 = vmul.f32 %v5071, %v772
    %v5203 = vmul.f32 %v5078, %v773
    %v5204 = vmul.f32 %v5082, %v774
    %v5205 = vmul.f32 %v5089, %v775
    %v5206 = vmul.f32 %v5093, %v776
    %v5207 = vmul.f32 %v5100, %v777
    %v5208 = vmul.f32 %v5104, %v778
    %v5209 = vmul.f32 %v5111, %v779
    %v5210 = vmul.f32 %v5115, %v780
    %v5211 = vmul.f32 %v5122, %v781
    %v5212 = vmul.f32 %v5126, %v782
    %v5213 = vmul.f32 %v5133, %v783
    %v5214 = vmul.f32 %v5137, %v784
    %v5215 = vmul.f32 %v5144, %v785
    %v5216 = vmul.f32 %v5148, %v786
    %v5217 = vmul.f32 %v5155, %v787
    %v5218 = vmul.f32 %v5159, %v788
    %v5219 = vmul.f32 %v5166, %v789
    %v5220 = vmul.f32 %v5170, %v790
    %v5221 = vmul.f32 %v5177, %v791
    %v5222 = vmul.f32 %v5181, %v792
    %v5223 = vmul.f32 %v5188, %v793
    %v5224 = vmul.f32 %v5192, %v794
    %v5225 = vsel %vm820, %v5193, 0.0
    %v5226 = vsel %vm820, %v5194, 0.0
    %v5227 = vadd.f32 %v5225, %v5226
    %v5228 = vrot.slane %v5227, 4
    %v5229 = vadd.f32 %v5227, %v5228
    %v5230 = vrot.slane %v5229, 2
    %v5231 = vadd.f32 %v5229, %v5230
    %v5232 = vrot.slane %v5231, 1
    %v5233 = vadd.f32 %v5231, %v5232
    %v5234 = vsel %vm820, %v5195, 0.0
    %v5235 = vsel %vm820, %v5196, 0.0
    %v5236 = vadd.f32 %v5234, %v5235
    %v5237 = vrot.slane %v5236, 4
    %v5238 = vadd.f32 %v5236, %v5237
    %v5239 = vrot.slane %v5238, 2
    %v5240 = vadd.f32 %v5238, %v5239
    %v5241 = vrot.slane %v5240, 1
    %v5242 = vadd.f32 %v5240, %v5241
    %v5243 = vsel %vm820, %v5197, 0.0
    %v5244 = vsel %vm820, %v5198, 0.0
    %v5245 = vadd.f32 %v5243, %v5244
    %v5246 = vrot.slane %v5245, 4
    %v5247 = vadd.f32 %v5245, %v5246
    %v5248 = vrot.slane %v5247, 2
    %v5249 = vadd.f32 %v5247, %v5248
    %v5250 = vrot.slane %v5249, 1
    %v5251 = vadd.f32 %v5249, %v5250
    %v5252 = vsel %vm820, %v5199, 0.0
    %v5253 = vsel %vm820, %v5200, 0.0
    %v5254 = vadd.f32 %v5252, %v5253
    %v5255 = vrot.slane %v5254, 4
    %v5256 = vadd.f32 %v5254, %v5255
    %v5257 = vrot.slane %v5256, 2
    %v5258 = vadd.f32 %v5256, %v5257
    %v5259 = vrot.slane %v5258, 1
    %v5260 = vadd.f32 %v5258, %v5259
    %v5261 = vsel %vm820, %v5201, 0.0
    %v5262 = vsel %vm820, %v5202, 0.0
    %v5263 = vadd.f32 %v5261, %v5262
    %v5264 = vrot.slane %v5263, 4
    %v5265 = vadd.f32 %v5263, %v5264
    %v5266 = vrot.slane %v5265, 2
    %v5267 = vadd.f32 %v5265, %v5266
    %v5268 = vrot.slane %v5267, 1
    %v5269 = vadd.f32 %v5267, %v5268
    %v5270 = vsel %vm820, %v5203, 0.0
    %v5271 = vsel %vm820, %v5204, 0.0
    %v5272 = vadd.f32 %v5270, %v5271
    %v5273 = vrot.slane %v5272, 4
    %v5274 = vadd.f32 %v5272, %v5273
    %v5275 = vrot.slane %v5274, 2
    %v5276 = vadd.f32 %v5274, %v5275
    %v5277 = vrot.slane %v5276, 1
    %v5278 = vadd.f32 %v5276, %v5277
    %v5279 = vsel %vm820, %v5205, 0.0
    %v5280 = vsel %vm820, %v5206, 0.0
    %v5281 = vadd.f32 %v5279, %v5280
    %v5282 = vrot.slane %v5281, 4
    %v5283 = vadd.f32 %v5281, %v5282
    %v5284 = vrot.slane %v5283, 2
    %v5285 = vadd.f32 %v5283, %v5284
    %v5286 = vrot.slane %v5285, 1
    %v5287 = vadd.f32 %v5285, %v5286
    %v5288 = vsel %vm820, %v5207, 0.0
    %v5289 = vsel %vm820, %v5208, 0.0
    %v5290 = vadd.f32 %v5288, %v5289
    %v5291 = vrot.slane %v5290, 4
    %v5292 = vadd.f32 %v5290, %v5291
    %v5293 = vrot.slane %v5292, 2
    %v5294 = vadd.f32 %v5292, %v5293
    %v5295 = vrot.slane %v5294, 1
    %v5296 = vadd.f32 %v5294, %v5295
    %v5297 = vsel %vm820, %v5209, 0.0
    %v5298 = vsel %vm820, %v5210, 0.0
    %v5299 = vadd.f32 %v5297, %v5298
    %v5300 = vrot.slane %v5299, 4
    %v5301 = vadd.f32 %v5299, %v5300
    %v5302 = vrot.slane %v5301, 2
    %v5303 = vadd.f32 %v5301, %v5302
    %v5304 = vrot.slane %v5303, 1
    %v5305 = vadd.f32 %v5303, %v5304
    %v5306 = vsel %vm820, %v5211, 0.0
    %v5307 = vsel %vm820, %v5212, 0.0
    %v5308 = vadd.f32 %v5306, %v5307
    %v5309 = vrot.slane %v5308, 4
    %v5310 = vadd.f32 %v5308, %v5309
    %v5311 = vrot.slane %v5310, 2
    %v5312 = vadd.f32 %v5310, %v5311
    %v5313 = vrot.slane %v5312, 1
    %v5314 = vadd.f32 %v5312, %v5313
    %v5315 = vsel %vm820, %v5213, 0.0
    %v5316 = vsel %vm820, %v5214, 0.0
    %v5317 = vadd.f32 %v5315, %v5316
    %v5318 = vrot.slane %v5317, 4
    %v5319 = vadd.f32 %v5317, %v5318
    %v5320 = vrot.slane %v5319, 2
    %v5321 = vadd.f32 %v5319, %v5320
    %v5322 = vrot.slane %v5321, 1
    %v5323 = vadd.f32 %v5321, %v5322
    %v5324 = vsel %vm820, %v5215, 0.0
    %v5325 = vsel %vm820, %v5216, 0.0
    %v5326 = vadd.f32 %v5324, %v5325
    %v5327 = vrot.slane %v5326, 4
    %v5328 = vadd.f32 %v5326, %v5327
    %v5329 = vrot.slane %v5328, 2
    %v5330 = vadd.f32 %v5328, %v5329
    %v5331 = vrot.slane %v5330, 1
    %v5332 = vadd.f32 %v5330, %v5331
    %v5333 = vsel %vm820, %v5217, 0.0
    %v5334 = vsel %vm820, %v5218, 0.0
    %v5335 = vadd.f32 %v5333, %v5334
    %v5336 = vrot.slane %v5335, 4
    %v5337 = vadd.f32 %v5335, %v5336
    %v5338 = vrot.slane %v5337, 2
    %v5339 = vadd.f32 %v5337, %v5338
    %v5340 = vrot.slane %v5339, 1
    %v5341 = vadd.f32 %v5339, %v5340
    %v5342 = vsel %vm820, %v5219, 0.0
    %v5343 = vsel %vm820, %v5220, 0.0
    %v5344 = vadd.f32 %v5342, %v5343
    %v5345 = vrot.slane %v5344, 4
    %v5346 = vadd.f32 %v5344, %v5345
    %v5347 = vrot.slane %v5346, 2
    %v5348 = vadd.f32 %v5346, %v5347
    %v5349 = vrot.slane %v5348, 1
    %v5350 = vadd.f32 %v5348, %v5349
    %v5351 = vsel %vm820, %v5221, 0.0
    %v5352 = vsel %vm820, %v5222, 0.0
    %v5353 = vadd.f32 %v5351, %v5352
    %v5354 = vrot.slane %v5353, 4
    %v5355 = vadd.f32 %v5353, %v5354
    %v5356 = vrot.slane %v5355, 2
    %v5357 = vadd.f32 %v5355, %v5356
    %v5358 = vrot.slane %v5357, 1
    %v5359 = vadd.f32 %v5357, %v5358
    %v5360 = vsel %vm820, %v5223, 0.0
    %v5361 = vsel %vm820, %v5224, 0.0
    %v5362 = vadd.f32 %v5360, %v5361
    %v5363 = vrot.slane %v5362, 4
    %v5364 = vadd.f32 %v5362, %v5363
    %v5365 = vrot.slane %v5364, 2
    %v5366 = vadd.f32 %v5364, %v5365
    %v5367 = vrot.slane %v5366, 1
    %v5368 = vadd.f32 %v5366, %v5367
    %v5385 = vsel %vm4969, %v5242, %v5233
    %v5386 = vsel %vm4971, %v5251, %v5385
    %v5387 = vsel %vm4973, %v5260, %v5386
    %v5388 = vsel %vm4975, %v5269, %v5387
    %v5389 = vsel %vm4977, %v5278, %v5388
    %v5390 = vsel %vm4979, %v5287, %v5389
    %v5391 = vsel %vm4981, %v5296, %v5390
    %v5392 = vsel %vm4969, %v5314, %v5305
    %v5393 = vsel %vm4971, %v5323, %v5392
    %v5394 = vsel %vm4973, %v5332, %v5393
    %v5395 = vsel %vm4975, %v5341, %v5394
    %v5396 = vsel %vm4977, %v5350, %v5395
    %v5397 = vsel %vm4979, %v5359, %v5396
    %v5398 = vsel %vm4981, %v5368, %v5397
    %v5399 = vsel %vm820, %v5391, 0
    %v5401 = vsel %vm820, %v5398, 0
    %5403 = vmatprep.subr.mxu0 0.0
    %5404 = vmatpush1.msra.mxu0 0.0
    %5405 = vmatprep.subr.mxu0 0.0
    %5406 = vmatpush1.msra.mxu0 0.0
    %5407 = vmatprep.subr.mxu0 0.0
    %5408 = vmatpush1.msra.mxu0 0.0
    %5409 = vmatprep.subr.mxu0 0.0
    %5410 = vmatpush1.msra.mxu0 0.0
    %5411 = vmatprep.subr.mxu0 0.0
    %5412 = vmatpush1.msra.mxu0 0.0
    %5413 = vmatprep.subr.mxu0 0.0
    %5414 = vmatpush1.msra.mxu0 0.0
    %5415 = vmatprep.subr.mxu0 0.0
    %5416 = vmatpush1.msra.mxu0 0.0
    %5417 = vmatprep.subr.mxu0 0.0
    %5418 = vmatpush1.msra.mxu0 0.0
    %5419 = vmatprep.subr.mxu0 0.0
    %5420 = vmatpush1.msra.mxu0 0.0
    %5421 = vmatprep.subr.mxu0 0.0
    %5422 = vmatpush1.msra.mxu0 0.0
    %5423 = vmatprep.subr.mxu0 0.0
    %5424 = vmatpush1.msra.mxu0 0.0
    %5425 = vmatprep.subr.mxu0 0.0
    %5426 = vmatpush1.msra.mxu0 0.0
    %5427 = vmatprep.subr.mxu0 0.0
    %5428 = vmatpush1.msra.mxu0 0.0
    %5429 = vmatprep.subr.mxu0 0.0
    %5430 = vmatpush1.msra.mxu0 %v242
    %5431 = vmatprep.subr.mxu0 0.0
    %5432 = vmatpush1.msra.mxu0 %v241
    %5433 = vmatprep.subr.mxu0 0.0
    %5434 = vmatpush1.msra.mxu0 %v240
    %5435 = vmatprep.subr.mxu0 0.0
    %5436 = vmatpush2.msra.mxu0 0.0
    %5437 = vmatprep.subr.mxu0 0.0
    %5438 = vmatpush2.msra.mxu0 0.0
    %5439 = vmatprep.subr.mxu0 0.0
    %5440 = vmatpush2.msra.mxu0 0.0
    %5441 = vmatprep.subr.mxu0 0.0
    %5442 = vmatpush2.msra.mxu0 0.0
    %5443 = vmatprep.subr.mxu0 0.0
    %5444 = vmatpush2.msra.mxu0 0.0
    %5445 = vmatprep.subr.mxu0 0.0
    %5446 = vmatpush2.msra.mxu0 0.0
    %5447 = vmatprep.subr.mxu0 0.0
    %5448 = vmatpush2.msra.mxu0 0.0
    %5449 = vmatprep.subr.mxu0 0.0
    %5450 = vmatpush2.msra.mxu0 0.0
    %5451 = vmatprep.subr.mxu0 0.0
    %5452 = vmatpush2.msra.mxu0 0.0
    %5453 = vmatprep.subr.mxu0 0.0
    %5454 = vmatpush2.msra.mxu0 0.0
    %5455 = vmatprep.subr.mxu0 0.0
    %5456 = vmatpush2.msra.mxu0 0.0
    %5457 = vmatprep.subr.mxu0 0.0
    %5458 = vmatpush2.msra.mxu0 0.0
    %5459 = vmatprep.subr.mxu0 0.0
    %5460 = vmatpush2.msra.mxu0 0.0
    %5461 = vmatprep.subr.mxu0 0.0
    %5462 = vmatpush2.msra.mxu0 0.0
    %5463 = vmatprep.subr.mxu0 0.0
    %5464 = vmatpush2.msra.mxu0 0.0
    %5465 = vmatprep.subr.mxu0 0.0
    %5466 = vmatpush2.msra.mxu0 0.0
    %5467 = vmatprep.mubr.f32.mxu0 0.0
    %5468 = vmatmul.mubr.f32.gmra.mxu0 %v5399
    %v5469 = vpop.f32.mrf.mxu0
    %v5470 = vadd.f32 0.0, %v5469
    %v5471 = vpop.f32.mrf.mxu0
    %5472 = vmatprep.mubr.f32.mxu0 0.0
    %5473 = vmatmul.mubr.f32.gmra.mxu0 %v5401
    %v5474 = vpop.f32.mrf.mxu0
    %v5475 = vadd.f32 0.0, %v5474
    %v5476 = vpop.f32.mrf.mxu0
    %5477 = vdwg.mxu0
    %v5479 = vsel %vm820, %v807, 0
    %v5482 = vsel %vm820, %v808, 0
    %5484 = vmatprep.subr.mxu0 0.0
    %5485 = vmatpush1.msra.mxu0 0.0
    %5486 = vmatprep.subr.mxu0 0.0
    %5487 = vmatpush1.msra.mxu0 0.0
    %5488 = vmatprep.subr.mxu0 0.0
    %5489 = vmatpush1.msra.mxu0 0.0
    %5490 = vmatprep.subr.mxu0 0.0
    %5491 = vmatpush1.msra.mxu0 0.0
    %5492 = vmatprep.subr.mxu0 0.0
    %5493 = vmatpush1.msra.mxu0 0.0
    %5494 = vmatprep.subr.mxu0 0.0
    %5495 = vmatpush1.msra.mxu0 0.0
    %5496 = vmatprep.subr.mxu0 0.0
    %5497 = vmatpush1.msra.mxu0 0.0
    %5498 = vmatprep.subr.mxu0 0.0
    %5499 = vmatpush1.msra.mxu0 0.0
    %5500 = vmatprep.subr.mxu0 0.0
    %5501 = vmatpush1.msra.mxu0 0.0
    %5502 = vmatprep.subr.mxu0 0.0
    %5503 = vmatpush1.msra.mxu0 0.0
    %5504 = vmatprep.subr.mxu0 0.0
    %5505 = vmatpush1.msra.mxu0 0.0
    %5506 = vmatprep.subr.mxu0 0.0
    %5507 = vmatpush1.msra.mxu0 0.0
    %5508 = vmatprep.subr.mxu0 0.0
    %5509 = vmatpush1.msra.mxu0 0.0
    %5510 = vmatprep.subr.mxu0 0.0
    %5511 = vmatpush1.msra.mxu0 %v242
    %5512 = vmatprep.subr.mxu0 0.0
    %5513 = vmatpush1.msra.mxu0 %v241
    %5514 = vmatprep.subr.mxu0 0.0
    %5515 = vmatpush1.msra.mxu0 %v240
    %5516 = vmatprep.subr.mxu0 0.0
    %5517 = vmatpush2.msra.mxu0 0.0
    %5518 = vmatprep.subr.mxu0 0.0
    %5519 = vmatpush2.msra.mxu0 0.0
    %5520 = vmatprep.subr.mxu0 0.0
    %5521 = vmatpush2.msra.mxu0 0.0
    %5522 = vmatprep.subr.mxu0 0.0
    %5523 = vmatpush2.msra.mxu0 0.0
    %5524 = vmatprep.subr.mxu0 0.0
    %5525 = vmatpush2.msra.mxu0 0.0
    %5526 = vmatprep.subr.mxu0 0.0
    %5527 = vmatpush2.msra.mxu0 0.0
    %5528 = vmatprep.subr.mxu0 0.0
    %5529 = vmatpush2.msra.mxu0 0.0
    %5530 = vmatprep.subr.mxu0 0.0
    %5531 = vmatpush2.msra.mxu0 0.0
    %5532 = vmatprep.subr.mxu0 0.0
    %5533 = vmatpush2.msra.mxu0 0.0
    %5534 = vmatprep.subr.mxu0 0.0
    %5535 = vmatpush2.msra.mxu0 0.0
    %5536 = vmatprep.subr.mxu0 0.0
    %5537 = vmatpush2.msra.mxu0 0.0
    %5538 = vmatprep.subr.mxu0 0.0
    %5539 = vmatpush2.msra.mxu0 0.0
    %5540 = vmatprep.subr.mxu0 0.0
    %5541 = vmatpush2.msra.mxu0 0.0
    %5542 = vmatprep.subr.mxu0 0.0
    %5543 = vmatpush2.msra.mxu0 0.0
    %5544 = vmatprep.subr.mxu0 0.0
    %5545 = vmatpush2.msra.mxu0 0.0
    %5546 = vmatprep.subr.mxu0 0.0
    %5547 = vmatpush2.msra.mxu0 0.0
    %5548 = vmatprep.mubr.f32.mxu0 0.0
    %5549 = vmatmul.mubr.f32.gmra.mxu0 %v5479
    %v5550 = vpop.f32.mrf.mxu0
    %v5551 = vadd.f32 0.0, %v5550
    %v5552 = vpop.f32.mrf.mxu0
    %5553 = vmatprep.mubr.f32.mxu0 0.0
    %5554 = vmatmul.mubr.f32.gmra.mxu0 %v5482
    %v5555 = vpop.f32.mrf.mxu0
    %v5556 = vadd.f32 0.0, %v5555
    %v5557 = vpop.f32.mrf.mxu0
    %5558 = vdwg.mxu0
    %v5559 = vld [vmem:[#allocation5] sm:$0xff]
    %v5560 = vld [vmem:[#allocation5 + $0x8] sm:$0xff]
    %v5561 = vld [vmem:[#allocation5 + $0x10] sm:$0xff]
    %v5562 = vld [vmem:[#allocation5 + $0x18] sm:$0xff]
    %v5564 = vsel %vm898, %v5470, 0
    %v5567 = vsel %vm898, %v5475, 0
    %5569 = vmatprep.subr.mxu0 0.0
    %5570 = vmatpush1.msra.mxu0 0.0
    %5571 = vmatprep.subr.mxu0 0.0
    %5572 = vmatpush1.msra.mxu0 0.0
    %5573 = vmatprep.subr.mxu0 0.0
    %5574 = vmatpush1.msra.mxu0 0.0
    %5575 = vmatprep.subr.mxu0 0.0
    %5576 = vmatpush1.msra.mxu0 0.0
    %5577 = vmatprep.subr.mxu0 0.0
    %5578 = vmatpush1.msra.mxu0 0.0
    %5579 = vmatprep.subr.mxu0 0.0
    %5580 = vmatpush1.msra.mxu0 0.0
    %5581 = vmatprep.subr.mxu0 0.0
    %5582 = vmatpush1.msra.mxu0 0.0
    %5583 = vmatprep.subr.mxu0 0.0
    %5584 = vmatpush1.msra.mxu0 0.0
    %5585 = vmatprep.subr.mxu0 0.0
    %5586 = vmatpush1.msra.mxu0 0.0
    %5587 = vmatprep.subr.mxu0 0.0
    %5588 = vmatpush1.msra.mxu0 0.0
    %5589 = vmatprep.subr.mxu0 0.0
    %5590 = vmatpush1.msra.mxu0 0.0
    %5591 = vmatprep.subr.mxu0 0.0
    %5592 = vmatpush1.msra.mxu0 0.0
    %5593 = vmatprep.subr.mxu0 0.0
    %5594 = vmatpush1.msra.mxu0 %v5562
    %5595 = vmatprep.subr.mxu0 0.0
    %5596 = vmatpush1.msra.mxu0 %v5561
    %5597 = vmatprep.subr.mxu0 0.0
    %5598 = vmatpush1.msra.mxu0 %v5560
    %5599 = vmatprep.subr.mxu0 0.0
    %5600 = vmatpush1.msra.mxu0 %v5559
    %5601 = vmatprep.subr.mxu0 0.0
    %5602 = vmatpush2.msra.mxu0 0.0
    %5603 = vmatprep.subr.mxu0 0.0
    %5604 = vmatpush2.msra.mxu0 0.0
    %5605 = vmatprep.subr.mxu0 0.0
    %5606 = vmatpush2.msra.mxu0 0.0
    %5607 = vmatprep.subr.mxu0 0.0
    %5608 = vmatpush2.msra.mxu0 0.0
    %5609 = vmatprep.subr.mxu0 0.0
    %5610 = vmatpush2.msra.mxu0 0.0
    %5611 = vmatprep.subr.mxu0 0.0
    %5612 = vmatpush2.msra.mxu0 0.0
    %5613 = vmatprep.subr.mxu0 0.0
    %5614 = vmatpush2.msra.mxu0 0.0
    %5615 = vmatprep.subr.mxu0 0.0
    %5616 = vmatpush2.msra.mxu0 0.0
    %5617 = vmatprep.subr.mxu0 0.0
    %5618 = vmatpush2.msra.mxu0 0.0
    %5619 = vmatprep.subr.mxu0 0.0
    %5620 = vmatpush2.msra.mxu0 0.0
    %5621 = vmatprep.subr.mxu0 0.0
    %5622 = vmatpush2.msra.mxu0 0.0
    %5623 = vmatprep.subr.mxu0 0.0
    %5624 = vmatpush2.msra.mxu0 0.0
    %5625 = vmatprep.subr.mxu0 0.0
    %5626 = vmatpush2.msra.mxu0 0.0
    %5627 = vmatprep.subr.mxu0 0.0
    %5628 = vmatpush2.msra.mxu0 0.0
    %5629 = vmatprep.subr.mxu0 0.0
    %5630 = vmatpush2.msra.mxu0 0.0
    %5631 = vmatprep.subr.mxu0 0.0
    %5632 = vmatpush2.msra.mxu0 0.0
    %5633 = vmatprep.mubr.f32.mxu0 0.0
    %5634 = vmatmul.mubr.f32.gmra.mxu0 %v5564
    %v5635 = vpop.f32.mrf.mxu0
    %v5636 = vadd.f32 0.0, %v5635
    %v5637 = vpop.f32.mrf.mxu0
    %5638 = vmatprep.mubr.f32.mxu0 0.0
    %5639 = vmatmul.mubr.f32.gmra.mxu0 %v5567
    %v5640 = vpop.f32.mrf.mxu0
    %v5641 = vadd.f32 0.0, %v5640
    %v5642 = vpop.f32.mrf.mxu0
    %5643 = vdwg.mxu0
    %v5644 = vld [vmem:[%s6] sm:$0xff]
    %v5645 = vld [vmem:[%s6 + $0x8] sm:$0xff]
    %5647 = vset.pattern.permute.xlu0 0
    %5648 = vperm.xlu0 %5647, %v5644
    %v5649 = vpop.permute.xlu0 %5648
    %5652 = vset.pattern.permute.xlu0 0
    %5653 = vperm.xlu0 %5652, %v5645
    %v5654 = vpop.permute.xlu0 %5653
    %v5656 = vmul.f32 %v5636, %v5649
    %v5657 = vmul.f32 %v5641, %v5654
    %v5658 = vld [vmem:[#allocation7] sm:$0xff]
    %v5659 = vld [vmem:[#allocation7 + $0x8] sm:$0xff]
    %v5660 = vld [vmem:[#allocation7 + $0x10] sm:$0xff]
    %v5661 = vld [vmem:[#allocation7 + $0x18] sm:$0xff]
    %v5663 = vsel %vm898, %v5551, 0
    %v5666 = vsel %vm898, %v5556, 0
    %5668 = vmatprep.subr.mxu0 0.0
    %5669 = vmatpush1.msra.mxu0 0.0
    %5670 = vmatprep.subr.mxu0 0.0
    %5671 = vmatpush1.msra.mxu0 0.0
    %5672 = vmatprep.subr.mxu0 0.0
    %5673 = vmatpush1.msra.mxu0 0.0
    %5674 = vmatprep.subr.mxu0 0.0
    %5675 = vmatpush1.msra.mxu0 0.0
    %5676 = vmatprep.subr.mxu0 0.0
    %5677 = vmatpush1.msra.mxu0 0.0
    %5678 = vmatprep.subr.mxu0 0.0
    %5679 = vmatpush1.msra.mxu0 0.0
    %5680 = vmatprep.subr.mxu0 0.0
    %5681 = vmatpush1.msra.mxu0 0.0
    %5682 = vmatprep.subr.mxu0 0.0
    %5683 = vmatpush1.msra.mxu0 0.0
    %5684 = vmatprep.subr.mxu0 0.0
    %5685 = vmatpush1.msra.mxu0 0.0
    %5686 = vmatprep.subr.mxu0 0.0
    %5687 = vmatpush1.msra.mxu0 0.0
    %5688 = vmatprep.subr.mxu0 0.0
    %5689 = vmatpush1.msra.mxu0 0.0
    %5690 = vmatprep.subr.mxu0 0.0
    %5691 = vmatpush1.msra.mxu0 0.0
    %5692 = vmatprep.subr.mxu0 0.0
    %5693 = vmatpush1.msra.mxu0 %v5661
    %5694 = vmatprep.subr.mxu0 0.0
    %5695 = vmatpush1.msra.mxu0 %v5660
    %5696 = vmatprep.subr.mxu0 0.0
    %5697 = vmatpush1.msra.mxu0 %v5659
    %5698 = vmatprep.subr.mxu0 0.0
    %5699 = vmatpush1.msra.mxu0 %v5658
    %5700 = vmatprep.subr.mxu0 0.0
    %5701 = vmatpush2.msra.mxu0 0.0
    %5702 = vmatprep.subr.mxu0 0.0
    %5703 = vmatpush2.msra.mxu0 0.0
    %5704 = vmatprep.subr.mxu0 0.0
    %5705 = vmatpush2.msra.mxu0 0.0
    %5706 = vmatprep.subr.mxu0 0.0
    %5707 = vmatpush2.msra.mxu0 0.0
    %5708 = vmatprep.subr.mxu0 0.0
    %5709 = vmatpush2.msra.mxu0 0.0
    %5710 = vmatprep.subr.mxu0 0.0
    %5711 = vmatpush2.msra.mxu0 0.0
    %5712 = vmatprep.subr.mxu0 0.0
    %5713 = vmatpush2.msra.mxu0 0.0
    %5714 = vmatprep.subr.mxu0 0.0
    %5715 = vmatpush2.msra.mxu0 0.0
    %5716 = vmatprep.subr.mxu0 0.0
    %5717 = vmatpush2.msra.mxu0 0.0
    %5718 = vmatprep.subr.mxu0 0.0
    %5719 = vmatpush2.msra.mxu0 0.0
    %5720 = vmatprep.subr.mxu0 0.0
    %5721 = vmatpush2.msra.mxu0 0.0
    %5722 = vmatprep.subr.mxu0 0.0
    %5723 = vmatpush2.msra.mxu0 0.0
    %5724 = vmatprep.subr.mxu0 0.0
    %5725 = vmatpush2.msra.mxu0 0.0
    %5726 = vmatprep.subr.mxu0 0.0
    %5727 = vmatpush2.msra.mxu0 0.0
    %5728 = vmatprep.subr.mxu0 0.0
    %5729 = vmatpush2.msra.mxu0 0.0
    %5730 = vmatprep.subr.mxu0 0.0
    %5731 = vmatpush2.msra.mxu0 0.0
    %5732 = vmatprep.mubr.f32.mxu0 0.0
    %5733 = vmatmul.mubr.f32.gmra.mxu0 %v5663
    %v5734 = vpop.f32.mrf.mxu0
    %v5735 = vadd.f32 0.0, %v5734
    %v5736 = vpop.f32.mrf.mxu0
    %5737 = vmatprep.mubr.f32.mxu0 0.0
    %5738 = vmatmul.mubr.f32.gmra.mxu0 %v5666
    %v5739 = vpop.f32.mrf.mxu0
    %v5740 = vadd.f32 0.0, %v5739
    %v5741 = vpop.f32.mrf.mxu0
    %5742 = vdwg.mxu0
    %v5743 = vadd.f32 %v5656, %v5735
    %v5744 = vadd.f32 %v5657, %v5740
    %v5745 = vmax.f32 %v5743, 0.0
    %v5746 = vmax.f32 %v5744, 0.0
    %v5748 = vrot.slane %v5745, 4
    %5749 = vrot.lane.b32.xlu0 %v5748, 32
    %v5750 = vpop.permute.xlu0 %5749
    %v5752 = vsel %vm898, %v5745, %v5750
    %v5754 = vrot.slane %v5746, 4
    %5755 = vrot.lane.b32.xlu0 %v5754, 32
    %v5756 = vpop.permute.xlu0 %5755
    %v5758 = vsel %vm898, %v5746, %v5756
    %vm5759 = vcmp.lt.s32.totalorder %v248, 0
    %v5760 = vsub.s32 0, %v248
    %v5761 = vsel %vm5759, %v5760, %v248
    %v5762 = vshrl.u32 %v5761, 1
    %v5763 = vand.u32 %v5761, 1
    %v5764 = vsub.s32 0, %v5763
    %v5765 = vsel %vm5759, %v5764, %v5763
    %vm5766 = vcmp.ne.s32.totalorder %v5765, 0
    %vm5767 = vcmp.lt.s32.totalorder %v5765, 0
    %vm5768 = vmand %vm5767, %vm5766
    %v5769 = vadd.s32 %v5765, 2
    %v5770 = vsel %vm5768, %v5769, %v5765
    %vm5771 = vcmp.eq.s32.totalorder %v5770, 0
    %v5772 = vsel %vm5771, 0.0, 1.5707964
    %v5773 = vld [vmem:[#allocation10] sm:$0x1]
    %v5775 = vlaneseq
    %v5776 = vshrl.u32 %v5775, 7
    %v5777 = vsub.s32 0, %v5776
    %v5778 = vrot.slane %v5773, %v5777
    %v5780 = vmul.f32 %v1109, %v5778
    %v5781 = vsub.f32 %v5780, %v5772
    %v5782 = vand.u32 2147483647, %v5781
    %vm5783 = vcmp.le.f32.partialorder %v5782, 0.7853982
    %vm5784 = vcmp.lt.s32.totalorder %v5781, 0
    %v5785 = vand.u32 %v5781, 2139095040
    %v5786 = vshrl.u32 %v5785, 23
    %v5787 = vsub.s32 %v5786, 127
    %v5788 = vand.u32 2147483647, %v5781
    %v5789 = vand.u32 %v5788, 8388607
    %v5790 = vor.u32 %v5789, 8388608
    %v5791 = vsub.s32 0, %v5790
    %v5792 = vadd.s32 %v5787, 1
    %vm5793 = vcmp.gt.s32.totalorder %v5792, 0
    %v5794 = vsel %vm5793, %v5792, 0
    %v5795 = vshrl.u32 %v5794, 5
    %v5796 = vand.u32 %v5794, 31
    %v5797 = vsub.s32 32, %v5796
    %v5798 = vshrl.u32 683565275, %v5797
    %v5799 = vshll.u32 683565275, %v5796
    %v5800 = vshrl.u32 2475754826, %v5797
    %v5801 = vor.u32 %v5799, %v5800
    %v5802 = vshll.u32 2475754826, %v5796
    %v5803 = vshrl.u32 2131351028, %v5797
    %v5804 = vor.u32 %v5802, %v5803
    %v5805 = vshll.u32 2131351028, %v5796
    %v5806 = vshrl.u32 2102212464, %v5797
    %v5807 = vor.u32 %v5805, %v5806
    %v5808 = vshll.u32 2102212464, %v5796
    %v5809 = vshrl.u32 920167782, %v5797
    %v5810 = vor.u32 %v5808, %v5809
    %v5811 = vshll.u32 920167782, %v5796
    %v5812 = vshrl.u32 1326507024, %v5797
    %v5813 = vor.u32 %v5811, %v5812
    %vm5814 = vcmp.lt.s32.totalorder %v5795, 1
    %vm5815 = vcmp.lt.s32.totalorder %v5795, 2
    %vm5816 = vcmp.lt.s32.totalorder %v5795, 3
    %vm5817 = vcmp.lt.s32.totalorder %v5795, 4
    %v5818 = vsel %vm5814, %v5798, %v5801
    %v5819 = vsel %vm5817, %v5807, 2102212464
    %v5820 = vsel %vm5816, %v5804, %v5819
    %v5821 = vsel %vm5815, %v5818, %v5820
    %v5822 = vsel %vm5814, %v5801, %v5804
    %v5823 = vsel %vm5817, %v5810, 920167782
    %v5824 = vsel %vm5816, %v5807, %v5823
    %v5825 = vsel %vm5815, %v5822, %v5824
    %v5826 = vsel %vm5814, %v5804, %v5807
    %v5827 = vsel %vm5817, %v5813, 1326507024
    %v5828 = vsel %vm5816, %v5810, %v5827
    %v5829 = vsel %vm5815, %v5826, %v5828
    %v5830 = vshll.u32 %v5790, 8
    %v5831 = vmul.u32.u64.compose %v5830, %v5829
    %v5832 = vextract.low.u32 %v5831
    %v5833 = vextract.high.u32 %v5831
    %v5834 = vmul.u32.u64.compose %v5830, %v5825
    %v5835 = vextract.low.u32 %v5834
    %v5836 = vextract.high.u32 %v5834
    %v5837 = vmul.u32 %v5830, %v5821
    %v5838 = vadd.s32 %v5833, %v5835
    %vm5839 = vc.u32 %v5833, %v5835
    %v5840 = vadd.s32 %v5836, 1
    %v5841 = vsel %vm5839, %v5840, %v5836
    %v5842 = vadd.s32 %v5837, %v5841
    %v5843 = vadd.s32 %v5842, 536870912
    %v5844 = vshrl.u32 %v5843, 30
    %v5845 = vshll.u32 %v5844, 30
    %v5846 = vsub.s32 %v5842, %v5845
    %vm5847 = vcmp.lt.s32.totalorder %v5846, 0
    %v5848 = vsub.s32 0, %v5846
    %v5849 = vsel %vm5847, %v5848, %v5846
    %v5850 = vclz %v5849
    %v5851 = vsub.s32 %v5850, 2
    %vm5852 = vcmp.gt.s32.totalorder 0, %v5851
    %v5853 = vsel %vm5852, 0, %v5851
    %v5854 = vsub.s32 32, %v5853
    %v5855 = vshll.u32 %v5846, %v5853
    %v5856 = vshrl.u32 %v5838, %v5854
    %v5857 = vor.u32 %v5855, %v5856
    %v5858 = vsub.s32 4294967266, %v5853
    %v5859 = vadd.s32 %v5858, 127
    %v5860 = vshll.u32 %v5859, 23
    %v5861 = vor.u32 4788187, %v5860
    %v5862 = vand.u32 2147483647, %v5861
    %v5864 = vcvt.s32.f32 %v5857
    %v5865 = vmul.f32 %v5864, %v5862
    %v5866 = vxor.u32 %v5865, 2147483648
    %v5867 = vsel %vm5784, %v5866, %v5865
    %v5868 = vsub.s32 4, %v5844
    %v5869 = vsel %vm5784, %v5868, %v5844
    %v5870 = vsel %vm5783, %v5781, %v5867
    %v5871 = vsel %vm5783, 0, %v5869
    %v5872 = vcosq.f32.pop %v5870
    %v5873 = vsinq.f32.pop %v5870
    %vm5874 = vweird.f32 %v5781
    %v5875 = vand.u32 %v5871, 3
    %vm5876 = vcmp.lt.s32.totalorder %v5875, 2
    %vm5877 = vcmp.eq.s32.totalorder %v5875, 0
    %v5878 = vxor.u32 %v5873, 2147483648
    %v5879 = vsel %vm5877, %v5872, %v5878
    %vm5880 = vcmp.eq.s32.totalorder %v5875, 2
    %v5881 = vxor.u32 %v5872, 2147483648
    %v5882 = vsel %vm5880, %v5881, %v5873
    %v5883 = vsel %vm5876, %v5879, %v5882
    %v5884 = vsel %vm5874, nan, %v5883
    %v5885 = vmul.f32 %v5884, 0.17677669
    %v5886 = vadd.f32 %v5752, %v5885
    %v5887 = vmul.f32 %v1114, %v5778
    %v5888 = vsub.f32 %v5887, %v5772
    %v5889 = vand.u32 2147483647, %v5888
    %vm5890 = vcmp.le.f32.partialorder %v5889, 0.7853982
    %vm5891 = vcmp.lt.s32.totalorder %v5888, 0
    %v5892 = vand.u32 %v5888, 2139095040
    %v5893 = vshrl.u32 %v5892, 23
    %v5894 = vsub.s32 %v5893, 127
    %v5895 = vand.u32 2147483647, %v5888
    %v5896 = vand.u32 %v5895, 8388607
    %v5897 = vor.u32 %v5896, 8388608
    %v5898 = vsub.s32 0, %v5897
    %v5899 = vadd.s32 %v5894, 1
    %vm5900 = vcmp.gt.s32.totalorder %v5899, 0
    %v5901 = vsel %vm5900, %v5899, 0
    %v5902 = vshrl.u32 %v5901, 5
    %v5903 = vand.u32 %v5901, 31
    %v5904 = vsub.s32 32, %v5903
    %v5905 = vshrl.u32 683565275, %v5904
    %v5906 = vshll.u32 683565275, %v5903
    %v5907 = vshrl.u32 2475754826, %v5904
    %v5908 = vor.u32 %v5906, %v5907
    %v5909 = vshll.u32 2475754826, %v5903
    %v5910 = vshrl.u32 2131351028, %v5904
    %v5911 = vor.u32 %v5909, %v5910
    %v5912 = vshll.u32 2131351028, %v5903
    %v5913 = vshrl.u32 2102212464, %v5904
    %v5914 = vor.u32 %v5912, %v5913
    %v5915 = vshll.u32 2102212464, %v5903
    %v5916 = vshrl.u32 920167782, %v5904
    %v5917 = vor.u32 %v5915, %v5916
    %v5918 = vshll.u32 920167782, %v5903
    %v5919 = vshrl.u32 1326507024, %v5904
    %v5920 = vor.u32 %v5918, %v5919
    %vm5921 = vcmp.lt.s32.totalorder %v5902, 1
    %vm5922 = vcmp.lt.s32.totalorder %v5902, 2
    %vm5923 = vcmp.lt.s32.totalorder %v5902, 3
    %vm5924 = vcmp.lt.s32.totalorder %v5902, 4
    %v5925 = vsel %vm5921, %v5905, %v5908
    %v5926 = vsel %vm5924, %v5914, 2102212464
    %v5927 = vsel %vm5923, %v5911, %v5926
    %v5928 = vsel %vm5922, %v5925, %v5927
    %v5929 = vsel %vm5921, %v5908, %v5911
    %v5930 = vsel %vm5924, %v5917, 920167782
    %v5931 = vsel %vm5923, %v5914, %v5930
    %v5932 = vsel %vm5922, %v5929, %v5931
    %v5933 = vsel %vm5921, %v5911, %v5914
    %v5934 = vsel %vm5924, %v5920, 1326507024
    %v5935 = vsel %vm5923, %v5917, %v5934
    %v5936 = vsel %vm5922, %v5933, %v5935
    %v5937 = vshll.u32 %v5897, 8
    %v5938 = vmul.u32.u64.compose %v5937, %v5936
    %v5939 = vextract.low.u32 %v5938
    %v5940 = vextract.high.u32 %v5938
    %v5941 = vmul.u32.u64.compose %v5937, %v5932
    %v5942 = vextract.low.u32 %v5941
    %v5943 = vextract.high.u32 %v5941
    %v5944 = vmul.u32 %v5937, %v5928
    %v5945 = vadd.s32 %v5940, %v5942
    %vm5946 = vc.u32 %v5940, %v5942
    %v5947 = vadd.s32 %v5943, 1
    %v5948 = vsel %vm5946, %v5947, %v5943
    %v5949 = vadd.s32 %v5944, %v5948
    %v5950 = vadd.s32 %v5949, 536870912
    %v5951 = vshrl.u32 %v5950, 30
    %v5952 = vshll.u32 %v5951, 30
    %v5953 = vsub.s32 %v5949, %v5952
    %vm5954 = vcmp.lt.s32.totalorder %v5953, 0
    %v5955 = vsub.s32 0, %v5953
    %v5956 = vsel %vm5954, %v5955, %v5953
    %v5957 = vclz %v5956
    %v5958 = vsub.s32 %v5957, 2
    %vm5959 = vcmp.gt.s32.totalorder 0, %v5958
    %v5960 = vsel %vm5959, 0, %v5958
    %v5961 = vsub.s32 32, %v5960
    %v5962 = vshll.u32 %v5953, %v5960
    %v5963 = vshrl.u32 %v5945, %v5961
    %v5964 = vor.u32 %v5962, %v5963
    %v5965 = vsub.s32 4294967266, %v5960
    %v5966 = vadd.s32 %v5965, 127
    %v5967 = vshll.u32 %v5966, 23
    %v5968 = vor.u32 4788187, %v5967
    %v5969 = vand.u32 2147483647, %v5968
    %v5971 = vcvt.s32.f32 %v5964
    %v5972 = vmul.f32 %v5971, %v5969
    %v5973 = vxor.u32 %v5972, 2147483648
    %v5974 = vsel %vm5891, %v5973, %v5972
    %v5975 = vsub.s32 4, %v5951
    %v5976 = vsel %vm5891, %v5975, %v5951
    %v5977 = vsel %vm5890, %v5888, %v5974
    %v5978 = vsel %vm5890, 0, %v5976
    %v5979 = vcosq.f32.pop %v5977
    %v5980 = vsinq.f32.pop %v5977
    %vm5981 = vweird.f32 %v5888
    %v5982 = vand.u32 %v5978, 3
    %vm5983 = vcmp.lt.s32.totalorder %v5982, 2
    %vm5984 = vcmp.eq.s32.totalorder %v5982, 0
    %v5985 = vxor.u32 %v5980, 2147483648
    %v5986 = vsel %vm5984, %v5979, %v5985
    %vm5987 = vcmp.eq.s32.totalorder %v5982, 2
    %v5988 = vxor.u32 %v5979, 2147483648
    %v5989 = vsel %vm5987, %v5988, %v5980
    %v5990 = vsel %vm5983, %v5986, %v5989
    %v5991 = vsel %vm5981, nan, %v5990
    %v5992 = vmul.f32 %v5991, 0.17677669
    %v5993 = vadd.f32 %v5758, %v5992
    %v5994 = vld [vmem:[%s13] sm:$0xff]
    %v5995 = vld [vmem:[%s13 + $0x8] sm:$0xff]
    %v5996 = vld [vmem:[%s13 + $0x10] sm:$0xff]
    %v5997 = vld [vmem:[%s13 + $0x18] sm:$0xff]
    %v5998 = vld [vmem:[%s13 + $0x20] sm:$0xff]
    %v5999 = vld [vmem:[%s13 + $0x28] sm:$0xff]
    %v6000 = vld [vmem:[%s13 + $0x30] sm:$0xff]
    %v6001 = vld [vmem:[%s13 + $0x38] sm:$0xff]
    %v6002 = vld [vmem:[#allocation11] sm:$0x1]
    %v6004 = vlaneseq
    %v6005 = vshrl.u32 %v6004, 7
    %v6006 = vsub.s32 0, %v6005
    %v6007 = vrot.slane %v6002, %v6006
    %vm6009 = vcmask 523264
    %v6011 = vsel %vm6009, %v5886, 0
    %6013 = vmatprep.subr.mxu0 0.0
    %6014 = vmatpush1.msra.mxu0 0.0
    %6015 = vmatprep.subr.mxu0 0.0
    %6016 = vmatpush1.msra.mxu0 0.0
    %6017 = vmatprep.subr.mxu0 0.0
    %6018 = vmatpush1.msra.mxu0 0.0
    %6019 = vmatprep.subr.mxu0 0.0
    %6020 = vmatpush1.msra.mxu0 0.0
    %6021 = vmatprep.subr.mxu0 0.0
    %6022 = vmatpush1.msra.mxu0 0.0
    %6023 = vmatprep.subr.mxu0 0.0
    %6024 = vmatpush1.msra.mxu0 0.0
    %6025 = vmatprep.subr.mxu0 0.0
    %6026 = vmatpush1.msra.mxu0 0.0
    %6027 = vmatprep.subr.mxu0 0.0
    %6028 = vmatpush1.msra.mxu0 0.0
    %6029 = vmatprep.subr.mxu0 0.0
    %6030 = vmatpush1.msra.mxu0 %v6001
    %6031 = vmatprep.subr.mxu0 0.0
    %6032 = vmatpush1.msra.mxu0 %v6000
    %6033 = vmatprep.subr.mxu0 0.0
    %6034 = vmatpush1.msra.mxu0 %v5999
    %6035 = vmatprep.subr.mxu0 0.0
    %6036 = vmatpush1.msra.mxu0 %v5998
    %6037 = vmatprep.subr.mxu0 0.0
    %6038 = vmatpush1.msra.mxu0 %v5997
    %6039 = vmatprep.subr.mxu0 0.0
    %6040 = vmatpush1.msra.mxu0 %v5996
    %6041 = vmatprep.subr.mxu0 0.0
    %6042 = vmatpush1.msra.mxu0 %v5995
    %6043 = vmatprep.subr.mxu0 0.0
    %6044 = vmatpush1.msra.mxu0 %v5994
    %6045 = vmatprep.subr.mxu0 0.0
    %6046 = vmatpush2.msra.mxu0 0.0
    %6047 = vmatprep.subr.mxu0 0.0
    %6048 = vmatpush2.msra.mxu0 0.0
    %6049 = vmatprep.subr.mxu0 0.0
    %6050 = vmatpush2.msra.mxu0 0.0
    %6051 = vmatprep.subr.mxu0 0.0
    %6052 = vmatpush2.msra.mxu0 0.0
    %6053 = vmatprep.subr.mxu0 0.0
    %6054 = vmatpush2.msra.mxu0 0.0
    %6055 = vmatprep.subr.mxu0 0.0
    %6056 = vmatpush2.msra.mxu0 0.0
    %6057 = vmatprep.subr.mxu0 0.0
    %6058 = vmatpush2.msra.mxu0 0.0
    %6059 = vmatprep.subr.mxu0 0.0
    %6060 = vmatpush2.msra.mxu0 0.0
    %6061 = vmatprep.subr.mxu0 0.0
    %6062 = vmatpush2.msra.mxu0 0.0
    %6063 = vmatprep.subr.mxu0 0.0
    %6064 = vmatpush2.msra.mxu0 0.0
    %6065 = vmatprep.subr.mxu0 0.0
    %6066 = vmatpush2.msra.mxu0 0.0
    %6067 = vmatprep.subr.mxu0 0.0
    %6068 = vmatpush2.msra.mxu0 0.0
    %6069 = vmatprep.subr.mxu0 0.0
    %6070 = vmatpush2.msra.mxu0 0.0
    %6071 = vmatprep.subr.mxu0 0.0
    %6072 = vmatpush2.msra.mxu0 0.0
    %6073 = vmatprep.subr.mxu0 0.0
    %6074 = vmatpush2.msra.mxu0 0.0
    %6075 = vmatprep.subr.mxu0 0.0
    %6076 = vmatpush2.msra.mxu0 0.0
    %6077 = vmatprep.mubr.f32.mxu0 0.0
    %6078 = vmatmul.mubr.f32.gmra.mxu0 %v6011
    %v6079 = vpop.f32.mrf.mxu0
    %v6080 = vadd.f32 %v6007, %v6079
    %v6081 = vpop.f32.mrf.mxu0
    %6082 = vdwg.mxu0
    %v6083 = vld [vmem:[#allocation13] sm:$0xff]
    %v6084 = vld [vmem:[#allocation13 + $0x8] sm:$0xff]
    %v6085 = vld [vmem:[#allocation13 + $0x10] sm:$0xff]
    %v6086 = vld [vmem:[#allocation13 + $0x18] sm:$0xff]
    %v6087 = vld [vmem:[#allocation13 + $0x20] sm:$0xff]
    %v6088 = vld [vmem:[#allocation13 + $0x28] sm:$0xff]
    %v6089 = vld [vmem:[#allocation13 + $0x30] sm:$0xff]
    %v6090 = vld [vmem:[#allocation13 + $0x38] sm:$0xff]
    %v6091 = vld [vmem:[#allocation14] sm:$0x1]
    %v6093 = vlaneseq
    %v6094 = vshrl.u32 %v6093, 7
    %v6095 = vsub.s32 0, %v6094
    %v6096 = vrot.slane %v6091, %v6095
    %6098 = vmatprep.subr.mxu0 0.0
    %6099 = vmatpush1.msra.mxu0 0.0
    %6100 = vmatprep.subr.mxu0 0.0
    %6101 = vmatpush1.msra.mxu0 0.0
    %6102 = vmatprep.subr.mxu0 0.0
    %6103 = vmatpush1.msra.mxu0 0.0
    %6104 = vmatprep.subr.mxu0 0.0
    %6105 = vmatpush1.msra.mxu0 0.0
    %6106 = vmatprep.subr.mxu0 0.0
    %6107 = vmatpush1.msra.mxu0 0.0
    %6108 = vmatprep.subr.mxu0 0.0
    %6109 = vmatpush1.msra.mxu0 0.0
    %6110 = vmatprep.subr.mxu0 0.0
    %6111 = vmatpush1.msra.mxu0 0.0
    %6112 = vmatprep.subr.mxu0 0.0
    %6113 = vmatpush1.msra.mxu0 0.0
    %6114 = vmatprep.subr.mxu0 0.0
    %6115 = vmatpush1.msra.mxu0 %v6090
    %6116 = vmatprep.subr.mxu0 0.0
    %6117 = vmatpush1.msra.mxu0 %v6089
    %6118 = vmatprep.subr.mxu0 0.0
    %6119 = vmatpush1.msra.mxu0 %v6088
    %6120 = vmatprep.subr.mxu0 0.0
    %6121 = vmatpush1.msra.mxu0 %v6087
    %6122 = vmatprep.subr.mxu0 0.0
    %6123 = vmatpush1.msra.mxu0 %v6086
    %6124 = vmatprep.subr.mxu0 0.0
    %6125 = vmatpush1.msra.mxu0 %v6085
    %6126 = vmatprep.subr.mxu0 0.0
    %6127 = vmatpush1.msra.mxu0 %v6084
    %6128 = vmatprep.subr.mxu0 0.0
    %6129 = vmatpush1.msra.mxu0 %v6083
    %6130 = vmatprep.subr.mxu0 0.0
    %6131 = vmatpush2.msra.mxu0 0.0
    %6132 = vmatprep.subr.mxu0 0.0
    %6133 = vmatpush2.msra.mxu0 0.0
    %6134 = vmatprep.subr.mxu0 0.0
    %6135 = vmatpush2.msra.mxu0 0.0
    %6136 = vmatprep.subr.mxu0 0.0
    %6137 = vmatpush2.msra.mxu0 0.0
    %6138 = vmatprep.subr.mxu0 0.0
    %6139 = vmatpush2.msra.mxu0 0.0
    %6140 = vmatprep.subr.mxu0 0.0
    %6141 = vmatpush2.msra.mxu0 0.0
    %6142 = vmatprep.subr.mxu0 0.0
    %6143 = vmatpush2.msra.mxu0 0.0
    %6144 = vmatprep.subr.mxu0 0.0
    %6145 = vmatpush2.msra.mxu0 0.0
    %6146 = vmatprep.subr.mxu0 0.0
    %6147 = vmatpush2.msra.mxu0 0.0
    %6148 = vmatprep.subr.mxu0 0.0
    %6149 = vmatpush2.msra.mxu0 0.0
    %6150 = vmatprep.subr.mxu0 0.0
    %6151 = vmatpush2.msra.mxu0 0.0
    %6152 = vmatprep.subr.mxu0 0.0
    %6153 = vmatpush2.msra.mxu0 0.0
    %6154 = vmatprep.subr.mxu0 0.0
    %6155 = vmatpush2.msra.mxu0 0.0
    %6156 = vmatprep.subr.mxu0 0.0
    %6157 = vmatpush2.msra.mxu0 0.0
    %6158 = vmatprep.subr.mxu0 0.0
    %6159 = vmatpush2.msra.mxu0 0.0
    %6160 = vmatprep.subr.mxu0 0.0
    %6161 = vmatpush2.msra.mxu0 0.0
    %6162 = vmatprep.mubr.f32.mxu0 0.0
    %6163 = vmatmul.mubr.f32.gmra.mxu0 %v6011
    %v6164 = vpop.f32.mrf.mxu0
    %v6165 = vadd.f32 %v6096, %v6164
    %v6166 = vpop.f32.mrf.mxu0
    %6167 = vdwg.mxu0
    %v6168 = vld [vmem:[#allocation16] sm:$0xff]
    %v6169 = vld [vmem:[#allocation16 + $0x8] sm:$0xff]
    %v6170 = vld [vmem:[#allocation16 + $0x10] sm:$0xff]
    %v6171 = vld [vmem:[#allocation16 + $0x18] sm:$0xff]
    %v6172 = vld [vmem:[#allocation16 + $0x20] sm:$0xff]
    %v6173 = vld [vmem:[#allocation16 + $0x28] sm:$0xff]
    %v6174 = vld [vmem:[#allocation16 + $0x30] sm:$0xff]
    %v6175 = vld [vmem:[#allocation16 + $0x38] sm:$0xff]
    %v6176 = vld [vmem:[#allocation17] sm:$0x1]
    %v6178 = vlaneseq
    %v6179 = vshrl.u32 %v6178, 7
    %v6180 = vsub.s32 0, %v6179
    %v6181 = vrot.slane %v6176, %v6180
    %6183 = vmatprep.subr.mxu0 0.0
    %6184 = vmatpush1.msra.mxu0 0.0
    %6185 = vmatprep.subr.mxu0 0.0
    %6186 = vmatpush1.msra.mxu0 0.0
    %6187 = vmatprep.subr.mxu0 0.0
    %6188 = vmatpush1.msra.mxu0 0.0
    %6189 = vmatprep.subr.mxu0 0.0
    %6190 = vmatpush1.msra.mxu0 0.0
    %6191 = vmatprep.subr.mxu0 0.0
    %6192 = vmatpush1.msra.mxu0 0.0
    %6193 = vmatprep.subr.mxu0 0.0
    %6194 = vmatpush1.msra.mxu0 0.0
    %6195 = vmatprep.subr.mxu0 0.0
    %6196 = vmatpush1.msra.mxu0 0.0
    %6197 = vmatprep.subr.mxu0 0.0
    %6198 = vmatpush1.msra.mxu0 0.0
    %6199 = vmatprep.subr.mxu0 0.0
    %6200 = vmatpush1.msra.mxu0 %v6175
    %6201 = vmatprep.subr.mxu0 0.0
    %6202 = vmatpush1.msra.mxu0 %v6174
    %6203 = vmatprep.subr.mxu0 0.0
    %6204 = vmatpush1.msra.mxu0 %v6173
    %6205 = vmatprep.subr.mxu0 0.0
    %6206 = vmatpush1.msra.mxu0 %v6172
    %6207 = vmatprep.subr.mxu0 0.0
    %6208 = vmatpush1.msra.mxu0 %v6171
    %6209 = vmatprep.subr.mxu0 0.0
    %6210 = vmatpush1.msra.mxu0 %v6170
    %6211 = vmatprep.subr.mxu0 0.0
    %6212 = vmatpush1.msra.mxu0 %v6169
    %6213 = vmatprep.subr.mxu0 0.0
    %6214 = vmatpush1.msra.mxu0 %v6168
    %6215 = vmatprep.subr.mxu0 0.0
    %6216 = vmatpush2.msra.mxu0 0.0
    %6217 = vmatprep.subr.mxu0 0.0
    %6218 = vmatpush2.msra.mxu0 0.0
    %6219 = vmatprep.subr.mxu0 0.0
    %6220 = vmatpush2.msra.mxu0 0.0
    %6221 = vmatprep.subr.mxu0 0.0
    %6222 = vmatpush2.msra.mxu0 0.0
    %6223 = vmatprep.subr.mxu0 0.0
    %6224 = vmatpush2.msra.mxu0 0.0
    %6225 = vmatprep.subr.mxu0 0.0
    %6226 = vmatpush2.msra.mxu0 0.0
    %6227 = vmatprep.subr.mxu0 0.0
    %6228 = vmatpush2.msra.mxu0 0.0
    %6229 = vmatprep.subr.mxu0 0.0
    %6230 = vmatpush2.msra.mxu0 0.0
    %6231 = vmatprep.subr.mxu0 0.0
    %6232 = vmatpush2.msra.mxu0 0.0
    %6233 = vmatprep.subr.mxu0 0.0
    %6234 = vmatpush2.msra.mxu0 0.0
    %6235 = vmatprep.subr.mxu0 0.0
    %6236 = vmatpush2.msra.mxu0 0.0
    %6237 = vmatprep.subr.mxu0 0.0
    %6238 = vmatpush2.msra.mxu0 0.0
    %6239 = vmatprep.subr.mxu0 0.0
    %6240 = vmatpush2.msra.mxu0 0.0
    %6241 = vmatprep.subr.mxu0 0.0
    %6242 = vmatpush2.msra.mxu0 0.0
    %6243 = vmatprep.subr.mxu0 0.0
    %6244 = vmatpush2.msra.mxu0 0.0
    %6245 = vmatprep.subr.mxu0 0.0
    %6246 = vmatpush2.msra.mxu0 0.0
    %6247 = vmatprep.mubr.f32.mxu0 0.0
    %6248 = vmatmul.mubr.f32.gmra.mxu0 %v6011
    %v6249 = vpop.f32.mrf.mxu0
    %v6250 = vadd.f32 %v6181, %v6249
    %v6251 = vpop.f32.mrf.mxu0
    %6252 = vdwg.mxu0
    %v6254 = vsel %vm4994, %v6080, 0
    %v6257 = vsel %vm4994, %v6165, 0
    %6259 = vmatprep.subr.mxu0 0.0
    %6260 = vmatpush1.xpose.msra.mxu0 0.0
    %6261 = vmatprep.subr.mxu0 0.0
    %6262 = vmatpush1.xpose.msra.mxu0 0.0
    %6263 = vmatprep.subr.mxu0 0.0
    %6264 = vmatpush1.xpose.msra.mxu0 0.0
    %6265 = vmatprep.subr.mxu0 0.0
    %6266 = vmatpush1.xpose.msra.mxu0 0.0
    %6267 = vmatprep.subr.mxu0 0.0
    %6268 = vmatpush1.xpose.msra.mxu0 0.0
    %6269 = vmatprep.subr.mxu0 0.0
    %6270 = vmatpush1.xpose.msra.mxu0 0.0
    %6271 = vmatprep.subr.mxu0 0.0
    %6272 = vmatpush1.xpose.msra.mxu0 0.0
    %6273 = vmatprep.subr.mxu0 0.0
    %6274 = vmatpush1.xpose.msra.mxu0 0.0
    %6275 = vmatprep.subr.mxu0 0.0
    %6276 = vmatpush1.xpose.msra.mxu0 0.0
    %6277 = vmatprep.subr.mxu0 0.0
    %6278 = vmatpush1.xpose.msra.mxu0 0.0
    %6279 = vmatprep.subr.mxu0 0.0
    %6280 = vmatpush1.xpose.msra.mxu0 0.0
    %6281 = vmatprep.subr.mxu0 0.0
    %6282 = vmatpush1.xpose.msra.mxu0 0.0
    %6283 = vmatprep.subr.mxu0 0.0
    %6284 = vmatpush1.xpose.msra.mxu0 0.0
    %6285 = vmatprep.subr.mxu0 0.0
    %6286 = vmatpush1.xpose.msra.mxu0 0.0
    %6287 = vmatprep.subr.mxu0 0.0
    %6288 = vmatpush1.xpose.msra.mxu0 0.0
    %6289 = vmatprep.subr.mxu0 0.0
    %6290 = vmatpush1.xpose.msra.mxu0 %v6257
    %6291 = vmatprep.subr.mxu0 0.0
    %6292 = vmatpush2.xpose.msra.mxu0 0.0
    %6293 = vmatprep.subr.mxu0 0.0
    %6294 = vmatpush2.xpose.msra.mxu0 0.0
    %6295 = vmatprep.subr.mxu0 0.0
    %6296 = vmatpush2.xpose.msra.mxu0 0.0
    %6297 = vmatprep.subr.mxu0 0.0
    %6298 = vmatpush2.xpose.msra.mxu0 0.0
    %6299 = vmatprep.subr.mxu0 0.0
    %6300 = vmatpush2.xpose.msra.mxu0 0.0
    %6301 = vmatprep.subr.mxu0 0.0
    %6302 = vmatpush2.xpose.msra.mxu0 0.0
    %6303 = vmatprep.subr.mxu0 0.0
    %6304 = vmatpush2.xpose.msra.mxu0 0.0
    %6305 = vmatprep.subr.mxu0 0.0
    %6306 = vmatpush2.xpose.msra.mxu0 0.0
    %6307 = vmatprep.subr.mxu0 0.0
    %6308 = vmatpush2.xpose.msra.mxu0 0.0
    %6309 = vmatprep.subr.mxu0 0.0
    %6310 = vmatpush2.xpose.msra.mxu0 0.0
    %6311 = vmatprep.subr.mxu0 0.0
    %6312 = vmatpush2.xpose.msra.mxu0 0.0
    %6313 = vmatprep.subr.mxu0 0.0
    %6314 = vmatpush2.xpose.msra.mxu0 0.0
    %6315 = vmatprep.subr.mxu0 0.0
    %6316 = vmatpush2.xpose.msra.mxu0 0.0
    %6317 = vmatprep.subr.mxu0 0.0
    %6318 = vmatpush2.xpose.msra.mxu0 0.0
    %6319 = vmatprep.subr.mxu0 0.0
    %6320 = vmatpush2.xpose.msra.mxu0 0.0
    %6321 = vmatprep.subr.mxu0 0.0
    %6322 = vmatpush2.xpose.msra.mxu0 0.0
    %6323 = vmatprep.mubr.f32.mxu0 0.0
    %6324 = vmatmul.mubr.f32.gmra.mxu0 %v6254
    %v6325 = vpop.f32.mrf.mxu0
    %v6326 = vadd.f32 0.0, %v6325
    %v6327 = vpop.f32.mrf.mxu0
    %6328 = vdwg.mxu0
    %v6329 = vmul.f32 %v6326, 0.25
    %vm6330 = vcmask 27648
    %v6331 = vsel %vm6330, %v6329, -inf
    %6332 = vmax.xlane.f32.xlu0 %v6331
    %v6333 = vpop.xlane.xlu0 %6332
    %v6334 = vsub.f32 %v6329, %v6333
    %v6335 = vmul.f32 %v6334, 1.442695
    %v6336 = vpow.pop %v6335
    %v6337 = vsel %vm6330, %v6336, 0.0
    %6338 = vadd.xlane.f32.xlu0 %v6337
    %v6339 = vpop.xlane.xlu0 %6338
    %v6340 = vrcp.pop %v6339
    %v6341 = vmul.f32 %v6336, %v6340
    %vm6342 = vcmask 31744
    %v6344 = vsel %vm6342, %v6341, 0
    %vm6346 = vcmask 1043456
    %v6348 = vsel %vm6346, %v6250, 0
    %6350 = vmatprep.subr.mxu0 0.0
    %6351 = vmatpush1.msra.mxu0 0.0
    %6352 = vmatprep.subr.mxu0 0.0
    %6353 = vmatpush1.msra.mxu0 0.0
    %6354 = vmatprep.subr.mxu0 0.0
    %6355 = vmatpush1.msra.mxu0 0.0
    %6356 = vmatprep.subr.mxu0 0.0
    %6357 = vmatpush1.msra.mxu0 0.0
    %6358 = vmatprep.subr.mxu0 0.0
    %6359 = vmatpush1.msra.mxu0 0.0
    %6360 = vmatprep.subr.mxu0 0.0
    %6361 = vmatpush1.msra.mxu0 0.0
    %6362 = vmatprep.subr.mxu0 0.0
    %6363 = vmatpush1.msra.mxu0 0.0
    %6364 = vmatprep.subr.mxu0 0.0
    %6365 = vmatpush1.msra.mxu0 0.0
    %6366 = vmatprep.subr.mxu0 0.0
    %6367 = vmatpush1.msra.mxu0 0.0
    %6368 = vmatprep.subr.mxu0 0.0
    %6369 = vmatpush1.msra.mxu0 0.0
    %6370 = vmatprep.subr.mxu0 0.0
    %6371 = vmatpush1.msra.mxu0 0.0
    %6372 = vmatprep.subr.mxu0 0.0
    %6373 = vmatpush1.msra.mxu0 0.0
    %6374 = vmatprep.subr.mxu0 0.0
    %6375 = vmatpush1.msra.mxu0 0.0
    %6376 = vmatprep.subr.mxu0 0.0
    %6377 = vmatpush1.msra.mxu0 0.0
    %6378 = vmatprep.subr.mxu0 0.0
    %6379 = vmatpush1.msra.mxu0 0.0
    %6380 = vmatprep.subr.mxu0 0.0
    %6381 = vmatpush1.msra.mxu0 %v6348
    %6382 = vmatprep.subr.mxu0 0.0
    %6383 = vmatpush2.msra.mxu0 0.0
    %6384 = vmatprep.subr.mxu0 0.0
    %6385 = vmatpush2.msra.mxu0 0.0
    %6386 = vmatprep.subr.mxu0 0.0
    %6387 = vmatpush2.msra.mxu0 0.0
    %6388 = vmatprep.subr.mxu0 0.0
    %6389 = vmatpush2.msra.mxu0 0.0
    %6390 = vmatprep.subr.mxu0 0.0
    %6391 = vmatpush2.msra.mxu0 0.0
    %6392 = vmatprep.subr.mxu0 0.0
    %6393 = vmatpush2.msra.mxu0 0.0
    %6394 = vmatprep.subr.mxu0 0.0
    %6395 = vmatpush2.msra.mxu0 0.0
    %6396 = vmatprep.subr.mxu0 0.0
    %6397 = vmatpush2.msra.mxu0 0.0
    %6398 = vmatprep.subr.mxu0 0.0
    %6399 = vmatpush2.msra.mxu0 0.0
    %6400 = vmatprep.subr.mxu0 0.0
    %6401 = vmatpush2.msra.mxu0 0.0
    %6402 = vmatprep.subr.mxu0 0.0
    %6403 = vmatpush2.msra.mxu0 0.0
    %6404 = vmatprep.subr.mxu0 0.0
    %6405 = vmatpush2.msra.mxu0 0.0
    %6406 = vmatprep.subr.mxu0 0.0
    %6407 = vmatpush2.msra.mxu0 0.0
    %6408 = vmatprep.subr.mxu0 0.0
    %6409 = vmatpush2.msra.mxu0 0.0
    %6410 = vmatprep.subr.mxu0 0.0
    %6411 = vmatpush2.msra.mxu0 0.0
    %6412 = vmatprep.subr.mxu0 0.0
    %6413 = vmatpush2.msra.mxu0 0.0
    %6414 = vmatprep.mubr.f32.mxu0 0.0
    %6415 = vmatmul.mubr.f32.gmra.mxu0 %v6344
    %v6416 = vpop.f32.mrf.mxu0
    %v6417 = vadd.f32 0.0, %v6416
    %v6418 = vpop.f32.mrf.mxu0
    %6419 = vdwg.mxu0
    %6420 = vrot.lane.b32.xlu0 %v6080, 112
    %v6421 = vpop.permute.xlu0 %6420
    %6422 = vrot.lane.b32.xlu0 %v6165, 112
    %v6423 = vpop.permute.xlu0 %6422
    %v6424 = vsel %vm4994, %v6421, 0
    %v6426 = vsel %vm4994, %v6423, 0
    %6428 = vmatprep.subr.mxu0 0.0
    %6429 = vmatpush1.xpose.msra.mxu0 0.0
    %6430 = vmatprep.subr.mxu0 0.0
    %6431 = vmatpush1.xpose.msra.mxu0 0.0
    %6432 = vmatprep.subr.mxu0 0.0
    %6433 = vmatpush1.xpose.msra.mxu0 0.0
    %6434 = vmatprep.subr.mxu0 0.0
    %6435 = vmatpush1.xpose.msra.mxu0 0.0
    %6436 = vmatprep.subr.mxu0 0.0
    %6437 = vmatpush1.xpose.msra.mxu0 0.0
    %6438 = vmatprep.subr.mxu0 0.0
    %6439 = vmatpush1.xpose.msra.mxu0 0.0
    %6440 = vmatprep.subr.mxu0 0.0
    %6441 = vmatpush1.xpose.msra.mxu0 0.0
    %6442 = vmatprep.subr.mxu0 0.0
    %6443 = vmatpush1.xpose.msra.mxu0 0.0
    %6444 = vmatprep.subr.mxu0 0.0
    %6445 = vmatpush1.xpose.msra.mxu0 0.0
    %6446 = vmatprep.subr.mxu0 0.0
    %6447 = vmatpush1.xpose.msra.mxu0 0.0
    %6448 = vmatprep.subr.mxu0 0.0
    %6449 = vmatpush1.xpose.msra.mxu0 0.0
    %6450 = vmatprep.subr.mxu0 0.0
    %6451 = vmatpush1.xpose.msra.mxu0 0.0
    %6452 = vmatprep.subr.mxu0 0.0
    %6453 = vmatpush1.xpose.msra.mxu0 0.0
    %6454 = vmatprep.subr.mxu0 0.0
    %6455 = vmatpush1.xpose.msra.mxu0 0.0
    %6456 = vmatprep.subr.mxu0 0.0
    %6457 = vmatpush1.xpose.msra.mxu0 0.0
    %6458 = vmatprep.subr.mxu0 0.0
    %6459 = vmatpush1.xpose.msra.mxu0 %v6426
    %6460 = vmatprep.subr.mxu0 0.0
    %6461 = vmatpush2.xpose.msra.mxu0 0.0
    %6462 = vmatprep.subr.mxu0 0.0
    %6463 = vmatpush2.xpose.msra.mxu0 0.0
    %6464 = vmatprep.subr.mxu0 0.0
    %6465 = vmatpush2.xpose.msra.mxu0 0.0
    %6466 = vmatprep.subr.mxu0 0.0
    %6467 = vmatpush2.xpose.msra.mxu0 0.0
    %6468 = vmatprep.subr.mxu0 0.0
    %6469 = vmatpush2.xpose.msra.mxu0 0.0
    %6470 = vmatprep.subr.mxu0 0.0
    %6471 = vmatpush2.xpose.msra.mxu0 0.0
    %6472 = vmatprep.subr.mxu0 0.0
    %6473 = vmatpush2.xpose.msra.mxu0 0.0
    %6474 = vmatprep.subr.mxu0 0.0
    %6475 = vmatpush2.xpose.msra.mxu0 0.0
    %6476 = vmatprep.subr.mxu0 0.0
    %6477 = vmatpush2.xpose.msra.mxu0 0.0
    %6478 = vmatprep.subr.mxu0 0.0
    %6479 = vmatpush2.xpose.msra.mxu0 0.0
    %6480 = vmatprep.subr.mxu0 0.0
    %6481 = vmatpush2.xpose.msra.mxu0 0.0
    %6482 = vmatprep.subr.mxu0 0.0
    %6483 = vmatpush2.xpose.msra.mxu0 0.0
    %6484 = vmatprep.subr.mxu0 0.0
    %6485 = vmatpush2.xpose.msra.mxu0 0.0
    %6486 = vmatprep.subr.mxu0 0.0
    %6487 = vmatpush2.xpose.msra.mxu0 0.0
    %6488 = vmatprep.subr.mxu0 0.0
    %6489 = vmatpush2.xpose.msra.mxu0 0.0
    %6490 = vmatprep.subr.mxu0 0.0
    %6491 = vmatpush2.xpose.msra.mxu0 0.0
    %6492 = vmatprep.mubr.f32.mxu0 0.0
    %6493 = vmatmul.mubr.f32.gmra.mxu0 %v6424
    %v6494 = vpop.f32.mrf.mxu0
    %v6495 = vadd.f32 0.0, %v6494
    %v6496 = vpop.f32.mrf.mxu0
    %6497 = vdwg.mxu0
    %v6498 = vmul.f32 %v6495, 0.25
    %v6499 = vsel %vm6330, %v6498, -inf
    %6500 = vmax.xlane.f32.xlu0 %v6499
    %v6501 = vpop.xlane.xlu0 %6500
    %v6502 = vsub.f32 %v6498, %v6501
    %v6503 = vmul.f32 %v6502, 1.442695
    %v6504 = vpow.pop %v6503
    %v6505 = vsel %vm6330, %v6504, 0.0
    %6506 = vadd.xlane.f32.xlu0 %v6505
    %v6507 = vpop.xlane.xlu0 %6506
    %v6508 = vrcp.pop %v6507
    %v6509 = vmul.f32 %v6504, %v6508
    %6510 = vrot.lane.b32.xlu0 %v6250, 112
    %v6511 = vpop.permute.xlu0 %6510
    %v6513 = vsel %vm6342, %v6509, 0
    %v6515 = vsel %vm6346, %v6511, 0
    %6517 = vmatprep.subr.mxu0 0.0
    %6518 = vmatpush1.msra.mxu0 0.0
    %6519 = vmatprep.subr.mxu0 0.0
    %6520 = vmatpush1.msra.mxu0 0.0
    %6521 = vmatprep.subr.mxu0 0.0
    %6522 = vmatpush1.msra.mxu0 0.0
    %6523 = vmatprep.subr.mxu0 0.0
    %6524 = vmatpush1.msra.mxu0 0.0
    %6525 = vmatprep.subr.mxu0 0.0
    %6526 = vmatpush1.msra.mxu0 0.0
    %6527 = vmatprep.subr.mxu0 0.0
    %6528 = vmatpush1.msra.mxu0 0.0
    %6529 = vmatprep.subr.mxu0 0.0
    %6530 = vmatpush1.msra.mxu0 0.0
    %6531 = vmatprep.subr.mxu0 0.0
    %6532 = vmatpush1.msra.mxu0 0.0
    %6533 = vmatprep.subr.mxu0 0.0
    %6534 = vmatpush1.msra.mxu0 0.0
    %6535 = vmatprep.subr.mxu0 0.0
    %6536 = vmatpush1.msra.mxu0 0.0
    %6537 = vmatprep.subr.mxu0 0.0
    %6538 = vmatpush1.msra.mxu0 0.0
    %6539 = vmatprep.subr.mxu0 0.0
    %6540 = vmatpush1.msra.mxu0 0.0
    %6541 = vmatprep.subr.mxu0 0.0
    %6542 = vmatpush1.msra.mxu0 0.0
    %6543 = vmatprep.subr.mxu0 0.0
    %6544 = vmatpush1.msra.mxu0 0.0
    %6545 = vmatprep.subr.mxu0 0.0
    %6546 = vmatpush1.msra.mxu0 0.0
    %6547 = vmatprep.subr.mxu0 0.0
    %6548 = vmatpush1.msra.mxu0 %v6515
    %6549 = vmatprep.subr.mxu0 0.0
    %6550 = vmatpush2.msra.mxu0 0.0
    %6551 = vmatprep.subr.mxu0 0.0
    %6552 = vmatpush2.msra.mxu0 0.0
    %6553 = vmatprep.subr.mxu0 0.0
    %6554 = vmatpush2.msra.mxu0 0.0
    %6555 = vmatprep.subr.mxu0 0.0
    %6556 = vmatpush2.msra.mxu0 0.0
    %6557 = vmatprep.subr.mxu0 0.0
    %6558 = vmatpush2.msra.mxu0 0.0
    %6559 = vmatprep.subr.mxu0 0.0
    %6560 = vmatpush2.msra.mxu0 0.0
    %6561 = vmatprep.subr.mxu0 0.0
    %6562 = vmatpush2.msra.mxu0 0.0
    %6563 = vmatprep.subr.mxu0 0.0
    %6564 = vmatpush2.msra.mxu0 0.0
    %6565 = vmatprep.subr.mxu0 0.0
    %6566 = vmatpush2.msra.mxu0 0.0
    %6567 = vmatprep.subr.mxu0 0.0
    %6568 = vmatpush2.msra.mxu0 0.0
    %6569 = vmatprep.subr.mxu0 0.0
    %6570 = vmatpush2.msra.mxu0 0.0
    %6571 = vmatprep.subr.mxu0 0.0
    %6572 = vmatpush2.msra.mxu0 0.0
    %6573 = vmatprep.subr.mxu0 0.0
    %6574 = vmatpush2.msra.mxu0 0.0
    %6575 = vmatprep.subr.mxu0 0.0
    %6576 = vmatpush2.msra.mxu0 0.0
    %6577 = vmatprep.subr.mxu0 0.0
    %6578 = vmatpush2.msra.mxu0 0.0
    %6579 = vmatprep.subr.mxu0 0.0
    %6580 = vmatpush2.msra.mxu0 0.0
    %6581 = vmatprep.mubr.f32.mxu0 0.0
    %6582 = vmatmul.mubr.f32.gmra.mxu0 %v6513
    %v6583 = vpop.f32.mrf.mxu0
    %v6584 = vadd.f32 0.0, %v6583
    %v6585 = vpop.f32.mrf.mxu0
    %6586 = vdwg.mxu0
    %6587 = vrot.lane.b32.xlu0 %v6080, 96
    %v6588 = vpop.permute.xlu0 %6587
    %6589 = vrot.lane.b32.xlu0 %v6165, 96
    %v6590 = vpop.permute.xlu0 %6589
    %v6591 = vsel %vm4994, %v6588, 0
    %v6593 = vsel %vm4994, %v6590, 0
    %6595 = vmatprep.subr.mxu0 0.0
    %6596 = vmatpush1.xpose.msra.mxu0 0.0
    %6597 = vmatprep.subr.mxu0 0.0
    %6598 = vmatpush1.xpose.msra.mxu0 0.0
    %6599 = vmatprep.subr.mxu0 0.0
    %6600 = vmatpush1.xpose.msra.mxu0 0.0
    %6601 = vmatprep.subr.mxu0 0.0
    %6602 = vmatpush1.xpose.msra.mxu0 0.0
    %6603 = vmatprep.subr.mxu0 0.0
    %6604 = vmatpush1.xpose.msra.mxu0 0.0
    %6605 = vmatprep.subr.mxu0 0.0
    %6606 = vmatpush1.xpose.msra.mxu0 0.0
    %6607 = vmatprep.subr.mxu0 0.0
    %6608 = vmatpush1.xpose.msra.mxu0 0.0
    %6609 = vmatprep.subr.mxu0 0.0
    %6610 = vmatpush1.xpose.msra.mxu0 0.0
    %6611 = vmatprep.subr.mxu0 0.0
    %6612 = vmatpush1.xpose.msra.mxu0 0.0
    %6613 = vmatprep.subr.mxu0 0.0
    %6614 = vmatpush1.xpose.msra.mxu0 0.0
    %6615 = vmatprep.subr.mxu0 0.0
    %6616 = vmatpush1.xpose.msra.mxu0 0.0
    %6617 = vmatprep.subr.mxu0 0.0
    %6618 = vmatpush1.xpose.msra.mxu0 0.0
    %6619 = vmatprep.subr.mxu0 0.0
    %6620 = vmatpush1.xpose.msra.mxu0 0.0
    %6621 = vmatprep.subr.mxu0 0.0
    %6622 = vmatpush1.xpose.msra.mxu0 0.0
    %6623 = vmatprep.subr.mxu0 0.0
    %6624 = vmatpush1.xpose.msra.mxu0 0.0
    %6625 = vmatprep.subr.mxu0 0.0
    %6626 = vmatpush1.xpose.msra.mxu0 %v6593
    %6627 = vmatprep.subr.mxu0 0.0
    %6628 = vmatpush2.xpose.msra.mxu0 0.0
    %6629 = vmatprep.subr.mxu0 0.0
    %6630 = vmatpush2.xpose.msra.mxu0 0.0
    %6631 = vmatprep.subr.mxu0 0.0
    %6632 = vmatpush2.xpose.msra.mxu0 0.0
    %6633 = vmatprep.subr.mxu0 0.0
    %6634 = vmatpush2.xpose.msra.mxu0 0.0
    %6635 = vmatprep.subr.mxu0 0.0
    %6636 = vmatpush2.xpose.msra.mxu0 0.0
    %6637 = vmatprep.subr.mxu0 0.0
    %6638 = vmatpush2.xpose.msra.mxu0 0.0
    %6639 = vmatprep.subr.mxu0 0.0
    %6640 = vmatpush2.xpose.msra.mxu0 0.0
    %6641 = vmatprep.subr.mxu0 0.0
    %6642 = vmatpush2.xpose.msra.mxu0 0.0
    %6643 = vmatprep.subr.mxu0 0.0
    %6644 = vmatpush2.xpose.msra.mxu0 0.0
    %6645 = vmatprep.subr.mxu0 0.0
    %6646 = vmatpush2.xpose.msra.mxu0 0.0
    %6647 = vmatprep.subr.mxu0 0.0
    %6648 = vmatpush2.xpose.msra.mxu0 0.0
    %6649 = vmatprep.subr.mxu0 0.0
    %6650 = vmatpush2.xpose.msra.mxu0 0.0
    %6651 = vmatprep.subr.mxu0 0.0
    %6652 = vmatpush2.xpose.msra.mxu0 0.0
    %6653 = vmatprep.subr.mxu0 0.0
    %6654 = vmatpush2.xpose.msra.mxu0 0.0
    %6655 = vmatprep.subr.mxu0 0.0
    %6656 = vmatpush2.xpose.msra.mxu0 0.0
    %6657 = vmatprep.subr.mxu0 0.0
    %6658 = vmatpush2.xpose.msra.mxu0 0.0
    %6659 = vmatprep.mubr.f32.mxu0 0.0
    %6660 = vmatmul.mubr.f32.gmra.mxu0 %v6591
    %v6661 = vpop.f32.mrf.mxu0
    %v6662 = vadd.f32 0.0, %v6661
    %v6663 = vpop.f32.mrf.mxu0
    %6664 = vdwg.mxu0
    %v6665 = vmul.f32 %v6662, 0.25
    %v6666 = vsel %vm6330, %v6665, -inf
    %6667 = vmax.xlane.f32.xlu0 %v6666
    %v6668 = vpop.xlane.xlu0 %6667
    %v6669 = vsub.f32 %v6665, %v6668
    %v6670 = vmul.f32 %v6669, 1.442695
    %v6671 = vpow.pop %v6670
    %v6672 = vsel %vm6330, %v6671, 0.0
    %6673 = vadd.xlane.f32.xlu0 %v6672
    %v6674 = vpop.xlane.xlu0 %6673
    %v6675 = vrcp.pop %v6674
    %v6676 = vmul.f32 %v6671, %v6675
    %6677 = vrot.lane.b32.xlu0 %v6250, 96
    %v6678 = vpop.permute.xlu0 %6677
    %v6680 = vsel %vm6342, %v6676, 0
    %v6682 = vsel %vm6346, %v6678, 0
    %6684 = vmatprep.subr.mxu0 0.0
    %6685 = vmatpush1.msra.mxu0 0.0
    %6686 = vmatprep.subr.mxu0 0.0
    %6687 = vmatpush1.msra.mxu0 0.0
    %6688 = vmatprep.subr.mxu0 0.0
    %6689 = vmatpush1.msra.mxu0 0.0
    %6690 = vmatprep.subr.mxu0 0.0
    %6691 = vmatpush1.msra.mxu0 0.0
    %6692 = vmatprep.subr.mxu0 0.0
    %6693 = vmatpush1.msra.mxu0 0.0
    %6694 = vmatprep.subr.mxu0 0.0
    %6695 = vmatpush1.msra.mxu0 0.0
    %6696 = vmatprep.subr.mxu0 0.0
    %6697 = vmatpush1.msra.mxu0 0.0
    %6698 = vmatprep.subr.mxu0 0.0
    %6699 = vmatpush1.msra.mxu0 0.0
    %6700 = vmatprep.subr.mxu0 0.0
    %6701 = vmatpush1.msra.mxu0 0.0
    %6702 = vmatprep.subr.mxu0 0.0
    %6703 = vmatpush1.msra.mxu0 0.0
    %6704 = vmatprep.subr.mxu0 0.0
    %6705 = vmatpush1.msra.mxu0 0.0
    %6706 = vmatprep.subr.mxu0 0.0
    %6707 = vmatpush1.msra.mxu0 0.0
    %6708 = vmatprep.subr.mxu0 0.0
    %6709 = vmatpush1.msra.mxu0 0.0
    %6710 = vmatprep.subr.mxu0 0.0
    %6711 = vmatpush1.msra.mxu0 0.0
    %6712 = vmatprep.subr.mxu0 0.0
    %6713 = vmatpush1.msra.mxu0 0.0
    %6714 = vmatprep.subr.mxu0 0.0
    %6715 = vmatpush1.msra.mxu0 %v6682
    %6716 = vmatprep.subr.mxu0 0.0
    %6717 = vmatpush2.msra.mxu0 0.0
    %6718 = vmatprep.subr.mxu0 0.0
    %6719 = vmatpush2.msra.mxu0 0.0
    %6720 = vmatprep.subr.mxu0 0.0
    %6721 = vmatpush2.msra.mxu0 0.0
    %6722 = vmatprep.subr.mxu0 0.0
    %6723 = vmatpush2.msra.mxu0 0.0
    %6724 = vmatprep.subr.mxu0 0.0
    %6725 = vmatpush2.msra.mxu0 0.0
    %6726 = vmatprep.subr.mxu0 0.0
    %6727 = vmatpush2.msra.mxu0 0.0
    %6728 = vmatprep.subr.mxu0 0.0
    %6729 = vmatpush2.msra.mxu0 0.0
    %6730 = vmatprep.subr.mxu0 0.0
    %6731 = vmatpush2.msra.mxu0 0.0
    %6732 = vmatprep.subr.mxu0 0.0
    %6733 = vmatpush2.msra.mxu0 0.0
    %6734 = vmatprep.subr.mxu0 0.0
    %6735 = vmatpush2.msra.mxu0 0.0
    %6736 = vmatprep.subr.mxu0 0.0
    %6737 = vmatpush2.msra.mxu0 0.0
    %6738 = vmatprep.subr.mxu0 0.0
    %6739 = vmatpush2.msra.mxu0 0.0
    %6740 = vmatprep.subr.mxu0 0.0
    %6741 = vmatpush2.msra.mxu0 0.0
    %6742 = vmatprep.subr.mxu0 0.0
    %6743 = vmatpush2.msra.mxu0 0.0
    %6744 = vmatprep.subr.mxu0 0.0
    %6745 = vmatpush2.msra.mxu0 0.0
    %6746 = vmatprep.subr.mxu0 0.0
    %6747 = vmatpush2.msra.mxu0 0.0
    %6748 = vmatprep.mubr.f32.mxu0 0.0
    %6749 = vmatmul.mubr.f32.gmra.mxu0 %v6680
    %v6750 = vpop.f32.mrf.mxu0
    %v6751 = vadd.f32 0.0, %v6750
    %v6752 = vpop.f32.mrf.mxu0
    %6753 = vdwg.mxu0
    %6754 = vrot.lane.b32.xlu0 %v6080, 80
    %v6755 = vpop.permute.xlu0 %6754
    %6756 = vrot.lane.b32.xlu0 %v6165, 80
    %v6757 = vpop.permute.xlu0 %6756
    %v6758 = vsel %vm4994, %v6755, 0
    %v6760 = vsel %vm4994, %v6757, 0
    %6762 = vmatprep.subr.mxu0 0.0
    %6763 = vmatpush1.xpose.msra.mxu0 0.0
    %6764 = vmatprep.subr.mxu0 0.0
    %6765 = vmatpush1.xpose.msra.mxu0 0.0
    %6766 = vmatprep.subr.mxu0 0.0
    %6767 = vmatpush1.xpose.msra.mxu0 0.0
    %6768 = vmatprep.subr.mxu0 0.0
    %6769 = vmatpush1.xpose.msra.mxu0 0.0
    %6770 = vmatprep.subr.mxu0 0.0
    %6771 = vmatpush1.xpose.msra.mxu0 0.0
    %6772 = vmatprep.subr.mxu0 0.0
    %6773 = vmatpush1.xpose.msra.mxu0 0.0
    %6774 = vmatprep.subr.mxu0 0.0
    %6775 = vmatpush1.xpose.msra.mxu0 0.0
    %6776 = vmatprep.subr.mxu0 0.0
    %6777 = vmatpush1.xpose.msra.mxu0 0.0
    %6778 = vmatprep.subr.mxu0 0.0
    %6779 = vmatpush1.xpose.msra.mxu0 0.0
    %6780 = vmatprep.subr.mxu0 0.0
    %6781 = vmatpush1.xpose.msra.mxu0 0.0
    %6782 = vmatprep.subr.mxu0 0.0
    %6783 = vmatpush1.xpose.msra.mxu0 0.0
    %6784 = vmatprep.subr.mxu0 0.0
    %6785 = vmatpush1.xpose.msra.mxu0 0.0
    %6786 = vmatprep.subr.mxu0 0.0
    %6787 = vmatpush1.xpose.msra.mxu0 0.0
    %6788 = vmatprep.subr.mxu0 0.0
    %6789 = vmatpush1.xpose.msra.mxu0 0.0
    %6790 = vmatprep.subr.mxu0 0.0
    %6791 = vmatpush1.xpose.msra.mxu0 0.0
    %6792 = vmatprep.subr.mxu0 0.0
    %6793 = vmatpush1.xpose.msra.mxu0 %v6760
    %6794 = vmatprep.subr.mxu0 0.0
    %6795 = vmatpush2.xpose.msra.mxu0 0.0
    %6796 = vmatprep.subr.mxu0 0.0
    %6797 = vmatpush2.xpose.msra.mxu0 0.0
    %6798 = vmatprep.subr.mxu0 0.0
    %6799 = vmatpush2.xpose.msra.mxu0 0.0
    %6800 = vmatprep.subr.mxu0 0.0
    %6801 = vmatpush2.xpose.msra.mxu0 0.0
    %6802 = vmatprep.subr.mxu0 0.0
    %6803 = vmatpush2.xpose.msra.mxu0 0.0
    %6804 = vmatprep.subr.mxu0 0.0
    %6805 = vmatpush2.xpose.msra.mxu0 0.0
    %6806 = vmatprep.subr.mxu0 0.0
    %6807 = vmatpush2.xpose.msra.mxu0 0.0
    %6808 = vmatprep.subr.mxu0 0.0
    %6809 = vmatpush2.xpose.msra.mxu0 0.0
    %6810 = vmatprep.subr.mxu0 0.0
    %6811 = vmatpush2.xpose.msra.mxu0 0.0
    %6812 = vmatprep.subr.mxu0 0.0
    %6813 = vmatpush2.xpose.msra.mxu0 0.0
    %6814 = vmatprep.subr.mxu0 0.0
    %6815 = vmatpush2.xpose.msra.mxu0 0.0
    %6816 = vmatprep.subr.mxu0 0.0
    %6817 = vmatpush2.xpose.msra.mxu0 0.0
    %6818 = vmatprep.subr.mxu0 0.0
    %6819 = vmatpush2.xpose.msra.mxu0 0.0
    %6820 = vmatprep.subr.mxu0 0.0
    %6821 = vmatpush2.xpose.msra.mxu0 0.0
    %6822 = vmatprep.subr.mxu0 0.0
    %6823 = vmatpush2.xpose.msra.mxu0 0.0
    %6824 = vmatprep.subr.mxu0 0.0
    %6825 = vmatpush2.xpose.msra.mxu0 0.0
    %6826 = vmatprep.mubr.f32.mxu0 0.0
    %6827 = vmatmul.mubr.f32.gmra.mxu0 %v6758
    %v6828 = vpop.f32.mrf.mxu0
    %v6829 = vadd.f32 0.0, %v6828
    %v6830 = vpop.f32.mrf.mxu0
    %6831 = vdwg.mxu0
    %v6832 = vmul.f32 %v6829, 0.25
    %v6833 = vsel %vm6330, %v6832, -inf
    %6834 = vmax.xlane.f32.xlu0 %v6833
    %v6835 = vpop.xlane.xlu0 %6834
    %v6836 = vsub.f32 %v6832, %v6835
    %v6837 = vmul.f32 %v6836, 1.442695
    %v6838 = vpow.pop %v6837
    %v6839 = vsel %vm6330, %v6838, 0.0
    %6840 = vadd.xlane.f32.xlu0 %v6839
    %v6841 = vpop.xlane.xlu0 %6840
    %v6842 = vrcp.pop %v6841
    %v6843 = vmul.f32 %v6838, %v6842
    %6844 = vrot.lane.b32.xlu0 %v6250, 80
    %v6845 = vpop.permute.xlu0 %6844
    %v6847 = vsel %vm6342, %v6843, 0
    %v6849 = vsel %vm6346, %v6845, 0
    %6851 = vmatprep.subr.mxu0 0.0
    %6852 = vmatpush1.msra.mxu0 0.0
    %6853 = vmatprep.subr.mxu0 0.0
    %6854 = vmatpush1.msra.mxu0 0.0
    %6855 = vmatprep.subr.mxu0 0.0
    %6856 = vmatpush1.msra.mxu0 0.0
    %6857 = vmatprep.subr.mxu0 0.0
    %6858 = vmatpush1.msra.mxu0 0.0
    %6859 = vmatprep.subr.mxu0 0.0
    %6860 = vmatpush1.msra.mxu0 0.0
    %6861 = vmatprep.subr.mxu0 0.0
    %6862 = vmatpush1.msra.mxu0 0.0
    %6863 = vmatprep.subr.mxu0 0.0
    %6864 = vmatpush1.msra.mxu0 0.0
    %6865 = vmatprep.subr.mxu0 0.0
    %6866 = vmatpush1.msra.mxu0 0.0
    %6867 = vmatprep.subr.mxu0 0.0
    %6868 = vmatpush1.msra.mxu0 0.0
    %6869 = vmatprep.subr.mxu0 0.0
    %6870 = vmatpush1.msra.mxu0 0.0
    %6871 = vmatprep.subr.mxu0 0.0
    %6872 = vmatpush1.msra.mxu0 0.0
    %6873 = vmatprep.subr.mxu0 0.0
    %6874 = vmatpush1.msra.mxu0 0.0
    %6875 = vmatprep.subr.mxu0 0.0
    %6876 = vmatpush1.msra.mxu0 0.0
    %6877 = vmatprep.subr.mxu0 0.0
    %6878 = vmatpush1.msra.mxu0 0.0
    %6879 = vmatprep.subr.mxu0 0.0
    %6880 = vmatpush1.msra.mxu0 0.0
    %6881 = vmatprep.subr.mxu0 0.0
    %6882 = vmatpush1.msra.mxu0 %v6849
    %6883 = vmatprep.subr.mxu0 0.0
    %6884 = vmatpush2.msra.mxu0 0.0
    %6885 = vmatprep.subr.mxu0 0.0
    %6886 = vmatpush2.msra.mxu0 0.0
    %6887 = vmatprep.subr.mxu0 0.0
    %6888 = vmatpush2.msra.mxu0 0.0
    %6889 = vmatprep.subr.mxu0 0.0
    %6890 = vmatpush2.msra.mxu0 0.0
    %6891 = vmatprep.subr.mxu0 0.0
    %6892 = vmatpush2.msra.mxu0 0.0
    %6893 = vmatprep.subr.mxu0 0.0
    %6894 = vmatpush2.msra.mxu0 0.0
    %6895 = vmatprep.subr.mxu0 0.0
    %6896 = vmatpush2.msra.mxu0 0.0
    %6897 = vmatprep.subr.mxu0 0.0
    %6898 = vmatpush2.msra.mxu0 0.0
    %6899 = vmatprep.subr.mxu0 0.0
    %6900 = vmatpush2.msra.mxu0 0.0
    %6901 = vmatprep.subr.mxu0 0.0
    %6902 = vmatpush2.msra.mxu0 0.0
    %6903 = vmatprep.subr.mxu0 0.0
    %6904 = vmatpush2.msra.mxu0 0.0
    %6905 = vmatprep.subr.mxu0 0.0
    %6906 = vmatpush2.msra.mxu0 0.0
    %6907 = vmatprep.subr.mxu0 0.0
    %6908 = vmatpush2.msra.mxu0 0.0
    %6909 = vmatprep.subr.mxu0 0.0
    %6910 = vmatpush2.msra.mxu0 0.0
    %6911 = vmatprep.subr.mxu0 0.0
    %6912 = vmatpush2.msra.mxu0 0.0
    %6913 = vmatprep.subr.mxu0 0.0
    %6914 = vmatpush2.msra.mxu0 0.0
    %6915 = vmatprep.mubr.f32.mxu0 0.0
    %6916 = vmatmul.mubr.f32.gmra.mxu0 %v6847
    %v6917 = vpop.f32.mrf.mxu0
    %v6918 = vadd.f32 0.0, %v6917
    %v6919 = vpop.f32.mrf.mxu0
    %6920 = vdwg.mxu0
    %6922 = vrot.lane.b32.xlu0 %v6584, 16
    %v6923 = vpop.permute.xlu0 %6922
    %6926 = vrot.lane.b32.xlu0 %v6751, 32
    %v6927 = vpop.permute.xlu0 %6926
    %6930 = vrot.lane.b32.xlu0 %v6918, 48
    %v6931 = vpop.permute.xlu0 %6930
    %v6933 = vsel %vm4994, %v6417, %v6923
    %v6934 = vsel %vm898, %v6933, %v6927
    %vm6935 = vcmask 392192
    %v6936 = vsel %vm6935, %v6934, %v6931
    %v6937 = vld [vmem:[%s19] sm:$0xff]
    %v6938 = vld [vmem:[%s19 + $0x8] sm:$0xff]
    %v6939 = vld [vmem:[%s19 + $0x10] sm:$0xff]
    %v6940 = vld [vmem:[%s19 + $0x18] sm:$0xff]
    %v6941 = vld [vmem:[%s19 + $0x20] sm:$0xff]
    %v6942 = vld [vmem:[%s19 + $0x28] sm:$0xff]
    %v6943 = vld [vmem:[%s19 + $0x30] sm:$0xff]
    %v6944 = vld [vmem:[%s19 + $0x38] sm:$0xff]
    %v6945 = vld [vmem:[%s19 + $0x40] sm:$0xff]
    %v6946 = vld [vmem:[%s19 + $0x48] sm:$0xff]
    %v6947 = vld [vmem:[%s19 + $0x50] sm:$0xff]
    %v6948 = vld [vmem:[%s19 + $0x58] sm:$0xff]
    %v6949 = vld [vmem:[%s19 + $0x60] sm:$0xff]
    %v6950 = vld [vmem:[%s19 + $0x68] sm:$0xff]
    %v6951 = vld [vmem:[%s19 + $0x70] sm:$0xff]
    %v6952 = vld [vmem:[%s19 + $0x78] sm:$0xff]
    %v6953 = vld [vmem:[%s19 + $0x80] sm:$0xff]
    %v6954 = vld [vmem:[%s19 + $0x88] sm:$0xff]
    %v6955 = vld [vmem:[%s19 + $0x90] sm:$0xff]
    %v6956 = vld [vmem:[%s19 + $0x98] sm:$0xff]
    %v6957 = vld [vmem:[%s19 + $0xa0] sm:$0xff]
    %v6958 = vld [vmem:[%s19 + $0xa8] sm:$0xff]
    %v6959 = vld [vmem:[%s19 + $0xb0] sm:$0xff]
    %v6960 = vld [vmem:[%s19 + $0xb8] sm:$0xff]
    %v6961 = vld [vmem:[%s19 + $0xc0] sm:$0xff]
    %v6962 = vld [vmem:[%s19 + $0xc8] sm:$0xff]
    %v6963 = vld [vmem:[%s19 + $0xd0] sm:$0xff]
    %v6964 = vld [vmem:[%s19 + $0xd8] sm:$0xff]
    %v6965 = vld [vmem:[%s19 + $0xe0] sm:$0xff]
    %v6966 = vld [vmem:[%s19 + $0xe8] sm:$0xff]
    %v6967 = vld [vmem:[%s19 + $0xf0] sm:$0xff]
    %v6968 = vld [vmem:[%s19 + $0xf8] sm:$0xff]
    %v6969 = vld [vmem:[#allocation22] sm:$0xf]
    %v6971 = vlaneseq
    %v6972 = vshrl.u32 %v6971, 7
    %v6973 = vsub.s32 0, %v6972
    %v6974 = vrot.slane %v6969, %v6973
    %v6975 = vlaneseq
    %v6976 = vshrl.u32 %v6975, 7
    %v6977 = vsub.s32 1, %v6976
    %v6978 = vrot.slane %v6969, %v6977
    %v6979 = vlaneseq
    %v6980 = vshrl.u32 %v6979, 7
    %v6981 = vsub.s32 2, %v6980
    %v6982 = vrot.slane %v6969, %v6981
    %v6983 = vlaneseq
    %v6984 = vshrl.u32 %v6983, 7
    %v6985 = vsub.s32 3, %v6984
    %v6986 = vrot.slane %v6969, %v6985
    %v6992 = vsel %vm6009, %v5993, 0
    %6994 = vmatprep.subr.mxu0 0.0
    %6995 = vmatpush1.msra.mxu0 0.0
    %6996 = vmatprep.subr.mxu0 0.0
    %6997 = vmatpush1.msra.mxu0 0.0
    %6998 = vmatprep.subr.mxu0 0.0
    %6999 = vmatpush1.msra.mxu0 0.0
    %7000 = vmatprep.subr.mxu0 0.0
    %7001 = vmatpush1.msra.mxu0 0.0
    %7002 = vmatprep.subr.mxu0 0.0
    %7003 = vmatpush1.msra.mxu0 0.0
    %7004 = vmatprep.subr.mxu0 0.0
    %7005 = vmatpush1.msra.mxu0 0.0
    %7006 = vmatprep.subr.mxu0 0.0
    %7007 = vmatpush1.msra.mxu0 0.0
    %7008 = vmatprep.subr.mxu0 0.0
    %7009 = vmatpush1.msra.mxu0 0.0
    %7010 = vmatprep.subr.mxu0 %v6966
    %7011 = vmatpush1.msra.mxu0 %v6965
    %7012 = vmatprep.subr.mxu0 %v6962
    %7013 = vmatpush1.msra.mxu0 %v6961
    %7014 = vmatprep.subr.mxu0 %v6958
    %7015 = vmatpush1.msra.mxu0 %v6957
    %7016 = vmatprep.subr.mxu0 %v6954
    %7017 = vmatpush1.msra.mxu0 %v6953
    %7018 = vmatprep.subr.mxu0 %v6950
    %7019 = vmatpush1.msra.mxu0 %v6949
    %7020 = vmatprep.subr.mxu0 %v6946
    %7021 = vmatpush1.msra.mxu0 %v6945
    %7022 = vmatprep.subr.mxu0 %v6942
    %7023 = vmatpush1.msra.mxu0 %v6941
    %7024 = vmatprep.subr.mxu0 %v6938
    %7025 = vmatpush1.msra.mxu0 %v6937
    %7026 = vmatprep.subr.mxu0 0.0
    %7027 = vmatpush2.msra.mxu0 0.0
    %7028 = vmatprep.subr.mxu0 0.0
    %7029 = vmatpush2.msra.mxu0 0.0
    %7030 = vmatprep.subr.mxu0 0.0
    %7031 = vmatpush2.msra.mxu0 0.0
    %7032 = vmatprep.subr.mxu0 0.0
    %7033 = vmatpush2.msra.mxu0 0.0
    %7034 = vmatprep.subr.mxu0 0.0
    %7035 = vmatpush2.msra.mxu0 0.0
    %7036 = vmatprep.subr.mxu0 0.0
    %7037 = vmatpush2.msra.mxu0 0.0
    %7038 = vmatprep.subr.mxu0 0.0
    %7039 = vmatpush2.msra.mxu0 0.0
    %7040 = vmatprep.subr.mxu0 0.0
    %7041 = vmatpush2.msra.mxu0 0.0
    %7042 = vmatprep.subr.mxu0 0.0
    %7043 = vmatpush2.msra.mxu0 0.0
    %7044 = vmatprep.subr.mxu0 0.0
    %7045 = vmatpush2.msra.mxu0 0.0
    %7046 = vmatprep.subr.mxu0 0.0
    %7047 = vmatpush2.msra.mxu0 0.0
    %7048 = vmatprep.subr.mxu0 0.0
    %7049 = vmatpush2.msra.mxu0 0.0
    %7050 = vmatprep.subr.mxu0 0.0
    %7051 = vmatpush2.msra.mxu0 0.0
    %7052 = vmatprep.subr.mxu0 0.0
    %7053 = vmatpush2.msra.mxu0 0.0
    %7054 = vmatprep.subr.mxu0 0.0
    %7055 = vmatpush2.msra.mxu0 0.0
    %7056 = vmatprep.subr.mxu0 0.0
    %7057 = vmatpush2.msra.mxu0 0.0
    %7058 = vmatprep.mubr.f32.mxu0 0.0
    %7059 = vmatmul.mubr.f32.gmra.mxu0 %v6992
    %v7060 = vpop.f32.mrf.mxu0
    %v7061 = vadd.f32 %v6974, %v7060
    %v7062 = vpop.f32.mrf.mxu0
    %v7063 = vadd.f32 %v6978, %v7062
    %7064 = vdwg.mxu0
    %7065 = vmatprep.subr.mxu0 0.0
    %7066 = vmatpush1.msra.mxu0 0.0
    %7067 = vmatprep.subr.mxu0 0.0
    %7068 = vmatpush1.msra.mxu0 0.0
    %7069 = vmatprep.subr.mxu0 0.0
    %7070 = vmatpush1.msra.mxu0 0.0
    %7071 = vmatprep.subr.mxu0 0.0
    %7072 = vmatpush1.msra.mxu0 0.0
    %7073 = vmatprep.subr.mxu0 0.0
    %7074 = vmatpush1.msra.mxu0 0.0
    %7075 = vmatprep.subr.mxu0 0.0
    %7076 = vmatpush1.msra.mxu0 0.0
    %7077 = vmatprep.subr.mxu0 0.0
    %7078 = vmatpush1.msra.mxu0 0.0
    %7079 = vmatprep.subr.mxu0 0.0
    %7080 = vmatpush1.msra.mxu0 0.0
    %7081 = vmatprep.subr.mxu0 %v6968
    %7082 = vmatpush1.msra.mxu0 %v6967
    %7083 = vmatprep.subr.mxu0 %v6964
    %7084 = vmatpush1.msra.mxu0 %v6963
    %7085 = vmatprep.subr.mxu0 %v6960
    %7086 = vmatpush1.msra.mxu0 %v6959
    %7087 = vmatprep.subr.mxu0 %v6956
    %7088 = vmatpush1.msra.mxu0 %v6955
    %7089 = vmatprep.subr.mxu0 %v6952
    %7090 = vmatpush1.msra.mxu0 %v6951
    %7091 = vmatprep.subr.mxu0 %v6948
    %7092 = vmatpush1.msra.mxu0 %v6947
    %7093 = vmatprep.subr.mxu0 %v6944
    %7094 = vmatpush1.msra.mxu0 %v6943
    %7095 = vmatprep.subr.mxu0 %v6940
    %7096 = vmatpush1.msra.mxu0 %v6939
    %7097 = vmatprep.subr.mxu0 0.0
    %7098 = vmatpush2.msra.mxu0 0.0
    %7099 = vmatprep.subr.mxu0 0.0
    %7100 = vmatpush2.msra.mxu0 0.0
    %7101 = vmatprep.subr.mxu0 0.0
    %7102 = vmatpush2.msra.mxu0 0.0
    %7103 = vmatprep.subr.mxu0 0.0
    %7104 = vmatpush2.msra.mxu0 0.0
    %7105 = vmatprep.subr.mxu0 0.0
    %7106 = vmatpush2.msra.mxu0 0.0
    %7107 = vmatprep.subr.mxu0 0.0
    %7108 = vmatpush2.msra.mxu0 0.0
    %7109 = vmatprep.subr.mxu0 0.0
    %7110 = vmatpush2.msra.mxu0 0.0
    %7111 = vmatprep.subr.mxu0 0.0
    %7112 = vmatpush2.msra.mxu0 0.0
    %7113 = vmatprep.subr.mxu0 0.0
    %7114 = vmatpush2.msra.mxu0 0.0
    %7115 = vmatprep.subr.mxu0 0.0
    %7116 = vmatpush2.msra.mxu0 0.0
    %7117 = vmatprep.subr.mxu0 0.0
    %7118 = vmatpush2.msra.mxu0 0.0
    %7119 = vmatprep.subr.mxu0 0.0
    %7120 = vmatpush2.msra.mxu0 0.0
    %7121 = vmatprep.subr.mxu0 0.0
    %7122 = vmatpush2.msra.mxu0 0.0
    %7123 = vmatprep.subr.mxu0 0.0
    %7124 = vmatpush2.msra.mxu0 0.0
    %7125 = vmatprep.subr.mxu0 0.0
    %7126 = vmatpush2.msra.mxu0 0.0
    %7127 = vmatprep.subr.mxu0 0.0
    %7128 = vmatpush2.msra.mxu0 0.0
    %7129 = vmatprep.mubr.f32.mxu0 0.0
    %7130 = vmatmul.mubr.f32.gmra.mxu0 %v6992
    %v7131 = vpop.f32.mrf.mxu0
    %v7132 = vadd.f32 %v6982, %v7131
    %v7133 = vpop.f32.mrf.mxu0
    %v7134 = vadd.f32 %v6986, %v7133
    %7135 = vdwg.mxu0
    %v7136 = vld [vmem:[#allocation19] sm:$0xff]
    %v7137 = vld [vmem:[#allocation19 + $0x8] sm:$0xff]
    %v7138 = vld [vmem:[#allocation19 + $0x10] sm:$0xff]
    %v7139 = vld [vmem:[#allocation19 + $0x18] sm:$0xff]
    %v7140 = vld [vmem:[#allocation19 + $0x20] sm:$0xff]
    %v7141 = vld [vmem:[#allocation19 + $0x28] sm:$0xff]
    %v7142 = vld [vmem:[#allocation19 + $0x30] sm:$0xff]
    %v7143 = vld [vmem:[#allocation19 + $0x38] sm:$0xff]
    %v7144 = vld [vmem:[#allocation19 + $0x40] sm:$0xff]
    %v7145 = vld [vmem:[#allocation19 + $0x48] sm:$0xff]
    %v7146 = vld [vmem:[#allocation19 + $0x50] sm:$0xff]
    %v7147 = vld [vmem:[#allocation19 + $0x58] sm:$0xff]
    %v7148 = vld [vmem:[#allocation19 + $0x60] sm:$0xff]
    %v7149 = vld [vmem:[#allocation19 + $0x68] sm:$0xff]
    %v7150 = vld [vmem:[#allocation19 + $0x70] sm:$0xff]
    %v7151 = vld [vmem:[#allocation19 + $0x78] sm:$0xff]
    %v7152 = vld [vmem:[#allocation19 + $0x80] sm:$0xff]
    %v7153 = vld [vmem:[#allocation19 + $0x88] sm:$0xff]
    %v7154 = vld [vmem:[#allocation19 + $0x90] sm:$0xff]
    %v7155 = vld [vmem:[#allocation19 + $0x98] sm:$0xff]
    %v7156 = vld [vmem:[#allocation19 + $0xa0] sm:$0xff]
    %v7157 = vld [vmem:[#allocation19 + $0xa8] sm:$0xff]
    %v7158 = vld [vmem:[#allocation19 + $0xb0] sm:$0xff]
    %v7159 = vld [vmem:[#allocation19 + $0xb8] sm:$0xff]
    %v7160 = vld [vmem:[#allocation19 + $0xc0] sm:$0xff]
    %v7161 = vld [vmem:[#allocation19 + $0xc8] sm:$0xff]
    %v7162 = vld [vmem:[#allocation19 + $0xd0] sm:$0xff]
    %v7163 = vld [vmem:[#allocation19 + $0xd8] sm:$0xff]
    %v7164 = vld [vmem:[#allocation19 + $0xe0] sm:$0xff]
    %v7165 = vld [vmem:[#allocation19 + $0xe8] sm:$0xff]
    %v7166 = vld [vmem:[#allocation19 + $0xf0] sm:$0xff]
    %v7167 = vld [vmem:[#allocation19 + $0xf8] sm:$0xff]
    %v7168 = vld [vmem:[#allocation20] sm:$0xff]
    %v7169 = vld [vmem:[#allocation20 + $0x8] sm:$0xff]
    %v7170 = vld [vmem:[#allocation20 + $0x10] sm:$0xff]
    %v7171 = vld [vmem:[#allocation20 + $0x18] sm:$0xff]
    %v7172 = vld [vmem:[#allocation20 + $0x20] sm:$0xff]
    %v7173 = vld [vmem:[#allocation20 + $0x28] sm:$0xff]
    %v7174 = vld [vmem:[#allocation20 + $0x30] sm:$0xff]
    %v7175 = vld [vmem:[#allocation20 + $0x38] sm:$0xff]
    %v7176 = vld [vmem:[#allocation20 + $0x40] sm:$0xff]
    %v7177 = vld [vmem:[#allocation20 + $0x48] sm:$0xff]
    %v7178 = vld [vmem:[#allocation20 + $0x50] sm:$0xff]
    %v7179 = vld [vmem:[#allocation20 + $0x58] sm:$0xff]
    %v7180 = vld [vmem:[#allocation20 + $0x60] sm:$0xff]
    %v7181 = vld [vmem:[#allocation20 + $0x68] sm:$0xff]
    %v7182 = vld [vmem:[#allocation20 + $0x70] sm:$0xff]
    %v7183 = vld [vmem:[#allocation20 + $0x78] sm:$0xff]
    %v7184 = vld [vmem:[#allocation20 + $0x80] sm:$0xff]
    %v7185 = vld [vmem:[#allocation20 + $0x88] sm:$0xff]
    %v7186 = vld [vmem:[#allocation20 + $0x90] sm:$0xff]
    %v7187 = vld [vmem:[#allocation20 + $0x98] sm:$0xff]
    %v7188 = vld [vmem:[#allocation20 + $0xa0] sm:$0xff]
    %v7189 = vld [vmem:[#allocation20 + $0xa8] sm:$0xff]
    %v7190 = vld [vmem:[#allocation20 + $0xb0] sm:$0xff]
    %v7191 = vld [vmem:[#allocation20 + $0xb8] sm:$0xff]
    %v7192 = vld [vmem:[#allocation20 + $0xc0] sm:$0xff]
    %v7193 = vld [vmem:[#allocation20 + $0xc8] sm:$0xff]
    %v7194 = vld [vmem:[#allocation20 + $0xd0] sm:$0xff]
    %v7195 = vld [vmem:[#allocation20 + $0xd8] sm:$0xff]
    %v7196 = vld [vmem:[#allocation20 + $0xe0] sm:$0xff]
    %v7197 = vld [vmem:[#allocation20 + $0xe8] sm:$0xff]
    %v7198 = vld [vmem:[#allocation20 + $0xf0] sm:$0xff]
    %v7199 = vld [vmem:[#allocation20 + $0xf8] sm:$0xff]
    %v7201 = vsel %vm6009, 0.0, 0
    %7203 = vmatprep.subr.mxu0 0.0
    %7204 = vmatpush1.msra.mxu0 0.0
    %7205 = vmatprep.subr.mxu0 0.0
    %7206 = vmatpush1.msra.mxu0 0.0
    %7207 = vmatprep.subr.mxu0 0.0
    %7208 = vmatpush1.msra.mxu0 0.0
    %7209 = vmatprep.subr.mxu0 0.0
    %7210 = vmatpush1.msra.mxu0 0.0
    %7211 = vmatprep.subr.mxu0 0.0
    %7212 = vmatpush1.msra.mxu0 0.0
    %7213 = vmatprep.subr.mxu0 0.0
    %7214 = vmatpush1.msra.mxu0 0.0
    %7215 = vmatprep.subr.mxu0 0.0
    %7216 = vmatpush1.msra.mxu0 0.0
    %7217 = vmatprep.subr.mxu0 0.0
    %7218 = vmatpush1.msra.mxu0 0.0
    %7219 = vmatprep.subr.mxu0 %v7165
    %7220 = vmatpush1.msra.mxu0 %v7164
    %7221 = vmatprep.subr.mxu0 %v7161
    %7222 = vmatpush1.msra.mxu0 %v7160
    %7223 = vmatprep.subr.mxu0 %v7157
    %7224 = vmatpush1.msra.mxu0 %v7156
    %7225 = vmatprep.subr.mxu0 %v7153
    %7226 = vmatpush1.msra.mxu0 %v7152
    %7227 = vmatprep.subr.mxu0 %v7149
    %7228 = vmatpush1.msra.mxu0 %v7148
    %7229 = vmatprep.subr.mxu0 %v7145
    %7230 = vmatpush1.msra.mxu0 %v7144
    %7231 = vmatprep.subr.mxu0 %v7141
    %7232 = vmatpush1.msra.mxu0 %v7140
    %7233 = vmatprep.subr.mxu0 %v7137
    %7234 = vmatpush1.msra.mxu0 %v7136
    %7235 = vmatprep.subr.mxu0 0.0
    %7236 = vmatpush2.msra.mxu0 0.0
    %7237 = vmatprep.subr.mxu0 0.0
    %7238 = vmatpush2.msra.mxu0 0.0
    %7239 = vmatprep.subr.mxu0 0.0
    %7240 = vmatpush2.msra.mxu0 0.0
    %7241 = vmatprep.subr.mxu0 0.0
    %7242 = vmatpush2.msra.mxu0 0.0
    %7243 = vmatprep.subr.mxu0 0.0
    %7244 = vmatpush2.msra.mxu0 0.0
    %7245 = vmatprep.subr.mxu0 0.0
    %7246 = vmatpush2.msra.mxu0 0.0
    %7247 = vmatprep.subr.mxu0 0.0
    %7248 = vmatpush2.msra.mxu0 0.0
    %7249 = vmatprep.subr.mxu0 0.0
    %7250 = vmatpush2.msra.mxu0 0.0
    %7251 = vmatprep.subr.mxu0 0.0
    %7252 = vmatpush2.msra.mxu0 0.0
    %7253 = vmatprep.subr.mxu0 0.0
    %7254 = vmatpush2.msra.mxu0 0.0
    %7255 = vmatprep.subr.mxu0 0.0
    %7256 = vmatpush2.msra.mxu0 0.0
    %7257 = vmatprep.subr.mxu0 0.0
    %7258 = vmatpush2.msra.mxu0 0.0
    %7259 = vmatprep.subr.mxu0 0.0
    %7260 = vmatpush2.msra.mxu0 0.0
    %7261 = vmatprep.subr.mxu0 0.0
    %7262 = vmatpush2.msra.mxu0 0.0
    %7263 = vmatprep.subr.mxu0 0.0
    %7264 = vmatpush2.msra.mxu0 0.0
    %7265 = vmatprep.subr.mxu0 0.0
    %7266 = vmatpush2.msra.mxu0 0.0
    %7267 = vmatprep.mubr.f32.mxu0 0.0
    %7268 = vmatmul.mubr.f32.gmra.mxu0 %v7201
    %v7269 = vpop.f32.mrf.mxu0
    %v7270 = vadd.f32 0.0, %v7269
    %v7271 = vpop.f32.mrf.mxu0
    %v7272 = vadd.f32 0.0, %v7271
    %7273 = vdwg.mxu0
    %7274 = vmatprep.subr.mxu0 0.0
    %7275 = vmatpush1.msra.mxu0 0.0
    %7276 = vmatprep.subr.mxu0 0.0
    %7277 = vmatpush1.msra.mxu0 0.0
    %7278 = vmatprep.subr.mxu0 0.0
    %7279 = vmatpush1.msra.mxu0 0.0
    %7280 = vmatprep.subr.mxu0 0.0
    %7281 = vmatpush1.msra.mxu0 0.0
    %7282 = vmatprep.subr.mxu0 0.0
    %7283 = vmatpush1.msra.mxu0 0.0
    %7284 = vmatprep.subr.mxu0 0.0
    %7285 = vmatpush1.msra.mxu0 0.0
    %7286 = vmatprep.subr.mxu0 0.0
    %7287 = vmatpush1.msra.mxu0 0.0
    %7288 = vmatprep.subr.mxu0 0.0
    %7289 = vmatpush1.msra.mxu0 0.0
    %7290 = vmatprep.subr.mxu0 %v7167
    %7291 = vmatpush1.msra.mxu0 %v7166
    %7292 = vmatprep.subr.mxu0 %v7163
    %7293 = vmatpush1.msra.mxu0 %v7162
    %7294 = vmatprep.subr.mxu0 %v7159
    %7295 = vmatpush1.msra.mxu0 %v7158
    %7296 = vmatprep.subr.mxu0 %v7155
    %7297 = vmatpush1.msra.mxu0 %v7154
    %7298 = vmatprep.subr.mxu0 %v7151
    %7299 = vmatpush1.msra.mxu0 %v7150
    %7300 = vmatprep.subr.mxu0 %v7147
    %7301 = vmatpush1.msra.mxu0 %v7146
    %7302 = vmatprep.subr.mxu0 %v7143
    %7303 = vmatpush1.msra.mxu0 %v7142
    %7304 = vmatprep.subr.mxu0 %v7139
    %7305 = vmatpush1.msra.mxu0 %v7138
    %7306 = vmatprep.subr.mxu0 0.0
    %7307 = vmatpush2.msra.mxu0 0.0
    %7308 = vmatprep.subr.mxu0 0.0
    %7309 = vmatpush2.msra.mxu0 0.0
    %7310 = vmatprep.subr.mxu0 0.0
    %7311 = vmatpush2.msra.mxu0 0.0
    %7312 = vmatprep.subr.mxu0 0.0
    %7313 = vmatpush2.msra.mxu0 0.0
    %7314 = vmatprep.subr.mxu0 0.0
    %7315 = vmatpush2.msra.mxu0 0.0
    %7316 = vmatprep.subr.mxu0 0.0
    %7317 = vmatpush2.msra.mxu0 0.0
    %7318 = vmatprep.subr.mxu0 0.0
    %7319 = vmatpush2.msra.mxu0 0.0
    %7320 = vmatprep.subr.mxu0 0.0
    %7321 = vmatpush2.msra.mxu0 0.0
    %7322 = vmatprep.subr.mxu0 0.0
    %7323 = vmatpush2.msra.mxu0 0.0
    %7324 = vmatprep.subr.mxu0 0.0
    %7325 = vmatpush2.msra.mxu0 0.0
    %7326 = vmatprep.subr.mxu0 0.0
    %7327 = vmatpush2.msra.mxu0 0.0
    %7328 = vmatprep.subr.mxu0 0.0
    %7329 = vmatpush2.msra.mxu0 0.0
    %7330 = vmatprep.subr.mxu0 0.0
    %7331 = vmatpush2.msra.mxu0 0.0
    %7332 = vmatprep.subr.mxu0 0.0
    %7333 = vmatpush2.msra.mxu0 0.0
    %7334 = vmatprep.subr.mxu0 0.0
    %7335 = vmatpush2.msra.mxu0 0.0
    %7336 = vmatprep.subr.mxu0 0.0
    %7337 = vmatpush2.msra.mxu0 0.0
    %7338 = vmatprep.mubr.f32.mxu0 0.0
    %7339 = vmatmul.mubr.f32.gmra.mxu0 %v7201
    %v7340 = vpop.f32.mrf.mxu0
    %v7341 = vadd.f32 0.0, %v7340
    %v7342 = vpop.f32.mrf.mxu0
    %v7343 = vadd.f32 0.0, %v7342
    %7344 = vdwg.mxu0
    %v7345 = vadd.f32 %v7061, %v7270
    %v7346 = vadd.f32 %v7063, %v7272
    %v7347 = vadd.f32 %v7132, %v7341
    %v7348 = vadd.f32 %v7134, %v7343
    %7349 = vmatprep.subr.mxu0 0.0
    %7350 = vmatpush1.msra.mxu0 0.0
    %7351 = vmatprep.subr.mxu0 0.0
    %7352 = vmatpush1.msra.mxu0 0.0
    %7353 = vmatprep.subr.mxu0 0.0
    %7354 = vmatpush1.msra.mxu0 0.0
    %7355 = vmatprep.subr.mxu0 0.0
    %7356 = vmatpush1.msra.mxu0 0.0
    %7357 = vmatprep.subr.mxu0 0.0
    %7358 = vmatpush1.msra.mxu0 0.0
    %7359 = vmatprep.subr.mxu0 0.0
    %7360 = vmatpush1.msra.mxu0 0.0
    %7361 = vmatprep.subr.mxu0 0.0
    %7362 = vmatpush1.msra.mxu0 0.0
    %7363 = vmatprep.subr.mxu0 0.0
    %7364 = vmatpush1.msra.mxu0 0.0
    %7365 = vmatprep.subr.mxu0 %v7197
    %7366 = vmatpush1.msra.mxu0 %v7196
    %7367 = vmatprep.subr.mxu0 %v7193
    %7368 = vmatpush1.msra.mxu0 %v7192
    %7369 = vmatprep.subr.mxu0 %v7189
    %7370 = vmatpush1.msra.mxu0 %v7188
    %7371 = vmatprep.subr.mxu0 %v7185
    %7372 = vmatpush1.msra.mxu0 %v7184
    %7373 = vmatprep.subr.mxu0 %v7181
    %7374 = vmatpush1.msra.mxu0 %v7180
    %7375 = vmatprep.subr.mxu0 %v7177
    %7376 = vmatpush1.msra.mxu0 %v7176
    %7377 = vmatprep.subr.mxu0 %v7173
    %7378 = vmatpush1.msra.mxu0 %v7172
    %7379 = vmatprep.subr.mxu0 %v7169
    %7380 = vmatpush1.msra.mxu0 %v7168
    %7381 = vmatprep.subr.mxu0 0.0
    %7382 = vmatpush2.msra.mxu0 0.0
    %7383 = vmatprep.subr.mxu0 0.0
    %7384 = vmatpush2.msra.mxu0 0.0
    %7385 = vmatprep.subr.mxu0 0.0
    %7386 = vmatpush2.msra.mxu0 0.0
    %7387 = vmatprep.subr.mxu0 0.0
    %7388 = vmatpush2.msra.mxu0 0.0
    %7389 = vmatprep.subr.mxu0 0.0
    %7390 = vmatpush2.msra.mxu0 0.0
    %7391 = vmatprep.subr.mxu0 0.0
    %7392 = vmatpush2.msra.mxu0 0.0
    %7393 = vmatprep.subr.mxu0 0.0
    %7394 = vmatpush2.msra.mxu0 0.0
    %7395 = vmatprep.subr.mxu0 0.0
    %7396 = vmatpush2.msra.mxu0 0.0
    %7397 = vmatprep.subr.mxu0 0.0
    %7398 = vmatpush2.msra.mxu0 0.0
    %7399 = vmatprep.subr.mxu0 0.0
    %7400 = vmatpush2.msra.mxu0 0.0
    %7401 = vmatprep.subr.mxu0 0.0
    %7402 = vmatpush2.msra.mxu0 0.0
    %7403 = vmatprep.subr.mxu0 0.0
    %7404 = vmatpush2.msra.mxu0 0.0
    %7405 = vmatprep.subr.mxu0 0.0
    %7406 = vmatpush2.msra.mxu0 0.0
    %7407 = vmatprep.subr.mxu0 0.0
    %7408 = vmatpush2.msra.mxu0 0.0
    %7409 = vmatprep.subr.mxu0 0.0
    %7410 = vmatpush2.msra.mxu0 0.0
    %7411 = vmatprep.subr.mxu0 0.0
    %7412 = vmatpush2.msra.mxu0 0.0
    %7413 = vmatprep.mubr.f32.mxu0 0.0
    %7414 = vmatmul.mubr.f32.gmra.mxu0 %v7201
    %v7415 = vpop.f32.mrf.mxu0
    %v7416 = vadd.f32 0.0, %v7415
    %v7417 = vpop.f32.mrf.mxu0
    %v7418 = vadd.f32 0.0, %v7417
    %7419 = vdwg.mxu0
    %7420 = vmatprep.subr.mxu0 0.0
    %7421 = vmatpush1.msra.mxu0 0.0
    %7422 = vmatprep.subr.mxu0 0.0
    %7423 = vmatpush1.msra.mxu0 0.0
    %7424 = vmatprep.subr.mxu0 0.0
    %7425 = vmatpush1.msra.mxu0 0.0
    %7426 = vmatprep.subr.mxu0 0.0
    %7427 = vmatpush1.msra.mxu0 0.0
    %7428 = vmatprep.subr.mxu0 0.0
    %7429 = vmatpush1.msra.mxu0 0.0
    %7430 = vmatprep.subr.mxu0 0.0
    %7431 = vmatpush1.msra.mxu0 0.0
    %7432 = vmatprep.subr.mxu0 0.0
    %7433 = vmatpush1.msra.mxu0 0.0
    %7434 = vmatprep.subr.mxu0 0.0
    %7435 = vmatpush1.msra.mxu0 0.0
    %7436 = vmatprep.subr.mxu0 %v7199
    %7437 = vmatpush1.msra.mxu0 %v7198
    %7438 = vmatprep.subr.mxu0 %v7195
    %7439 = vmatpush1.msra.mxu0 %v7194
    %7440 = vmatprep.subr.mxu0 %v7191
    %7441 = vmatpush1.msra.mxu0 %v7190
    %7442 = vmatprep.subr.mxu0 %v7187
    %7443 = vmatpush1.msra.mxu0 %v7186
    %7444 = vmatprep.subr.mxu0 %v7183
    %7445 = vmatpush1.msra.mxu0 %v7182
    %7446 = vmatprep.subr.mxu0 %v7179
    %7447 = vmatpush1.msra.mxu0 %v7178
    %7448 = vmatprep.subr.mxu0 %v7175
    %7449 = vmatpush1.msra.mxu0 %v7174
    %7450 = vmatprep.subr.mxu0 %v7171
    %7451 = vmatpush1.msra.mxu0 %v7170
    %7452 = vmatprep.subr.mxu0 0.0
    %7453 = vmatpush2.msra.mxu0 0.0
    %7454 = vmatprep.subr.mxu0 0.0
    %7455 = vmatpush2.msra.mxu0 0.0
    %7456 = vmatprep.subr.mxu0 0.0
    %7457 = vmatpush2.msra.mxu0 0.0
    %7458 = vmatprep.subr.mxu0 0.0
    %7459 = vmatpush2.msra.mxu0 0.0
    %7460 = vmatprep.subr.mxu0 0.0
    %7461 = vmatpush2.msra.mxu0 0.0
    %7462 = vmatprep.subr.mxu0 0.0
    %7463 = vmatpush2.msra.mxu0 0.0
    %7464 = vmatprep.subr.mxu0 0.0
    %7465 = vmatpush2.msra.mxu0 0.0
    %7466 = vmatprep.subr.mxu0 0.0
    %7467 = vmatpush2.msra.mxu0 0.0
    %7468 = vmatprep.subr.mxu0 0.0
    %7469 = vmatpush2.msra.mxu0 0.0
    %7470 = vmatprep.subr.mxu0 0.0
    %7471 = vmatpush2.msra.mxu0 0.0
    %7472 = vmatprep.subr.mxu0 0.0
    %7473 = vmatpush2.msra.mxu0 0.0
    %7474 = vmatprep.subr.mxu0 0.0
    %7475 = vmatpush2.msra.mxu0 0.0
    %7476 = vmatprep.subr.mxu0 0.0
    %7477 = vmatpush2.msra.mxu0 0.0
    %7478 = vmatprep.subr.mxu0 0.0
    %7479 = vmatpush2.msra.mxu0 0.0
    %7480 = vmatprep.subr.mxu0 0.0
    %7481 = vmatpush2.msra.mxu0 0.0
    %7482 = vmatprep.subr.mxu0 0.0
    %7483 = vmatpush2.msra.mxu0 0.0
    %7484 = vmatprep.mubr.f32.mxu0 0.0
    %7485 = vmatmul.mubr.f32.gmra.mxu0 %v7201
    %v7486 = vpop.f32.mrf.mxu0
    %v7487 = vadd.f32 0.0, %v7486
    %v7488 = vpop.f32.mrf.mxu0
    %v7489 = vadd.f32 0.0, %v7488
    %7490 = vdwg.mxu0
    %v7491 = vadd.f32 %v7345, %v7416
    %v7492 = vadd.f32 %v7346, %v7418
    %v7493 = vadd.f32 %v7347, %v7487
    %v7494 = vadd.f32 %v7348, %v7489
    %v7495 = vsub.f32 0.0, %v7491
    %v7496 = vmul.f32 %v7495, 1.442695
    %v7497 = vpow.pop %v7496
    %v7498 = vadd.f32 %v7497, 1.0
    %v7499 = vrcp.pop %v7498
    %v7500 = vmul.f32 1.0, %v7499
    %v7501 = vsub.f32 0.0, %v7492
    %v7502 = vmul.f32 %v7501, 1.442695
    %v7503 = vpow.pop %v7502
    %v7504 = vadd.f32 %v7503, 1.0
    %v7505 = vrcp.pop %v7504
    %v7506 = vmul.f32 1.0, %v7505
    %v7507 = vtanh.pop %v7493
    %v7508 = vsub.f32 0.0, %v7494
    %v7509 = vmul.f32 %v7508, 1.442695
    %v7510 = vpow.pop %v7509
    %v7511 = vadd.f32 %v7510, 1.0
    %v7512 = vrcp.pop %v7511
    %v7513 = vmul.f32 1.0, %v7512
    %v7514 = vmul.f32 %v7506, 0.0
    %v7515 = vmul.f32 %v7500, %v7507
    %v7516 = vadd.f32 %v7514, %v7515
    %v7517 = vtanh.pop %v7516
    %v7518 = vmul.f32 %v7513, %v7517
    %v7519 = vadd.f32 %v5993, %v7518
    %v7521 = vsel %vm6009, %v7519, 0
    %v7524 = vsel %vm6009, %v6936, 0
    %7526 = vmatprep.subr.mxu0 0.0
    %7527 = vmatpush1.xpose.msra.mxu0 0.0
    %7528 = vmatprep.subr.mxu0 0.0
    %7529 = vmatpush1.xpose.msra.mxu0 0.0
    %7530 = vmatprep.subr.mxu0 0.0
    %7531 = vmatpush1.xpose.msra.mxu0 0.0
    %7532 = vmatprep.subr.mxu0 0.0
    %7533 = vmatpush1.xpose.msra.mxu0 0.0
    %7534 = vmatprep.subr.mxu0 0.0
    %7535 = vmatpush1.xpose.msra.mxu0 0.0
    %7536 = vmatprep.subr.mxu0 0.0
    %7537 = vmatpush1.xpose.msra.mxu0 0.0
    %7538 = vmatprep.subr.mxu0 0.0
    %7539 = vmatpush1.xpose.msra.mxu0 0.0
    %7540 = vmatprep.subr.mxu0 0.0
    %7541 = vmatpush1.xpose.msra.mxu0 0.0
    %7542 = vmatprep.subr.mxu0 0.0
    %7543 = vmatpush1.xpose.msra.mxu0 0.0
    %7544 = vmatprep.subr.mxu0 0.0
    %7545 = vmatpush1.xpose.msra.mxu0 0.0
    %7546 = vmatprep.subr.mxu0 0.0
    %7547 = vmatpush1.xpose.msra.mxu0 0.0
    %7548 = vmatprep.subr.mxu0 0.0
    %7549 = vmatpush1.xpose.msra.mxu0 0.0
    %7550 = vmatprep.subr.mxu0 0.0
    %7551 = vmatpush1.xpose.msra.mxu0 0.0
    %7552 = vmatprep.subr.mxu0 0.0
    %7553 = vmatpush1.xpose.msra.mxu0 0.0
    %7554 = vmatprep.subr.mxu0 0.0
    %7555 = vmatpush1.xpose.msra.mxu0 0.0
    %7556 = vmatprep.subr.mxu0 0.0
    %7557 = vmatpush1.xpose.msra.mxu0 %v7524
    %7558 = vmatprep.subr.mxu0 0.0
    %7559 = vmatpush2.xpose.msra.mxu0 0.0
    %7560 = vmatprep.subr.mxu0 0.0
    %7561 = vmatpush2.xpose.msra.mxu0 0.0
    %7562 = vmatprep.subr.mxu0 0.0
    %7563 = vmatpush2.xpose.msra.mxu0 0.0
    %7564 = vmatprep.subr.mxu0 0.0
    %7565 = vmatpush2.xpose.msra.mxu0 0.0
    %7566 = vmatprep.subr.mxu0 0.0
    %7567 = vmatpush2.xpose.msra.mxu0 0.0
    %7568 = vmatprep.subr.mxu0 0.0
    %7569 = vmatpush2.xpose.msra.mxu0 0.0
    %7570 = vmatprep.subr.mxu0 0.0
    %7571 = vmatpush2.xpose.msra.mxu0 0.0
    %7572 = vmatprep.subr.mxu0 0.0
    %7573 = vmatpush2.xpose.msra.mxu0 0.0
    %7574 = vmatprep.subr.mxu0 0.0
    %7575 = vmatpush2.xpose.msra.mxu0 0.0
    %7576 = vmatprep.subr.mxu0 0.0
    %7577 = vmatpush2.xpose.msra.mxu0 0.0
    %7578 = vmatprep.subr.mxu0 0.0
    %7579 = vmatpush2.xpose.msra.mxu0 0.0
    %7580 = vmatprep.subr.mxu0 0.0
    %7581 = vmatpush2.xpose.msra.mxu0 0.0
    %7582 = vmatprep.subr.mxu0 0.0
    %7583 = vmatpush2.xpose.msra.mxu0 0.0
    %7584 = vmatprep.subr.mxu0 0.0
    %7585 = vmatpush2.xpose.msra.mxu0 0.0
    %7586 = vmatprep.subr.mxu0 0.0
    %7587 = vmatpush2.xpose.msra.mxu0 0.0
    %7588 = vmatprep.subr.mxu0 0.0
    %7589 = vmatpush2.xpose.msra.mxu0 0.0
    %7590 = vmatprep.mubr.f32.mxu0 0.0
    %7591 = vmatmul.mubr.f32.gmra.mxu0 %v7521
    %v7592 = vpop.f32.mrf.mxu0
    %v7593 = vadd.f32 0.0, %v7592
    %v7594 = vpop.f32.mrf.mxu0
    %7595 = vdwg.mxu0
    %v7596 = vsel %vm6330, %v7593, -inf
    %7597 = vmax.xlane.f32.xlu0 %v7596
    %v7598 = vpop.xlane.xlu0 %7597
    %v7599 = vsub.f32 %v7593, %v7598
    %v7600 = vmul.f32 %v7599, 1.442695
    %v7601 = vpow.pop %v7600
    %v7602 = vsel %vm6330, %v7601, 0.0
    %7603 = vadd.xlane.f32.xlu0 %v7602
    %v7604 = vpop.xlane.xlu0 %7603
    %v7605 = vrcp.pop %v7604
    %v7606 = vmul.f32 %v7601, %v7605
    %v7608 = vsel %vm6342, %v7606, 0
    %v7610 = vsel %vm6346, %v6936, 0
    %7612 = vmatprep.subr.mxu0 0.0
    %7613 = vmatpush1.msra.mxu0 0.0
    %7614 = vmatprep.subr.mxu0 0.0
    %7615 = vmatpush1.msra.mxu0 0.0
    %7616 = vmatprep.subr.mxu0 0.0
    %7617 = vmatpush1.msra.mxu0 0.0
    %7618 = vmatprep.subr.mxu0 0.0
    %7619 = vmatpush1.msra.mxu0 0.0
    %7620 = vmatprep.subr.mxu0 0.0
    %7621 = vmatpush1.msra.mxu0 0.0
    %7622 = vmatprep.subr.mxu0 0.0
    %7623 = vmatpush1.msra.mxu0 0.0
    %7624 = vmatprep.subr.mxu0 0.0
    %7625 = vmatpush1.msra.mxu0 0.0
    %7626 = vmatprep.subr.mxu0 0.0
    %7627 = vmatpush1.msra.mxu0 0.0
    %7628 = vmatprep.subr.mxu0 0.0
    %7629 = vmatpush1.msra.mxu0 0.0
    %7630 = vmatprep.subr.mxu0 0.0
    %7631 = vmatpush1.msra.mxu0 0.0
    %7632 = vmatprep.subr.mxu0 0.0
    %7633 = vmatpush1.msra.mxu0 0.0
    %7634 = vmatprep.subr.mxu0 0.0
    %7635 = vmatpush1.msra.mxu0 0.0
    %7636 = vmatprep.subr.mxu0 0.0
    %7637 = vmatpush1.msra.mxu0 0.0
    %7638 = vmatprep.subr.mxu0 0.0
    %7639 = vmatpush1.msra.mxu0 0.0
    %7640 = vmatprep.subr.mxu0 0.0
    %7641 = vmatpush1.msra.mxu0 0.0
    %7642 = vmatprep.subr.mxu0 0.0
    %7643 = vmatpush1.msra.mxu0 %v7610
    %7644 = vmatprep.subr.mxu0 0.0
    %7645 = vmatpush2.msra.mxu0 0.0
    %7646 = vmatprep.subr.mxu0 0.0
    %7647 = vmatpush2.msra.mxu0 0.0
    %7648 = vmatprep.subr.mxu0 0.0
    %7649 = vmatpush2.msra.mxu0 0.0
    %7650 = vmatprep.subr.mxu0 0.0
    %7651 = vmatpush2.msra.mxu0 0.0
    %7652 = vmatprep.subr.mxu0 0.0
    %7653 = vmatpush2.msra.mxu0 0.0
    %7654 = vmatprep.subr.mxu0 0.0
    %7655 = vmatpush2.msra.mxu0 0.0
    %7656 = vmatprep.subr.mxu0 0.0
    %7657 = vmatpush2.msra.mxu0 0.0
    %7658 = vmatprep.subr.mxu0 0.0
    %7659 = vmatpush2.msra.mxu0 0.0
    %7660 = vmatprep.subr.mxu0 0.0
    %7661 = vmatpush2.msra.mxu0 0.0
    %7662 = vmatprep.subr.mxu0 0.0
    %7663 = vmatpush2.msra.mxu0 0.0
    %7664 = vmatprep.subr.mxu0 0.0
    %7665 = vmatpush2.msra.mxu0 0.0
    %7666 = vmatprep.subr.mxu0 0.0
    %7667 = vmatpush2.msra.mxu0 0.0
    %7668 = vmatprep.subr.mxu0 0.0
    %7669 = vmatpush2.msra.mxu0 0.0
    %7670 = vmatprep.subr.mxu0 0.0
    %7671 = vmatpush2.msra.mxu0 0.0
    %7672 = vmatprep.subr.mxu0 0.0
    %7673 = vmatpush2.msra.mxu0 0.0
    %7674 = vmatprep.subr.mxu0 0.0
    %7675 = vmatpush2.msra.mxu0 0.0
    %7676 = vmatprep.mubr.f32.mxu0 0.0
    %7677 = vmatmul.mubr.f32.gmra.mxu0 %v7608
    %v7678 = vpop.f32.mrf.mxu0
    %v7679 = vadd.f32 0.0, %v7678
    %v7680 = vpop.f32.mrf.mxu0
    %7681 = vdwg.mxu0
    %7682 = vmatprep.subr.mxu0 0.0
    %7683 = vmatpush1.msra.mxu0 0.0
    %7684 = vmatprep.subr.mxu0 0.0
    %7685 = vmatpush1.msra.mxu0 0.0
    %7686 = vmatprep.subr.mxu0 0.0
    %7687 = vmatpush1.msra.mxu0 0.0
    %7688 = vmatprep.subr.mxu0 0.0
    %7689 = vmatpush1.msra.mxu0 0.0
    %7690 = vmatprep.subr.mxu0 0.0
    %7691 = vmatpush1.msra.mxu0 0.0
    %7692 = vmatprep.subr.mxu0 0.0
    %7693 = vmatpush1.msra.mxu0 0.0
    %7694 = vmatprep.subr.mxu0 0.0
    %7695 = vmatpush1.msra.mxu0 0.0
    %7696 = vmatprep.subr.mxu0 0.0
    %7697 = vmatpush1.msra.mxu0 0.0
    %7698 = vmatprep.subr.mxu0 %v7165
    %7699 = vmatpush1.msra.mxu0 %v7164
    %7700 = vmatprep.subr.mxu0 %v7161
    %7701 = vmatpush1.msra.mxu0 %v7160
    %7702 = vmatprep.subr.mxu0 %v7157
    %7703 = vmatpush1.msra.mxu0 %v7156
    %7704 = vmatprep.subr.mxu0 %v7153
    %7705 = vmatpush1.msra.mxu0 %v7152
    %7706 = vmatprep.subr.mxu0 %v7149
    %7707 = vmatpush1.msra.mxu0 %v7148
    %7708 = vmatprep.subr.mxu0 %v7145
    %7709 = vmatpush1.msra.mxu0 %v7144
    %7710 = vmatprep.subr.mxu0 %v7141
    %7711 = vmatpush1.msra.mxu0 %v7140
    %7712 = vmatprep.subr.mxu0 %v7137
    %7713 = vmatpush1.msra.mxu0 %v7136
    %7714 = vmatprep.subr.mxu0 0.0
    %7715 = vmatpush2.msra.mxu0 0.0
    %7716 = vmatprep.subr.mxu0 0.0
    %7717 = vmatpush2.msra.mxu0 0.0
    %7718 = vmatprep.subr.mxu0 0.0
    %7719 = vmatpush2.msra.mxu0 0.0
    %7720 = vmatprep.subr.mxu0 0.0
    %7721 = vmatpush2.msra.mxu0 0.0
    %7722 = vmatprep.subr.mxu0 0.0
    %7723 = vmatpush2.msra.mxu0 0.0
    %7724 = vmatprep.subr.mxu0 0.0
    %7725 = vmatpush2.msra.mxu0 0.0
    %7726 = vmatprep.subr.mxu0 0.0
    %7727 = vmatpush2.msra.mxu0 0.0
    %7728 = vmatprep.subr.mxu0 0.0
    %7729 = vmatpush2.msra.mxu0 0.0
    %7730 = vmatprep.subr.mxu0 0.0
    %7731 = vmatpush2.msra.mxu0 0.0
    %7732 = vmatprep.subr.mxu0 0.0
    %7733 = vmatpush2.msra.mxu0 0.0
    %7734 = vmatprep.subr.mxu0 0.0
    %7735 = vmatpush2.msra.mxu0 0.0
    %7736 = vmatprep.subr.mxu0 0.0
    %7737 = vmatpush2.msra.mxu0 0.0
    %7738 = vmatprep.subr.mxu0 0.0
    %7739 = vmatpush2.msra.mxu0 0.0
    %7740 = vmatprep.subr.mxu0 0.0
    %7741 = vmatpush2.msra.mxu0 0.0
    %7742 = vmatprep.subr.mxu0 0.0
    %7743 = vmatpush2.msra.mxu0 0.0
    %7744 = vmatprep.subr.mxu0 0.0
    %7745 = vmatpush2.msra.mxu0 0.0
    %7746 = vmatprep.mubr.f32.mxu0 0.0
    %7747 = vmatmul.mubr.f32.gmra.mxu0 %v7521
    %v7748 = vpop.f32.mrf.mxu0
    %v7749 = vadd.f32 0.0, %v7748
    %v7750 = vpop.f32.mrf.mxu0
    %v7751 = vadd.f32 0.0, %v7750
    %7752 = vdwg.mxu0
    %7753 = vmatprep.subr.mxu0 0.0
    %7754 = vmatpush1.msra.mxu0 0.0
    %7755 = vmatprep.subr.mxu0 0.0
    %7756 = vmatpush1.msra.mxu0 0.0
    %7757 = vmatprep.subr.mxu0 0.0
    %7758 = vmatpush1.msra.mxu0 0.0
    %7759 = vmatprep.subr.mxu0 0.0
    %7760 = vmatpush1.msra.mxu0 0.0
    %7761 = vmatprep.subr.mxu0 0.0
    %7762 = vmatpush1.msra.mxu0 0.0
    %7763 = vmatprep.subr.mxu0 0.0
    %7764 = vmatpush1.msra.mxu0 0.0
    %7765 = vmatprep.subr.mxu0 0.0
    %7766 = vmatpush1.msra.mxu0 0.0
    %7767 = vmatprep.subr.mxu0 0.0
    %7768 = vmatpush1.msra.mxu0 0.0
    %7769 = vmatprep.subr.mxu0 %v7167
    %7770 = vmatpush1.msra.mxu0 %v7166
    %7771 = vmatprep.subr.mxu0 %v7163
    %7772 = vmatpush1.msra.mxu0 %v7162
    %7773 = vmatprep.subr.mxu0 %v7159
    %7774 = vmatpush1.msra.mxu0 %v7158
    %7775 = vmatprep.subr.mxu0 %v7155
    %7776 = vmatpush1.msra.mxu0 %v7154
    %7777 = vmatprep.subr.mxu0 %v7151
    %7778 = vmatpush1.msra.mxu0 %v7150
    %7779 = vmatprep.subr.mxu0 %v7147
    %7780 = vmatpush1.msra.mxu0 %v7146
    %7781 = vmatprep.subr.mxu0 %v7143
    %7782 = vmatpush1.msra.mxu0 %v7142
    %7783 = vmatprep.subr.mxu0 %v7139
    %7784 = vmatpush1.msra.mxu0 %v7138
    %7785 = vmatprep.subr.mxu0 0.0
    %7786 = vmatpush2.msra.mxu0 0.0
    %7787 = vmatprep.subr.mxu0 0.0
    %7788 = vmatpush2.msra.mxu0 0.0
    %7789 = vmatprep.subr.mxu0 0.0
    %7790 = vmatpush2.msra.mxu0 0.0
    %7791 = vmatprep.subr.mxu0 0.0
    %7792 = vmatpush2.msra.mxu0 0.0
    %7793 = vmatprep.subr.mxu0 0.0
    %7794 = vmatpush2.msra.mxu0 0.0
    %7795 = vmatprep.subr.mxu0 0.0
    %7796 = vmatpush2.msra.mxu0 0.0
    %7797 = vmatprep.subr.mxu0 0.0
    %7798 = vmatpush2.msra.mxu0 0.0
    %7799 = vmatprep.subr.mxu0 0.0
    %7800 = vmatpush2.msra.mxu0 0.0
    %7801 = vmatprep.subr.mxu0 0.0
    %7802 = vmatpush2.msra.mxu0 0.0
    %7803 = vmatprep.subr.mxu0 0.0
    %7804 = vmatpush2.msra.mxu0 0.0
    %7805 = vmatprep.subr.mxu0 0.0
    %7806 = vmatpush2.msra.mxu0 0.0
    %7807 = vmatprep.subr.mxu0 0.0
    %7808 = vmatpush2.msra.mxu0 0.0
    %7809 = vmatprep.subr.mxu0 0.0
    %7810 = vmatpush2.msra.mxu0 0.0
    %7811 = vmatprep.subr.mxu0 0.0
    %7812 = vmatpush2.msra.mxu0 0.0
    %7813 = vmatprep.subr.mxu0 0.0
    %7814 = vmatpush2.msra.mxu0 0.0
    %7815 = vmatprep.subr.mxu0 0.0
    %7816 = vmatpush2.msra.mxu0 0.0
    %7817 = vmatprep.mubr.f32.mxu0 0.0
    %7818 = vmatmul.mubr.f32.gmra.mxu0 %v7521
    %v7819 = vpop.f32.mrf.mxu0
    %v7820 = vadd.f32 0.0, %v7819
    %v7821 = vpop.f32.mrf.mxu0
    %v7822 = vadd.f32 0.0, %v7821
    %7823 = vdwg.mxu0
    %v7824 = vadd.f32 %v7061, %v7749
    %v7825 = vadd.f32 %v7063, %v7751
    %v7826 = vadd.f32 %v7132, %v7820
    %v7827 = vadd.f32 %v7134, %v7822
    %v7829 = vsel %vm6009, %v7679, 0
    %7831 = vmatprep.subr.mxu0 0.0
    %7832 = vmatpush1.msra.mxu0 0.0
    %7833 = vmatprep.subr.mxu0 0.0
    %7834 = vmatpush1.msra.mxu0 0.0
    %7835 = vmatprep.subr.mxu0 0.0
    %7836 = vmatpush1.msra.mxu0 0.0
    %7837 = vmatprep.subr.mxu0 0.0
    %7838 = vmatpush1.msra.mxu0 0.0
    %7839 = vmatprep.subr.mxu0 0.0
    %7840 = vmatpush1.msra.mxu0 0.0
    %7841 = vmatprep.subr.mxu0 0.0
    %7842 = vmatpush1.msra.mxu0 0.0
    %7843 = vmatprep.subr.mxu0 0.0
    %7844 = vmatpush1.msra.mxu0 0.0
    %7845 = vmatprep.subr.mxu0 0.0
    %7846 = vmatpush1.msra.mxu0 0.0
    %7847 = vmatprep.subr.mxu0 %v7197
    %7848 = vmatpush1.msra.mxu0 %v7196
    %7849 = vmatprep.subr.mxu0 %v7193
    %7850 = vmatpush1.msra.mxu0 %v7192
    %7851 = vmatprep.subr.mxu0 %v7189
    %7852 = vmatpush1.msra.mxu0 %v7188
    %7853 = vmatprep.subr.mxu0 %v7185
    %7854 = vmatpush1.msra.mxu0 %v7184
    %7855 = vmatprep.subr.mxu0 %v7181
    %7856 = vmatpush1.msra.mxu0 %v7180
    %7857 = vmatprep.subr.mxu0 %v7177
    %7858 = vmatpush1.msra.mxu0 %v7176
    %7859 = vmatprep.subr.mxu0 %v7173
    %7860 = vmatpush1.msra.mxu0 %v7172
    %7861 = vmatprep.subr.mxu0 %v7169
    %7862 = vmatpush1.msra.mxu0 %v7168
    %7863 = vmatprep.subr.mxu0 0.0
    %7864 = vmatpush2.msra.mxu0 0.0
    %7865 = vmatprep.subr.mxu0 0.0
    %7866 = vmatpush2.msra.mxu0 0.0
    %7867 = vmatprep.subr.mxu0 0.0
    %7868 = vmatpush2.msra.mxu0 0.0
    %7869 = vmatprep.subr.mxu0 0.0
    %7870 = vmatpush2.msra.mxu0 0.0
    %7871 = vmatprep.subr.mxu0 0.0
    %7872 = vmatpush2.msra.mxu0 0.0
    %7873 = vmatprep.subr.mxu0 0.0
    %7874 = vmatpush2.msra.mxu0 0.0
    %7875 = vmatprep.subr.mxu0 0.0
    %7876 = vmatpush2.msra.mxu0 0.0
    %7877 = vmatprep.subr.mxu0 0.0
    %7878 = vmatpush2.msra.mxu0 0.0
    %7879 = vmatprep.subr.mxu0 0.0
    %7880 = vmatpush2.msra.mxu0 0.0
    %7881 = vmatprep.subr.mxu0 0.0
    %7882 = vmatpush2.msra.mxu0 0.0
    %7883 = vmatprep.subr.mxu0 0.0
    %7884 = vmatpush2.msra.mxu0 0.0
    %7885 = vmatprep.subr.mxu0 0.0
    %7886 = vmatpush2.msra.mxu0 0.0
    %7887 = vmatprep.subr.mxu0 0.0
    %7888 = vmatpush2.msra.mxu0 0.0
    %7889 = vmatprep.subr.mxu0 0.0
    %7890 = vmatpush2.msra.mxu0 0.0
    %7891 = vmatprep.subr.mxu0 0.0
    %7892 = vmatpush2.msra.mxu0 0.0
    %7893 = vmatprep.subr.mxu0 0.0
    %7894 = vmatpush2.msra.mxu0 0.0
    %7895 = vmatprep.mubr.f32.mxu0 0.0
    %7896 = vmatmul.mubr.f32.gmra.mxu0 %v7829
    %v7897 = vpop.f32.mrf.mxu0
    %v7898 = vadd.f32 0.0, %v7897
    %v7899 = vpop.f32.mrf.mxu0
    %v7900 = vadd.f32 0.0, %v7899
    %7901 = vdwg.mxu0
    %7902 = vmatprep.subr.mxu0 0.0
    %7903 = vmatpush1.msra.mxu0 0.0
    %7904 = vmatprep.subr.mxu0 0.0
    %7905 = vmatpush1.msra.mxu0 0.0
    %7906 = vmatprep.subr.mxu0 0.0
    %7907 = vmatpush1.msra.mxu0 0.0
    %7908 = vmatprep.subr.mxu0 0.0
    %7909 = vmatpush1.msra.mxu0 0.0
    %7910 = vmatprep.subr.mxu0 0.0
    %7911 = vmatpush1.msra.mxu0 0.0
    %7912 = vmatprep.subr.mxu0 0.0
    %7913 = vmatpush1.msra.mxu0 0.0
    %7914 = vmatprep.subr.mxu0 0.0
    %7915 = vmatpush1.msra.mxu0 0.0
    %7916 = vmatprep.subr.mxu0 0.0
    %7917 = vmatpush1.msra.mxu0 0.0
    %7918 = vmatprep.subr.mxu0 %v7199
    %7919 = vmatpush1.msra.mxu0 %v7198
    %7920 = vmatprep.subr.mxu0 %v7195
    %7921 = vmatpush1.msra.mxu0 %v7194
    %7922 = vmatprep.subr.mxu0 %v7191
    %7923 = vmatpush1.msra.mxu0 %v7190
    %7924 = vmatprep.subr.mxu0 %v7187
    %7925 = vmatpush1.msra.mxu0 %v7186
    %7926 = vmatprep.subr.mxu0 %v7183
    %7927 = vmatpush1.msra.mxu0 %v7182
    %7928 = vmatprep.subr.mxu0 %v7179
    %7929 = vmatpush1.msra.mxu0 %v7178
    %7930 = vmatprep.subr.mxu0 %v7175
    %7931 = vmatpush1.msra.mxu0 %v7174
    %7932 = vmatprep.subr.mxu0 %v7171
    %7933 = vmatpush1.msra.mxu0 %v7170
    %7934 = vmatprep.subr.mxu0 0.0
    %7935 = vmatpush2.msra.mxu0 0.0
    %7936 = vmatprep.subr.mxu0 0.0
    %7937 = vmatpush2.msra.mxu0 0.0
    %7938 = vmatprep.subr.mxu0 0.0
    %7939 = vmatpush2.msra.mxu0 0.0
    %7940 = vmatprep.subr.mxu0 0.0
    %7941 = vmatpush2.msra.mxu0 0.0
    %7942 = vmatprep.subr.mxu0 0.0
    %7943 = vmatpush2.msra.mxu0 0.0
    %7944 = vmatprep.subr.mxu0 0.0
    %7945 = vmatpush2.msra.mxu0 0.0
    %7946 = vmatprep.subr.mxu0 0.0
    %7947 = vmatpush2.msra.mxu0 0.0
    %7948 = vmatprep.subr.mxu0 0.0
    %7949 = vmatpush2.msra.mxu0 0.0
    %7950 = vmatprep.subr.mxu0 0.0
    %7951 = vmatpush2.msra.mxu0 0.0
    %7952 = vmatprep.subr.mxu0 0.0
    %7953 = vmatpush2.msra.mxu0 0.0
    %7954 = vmatprep.subr.mxu0 0.0
    %7955 = vmatpush2.msra.mxu0 0.0
    %7956 = vmatprep.subr.mxu0 0.0
    %7957 = vmatpush2.msra.mxu0 0.0
    %7958 = vmatprep.subr.mxu0 0.0
    %7959 = vmatpush2.msra.mxu0 0.0
    %7960 = vmatprep.subr.mxu0 0.0
    %7961 = vmatpush2.msra.mxu0 0.0
    %7962 = vmatprep.subr.mxu0 0.0
    %7963 = vmatpush2.msra.mxu0 0.0
    %7964 = vmatprep.subr.mxu0 0.0
    %7965 = vmatpush2.msra.mxu0 0.0
    %7966 = vmatprep.mubr.f32.mxu0 0.0
    %7967 = vmatmul.mubr.f32.gmra.mxu0 %v7829
    %v7968 = vpop.f32.mrf.mxu0
    %v7969 = vadd.f32 0.0, %v7968
    %v7970 = vpop.f32.mrf.mxu0
    %v7971 = vadd.f32 0.0, %v7970
    %7972 = vdwg.mxu0
    %v7973 = vadd.f32 %v7824, %v7898
    %v7974 = vadd.f32 %v7825, %v7900
    %v7975 = vadd.f32 %v7826, %v7969
    %v7976 = vadd.f32 %v7827, %v7971
    %v7977 = vsub.f32 0.0, %v7973
    %v7978 = vmul.f32 %v7977, 1.442695
    %v7979 = vpow.pop %v7978
    %v7980 = vadd.f32 %v7979, 1.0
    %v7981 = vrcp.pop %v7980
    %v7982 = vmul.f32 1.0, %v7981
    %v7983 = vsub.f32 0.0, %v7974
    %v7984 = vmul.f32 %v7983, 1.442695
    %v7985 = vpow.pop %v7984
    %v7986 = vadd.f32 %v7985, 1.0
    %v7987 = vrcp.pop %v7986
    %v7988 = vmul.f32 1.0, %v7987
    %v7989 = vtanh.pop %v7975
    %v7990 = vsub.f32 0.0, %v7976
    %v7991 = vmul.f32 %v7990, 1.442695
    %v7992 = vpow.pop %v7991
    %v7993 = vadd.f32 %v7992, 1.0
    %v7994 = vrcp.pop %v7993
    %v7995 = vmul.f32 1.0, %v7994
    %v7996 = vmul.f32 %v7988, %v7516
    %v7997 = vmul.f32 %v7982, %v7989
    %v7998 = vadd.f32 %v7996, %v7997
    %v7999 = vtanh.pop %v7998
    %v8000 = vmul.f32 %v7995, %v7999
    %v8001 = vadd.f32 %v5993, %v8000
    %vm8002 = vcmask 519168
    %v8003 = vsel %vm8002, %v6936, 0.0
    %v8004 = vrot.slane %v8003, 4
    %v8005 = vadd.f32 %v8003, %v8004
    %v8006 = vrot.slane %v8005, 2
    %v8007 = vadd.f32 %v8005, %v8006
    %v8008 = vrot.slane %v8007, 1
    %v8009 = vadd.f32 %v8007, %v8008
    %v8010 = vrcp.pop 4.0
    %v8011 = vmul.f32 %v8009, %v8010
    %v8012 = vmul.f32 %v8001, %v8011
    %v8013 = vsel %vm8002, %v8012, 0.0
    %8014 = vadd.xlane.f32.xlu0 %v8013
    %v8015 = vpop.xlane.xlu0 %8014
    %vm8016 = vcmask 3072
    %8017 = vst.msk [vmem:[%s23] sm:$0xf] %vm8016, %v8015
    // Predicated region
    $region146: #{matcher_forward.1} parent=1 // pred_check
      _
    $region147: #{matcher_forward.1} parent=1 // pred_check_branch
      %8019 = sbr.rel (0) target = $region149
    $region148: #{matcher_forward.1} parent=1 // pred_region
      _
    $region149: #{matcher_forward.1} parent=1 // pred_fallthru
      _
    // Predicated region
    $region150: #{matcher_forward.1} parent=1 // pred_check
      _
    $region151: #{matcher_forward.1} parent=1 // pred_check_branch
      %8021 = sbr.rel (0) target = $region153
    $region152: #{matcher_forward.1} parent=1 // pred_region
      _
    $region153: #{matcher_forward.1} parent=1 // pred_fallthru
      _
    %8022 = vsyncpa [#allocation4], 1
    %8023 = vsyncpa [#allocation6], 1
    %8024 = vsyncpa [#allocation9], 1
    %8025 = vsyncpa [#allocation12], 1
    %8026 = vsyncpa [#allocation15], 1
    %8027 = vsyncpa [#allocation18], 1
    %8028 = vsyncpa [#allocation21], 1

</llo_original>
